<compile_context>
chip_gen: v5e
topology: v5e:2x2
jax: 0.10.0
libtpu: 0.0.40
codegen_flags: <defaults>
</compile_context>

<pallas_src>
import functools

import jax
import jax.numpy as jnp
from jax import lax
from jax.experimental import pallas as pl
from jax.experimental.pallas import tpu as pltpu

_SMEM = pl.BlockSpec(memory_space=pltpu.MemorySpace.SMEM)


# --------------------------------------------------------------------------
# Tiling helper
# --------------------------------------------------------------------------
def _pick_rows(h, w, n_bufs, budget_bytes=12 * 1024 * 1024, pref=512):
    """Largest row tile (multiple of 8, divisor of h, <= pref) keeping
    n_bufs double-buffered (tile, w) f32 buffers under budget_bytes."""
    per_row = max(1, n_bufs * 2 * w * 4)
    t = min(pref, max(8, budget_bytes // per_row))
    t = max(8, (t // 8) * 8)
    if h <= t or h % 8 != 0:
        return h
    while h % t:
        t -= 8
    return max(t, 8)


# --------------------------------------------------------------------------
# In-kernel counter-based hash RNG (pure jnp -> portable, tile aware)
# --------------------------------------------------------------------------
def _u32(v):
    return jnp.uint32(v & 0xFFFFFFFF)


def _hash_uniform(shape, seed_i32, salt, row_off):
    """Uniform [0,1) per element, deterministic in (global row, col, seed)."""
    r = (lax.broadcasted_iota(jnp.int32, shape, 0) + row_off).astype(jnp.uint32)
    c = lax.broadcasted_iota(jnp.int32, shape, 1).astype(jnp.uint32)
    s = seed_i32.astype(jnp.uint32)
    x = (r * _u32(0x9E3779B1) + c * _u32(0x85EBCA77)
         + s * _u32(0x27D4EB2F) + _u32(salt * 0x9E3779B9 + 0x165667B1))
    x = x ^ (x >> 16)
    x = x * _u32(0x7FEB352D)
    x = x ^ (x >> 15)
    x = x * _u32(0x846CA68B)
    x = x ^ (x >> 16)
    mant = (x & _u32(0x7FFFFF)).astype(jnp.int32)
    return mant.astype(jnp.float32) * jnp.float32(1.0 / 8388608.0)


def _hash_normal(shape, seed_i32, salt, row_off):
    """Standard normal via Box-Muller on two hashed uniforms."""
    u1 = _hash_uniform(shape, seed_i32, salt, row_off)
    u2 = _hash_uniform(shape, seed_i32, salt + 7919, row_off)
    rad = jnp.sqrt(-2.0 * jnp.log(jnp.maximum(1.0 - u1, 1e-12)))
    return rad * jnp.cos(u2 * (2.0 * jnp.pi))


def _rayleigh(shape, seed_i32, salt, row_off, scale):
    u = _hash_uniform(shape, seed_i32, salt, row_off)
    return scale * jnp.sqrt(-2.0 * jnp.log(jnp.maximum(1.0 - u, 1e-12)))


# --------------------------------------------------------------------------
# Max-pool 2x2 (4-input max kernel; de-interleave done by XLA strided slices)
# --------------------------------------------------------------------------
def _max4_kernel(a_ref, b_ref, c_ref, d_ref, o_ref):
    o_ref[...] = jnp.maximum(jnp.maximum(a_ref[...], b_ref[...]),
                             jnp.maximum(c_ref[...], d_ref[...]))


def pool_max2(img):
    img = img.astype(jnp.float32)
    a = img[0::2, 0::2]
    b = img[0::2, 1::2]
    c = img[1::2, 0::2]
    d = img[1::2, 1::2]
    h, w = a.shape
    t = _pick_rows(h, w, n_bufs=5)
    spec = pl.BlockSpec((t, w), lambda i: (i, 0))
    return pl.pallas_call(
        _max4_kernel,
        out_shape=jax.ShapeDtypeStruct((h, w), jnp.float32),
        grid=(h // t,),
        in_specs=[spec, spec, spec, spec],
        out_specs=spec,
        compiler_params=pltpu.CompilerParams(dimension_semantics=("parallel",)),
    )(a, b, c, d)


# --------------------------------------------------------------------------
# 16x16 block mean as an MXU matmul reduction
# --------------------------------------------------------------------------
def _block_mean_kernel(at_ref, x_ref, b_ref, o_ref):
    i = pl.program_id(0)
    part = lax.dot_general(
        at_ref[...], x_ref[...],
        dimension_numbers=(((0,), (0,)), ((), ())),
        preferred_element_type=jnp.float32,
    )                                                     # (H/16, W)
    part = jnp.dot(part, b_ref[...], preferred_element_type=jnp.float32)

    @pl.when(i == 0)
    def _():
        o_ref[...] = part

    @pl.when(i > 0)
    def _():
        o_ref[...] = o_ref[...] + part


def _block_indicator(n, blk=16):
    return jax.nn.one_hot(jnp.arange(n) // blk, n // blk,
                          dtype=jnp.float32) / float(blk)


def block_mean16(x):
    x = x.astype(jnp.float32)
    h, w = x.shape
    hb, wb = h // 16, w // 16
    at = _block_indicator(h)      # (h, hb) rows carry 1/16
    bm = _block_indicator(w)      # (w, wb)
    t = _pick_rows(h, w, n_bufs=3)
    return pl.pallas_call(
        _block_mean_kernel,
        out_shape=jax.ShapeDtypeStruct((hb, wb), jnp.float32),
        grid=(h // t,),
        in_specs=[pl.BlockSpec((t, hb), lambda i: (i, 0)),
                  pl.BlockSpec((t, w), lambda i: (i, 0)),
                  pl.BlockSpec((w, wb), lambda i: (0, 0))],
        out_specs=pl.BlockSpec((hb, wb), lambda i: (0, 0)),
        compiler_params=pltpu.CompilerParams(dimension_semantics=("arbitrary",)),
    )(at, x, bm)


def _bilinear_matrix(n_out, n_in):
    """Half-pixel-center bilinear weights (n_out, n_in), edge replicate."""
    scale = n_in / n_out
    src = (jnp.arange(n_out, dtype=jnp.float32) + 0.5) * scale - 0.5
    src = jnp.clip(src, 0.0, float(n_in - 1))
    i0f = jnp.floor(src)
    frac = src - i0f
    i0 = i0f.astype(jnp.int32)
    i1 = jnp.minimum(i0 + 1, n_in - 1)
    w0 = jax.nn.one_hot(i0, n_in, dtype=jnp.float32) * (1.0 - frac)[:, None]
    w1 = jax.nn.one_hot(i1, n_in, dtype=jnp.float32) * frac[:, None]
    return w0 + w1


# --------------------------------------------------------------------------
# gray_correction kernels
# --------------------------------------------------------------------------
def _gc_noise_kernel(seed_ref, gmax_ref, img_ref, out_ref, *, tile_rows):
    # img1 = clip(img + (U[0,1)*0.5 - 1.0), 0, global_max(img))
    x = img_ref[...]
    u = _hash_uniform(x.shape, seed_ref[0], 3, pl.program_id(0) * tile_rows)
    out_ref[...] = jnp.clip(x + (u * 0.5 - 1.0), 0.0, gmax_ref[0])


def _gc_map_kernel(par_ref, img_ref, out_ref):
    # params: [min_diff, lg, hg, 1/(hg-lg), (hg_r-lg_r), r_gamma]
    md = par_ref[0]
    lg = par_ref[1]
    hg = par_ref[2]
    inv_rng = par_ref[3]
    scale = par_ref[4]
    gam = par_ref[5]
    x = img_ref[...] - md
    lin = (x - lg) * inv_rng * scale + lg
    base = jnp.maximum(x - lg, 0.0) * inv_rng
    gma = jnp.exp(gam * jnp.log(jnp.maximum(base, 1e-30))) * scale + lg
    out_ref[...] = jnp.where(x <= lg, x, jnp.where(x > hg, lin, gma))


def gray_correction(img, refer, seed, gmax):
    h, w = img.shape
    img = img.astype(jnp.float32)
    t = _pick_rows(h, w, n_bufs=2)
    spec = pl.BlockSpec((t, w), lambda i: (i, 0))
    img1 = pl.pallas_call(
        functools.partial(_gc_noise_kernel, tile_rows=t),
        out_shape=jax.ShapeDtypeStruct((h, w), jnp.float32),
        grid=(h // t,),
        in_specs=[_SMEM, _SMEM, spec],
        out_specs=spec,
        compiler_params=pltpu.CompilerParams(dimension_semantics=("parallel",)),
    )(jnp.array([seed], jnp.int32), gmax.reshape(1).astype(jnp.float32), img)

    # TODO(synk): exact-percentile order statistics via jnp.sort (no Pallas sort).
    s1 = jnp.sort(img1.reshape(-1))
    n = int(s1.shape[0])
    min_diff = jnp.maximum(s1[0] - 10.0, 0.0)
    lg = jnp.mean(s1[: int(n * 0.01)]) - min_diff
    mg = s1[int(n * 0.5)] - min_diff
    hg = jnp.mean(s1[int(n * 0.99):]) - min_diff

    sr = jnp.sort(refer.astype(jnp.float32).reshape(-1))
    lg_r = jnp.mean(sr[: int(n * 0.01)])
    mg_r = sr[int(n * 0.5)]
    hg_r = jnp.mean(sr[int(n * 0.99):])

    r_gamma = jnp.log((mg_r - lg_r) / (hg_r - lg_r)) / jnp.log((mg - lg) / (hg - lg))
    params = jnp.stack(
        [min_diff, lg, hg, 1.0 / (hg - lg), hg_r - lg_r, r_gamma]
    ).astype(jnp.float32)

    return pl.pallas_call(
        _gc_map_kernel,
        out_shape=jax.ShapeDtypeStruct((h, w), jnp.float32),
        grid=(h // t,),
        in_specs=[_SMEM, spec],
        out_specs=spec,
        compiler_params=pltpu.CompilerParams(dimension_semantics=("parallel",)),
    )(params, img1)


# --------------------------------------------------------------------------
# upsample kernels
# --------------------------------------------------------------------------
def _upsample_half_kernel(seed_ref, img_d_ref, up_ref, out_ref,
                          *, std_multi, std_gauss, tile_rows):
    # fus=False path: only (de + img_d)/2 is consumed (ratio/stats are dead).
    row_off = pl.program_id(0) * tile_rows
    x = img_d_ref[...]
    de = (_rayleigh(x.shape, seed_ref[0], 11, row_off, std_multi) + 1.0) * up_ref[...]
    if std_gauss != 0.0:
        de = de + std_gauss * _hash_normal(x.shape, seed_ref[0], 13, row_off)
    out_ref[...] = (de + x) * 0.5


def _upsample_fuse_kernel(seed_ref, stat_ref, img_d_ref, up_ref, refer_ref,
                          rmq_ref, ur_ref, uc_ref, fused_ref, fmax_ref,
                          *, std_multi, std_gauss, tile_rows):
    # Fused: rayleigh/gauss noise + ratio + bilinear-up of block mean (MXU)
    # + fusion, with a running global max carried across row tiles.
    i = pl.program_id(0)
    row_off = i * tile_rows
    seed = seed_ref[0]
    x = img_d_ref[...]

    de = (_rayleigh(x.shape, seed, 21, row_off, std_multi) + 1.0) * up_ref[...]
    if std_gauss != 0.0:
        de = de + std_gauss * _hash_normal(x.shape, seed, 33, row_off)

    mid = stat_ref[0]
    mn = stat_ref[1]
    mx = stat_ref[2]
    ratio = jnp.where(x < mid, (x - mn) / (mid - mn), (mx - x) / (mx - mid))

    rm_row = jnp.dot(ur_ref[...], rmq_ref[...], preferred_element_type=jnp.float32)
    rm_up = jnp.dot(rm_row, uc_ref[...], preferred_element_type=jnp.float32)

    fused = de + (refer_ref[...] - rm_up) * ratio
    fused_ref[...] = fused

    tmax = jnp.max(fused, axis=(0, 1), keepdims=True)

    @pl.when(i == 0)
    def _():
        fmax_ref[...] = tmax

    @pl.when(i > 0)
    def _():
        fmax_ref[...] = jnp.maximum(fmax_ref[...], tmax)


def _clip_avg_kernel(fmax_ref, fused_ref, img_d_ref, out_ref):
    out_ref[...] = (jnp.clip(fused_ref[...], 0.0, fmax_ref[0]) + img_d_ref[...]) * 0.5


def upsample(img_d, img_small, seed, std_gauss, std_multi, refer=None, fus=False):
    h, w = img_d.shape
    img_d = img_d.astype(jnp.float32)
    # TODO(synk): nearest 2x repeat kept in glue (pure data movement).
    img_up = jnp.repeat(jnp.repeat(img_small.astype(jnp.float32), 2, axis=0), 2, axis=1)
    seed_arr = jnp.array([seed], jnp.int32)

    if not fus:
        t = _pick_rows(h, w, n_bufs=3)
        spec = pl.BlockSpec((t, w), lambda i: (i, 0))
        return pl.pallas_call(
            functools.partial(_upsample_half_kernel, std_multi=float(std_multi),
                              std_gauss=float(std_gauss), tile_rows=t),
            out_shape=jax.ShapeDtypeStruct((h, w), jnp.float32),
            grid=(h // t,),
            in_specs=[_SMEM, spec, spec],
            out_specs=spec,
            compiler_params=pltpu.CompilerParams(dimension_semantics=("parallel",)),
        )(seed_arr, img_d, img_up)

    refer = refer.astype(jnp.float32)

    # ratio stats (mid / min / max of img_d) from one sort
    s = jnp.sort(img_d.reshape(-1))
    n = int(s.shape[0])
    stats = jnp.stack([s[int(n * 0.5)], s[0], s[-1]]).astype(jnp.float32)

    hb, wb = h // 16, w // 16
    refer_m = block_mean16(refer)
    # TODO(synk): cv2.resize(uint8, INTER_LINEAR) emulated with floor/clip +
    # half-pixel bilinear weight matrices applied on the MXU inside the kernel.
    refer_m_q = jnp.floor(jnp.clip(refer_m, 0.0, 255.0))
    ur = _bilinear_matrix(h, hb)            # (h, hb)
    uc = _bilinear_matrix(w, wb).T          # (wb, w)

    tf = _pick_rows(h, w, n_bufs=5)
    spec_f = pl.BlockSpec((tf, w), lambda i: (i, 0))
    fused, fmax = pl.pallas_call(
        functools.partial(_upsample_fuse_kernel, std_multi=float(std_multi),
                          std_gauss=float(std_gauss), tile_rows=tf),
        out_shape=(jax.ShapeDtypeStruct((h, w), jnp.float32),
                   jax.ShapeDtypeStruct((1, 1), jnp.float32)),
        grid=(h // tf,),
        in_specs=[_SMEM, _SMEM, spec_f, spec_f, spec_f,
                  pl.BlockSpec((hb, wb), lambda i: (0, 0)),
                  pl.BlockSpec((tf, hb), lambda i: (i, 0)),
                  pl.BlockSpec((wb, w), lambda i: (0, 0))],
        out_specs=(spec_f, pl.BlockSpec((1, 1), lambda i: (0, 0))),
        compiler_params=pltpu.CompilerParams(dimension_semantics=("arbitrary",)),
    )(seed_arr, stats, img_d, img_up, refer, refer_m_q, ur, uc)

    tc = _pick_rows(h, w, n_bufs=3)
    spec_c = pl.BlockSpec((tc, w), lambda i: (i, 0))
    return pl.pallas_call(
        _clip_avg_kernel,
        out_shape=jax.ShapeDtypeStruct((h, w), jnp.float32),
        grid=(h // tc,),
        in_specs=[_SMEM, spec_c, spec_c],
        out_specs=spec_c,
        compiler_params=pltpu.CompilerParams(dimension_semantics=("parallel",)),
    )(fmax.reshape((1,)), fused, img_d)


# --------------------------------------------------------------------------
# "refer is None" branch: img + N(0, scale_gauss)
# --------------------------------------------------------------------------
def _gauss_add_kernel(seed_ref, img_ref, out_ref, *, scale, tile_rows):
    x = img_ref[...]
    g = _hash_normal(x.shape, seed_ref[0], 101, pl.program_id(0) * tile_rows)
    out_ref[...] = x + scale * g


# --------------------------------------------------------------------------
# Full forward
# --------------------------------------------------------------------------
def rs2sss_forward(img, refer=None, scale_mul=(0.05, 0.05, 0.1),
                   scale_gauss=20.0, base_seed=0):
    # TODO(synk): numpy RNG streams are not bit-reproducible; the same
    # distributions are drawn with a deterministic in-kernel hash PRNG.
    img = img.astype(jnp.float32)
    h, w = img.shape

    if refer is None:
        t = _pick_rows(h, w, n_bufs=2)
        spec = pl.BlockSpec((t, w), lambda i: (i, 0))
        return pl.pallas_call(
            functools.partial(_gauss_add_kernel, scale=float(scale_gauss), tile_rows=t),
            out_shape=jax.ShapeDtypeStruct((h, w), jnp.float32),
            grid=(h // t,),
            in_specs=[_SMEM, spec],
            out_specs=spec,
            compiler_params=pltpu.CompilerParams(dimension_semantics=("parallel",)),
        )(jnp.array([base_seed], jnp.int32), img)

    refer = refer.astype(jnp.float32)

    img_d2 = pool_max2(img)
    img_d4 = pool_max2(img_d2)
    img_d8 = pool_max2(img_d4)
    refer_d2 = pool_max2(refer)
    refer_d4 = pool_max2(refer_d2)
    refer_d8 = pool_max2(refer_d4)

    # max-pooling preserves the global max -> one tiny reduction serves all levels
    gmax = jnp.max(img_d8)

    img_c = gray_correction(img, refer, base_seed + 1, gmax)
    img2_c = gray_correction(img_d2, refer_d2, base_seed + 2, gmax)
    img4_c = gray_correction(img_d4, refer_d4, base_seed + 3, gmax)
    img8_c = gray_correction(img_d8, refer_d8, base_seed + 4, gmax)

    img_up4 = upsample(img4_c, img8_c, base_seed + 5,
                       std_gauss=0.0, std_multi=scale_mul[0])
    img_up2 = upsample(img2_c, img_up4, base_seed + 6,
                       std_gauss=0.0, std_multi=scale_mul[1])
    img_up = upsample(img_c, img_up2, base_seed + 7,
                      std_gauss=scale_gauss, std_multi=scale_mul[2],
                      refer=refer, fus=True)
    return img_up


if __name__ == "__main__":
    target_size = 128  # small, but the 1%-percentile bins stay non-empty at d8
    key = jax.random.PRNGKey(0)
    k1, k2 = jax.random.split(key)
    img = jax.random.uniform(k1, (target_size, target_size), jnp.float32, 0.0, 255.0)
    refer = jax.random.uniform(k2, (target_size, target_size), jnp.float32, 0.0, 255.0)

    fwd_aug = jax.jit(lambda a, b: rs2sss_forward(a, b))
    fwd_noise = jax.jit(lambda a: rs2sss_forward(a, None))

    out_aug = fwd_aug(img, refer)         # refer branch (full pipeline)
    out_noise = fwd_noise(img)            # refer=None branch (gaussian add)
    jax.block_until_ready(out_aug)
    jax.block_until_ready(out_noise)

    assert out_aug.shape == (target_size, target_size)
    assert out_noise.shape == (target_size, target_size)
    assert bool(jnp.all(jnp.isfinite(out_aug)))
    assert bool(jnp.all(jnp.isfinite(out_noise)))
    print("KERNEL_OK")
</pallas_src>

<mosaic_0001>
module attributes {stable_mosaic.version = 11 : i64} {
  func.func @_max4_kernel(%arg0: i32, %arg1: memref<64x64xf32, #tpu.memory_space<vmem>>, %arg2: memref<64x64xf32, #tpu.memory_space<vmem>>, %arg3: memref<64x64xf32, #tpu.memory_space<vmem>>, %arg4: memref<64x64xf32, #tpu.memory_space<vmem>>, %arg5: memref<64x64xf32, #tpu.memory_space<vmem>>) attributes {dimension_semantics = [#tpu.dimension_semantics<parallel>], iteration_bounds = array<i64: 1>, scalar_prefetch = 0 : i64, scratch_operands = 0 : i64, tpu.core_type = #tpu.core_type<tc>, window_params = [{transform_indices = @transform_0, window_bounds = array<i64: 64, 64>}, {transform_indices = @transform_1, window_bounds = array<i64: 64, 64>}, {transform_indices = @transform_2, window_bounds = array<i64: 64, 64>}, {transform_indices = @transform_3, window_bounds = array<i64: 64, 64>}, {transform_indices = @transform_4, window_bounds = array<i64: 64, 64>}]} {
    %c0 = arith.constant 0 : index
    %c0_0 = arith.constant 0 : index
    %0 = vector.load %arg1[%c0, %c0_0] : memref<64x64xf32, #tpu.memory_space<vmem>>, vector<64x64xf32>
    %c0_1 = arith.constant 0 : index
    %c0_2 = arith.constant 0 : index
    %1 = vector.load %arg2[%c0_1, %c0_2] : memref<64x64xf32, #tpu.memory_space<vmem>>, vector<64x64xf32>
    %2 = arith.maximumf %0, %1 : vector<64x64xf32>
    %c0_3 = arith.constant 0 : index
    %c0_4 = arith.constant 0 : index
    %3 = vector.load %arg3[%c0_3, %c0_4] : memref<64x64xf32, #tpu.memory_space<vmem>>, vector<64x64xf32>
    %c0_5 = arith.constant 0 : index
    %c0_6 = arith.constant 0 : index
    %4 = vector.load %arg4[%c0_5, %c0_6] : memref<64x64xf32, #tpu.memory_space<vmem>>, vector<64x64xf32>
    %5 = arith.maximumf %3, %4 : vector<64x64xf32>
    %6 = arith.maximumf %2, %5 : vector<64x64xf32>
    %c0_7 = arith.constant 0 : index
    %c0_8 = arith.constant 0 : index
    %7 = vector.load %arg5[%c0_7, %c0_8] : memref<64x64xf32, #tpu.memory_space<vmem>>, vector<64x64xf32>
    tpu.vector_store %arg5[%c0_7, %c0_8], %6 {strides = array<i32>} : memref<64x64xf32, #tpu.memory_space<vmem>>, vector<64x64xf32>,
    return
  }
  func.func @transform_0(%arg0: i32) -> (i32, i32) {
    %c0_i32 = arith.constant 0 : i32
    %c0_i32_0 = arith.constant 0 : i32
    return %arg0, %c0_i32 : i32, i32
  }
  func.func @transform_1(%arg0: i32) -> (i32, i32) {
    %c0_i32 = arith.constant 0 : i32
    %c0_i32_0 = arith.constant 0 : i32
    return %arg0, %c0_i32 : i32, i32
  }
  func.func @transform_2(%arg0: i32) -> (i32, i32) {
    %c0_i32 = arith.constant 0 : i32
    %c0_i32_0 = arith.constant 0 : i32
    return %arg0, %c0_i32 : i32, i32
  }
  func.func @transform_3(%arg0: i32) -> (i32, i32) {
    %c0_i32 = arith.constant 0 : i32
    %c0_i32_0 = arith.constant 0 : i32
    return %arg0, %c0_i32 : i32, i32
  }
  func.func @transform_4(%arg0: i32) -> (i32, i32) {
    %c0_i32 = arith.constant 0 : i32
    %c0_i32_0 = arith.constant 0 : i32
    return %arg0, %c0_i32 : i32, i32
  }
}

module attributes {stable_mosaic.version = 11 : i64} {
  func.func @_max4_kernel(%arg0: i32, %arg1: memref<32x32xf32, #tpu.memory_space<vmem>>, %arg2: memref<32x32xf32, #tpu.memory_space<vmem>>, %arg3: memref<32x32xf32, #tpu.memory_space<vmem>>, %arg4: memref<32x32xf32, #tpu.memory_space<vmem>>, %arg5: memref<32x32xf32, #tpu.memory_space<vmem>>) attributes {dimension_semantics = [#tpu.dimension_semantics<parallel>], iteration_bounds = array<i64: 1>, scalar_prefetch = 0 : i64, scratch_operands = 0 : i64, tpu.core_type = #tpu.core_type<tc>, window_params = [{transform_indices = @transform_0, window_bounds = array<i64: 32, 32>}, {transform_indices = @transform_1, window_bounds = array<i64: 32, 32>}, {transform_indices = @transform_2, window_bounds = array<i64: 32, 32>}, {transform_indices = @transform_3, window_bounds = array<i64: 32, 32>}, {transform_indices = @transform_4, window_bounds = array<i64: 32, 32>}]} {
    %c0 = arith.constant 0 : index
    %c0_0 = arith.constant 0 : index
    %0 = vector.load %arg1[%c0, %c0_0] : memref<32x32xf32, #tpu.memory_space<vmem>>, vector<32x32xf32>
    %c0_1 = arith.constant 0 : index
    %c0_2 = arith.constant 0 : index
    %1 = vector.load %arg2[%c0_1, %c0_2] : memref<32x32xf32, #tpu.memory_space<vmem>>, vector<32x32xf32>
    %2 = arith.maximumf %0, %1 : vector<32x32xf32>
    %c0_3 = arith.constant 0 : index
    %c0_4 = arith.constant 0 : index
    %3 = vector.load %arg3[%c0_3, %c0_4] : memref<32x32xf32, #tpu.memory_space<vmem>>, vector<32x32xf32>
    %c0_5 = arith.constant 0 : index
    %c0_6 = arith.constant 0 : index
    %4 = vector.load %arg4[%c0_5, %c0_6] : memref<32x32xf32, #tpu.memory_space<vmem>>, vector<32x32xf32>
    %5 = arith.maximumf %3, %4 : vector<32x32xf32>
    %6 = arith.maximumf %2, %5 : vector<32x32xf32>
    %c0_7 = arith.constant 0 : index
    %c0_8 = arith.constant 0 : index
    %7 = vector.load %arg5[%c0_7, %c0_8] : memref<32x32xf32, #tpu.memory_space<vmem>>, vector<32x32xf32>
    tpu.vector_store %arg5[%c0_7, %c0_8], %6 {strides = array<i32>} : memref<32x32xf32, #tpu.memory_space<vmem>>, vector<32x32xf32>,
    return
  }
  func.func @transform_0(%arg0: i32) -> (i32, i32) {
    %c0_i32 = arith.constant 0 : i32
    %c0_i32_0 = arith.constant 0 : i32
    return %arg0, %c0_i32 : i32, i32
  }
  func.func @transform_1(%arg0: i32) -> (i32, i32) {
    %c0_i32 = arith.constant 0 : i32
    %c0_i32_0 = arith.constant 0 : i32
    return %arg0, %c0_i32 : i32, i32
  }
  func.func @transform_2(%arg0: i32) -> (i32, i32) {
    %c0_i32 = arith.constant 0 : i32
    %c0_i32_0 = arith.constant 0 : i32
    return %arg0, %c0_i32 : i32, i32
  }
  func.func @transform_3(%arg0: i32) -> (i32, i32) {
    %c0_i32 = arith.constant 0 : i32
    %c0_i32_0 = arith.constant 0 : i32
    return %arg0, %c0_i32 : i32, i32
  }
  func.func @transform_4(%arg0: i32) -> (i32, i32) {
    %c0_i32 = arith.constant 0 : i32
    %c0_i32_0 = arith.constant 0 : i32
    return %arg0, %c0_i32 : i32, i32
  }
}

module attributes {stable_mosaic.version = 11 : i64} {
  func.func @_max4_kernel(%arg0: i32, %arg1: memref<16x16xf32, #tpu.memory_space<vmem>>, %arg2: memref<16x16xf32, #tpu.memory_space<vmem>>, %arg3: memref<16x16xf32, #tpu.memory_space<vmem>>, %arg4: memref<16x16xf32, #tpu.memory_space<vmem>>, %arg5: memref<16x16xf32, #tpu.memory_space<vmem>>) attributes {dimension_semantics = [#tpu.dimension_semantics<parallel>], iteration_bounds = array<i64: 1>, scalar_prefetch = 0 : i64, scratch_operands = 0 : i64, tpu.core_type = #tpu.core_type<tc>, window_params = [{transform_indices = @transform_0, window_bounds = array<i64: 16, 16>}, {transform_indices = @transform_1, window_bounds = array<i64: 16, 16>}, {transform_indices = @transform_2, window_bounds = array<i64: 16, 16>}, {transform_indices = @transform_3, window_bounds = array<i64: 16, 16>}, {transform_indices = @transform_4, window_bounds = array<i64: 16, 16>}]} {
    %c0 = arith.constant 0 : index
    %c0_0 = arith.constant 0 : index
    %0 = vector.load %arg1[%c0, %c0_0] : memref<16x16xf32, #tpu.memory_space<vmem>>, vector<16x16xf32>
    %c0_1 = arith.constant 0 : index
    %c0_2 = arith.constant 0 : index
    %1 = vector.load %arg2[%c0_1, %c0_2] : memref<16x16xf32, #tpu.memory_space<vmem>>, vector<16x16xf32>
    %2 = arith.maximumf %0, %1 : vector<16x16xf32>
    %c0_3 = arith.constant 0 : index
    %c0_4 = arith.constant 0 : index
    %3 = vector.load %arg3[%c0_3, %c0_4] : memref<16x16xf32, #tpu.memory_space<vmem>>, vector<16x16xf32>
    %c0_5 = arith.constant 0 : index
    %c0_6 = arith.constant 0 : index
    %4 = vector.load %arg4[%c0_5, %c0_6] : memref<16x16xf32, #tpu.memory_space<vmem>>, vector<16x16xf32>
    %5 = arith.maximumf %3, %4 : vector<16x16xf32>
    %6 = arith.maximumf %2, %5 : vector<16x16xf32>
    %c0_7 = arith.constant 0 : index
    %c0_8 = arith.constant 0 : index
    %7 = vector.load %arg5[%c0_7, %c0_8] : memref<16x16xf32, #tpu.memory_space<vmem>>, vector<16x16xf32>
    tpu.vector_store %arg5[%c0_7, %c0_8], %6 {strides = array<i32>} : memref<16x16xf32, #tpu.memory_space<vmem>>, vector<16x16xf32>,
    return
  }
  func.func @transform_0(%arg0: i32) -> (i32, i32) {
    %c0_i32 = arith.constant 0 : i32
    %c0_i32_0 = arith.constant 0 : i32
    return %arg0, %c0_i32 : i32, i32
  }
  func.func @transform_1(%arg0: i32) -> (i32, i32) {
    %c0_i32 = arith.constant 0 : i32
    %c0_i32_0 = arith.constant 0 : i32
    return %arg0, %c0_i32 : i32, i32
  }
  func.func @transform_2(%arg0: i32) -> (i32, i32) {
    %c0_i32 = arith.constant 0 : i32
    %c0_i32_0 = arith.constant 0 : i32
    return %arg0, %c0_i32 : i32, i32
  }
  func.func @transform_3(%arg0: i32) -> (i32, i32) {
    %c0_i32 = arith.constant 0 : i32
    %c0_i32_0 = arith.constant 0 : i32
    return %arg0, %c0_i32 : i32, i32
  }
  func.func @transform_4(%arg0: i32) -> (i32, i32) {
    %c0_i32 = arith.constant 0 : i32
    %c0_i32_0 = arith.constant 0 : i32
    return %arg0, %c0_i32 : i32, i32
  }
}

module attributes {stable_mosaic.version = 11 : i64} {
  func.func @_gc_noise_kernel(%arg0: i32, %arg1: memref<1xi32, #tpu.memory_space<smem>>, %arg2: memref<1xf32, #tpu.memory_space<smem>>, %arg3: memref<16x16xf32, #tpu.memory_space<vmem>>, %arg4: memref<16x16xf32, #tpu.memory_space<vmem>>) attributes {dimension_semantics = [#tpu.dimension_semantics<parallel>], iteration_bounds = array<i64: 1>, scalar_prefetch = 0 : i64, scratch_operands = 0 : i64, tpu.core_type = #tpu.core_type<tc>, window_params = [{transform_indices = @transform_0, window_bounds = array<i64: 1>}, {transform_indices = @transform_1, window_bounds = array<i64: 1>}, {transform_indices = @transform_2, window_bounds = array<i64: 16, 16>}, {transform_indices = @transform_3, window_bounds = array<i64: 16, 16>}]} {
    %c0 = arith.constant 0 : index
    %c0_0 = arith.constant 0 : index
    %0 = vector.load %arg3[%c0, %c0_0] : memref<16x16xf32, #tpu.memory_space<vmem>>, vector<16x16xf32>
    %c0_1 = arith.constant 0 : index
    %1 = memref.load %arg1[%c0_1] : memref<1xi32, #tpu.memory_space<smem>>
    %c16_i32 = arith.constant 16 : i32
    %2 = arith.muli %arg0, %c16_i32 : i32
    %3 = tpu.iota {dimensions = array<i32: 0>} : vector<16x16xi32>
    %4 = vector.broadcast %2 : i32 to vector<16x16xi32>
    %5 = arith.addi %3, %4 : vector<16x16xi32>
    %6 = tpu.iota {dimensions = array<i32: 1>} : vector<16x16xi32>
    %c-1640531535_i32 = arith.constant -1640531535 : i32
    %7 = vector.broadcast %c-1640531535_i32 : i32 to vector<16x16xi32>
    %8 = arith.muli %5, %7 : vector<16x16xi32>
    %c-2048144777_i32 = arith.constant -2048144777 : i32
    %9 = vector.broadcast %c-2048144777_i32 : i32 to vector<16x16xi32>
    %10 = arith.muli %6, %9 : vector<16x16xi32>
    %11 = arith.addi %8, %10 : vector<16x16xi32>
    %c668265263_i32 = arith.constant 668265263 : i32
    %12 = arith.muli %1, %c668265263_i32 : i32
    %13 = vector.broadcast %12 : i32 to vector<16x16xi32>
    %14 = arith.addi %11, %13 : vector<16x16xi32>
    %c-251865892_i32 = arith.constant -251865892 : i32
    %15 = vector.broadcast %c-251865892_i32 : i32 to vector<16x16xi32>
    %16 = arith.addi %14, %15 : vector<16x16xi32>
    %c16_i32_2 = arith.constant 16 : i32
    %17 = vector.broadcast %c16_i32_2 : i32 to vector<16x16xi32>
    %18 = arith.shrui %16, %17 : vector<16x16xi32>
    %19 = arith.xori %16, %18 : vector<16x16xi32>
    %c2146121005_i32 = arith.constant 2146121005 : i32
    %20 = vector.broadcast %c2146121005_i32 : i32 to vector<16x16xi32>
    %21 = arith.muli %19, %20 : vector<16x16xi32>
    %c15_i32 = arith.constant 15 : i32
    %22 = vector.broadcast %c15_i32 : i32 to vector<16x16xi32>
    %23 = arith.shrui %21, %22 : vector<16x16xi32>
    %24 = arith.xori %21, %23 : vector<16x16xi32>
    %c-2073254261_i32 = arith.constant -2073254261 : i32
    %25 = vector.broadcast %c-2073254261_i32 : i32 to vector<16x16xi32>
    %26 = arith.muli %24, %25 : vector<16x16xi32>
    %c16_i32_3 = arith.constant 16 : i32
    %27 = vector.broadcast %c16_i32_3 : i32 to vector<16x16xi32>
    %28 = arith.shrui %26, %27 : vector<16x16xi32>
    %29 = arith.xori %26, %28 : vector<16x16xi32>
    %c8388607_i32 = arith.constant 8388607 : i32
    %30 = vector.broadcast %c8388607_i32 : i32 to vector<16x16xi32>
    %31 = arith.andi %29, %30 : vector<16x16xi32>
    %32 = arith.sitofp %31 : vector<16x16xi32> to vector<16x16xf32>
    %cst = arith.constant 1.1920929E-7 : f32
    %33 = vector.broadcast %cst : f32 to vector<16x16xf32>
    %34 = arith.mulf %32, %33 : vector<16x16xf32>
    %cst_4 = arith.constant 5.000000e-01 : f32
    %35 = vector.broadcast %cst_4 : f32 to vector<16x16xf32>
    %36 = arith.mulf %34, %35 : vector<16x16xf32>
    %cst_5 = arith.constant 1.000000e+00 : f32
    %37 = vector.broadcast %cst_5 : f32 to vector<16x16xf32>
    %38 = arith.subf %36, %37 : vector<16x16xf32>
    %39 = arith.addf %0, %38 : vector<16x16xf32>
    %c0_6 = arith.constant 0 : index
    %40 = memref.load %arg2[%c0_6] : memref<1xf32, #tpu.memory_space<smem>>
    %cst_7 = arith.constant 0.000000e+00 : f32
    %41 = vector.broadcast %cst_7 : f32 to vector<16x16xf32>
    %42 = arith.maximumf %41, %39 : vector<16x16xf32>
    %43 = vector.broadcast %40 : f32 to vector<16x16xf32>
    %44 = arith.minimumf %43, %42 : vector<16x16xf32>
    %c0_8 = arith.constant 0 : index
    %c0_9 = arith.constant 0 : index
    %45 = vector.load %arg4[%c0_8, %c0_9] : memref<16x16xf32, #tpu.memory_space<vmem>>, vector<16x16xf32>
    tpu.vector_store %arg4[%c0_8, %c0_9], %44 {strides = array<i32>} : memref<16x16xf32, #tpu.memory_space<vmem>>, vector<16x16xf32>,
    return
  }
  func.func @transform_0(%arg0: i32) -> i32 {
    %c0_i32 = arith.constant 0 : i32
    %c0_i32_0 = arith.constant 0 : i32
    return %c0_i32 : i32
  }
  func.func @transform_1(%arg0: i32) -> i32 {
    %c0_i32 = arith.constant 0 : i32
    %c0_i32_0 = arith.constant 0 : i32
    return %c0_i32 : i32
  }
  func.func @transform_2(%arg0: i32) -> (i32, i32) {
    %c0_i32 = arith.constant 0 : i32
    %c0_i32_0 = arith.constant 0 : i32
    return %arg0, %c0_i32 : i32, i32
  }
  func.func @transform_3(%arg0: i32) -> (i32, i32) {
    %c0_i32 = arith.constant 0 : i32
    %c0_i32_0 = arith.constant 0 : i32
    return %arg0, %c0_i32 : i32, i32
  }
}

module attributes {stable_mosaic.version = 11 : i64} {
  func.func @_gc_map_kernel(%arg0: i32, %arg1: memref<6xf32, #tpu.memory_space<smem>>, %arg2: memref<16x16xf32, #tpu.memory_space<vmem>>, %arg3: memref<16x16xf32, #tpu.memory_space<vmem>>) attributes {dimension_semantics = [#tpu.dimension_semantics<parallel>], iteration_bounds = array<i64: 1>, scalar_prefetch = 0 : i64, scratch_operands = 0 : i64, tpu.core_type = #tpu.core_type<tc>, window_params = [{transform_indices = @transform_0, window_bounds = array<i64: 6>}, {transform_indices = @transform_1, window_bounds = array<i64: 16, 16>}, {transform_indices = @transform_2, window_bounds = array<i64: 16, 16>}]} {
    %c0 = arith.constant 0 : index
    %0 = memref.load %arg1[%c0] : memref<6xf32, #tpu.memory_space<smem>>
    %c1 = arith.constant 1 : index
    %1 = memref.load %arg1[%c1] : memref<6xf32, #tpu.memory_space<smem>>
    %c2 = arith.constant 2 : index
    %2 = memref.load %arg1[%c2] : memref<6xf32, #tpu.memory_space<smem>>
    %c3 = arith.constant 3 : index
    %3 = memref.load %arg1[%c3] : memref<6xf32, #tpu.memory_space<smem>>
    %c4 = arith.constant 4 : index
    %4 = memref.load %arg1[%c4] : memref<6xf32, #tpu.memory_space<smem>>
    %c5 = arith.constant 5 : index
    %5 = memref.load %arg1[%c5] : memref<6xf32, #tpu.memory_space<smem>>
    %c0_0 = arith.constant 0 : index
    %c0_1 = arith.constant 0 : index
    %6 = vector.load %arg2[%c0_0, %c0_1] : memref<16x16xf32, #tpu.memory_space<vmem>>, vector<16x16xf32>
    %7 = vector.broadcast %0 : f32 to vector<16x16xf32>
    %8 = arith.subf %6, %7 : vector<16x16xf32>
    %9 = vector.broadcast %1 : f32 to vector<16x16xf32>
    %10 = arith.subf %8, %9 : vector<16x16xf32>
    %11 = vector.broadcast %3 : f32 to vector<16x16xf32>
    %12 = arith.mulf %10, %11 : vector<16x16xf32>
    %13 = vector.broadcast %4 : f32 to vector<16x16xf32>
    %14 = arith.mulf %12, %13 : vector<16x16xf32>
    %15 = vector.broadcast %1 : f32 to vector<16x16xf32>
    %16 = arith.addf %14, %15 : vector<16x16xf32>
    %17 = vector.broadcast %1 : f32 to vector<16x16xf32>
    %18 = arith.subf %8, %17 : vector<16x16xf32>
    %cst = arith.constant 0.000000e+00 : f32
    %19 = vector.broadcast %cst : f32 to vector<16x16xf32>
    %20 = arith.maximumf %18, %19 : vector<16x16xf32>
    %21 = vector.broadcast %3 : f32 to vector<16x16xf32>
    %22 = arith.mulf %20, %21 : vector<16x16xf32>
    %cst_2 = arith.constant 1.000000e-30 : f32
    %23 = vector.broadcast %cst_2 : f32 to vector<16x16xf32>
    %24 = arith.maximumf %22, %23 : vector<16x16xf32>
    %25 = math.log %24 : vector<16x16xf32>
    %26 = vector.broadcast %5 : f32 to vector<16x16xf32>
    %27 = arith.mulf %26, %25 : vector<16x16xf32>
    %28 = math.exp %27 : vector<16x16xf32>
    %29 = vector.broadcast %4 : f32 to vector<16x16xf32>
    %30 = arith.mulf %28, %29 : vector<16x16xf32>
    %31 = vector.broadcast %1 : f32 to vector<16x16xf32>
    %32 = arith.addf %30, %31 : vector<16x16xf32>
    %33 = vector.broadcast %1 : f32 to vector<16x16xf32>
    %34 = arith.cmpf ole, %8, %33 : vector<16x16xf32>
    %35 = vector.broadcast %2 : f32 to vector<16x16xf32>
    %36 = arith.cmpf ogt, %8, %35 : vector<16x16xf32>
    %37 = arith.select %36, %16, %32 : vector<16x16xi1>, vector<16x16xf32>
    %38 = arith.select %34, %8, %37 : vector<16x16xi1>, vector<16x16xf32>
    %c0_3 = arith.constant 0 : index
    %c0_4 = arith.constant 0 : index
    %39 = vector.load %arg3[%c0_3, %c0_4] : memref<16x16xf32, #tpu.memory_space<vmem>>, vector<16x16xf32>
    tpu.vector_store %arg3[%c0_3, %c0_4], %38 {strides = array<i32>} : memref<16x16xf32, #tpu.memory_space<vmem>>, vector<16x16xf32>,
    return
  }
  func.func @transform_0(%arg0: i32) -> i32 {
    %c0_i32 = arith.constant 0 : i32
    %c0_i32_0 = arith.constant 0 : i32
    return %c0_i32 : i32
  }
  func.func @transform_1(%arg0: i32) -> (i32, i32) {
    %c0_i32 = arith.constant 0 : i32
    %c0_i32_0 = arith.constant 0 : i32
    return %arg0, %c0_i32 : i32, i32
  }
  func.func @transform_2(%arg0: i32) -> (i32, i32) {
    %c0_i32 = arith.constant 0 : i32
    %c0_i32_0 = arith.constant 0 : i32
    return %arg0, %c0_i32 : i32, i32
  }
}

module attributes {stable_mosaic.version = 11 : i64} {
  func.func @_gc_noise_kernel(%arg0: i32, %arg1: memref<1xi32, #tpu.memory_space<smem>>, %arg2: memref<1xf32, #tpu.memory_space<smem>>, %arg3: memref<32x32xf32, #tpu.memory_space<vmem>>, %arg4: memref<32x32xf32, #tpu.memory_space<vmem>>) attributes {dimension_semantics = [#tpu.dimension_semantics<parallel>], iteration_bounds = array<i64: 1>, scalar_prefetch = 0 : i64, scratch_operands = 0 : i64, tpu.core_type = #tpu.core_type<tc>, window_params = [{transform_indices = @transform_0, window_bounds = array<i64: 1>}, {transform_indices = @transform_1, window_bounds = array<i64: 1>}, {transform_indices = @transform_2, window_bounds = array<i64: 32, 32>}, {transform_indices = @transform_3, window_bounds = array<i64: 32, 32>}]} {
    %c0 = arith.constant 0 : index
    %c0_0 = arith.constant 0 : index
    %0 = vector.load %arg3[%c0, %c0_0] : memref<32x32xf32, #tpu.memory_space<vmem>>, vector<32x32xf32>
    %c0_1 = arith.constant 0 : index
    %1 = memref.load %arg1[%c0_1] : memref<1xi32, #tpu.memory_space<smem>>
    %c32_i32 = arith.constant 32 : i32
    %2 = arith.muli %arg0, %c32_i32 : i32
    %3 = tpu.iota {dimensions = array<i32: 0>} : vector<32x32xi32>
    %4 = vector.broadcast %2 : i32 to vector<32x32xi32>
    %5 = arith.addi %3, %4 : vector<32x32xi32>
    %6 = tpu.iota {dimensions = array<i32: 1>} : vector<32x32xi32>
    %c-1640531535_i32 = arith.constant -1640531535 : i32
    %7 = vector.broadcast %c-1640531535_i32 : i32 to vector<32x32xi32>
    %8 = arith.muli %5, %7 : vector<32x32xi32>
    %c-2048144777_i32 = arith.constant -2048144777 : i32
    %9 = vector.broadcast %c-2048144777_i32 : i32 to vector<32x32xi32>
    %10 = arith.muli %6, %9 : vector<32x32xi32>
    %11 = arith.addi %8, %10 : vector<32x32xi32>
    %c668265263_i32 = arith.constant 668265263 : i32
    %12 = arith.muli %1, %c668265263_i32 : i32
    %13 = vector.broadcast %12 : i32 to vector<32x32xi32>
    %14 = arith.addi %11, %13 : vector<32x32xi32>
    %c-251865892_i32 = arith.constant -251865892 : i32
    %15 = vector.broadcast %c-251865892_i32 : i32 to vector<32x32xi32>
    %16 = arith.addi %14, %15 : vector<32x32xi32>
    %c16_i32 = arith.constant 16 : i32
    %17 = vector.broadcast %c16_i32 : i32 to vector<32x32xi32>
    %18 = arith.shrui %16, %17 : vector<32x32xi32>
    %19 = arith.xori %16, %18 : vector<32x32xi32>
    %c2146121005_i32 = arith.constant 2146121005 : i32
    %20 = vector.broadcast %c2146121005_i32 : i32 to vector<32x32xi32>
    %21 = arith.muli %19, %20 : vector<32x32xi32>
    %c15_i32 = arith.constant 15 : i32
    %22 = vector.broadcast %c15_i32 : i32 to vector<32x32xi32>
    %23 = arith.shrui %21, %22 : vector<32x32xi32>
    %24 = arith.xori %21, %23 : vector<32x32xi32>
    %c-2073254261_i32 = arith.constant -2073254261 : i32
    %25 = vector.broadcast %c-2073254261_i32 : i32 to vector<32x32xi32>
    %26 = arith.muli %24, %25 : vector<32x32xi32>
    %c16_i32_2 = arith.constant 16 : i32
    %27 = vector.broadcast %c16_i32_2 : i32 to vector<32x32xi32>
    %28 = arith.shrui %26, %27 : vector<32x32xi32>
    %29 = arith.xori %26, %28 : vector<32x32xi32>
    %c8388607_i32 = arith.constant 8388607 : i32
    %30 = vector.broadcast %c8388607_i32 : i32 to vector<32x32xi32>
    %31 = arith.andi %29, %30 : vector<32x32xi32>
    %32 = arith.sitofp %31 : vector<32x32xi32> to vector<32x32xf32>
    %cst = arith.constant 1.1920929E-7 : f32
    %33 = vector.broadcast %cst : f32 to vector<32x32xf32>
    %34 = arith.mulf %32, %33 : vector<32x32xf32>
    %cst_3 = arith.constant 5.000000e-01 : f32
    %35 = vector.broadcast %cst_3 : f32 to vector<32x32xf32>
    %36 = arith.mulf %34, %35 : vector<32x32xf32>
    %cst_4 = arith.constant 1.000000e+00 : f32
    %37 = vector.broadcast %cst_4 : f32 to vector<32x32xf32>
    %38 = arith.subf %36, %37 : vector<32x32xf32>
    %39 = arith.addf %0, %38 : vector<32x32xf32>
    %c0_5 = arith.constant 0 : index
    %40 = memref.load %arg2[%c0_5] : memref<1xf32, #tpu.memory_space<smem>>
    %cst_6 = arith.constant 0.000000e+00 : f32
    %41 = vector.broadcast %cst_6 : f32 to vector<32x32xf32>
    %42 = arith.maximumf %41, %39 : vector<32x32xf32>
    %43 = vector.broadcast %40 : f32 to vector<32x32xf32>
    %44 = arith.minimumf %43, %42 : vector<32x32xf32>
    %c0_7 = arith.constant 0 : index
    %c0_8 = arith.constant 0 : index
    %45 = vector.load %arg4[%c0_7, %c0_8] : memref<32x32xf32, #tpu.memory_space<vmem>>, vector<32x32xf32>
    tpu.vector_store %arg4[%c0_7, %c0_8], %44 {strides = array<i32>} : memref<32x32xf32, #tpu.memory_space<vmem>>, vector<32x32xf32>,
    return
  }
  func.func @transform_0(%arg0: i32) -> i32 {
    %c0_i32 = arith.constant 0 : i32
    %c0_i32_0 = arith.constant 0 : i32
    return %c0_i32 : i32
  }
  func.func @transform_1(%arg0: i32) -> i32 {
    %c0_i32 = arith.constant 0 : i32
    %c0_i32_0 = arith.constant 0 : i32
    return %c0_i32 : i32
  }
  func.func @transform_2(%arg0: i32) -> (i32, i32) {
    %c0_i32 = arith.constant 0 : i32
    %c0_i32_0 = arith.constant 0 : i32
    return %arg0, %c0_i32 : i32, i32
  }
  func.func @transform_3(%arg0: i32) -> (i32, i32) {
    %c0_i32 = arith.constant 0 : i32
    %c0_i32_0 = arith.constant 0 : i32
    return %arg0, %c0_i32 : i32, i32
  }
}

module attributes {stable_mosaic.version = 11 : i64} {
  func.func @_gc_map_kernel(%arg0: i32, %arg1: memref<6xf32, #tpu.memory_space<smem>>, %arg2: memref<32x32xf32, #tpu.memory_space<vmem>>, %arg3: memref<32x32xf32, #tpu.memory_space<vmem>>) attributes {dimension_semantics = [#tpu.dimension_semantics<parallel>], iteration_bounds = array<i64: 1>, scalar_prefetch = 0 : i64, scratch_operands = 0 : i64, tpu.core_type = #tpu.core_type<tc>, window_params = [{transform_indices = @transform_0, window_bounds = array<i64: 6>}, {transform_indices = @transform_1, window_bounds = array<i64: 32, 32>}, {transform_indices = @transform_2, window_bounds = array<i64: 32, 32>}]} {
    %c0 = arith.constant 0 : index
    %0 = memref.load %arg1[%c0] : memref<6xf32, #tpu.memory_space<smem>>
    %c1 = arith.constant 1 : index
    %1 = memref.load %arg1[%c1] : memref<6xf32, #tpu.memory_space<smem>>
    %c2 = arith.constant 2 : index
    %2 = memref.load %arg1[%c2] : memref<6xf32, #tpu.memory_space<smem>>
    %c3 = arith.constant 3 : index
    %3 = memref.load %arg1[%c3] : memref<6xf32, #tpu.memory_space<smem>>
    %c4 = arith.constant 4 : index
    %4 = memref.load %arg1[%c4] : memref<6xf32, #tpu.memory_space<smem>>
    %c5 = arith.constant 5 : index
    %5 = memref.load %arg1[%c5] : memref<6xf32, #tpu.memory_space<smem>>
    %c0_0 = arith.constant 0 : index
    %c0_1 = arith.constant 0 : index
    %6 = vector.load %arg2[%c0_0, %c0_1] : memref<32x32xf32, #tpu.memory_space<vmem>>, vector<32x32xf32>
    %7 = vector.broadcast %0 : f32 to vector<32x32xf32>
    %8 = arith.subf %6, %7 : vector<32x32xf32>
    %9 = vector.broadcast %1 : f32 to vector<32x32xf32>
    %10 = arith.subf %8, %9 : vector<32x32xf32>
    %11 = vector.broadcast %3 : f32 to vector<32x32xf32>
    %12 = arith.mulf %10, %11 : vector<32x32xf32>
    %13 = vector.broadcast %4 : f32 to vector<32x32xf32>
    %14 = arith.mulf %12, %13 : vector<32x32xf32>
    %15 = vector.broadcast %1 : f32 to vector<32x32xf32>
    %16 = arith.addf %14, %15 : vector<32x32xf32>
    %17 = vector.broadcast %1 : f32 to vector<32x32xf32>
    %18 = arith.subf %8, %17 : vector<32x32xf32>
    %cst = arith.constant 0.000000e+00 : f32
    %19 = vector.broadcast %cst : f32 to vector<32x32xf32>
    %20 = arith.maximumf %18, %19 : vector<32x32xf32>
    %21 = vector.broadcast %3 : f32 to vector<32x32xf32>
    %22 = arith.mulf %20, %21 : vector<32x32xf32>
    %cst_2 = arith.constant 1.000000e-30 : f32
    %23 = vector.broadcast %cst_2 : f32 to vector<32x32xf32>
    %24 = arith.maximumf %22, %23 : vector<32x32xf32>
    %25 = math.log %24 : vector<32x32xf32>
    %26 = vector.broadcast %5 : f32 to vector<32x32xf32>
    %27 = arith.mulf %26, %25 : vector<32x32xf32>
    %28 = math.exp %27 : vector<32x32xf32>
    %29 = vector.broadcast %4 : f32 to vector<32x32xf32>
    %30 = arith.mulf %28, %29 : vector<32x32xf32>
    %31 = vector.broadcast %1 : f32 to vector<32x32xf32>
    %32 = arith.addf %30, %31 : vector<32x32xf32>
    %33 = vector.broadcast %1 : f32 to vector<32x32xf32>
    %34 = arith.cmpf ole, %8, %33 : vector<32x32xf32>
    %35 = vector.broadcast %2 : f32 to vector<32x32xf32>
    %36 = arith.cmpf ogt, %8, %35 : vector<32x32xf32>
    %37 = arith.select %36, %16, %32 : vector<32x32xi1>, vector<32x32xf32>
    %38 = arith.select %34, %8, %37 : vector<32x32xi1>, vector<32x32xf32>
    %c0_3 = arith.constant 0 : index
    %c0_4 = arith.constant 0 : index
    %39 = vector.load %arg3[%c0_3, %c0_4] : memref<32x32xf32, #tpu.memory_space<vmem>>, vector<32x32xf32>
    tpu.vector_store %arg3[%c0_3, %c0_4], %38 {strides = array<i32>} : memref<32x32xf32, #tpu.memory_space<vmem>>, vector<32x32xf32>,
    return
  }
  func.func @transform_0(%arg0: i32) -> i32 {
    %c0_i32 = arith.constant 0 : i32
    %c0_i32_0 = arith.constant 0 : i32
    return %c0_i32 : i32
  }
  func.func @transform_1(%arg0: i32) -> (i32, i32) {
    %c0_i32 = arith.constant 0 : i32
    %c0_i32_0 = arith.constant 0 : i32
    return %arg0, %c0_i32 : i32, i32
  }
  func.func @transform_2(%arg0: i32) -> (i32, i32) {
    %c0_i32 = arith.constant 0 : i32
    %c0_i32_0 = arith.constant 0 : i32
    return %arg0, %c0_i32 : i32, i32
  }
}

module attributes {stable_mosaic.version = 11 : i64} {
  func.func @_upsample_half_kernel(%arg0: i32, %arg1: memref<1xi32, #tpu.memory_space<smem>>, %arg2: memref<32x32xf32, #tpu.memory_space<vmem>>, %arg3: memref<32x32xf32, #tpu.memory_space<vmem>>, %arg4: memref<32x32xf32, #tpu.memory_space<vmem>>) attributes {dimension_semantics = [#tpu.dimension_semantics<parallel>], iteration_bounds = array<i64: 1>, scalar_prefetch = 0 : i64, scratch_operands = 0 : i64, tpu.core_type = #tpu.core_type<tc>, window_params = [{transform_indices = @transform_0, window_bounds = array<i64: 1>}, {transform_indices = @transform_1, window_bounds = array<i64: 32, 32>}, {transform_indices = @transform_2, window_bounds = array<i64: 32, 32>}, {transform_indices = @transform_3, window_bounds = array<i64: 32, 32>}]} {
    %c32_i32 = arith.constant 32 : i32
    %0 = arith.muli %arg0, %c32_i32 : i32
    %c0 = arith.constant 0 : index
    %c0_0 = arith.constant 0 : index
    %1 = vector.load %arg2[%c0, %c0_0] : memref<32x32xf32, #tpu.memory_space<vmem>>, vector<32x32xf32>
    %c0_1 = arith.constant 0 : index
    %2 = memref.load %arg1[%c0_1] : memref<1xi32, #tpu.memory_space<smem>>
    %3 = tpu.iota {dimensions = array<i32: 0>} : vector<32x32xi32>
    %4 = vector.broadcast %0 : i32 to vector<32x32xi32>
    %5 = arith.addi %3, %4 : vector<32x32xi32>
    %6 = tpu.iota {dimensions = array<i32: 1>} : vector<32x32xi32>
    %c-1640531535_i32 = arith.constant -1640531535 : i32
    %7 = vector.broadcast %c-1640531535_i32 : i32 to vector<32x32xi32>
    %8 = arith.muli %5, %7 : vector<32x32xi32>
    %c-2048144777_i32 = arith.constant -2048144777 : i32
    %9 = vector.broadcast %c-2048144777_i32 : i32 to vector<32x32xi32>
    %10 = arith.muli %6, %9 : vector<32x32xi32>
    %11 = arith.addi %8, %10 : vector<32x32xi32>
    %c668265263_i32 = arith.constant 668265263 : i32
    %12 = arith.muli %2, %c668265263_i32 : i32
    %13 = vector.broadcast %12 : i32 to vector<32x32xi32>
    %14 = arith.addi %11, %13 : vector<32x32xi32>
    %c-491216220_i32 = arith.constant -491216220 : i32
    %15 = vector.broadcast %c-491216220_i32 : i32 to vector<32x32xi32>
    %16 = arith.addi %14, %15 : vector<32x32xi32>
    %c16_i32 = arith.constant 16 : i32
    %17 = vector.broadcast %c16_i32 : i32 to vector<32x32xi32>
    %18 = arith.shrui %16, %17 : vector<32x32xi32>
    %19 = arith.xori %16, %18 : vector<32x32xi32>
    %c2146121005_i32 = arith.constant 2146121005 : i32
    %20 = vector.broadcast %c2146121005_i32 : i32 to vector<32x32xi32>
    %21 = arith.muli %19, %20 : vector<32x32xi32>
    %c15_i32 = arith.constant 15 : i32
    %22 = vector.broadcast %c15_i32 : i32 to vector<32x32xi32>
    %23 = arith.shrui %21, %22 : vector<32x32xi32>
    %24 = arith.xori %21, %23 : vector<32x32xi32>
    %c-2073254261_i32 = arith.constant -2073254261 : i32
    %25 = vector.broadcast %c-2073254261_i32 : i32 to vector<32x32xi32>
    %26 = arith.muli %24, %25 : vector<32x32xi32>
    %c16_i32_2 = arith.constant 16 : i32
    %27 = vector.broadcast %c16_i32_2 : i32 to vector<32x32xi32>
    %28 = arith.shrui %26, %27 : vector<32x32xi32>
    %29 = arith.xori %26, %28 : vector<32x32xi32>
    %c8388607_i32 = arith.constant 8388607 : i32
    %30 = vector.broadcast %c8388607_i32 : i32 to vector<32x32xi32>
    %31 = arith.andi %29, %30 : vector<32x32xi32>
    %32 = arith.sitofp %31 : vector<32x32xi32> to vector<32x32xf32>
    %cst = arith.constant 1.1920929E-7 : f32
    %33 = vector.broadcast %cst : f32 to vector<32x32xf32>
    %34 = arith.mulf %32, %33 : vector<32x32xf32>
    %cst_3 = arith.constant 1.000000e+00 : f32
    %35 = vector.broadcast %cst_3 : f32 to vector<32x32xf32>
    %36 = arith.subf %35, %34 : vector<32x32xf32>
    %cst_4 = arith.constant 9.99999996E-13 : f32
    %37 = vector.broadcast %cst_4 : f32 to vector<32x32xf32>
    %38 = arith.maximumf %36, %37 : vector<32x32xf32>
    %39 = math.log %38 : vector<32x32xf32>
    %cst_5 = arith.constant -2.000000e+00 : f32
    %40 = vector.broadcast %cst_5 : f32 to vector<32x32xf32>
    %41 = arith.mulf %40, %39 : vector<32x32xf32>
    %42 = math.sqrt %41 : vector<32x32xf32>
    %cst_6 = arith.constant 5.000000e-02 : f32
    %43 = vector.broadcast %cst_6 : f32 to vector<32x32xf32>
    %44 = arith.mulf %43, %42 : vector<32x32xf32>
    %cst_7 = arith.constant 1.000000e+00 : f32
    %45 = vector.broadcast %cst_7 : f32 to vector<32x32xf32>
    %46 = arith.addf %44, %45 : vector<32x32xf32>
    %c0_8 = arith.constant 0 : index
    %c0_9 = arith.constant 0 : index
    %47 = vector.load %arg3[%c0_8, %c0_9] : memref<32x32xf32, #tpu.memory_space<vmem>>, vector<32x32xf32>
    %48 = arith.mulf %46, %47 : vector<32x32xf32>
    %49 = arith.addf %48, %1 : vector<32x32xf32>
    %cst_10 = arith.constant 5.000000e-01 : f32
    %50 = vector.broadcast %cst_10 : f32 to vector<32x32xf32>
    %51 = arith.mulf %49, %50 : vector<32x32xf32>
    %c0_11 = arith.constant 0 : index
    %c0_12 = arith.constant 0 : index
    %52 = vector.load %arg4[%c0_11, %c0_12] : memref<32x32xf32, #tpu.memory_space<vmem>>, vector<32x32xf32>
    tpu.vector_store %arg4[%c0_11, %c0_12], %51 {strides = array<i32>} : memref<32x32xf32, #tpu.memory_space<vmem>>, vector<32x32xf32>,
    return
  }
  func.func @transform_0(%arg0: i32) -> i32 {
    %c0_i32 = arith.constant 0 : i32
    %c0_i32_0 = arith.constant 0 : i32
    return %c0_i32 : i32
  }
  func.func @transform_1(%arg0: i32) -> (i32, i32) {
    %c0_i32 = arith.constant 0 : i32
    %c0_i32_0 = arith.constant 0 : i32
    return %arg0, %c0_i32 : i32, i32
  }
  func.func @transform_2(%arg0: i32) -> (i32, i32) {
    %c0_i32 = arith.constant 0 : i32
    %c0_i32_0 = arith.constant 0 : i32
    return %arg0, %c0_i32 : i32, i32
  }
  func.func @transform_3(%arg0: i32) -> (i32, i32) {
    %c0_i32 = arith.constant 0 : i32
    %c0_i32_0 = arith.constant 0 : i32
    return %arg0, %c0_i32 : i32, i32
  }
}

module attributes {stable_mosaic.version = 11 : i64} {
  func.func @_gc_noise_kernel(%arg0: i32, %arg1: memref<1xi32, #tpu.memory_space<smem>>, %arg2: memref<1xf32, #tpu.memory_space<smem>>, %arg3: memref<64x64xf32, #tpu.memory_space<vmem>>, %arg4: memref<64x64xf32, #tpu.memory_space<vmem>>) attributes {dimension_semantics = [#tpu.dimension_semantics<parallel>], iteration_bounds = array<i64: 1>, scalar_prefetch = 0 : i64, scratch_operands = 0 : i64, tpu.core_type = #tpu.core_type<tc>, window_params = [{transform_indices = @transform_0, window_bounds = array<i64: 1>}, {transform_indices = @transform_1, window_bounds = array<i64: 1>}, {transform_indices = @transform_2, window_bounds = array<i64: 64, 64>}, {transform_indices = @transform_3, window_bounds = array<i64: 64, 64>}]} {
    %c0 = arith.constant 0 : index
    %c0_0 = arith.constant 0 : index
    %0 = vector.load %arg3[%c0, %c0_0] : memref<64x64xf32, #tpu.memory_space<vmem>>, vector<64x64xf32>
    %c0_1 = arith.constant 0 : index
    %1 = memref.load %arg1[%c0_1] : memref<1xi32, #tpu.memory_space<smem>>
    %c64_i32 = arith.constant 64 : i32
    %2 = arith.muli %arg0, %c64_i32 : i32
    %3 = tpu.iota {dimensions = array<i32: 0>} : vector<64x64xi32>
    %4 = vector.broadcast %2 : i32 to vector<64x64xi32>
    %5 = arith.addi %3, %4 : vector<64x64xi32>
    %6 = tpu.iota {dimensions = array<i32: 1>} : vector<64x64xi32>
    %c-1640531535_i32 = arith.constant -1640531535 : i32
    %7 = vector.broadcast %c-1640531535_i32 : i32 to vector<64x64xi32>
    %8 = arith.muli %5, %7 : vector<64x64xi32>
    %c-2048144777_i32 = arith.constant -2048144777 : i32
    %9 = vector.broadcast %c-2048144777_i32 : i32 to vector<64x64xi32>
    %10 = arith.muli %6, %9 : vector<64x64xi32>
    %11 = arith.addi %8, %10 : vector<64x64xi32>
    %c668265263_i32 = arith.constant 668265263 : i32
    %12 = arith.muli %1, %c668265263_i32 : i32
    %13 = vector.broadcast %12 : i32 to vector<64x64xi32>
    %14 = arith.addi %11, %13 : vector<64x64xi32>
    %c-251865892_i32 = arith.constant -251865892 : i32
    %15 = vector.broadcast %c-251865892_i32 : i32 to vector<64x64xi32>
    %16 = arith.addi %14, %15 : vector<64x64xi32>
    %c16_i32 = arith.constant 16 : i32
    %17 = vector.broadcast %c16_i32 : i32 to vector<64x64xi32>
    %18 = arith.shrui %16, %17 : vector<64x64xi32>
    %19 = arith.xori %16, %18 : vector<64x64xi32>
    %c2146121005_i32 = arith.constant 2146121005 : i32
    %20 = vector.broadcast %c2146121005_i32 : i32 to vector<64x64xi32>
    %21 = arith.muli %19, %20 : vector<64x64xi32>
    %c15_i32 = arith.constant 15 : i32
    %22 = vector.broadcast %c15_i32 : i32 to vector<64x64xi32>
    %23 = arith.shrui %21, %22 : vector<64x64xi32>
    %24 = arith.xori %21, %23 : vector<64x64xi32>
    %c-2073254261_i32 = arith.constant -2073254261 : i32
    %25 = vector.broadcast %c-2073254261_i32 : i32 to vector<64x64xi32>
    %26 = arith.muli %24, %25 : vector<64x64xi32>
    %c16_i32_2 = arith.constant 16 : i32
    %27 = vector.broadcast %c16_i32_2 : i32 to vector<64x64xi32>
    %28 = arith.shrui %26, %27 : vector<64x64xi32>
    %29 = arith.xori %26, %28 : vector<64x64xi32>
    %c8388607_i32 = arith.constant 8388607 : i32
    %30 = vector.broadcast %c8388607_i32 : i32 to vector<64x64xi32>
    %31 = arith.andi %29, %30 : vector<64x64xi32>
    %32 = arith.sitofp %31 : vector<64x64xi32> to vector<64x64xf32>
    %cst = arith.constant 1.1920929E-7 : f32
    %33 = vector.broadcast %cst : f32 to vector<64x64xf32>
    %34 = arith.mulf %32, %33 : vector<64x64xf32>
    %cst_3 = arith.constant 5.000000e-01 : f32
    %35 = vector.broadcast %cst_3 : f32 to vector<64x64xf32>
    %36 = arith.mulf %34, %35 : vector<64x64xf32>
    %cst_4 = arith.constant 1.000000e+00 : f32
    %37 = vector.broadcast %cst_4 : f32 to vector<64x64xf32>
    %38 = arith.subf %36, %37 : vector<64x64xf32>
    %39 = arith.addf %0, %38 : vector<64x64xf32>
    %c0_5 = arith.constant 0 : index
    %40 = memref.load %arg2[%c0_5] : memref<1xf32, #tpu.memory_space<smem>>
    %cst_6 = arith.constant 0.000000e+00 : f32
    %41 = vector.broadcast %cst_6 : f32 to vector<64x64xf32>
    %42 = arith.maximumf %41, %39 : vector<64x64xf32>
    %43 = vector.broadcast %40 : f32 to vector<64x64xf32>
    %44 = arith.minimumf %43, %42 : vector<64x64xf32>
    %c0_7 = arith.constant 0 : index
    %c0_8 = arith.constant 0 : index
    %45 = vector.load %arg4[%c0_7, %c0_8] : memref<64x64xf32, #tpu.memory_space<vmem>>, vector<64x64xf32>
    tpu.vector_store %arg4[%c0_7, %c0_8], %44 {strides = array<i32>} : memref<64x64xf32, #tpu.memory_space<vmem>>, vector<64x64xf32>,
    return
  }
  func.func @transform_0(%arg0: i32) -> i32 {
    %c0_i32 = arith.constant 0 : i32
    %c0_i32_0 = arith.constant 0 : i32
    return %c0_i32 : i32
  }
  func.func @transform_1(%arg0: i32) -> i32 {
    %c0_i32 = arith.constant 0 : i32
    %c0_i32_0 = arith.constant 0 : i32
    return %c0_i32 : i32
  }
  func.func @transform_2(%arg0: i32) -> (i32, i32) {
    %c0_i32 = arith.constant 0 : i32
    %c0_i32_0 = arith.constant 0 : i32
    return %arg0, %c0_i32 : i32, i32
  }
  func.func @transform_3(%arg0: i32) -> (i32, i32) {
    %c0_i32 = arith.constant 0 : i32
    %c0_i32_0 = arith.constant 0 : i32
    return %arg0, %c0_i32 : i32, i32
  }
}

module attributes {stable_mosaic.version = 11 : i64} {
  func.func @_upsample_half_kernel(%arg0: i32, %arg1: memref<1xi32, #tpu.memory_space<smem>>, %arg2: memref<64x64xf32, #tpu.memory_space<vmem>>, %arg3: memref<64x64xf32, #tpu.memory_space<vmem>>, %arg4: memref<64x64xf32, #tpu.memory_space<vmem>>) attributes {dimension_semantics = [#tpu.dimension_semantics<parallel>], iteration_bounds = array<i64: 1>, scalar_prefetch = 0 : i64, scratch_operands = 0 : i64, tpu.core_type = #tpu.core_type<tc>, window_params = [{transform_indices = @transform_0, window_bounds = array<i64: 1>}, {transform_indices = @transform_1, window_bounds = array<i64: 64, 64>}, {transform_indices = @transform_2, window_bounds = array<i64: 64, 64>}, {transform_indices = @transform_3, window_bounds = array<i64: 64, 64>}]} {
    %c64_i32 = arith.constant 64 : i32
    %0 = arith.muli %arg0, %c64_i32 : i32
    %c0 = arith.constant 0 : index
    %c0_0 = arith.constant 0 : index
    %1 = vector.load %arg2[%c0, %c0_0] : memref<64x64xf32, #tpu.memory_space<vmem>>, vector<64x64xf32>
    %c0_1 = arith.constant 0 : index
    %2 = memref.load %arg1[%c0_1] : memref<1xi32, #tpu.memory_space<smem>>
    %3 = tpu.iota {dimensions = array<i32: 0>} : vector<64x64xi32>
    %4 = vector.broadcast %0 : i32 to vector<64x64xi32>
    %5 = arith.addi %3, %4 : vector<64x64xi32>
    %6 = tpu.iota {dimensions = array<i32: 1>} : vector<64x64xi32>
    %c-1640531535_i32 = arith.constant -1640531535 : i32
    %7 = vector.broadcast %c-1640531535_i32 : i32 to vector<64x64xi32>
    %8 = arith.muli %5, %7 : vector<64x64xi32>
    %c-2048144777_i32 = arith.constant -2048144777 : i32
    %9 = vector.broadcast %c-2048144777_i32 : i32 to vector<64x64xi32>
    %10 = arith.muli %6, %9 : vector<64x64xi32>
    %11 = arith.addi %8, %10 : vector<64x64xi32>
    %c668265263_i32 = arith.constant 668265263 : i32
    %12 = arith.muli %2, %c668265263_i32 : i32
    %13 = vector.broadcast %12 : i32 to vector<64x64xi32>
    %14 = arith.addi %11, %13 : vector<64x64xi32>
    %c-491216220_i32 = arith.constant -491216220 : i32
    %15 = vector.broadcast %c-491216220_i32 : i32 to vector<64x64xi32>
    %16 = arith.addi %14, %15 : vector<64x64xi32>
    %c16_i32 = arith.constant 16 : i32
    %17 = vector.broadcast %c16_i32 : i32 to vector<64x64xi32>
    %18 = arith.shrui %16, %17 : vector<64x64xi32>
    %19 = arith.xori %16, %18 : vector<64x64xi32>
    %c2146121005_i32 = arith.constant 2146121005 : i32
    %20 = vector.broadcast %c2146121005_i32 : i32 to vector<64x64xi32>
    %21 = arith.muli %19, %20 : vector<64x64xi32>
    %c15_i32 = arith.constant 15 : i32
    %22 = vector.broadcast %c15_i32 : i32 to vector<64x64xi32>
    %23 = arith.shrui %21, %22 : vector<64x64xi32>
    %24 = arith.xori %21, %23 : vector<64x64xi32>
    %c-2073254261_i32 = arith.constant -2073254261 : i32
    %25 = vector.broadcast %c-2073254261_i32 : i32 to vector<64x64xi32>
    %26 = arith.muli %24, %25 : vector<64x64xi32>
    %c16_i32_2 = arith.constant 16 : i32
    %27 = vector.broadcast %c16_i32_2 : i32 to vector<64x64xi32>
    %28 = arith.shrui %26, %27 : vector<64x64xi32>
    %29 = arith.xori %26, %28 : vector<64x64xi32>
    %c8388607_i32 = arith.constant 8388607 : i32
    %30 = vector.broadcast %c8388607_i32 : i32 to vector<64x64xi32>
    %31 = arith.andi %29, %30 : vector<64x64xi32>
    %32 = arith.sitofp %31 : vector<64x64xi32> to vector<64x64xf32>
    %cst = arith.constant 1.1920929E-7 : f32
    %33 = vector.broadcast %cst : f32 to vector<64x64xf32>
    %34 = arith.mulf %32, %33 : vector<64x64xf32>
    %cst_3 = arith.constant 1.000000e+00 : f32
    %35 = vector.broadcast %cst_3 : f32 to vector<64x64xf32>
    %36 = arith.subf %35, %34 : vector<64x64xf32>
    %cst_4 = arith.constant 9.99999996E-13 : f32
    %37 = vector.broadcast %cst_4 : f32 to vector<64x64xf32>
    %38 = arith.maximumf %36, %37 : vector<64x64xf32>
    %39 = math.log %38 : vector<64x64xf32>
    %cst_5 = arith.constant -2.000000e+00 : f32
    %40 = vector.broadcast %cst_5 : f32 to vector<64x64xf32>
    %41 = arith.mulf %40, %39 : vector<64x64xf32>
    %42 = math.sqrt %41 : vector<64x64xf32>
    %cst_6 = arith.constant 5.000000e-02 : f32
    %43 = vector.broadcast %cst_6 : f32 to vector<64x64xf32>
    %44 = arith.mulf %43, %42 : vector<64x64xf32>
    %cst_7 = arith.constant 1.000000e+00 : f32
    %45 = vector.broadcast %cst_7 : f32 to vector<64x64xf32>
    %46 = arith.addf %44, %45 : vector<64x64xf32>
    %c0_8 = arith.constant 0 : index
    %c0_9 = arith.constant 0 : index
    %47 = vector.load %arg3[%c0_8, %c0_9] : memref<64x64xf32, #tpu.memory_space<vmem>>, vector<64x64xf32>
    %48 = arith.mulf %46, %47 : vector<64x64xf32>
    %49 = arith.addf %48, %1 : vector<64x64xf32>
    %cst_10 = arith.constant 5.000000e-01 : f32
    %50 = vector.broadcast %cst_10 : f32 to vector<64x64xf32>
    %51 = arith.mulf %49, %50 : vector<64x64xf32>
    %c0_11 = arith.constant 0 : index
    %c0_12 = arith.constant 0 : index
    %52 = vector.load %arg4[%c0_11, %c0_12] : memref<64x64xf32, #tpu.memory_space<vmem>>, vector<64x64xf32>
    tpu.vector_store %arg4[%c0_11, %c0_12], %51 {strides = array<i32>} : memref<64x64xf32, #tpu.memory_space<vmem>>, vector<64x64xf32>,
    return
  }
  func.func @transform_0(%arg0: i32) -> i32 {
    %c0_i32 = arith.constant 0 : i32
    %c0_i32_0 = arith.constant 0 : i32
    return %c0_i32 : i32
  }
  func.func @transform_1(%arg0: i32) -> (i32, i32) {
    %c0_i32 = arith.constant 0 : i32
    %c0_i32_0 = arith.constant 0 : i32
    return %arg0, %c0_i32 : i32, i32
  }
  func.func @transform_2(%arg0: i32) -> (i32, i32) {
    %c0_i32 = arith.constant 0 : i32
    %c0_i32_0 = arith.constant 0 : i32
    return %arg0, %c0_i32 : i32, i32
  }
  func.func @transform_3(%arg0: i32) -> (i32, i32) {
    %c0_i32 = arith.constant 0 : i32
    %c0_i32_0 = arith.constant 0 : i32
    return %arg0, %c0_i32 : i32, i32
  }
}

module attributes {stable_mosaic.version = 11 : i64} {
  func.func @_gc_map_kernel(%arg0: i32, %arg1: memref<6xf32, #tpu.memory_space<smem>>, %arg2: memref<64x64xf32, #tpu.memory_space<vmem>>, %arg3: memref<64x64xf32, #tpu.memory_space<vmem>>) attributes {dimension_semantics = [#tpu.dimension_semantics<parallel>], iteration_bounds = array<i64: 1>, scalar_prefetch = 0 : i64, scratch_operands = 0 : i64, tpu.core_type = #tpu.core_type<tc>, window_params = [{transform_indices = @transform_0, window_bounds = array<i64: 6>}, {transform_indices = @transform_1, window_bounds = array<i64: 64, 64>}, {transform_indices = @transform_2, window_bounds = array<i64: 64, 64>}]} {
    %c0 = arith.constant 0 : index
    %0 = memref.load %arg1[%c0] : memref<6xf32, #tpu.memory_space<smem>>
    %c1 = arith.constant 1 : index
    %1 = memref.load %arg1[%c1] : memref<6xf32, #tpu.memory_space<smem>>
    %c2 = arith.constant 2 : index
    %2 = memref.load %arg1[%c2] : memref<6xf32, #tpu.memory_space<smem>>
    %c3 = arith.constant 3 : index
    %3 = memref.load %arg1[%c3] : memref<6xf32, #tpu.memory_space<smem>>
    %c4 = arith.constant 4 : index
    %4 = memref.load %arg1[%c4] : memref<6xf32, #tpu.memory_space<smem>>
    %c5 = arith.constant 5 : index
    %5 = memref.load %arg1[%c5] : memref<6xf32, #tpu.memory_space<smem>>
    %c0_0 = arith.constant 0 : index
    %c0_1 = arith.constant 0 : index
    %6 = vector.load %arg2[%c0_0, %c0_1] : memref<64x64xf32, #tpu.memory_space<vmem>>, vector<64x64xf32>
    %7 = vector.broadcast %0 : f32 to vector<64x64xf32>
    %8 = arith.subf %6, %7 : vector<64x64xf32>
    %9 = vector.broadcast %1 : f32 to vector<64x64xf32>
    %10 = arith.subf %8, %9 : vector<64x64xf32>
    %11 = vector.broadcast %3 : f32 to vector<64x64xf32>
    %12 = arith.mulf %10, %11 : vector<64x64xf32>
    %13 = vector.broadcast %4 : f32 to vector<64x64xf32>
    %14 = arith.mulf %12, %13 : vector<64x64xf32>
    %15 = vector.broadcast %1 : f32 to vector<64x64xf32>
    %16 = arith.addf %14, %15 : vector<64x64xf32>
    %17 = vector.broadcast %1 : f32 to vector<64x64xf32>
    %18 = arith.subf %8, %17 : vector<64x64xf32>
    %cst = arith.constant 0.000000e+00 : f32
    %19 = vector.broadcast %cst : f32 to vector<64x64xf32>
    %20 = arith.maximumf %18, %19 : vector<64x64xf32>
    %21 = vector.broadcast %3 : f32 to vector<64x64xf32>
    %22 = arith.mulf %20, %21 : vector<64x64xf32>
    %cst_2 = arith.constant 1.000000e-30 : f32
    %23 = vector.broadcast %cst_2 : f32 to vector<64x64xf32>
    %24 = arith.maximumf %22, %23 : vector<64x64xf32>
    %25 = math.log %24 : vector<64x64xf32>
    %26 = vector.broadcast %5 : f32 to vector<64x64xf32>
    %27 = arith.mulf %26, %25 : vector<64x64xf32>
    %28 = math.exp %27 : vector<64x64xf32>
    %29 = vector.broadcast %4 : f32 to vector<64x64xf32>
    %30 = arith.mulf %28, %29 : vector<64x64xf32>
    %31 = vector.broadcast %1 : f32 to vector<64x64xf32>
    %32 = arith.addf %30, %31 : vector<64x64xf32>
    %33 = vector.broadcast %1 : f32 to vector<64x64xf32>
    %34 = arith.cmpf ole, %8, %33 : vector<64x64xf32>
    %35 = vector.broadcast %2 : f32 to vector<64x64xf32>
    %36 = arith.cmpf ogt, %8, %35 : vector<64x64xf32>
    %37 = arith.select %36, %16, %32 : vector<64x64xi1>, vector<64x64xf32>
    %38 = arith.select %34, %8, %37 : vector<64x64xi1>, vector<64x64xf32>
    %c0_3 = arith.constant 0 : index
    %c0_4 = arith.constant 0 : index
    %39 = vector.load %arg3[%c0_3, %c0_4] : memref<64x64xf32, #tpu.memory_space<vmem>>, vector<64x64xf32>
    tpu.vector_store %arg3[%c0_3, %c0_4], %38 {strides = array<i32>} : memref<64x64xf32, #tpu.memory_space<vmem>>, vector<64x64xf32>,
    return
  }
  func.func @transform_0(%arg0: i32) -> i32 {
    %c0_i32 = arith.constant 0 : i32
    %c0_i32_0 = arith.constant 0 : i32
    return %c0_i32 : i32
  }
  func.func @transform_1(%arg0: i32) -> (i32, i32) {
    %c0_i32 = arith.constant 0 : i32
    %c0_i32_0 = arith.constant 0 : i32
    return %arg0, %c0_i32 : i32, i32
  }
  func.func @transform_2(%arg0: i32) -> (i32, i32) {
    %c0_i32 = arith.constant 0 : i32
    %c0_i32_0 = arith.constant 0 : i32
    return %arg0, %c0_i32 : i32, i32
  }
}

module attributes {stable_mosaic.version = 11 : i64} {
  func.func @_gc_noise_kernel(%arg0: i32, %arg1: memref<1xi32, #tpu.memory_space<smem>>, %arg2: memref<1xf32, #tpu.memory_space<smem>>, %arg3: memref<128x128xf32, #tpu.memory_space<vmem>>, %arg4: memref<128x128xf32, #tpu.memory_space<vmem>>) attributes {dimension_semantics = [#tpu.dimension_semantics<parallel>], iteration_bounds = array<i64: 1>, scalar_prefetch = 0 : i64, scratch_operands = 0 : i64, tpu.core_type = #tpu.core_type<tc>, window_params = [{transform_indices = @transform_0, window_bounds = array<i64: 1>}, {transform_indices = @transform_1, window_bounds = array<i64: 1>}, {transform_indices = @transform_2, window_bounds = array<i64: 128, 128>}, {transform_indices = @transform_3, window_bounds = array<i64: 128, 128>}]} {
    %c0 = arith.constant 0 : index
    %c0_0 = arith.constant 0 : index
    %0 = vector.load %arg3[%c0, %c0_0] : memref<128x128xf32, #tpu.memory_space<vmem>>, vector<128x128xf32>
    %c0_1 = arith.constant 0 : index
    %1 = memref.load %arg1[%c0_1] : memref<1xi32, #tpu.memory_space<smem>>
    %c128_i32 = arith.constant 128 : i32
    %2 = arith.muli %arg0, %c128_i32 : i32
    %3 = tpu.iota {dimensions = array<i32: 0>} : vector<128x128xi32>
    %4 = vector.broadcast %2 : i32 to vector<128x128xi32>
    %5 = arith.addi %3, %4 : vector<128x128xi32>
    %6 = tpu.iota {dimensions = array<i32: 1>} : vector<128x128xi32>
    %c-1640531535_i32 = arith.constant -1640531535 : i32
    %7 = vector.broadcast %c-1640531535_i32 : i32 to vector<128x128xi32>
    %8 = arith.muli %5, %7 : vector<128x128xi32>
    %c-2048144777_i32 = arith.constant -2048144777 : i32
    %9 = vector.broadcast %c-2048144777_i32 : i32 to vector<128x128xi32>
    %10 = arith.muli %6, %9 : vector<128x128xi32>
    %11 = arith.addi %8, %10 : vector<128x128xi32>
    %c668265263_i32 = arith.constant 668265263 : i32
    %12 = arith.muli %1, %c668265263_i32 : i32
    %13 = vector.broadcast %12 : i32 to vector<128x128xi32>
    %14 = arith.addi %11, %13 : vector<128x128xi32>
    %c-251865892_i32 = arith.constant -251865892 : i32
    %15 = vector.broadcast %c-251865892_i32 : i32 to vector<128x128xi32>
    %16 = arith.addi %14, %15 : vector<128x128xi32>
    %c16_i32 = arith.constant 16 : i32
    %17 = vector.broadcast %c16_i32 : i32 to vector<128x128xi32>
    %18 = arith.shrui %16, %17 : vector<128x128xi32>
    %19 = arith.xori %16, %18 : vector<128x128xi32>
    %c2146121005_i32 = arith.constant 2146121005 : i32
    %20 = vector.broadcast %c2146121005_i32 : i32 to vector<128x128xi32>
    %21 = arith.muli %19, %20 : vector<128x128xi32>
    %c15_i32 = arith.constant 15 : i32
    %22 = vector.broadcast %c15_i32 : i32 to vector<128x128xi32>
    %23 = arith.shrui %21, %22 : vector<128x128xi32>
    %24 = arith.xori %21, %23 : vector<128x128xi32>
    %c-2073254261_i32 = arith.constant -2073254261 : i32
    %25 = vector.broadcast %c-2073254261_i32 : i32 to vector<128x128xi32>
    %26 = arith.muli %24, %25 : vector<128x128xi32>
    %c16_i32_2 = arith.constant 16 : i32
    %27 = vector.broadcast %c16_i32_2 : i32 to vector<128x128xi32>
    %28 = arith.shrui %26, %27 : vector<128x128xi32>
    %29 = arith.xori %26, %28 : vector<128x128xi32>
    %c8388607_i32 = arith.constant 8388607 : i32
    %30 = vector.broadcast %c8388607_i32 : i32 to vector<128x128xi32>
    %31 = arith.andi %29, %30 : vector<128x128xi32>
    %32 = arith.sitofp %31 : vector<128x128xi32> to vector<128x128xf32>
    %cst = arith.constant 1.1920929E-7 : f32
    %33 = vector.broadcast %cst : f32 to vector<128x128xf32>
    %34 = arith.mulf %32, %33 : vector<128x128xf32>
    %cst_3 = arith.constant 5.000000e-01 : f32
    %35 = vector.broadcast %cst_3 : f32 to vector<128x128xf32>
    %36 = arith.mulf %34, %35 : vector<128x128xf32>
    %cst_4 = arith.constant 1.000000e+00 : f32
    %37 = vector.broadcast %cst_4 : f32 to vector<128x128xf32>
    %38 = arith.subf %36, %37 : vector<128x128xf32>
    %39 = arith.addf %0, %38 : vector<128x128xf32>
    %c0_5 = arith.constant 0 : index
    %40 = memref.load %arg2[%c0_5] : memref<1xf32, #tpu.memory_space<smem>>
    %cst_6 = arith.constant 0.000000e+00 : f32
    %41 = vector.broadcast %cst_6 : f32 to vector<128x128xf32>
    %42 = arith.maximumf %41, %39 : vector<128x128xf32>
    %43 = vector.broadcast %40 : f32 to vector<128x128xf32>
    %44 = arith.minimumf %43, %42 : vector<128x128xf32>
    %c0_7 = arith.constant 0 : index
    %c0_8 = arith.constant 0 : index
    %45 = vector.load %arg4[%c0_7, %c0_8] : memref<128x128xf32, #tpu.memory_space<vmem>>, vector<128x128xf32>
    tpu.vector_store %arg4[%c0_7, %c0_8], %44 {strides = array<i32>} : memref<128x128xf32, #tpu.memory_space<vmem>>, vector<128x128xf32>,
    return
  }
  func.func @transform_0(%arg0: i32) -> i32 {
    %c0_i32 = arith.constant 0 : i32
    %c0_i32_0 = arith.constant 0 : i32
    return %c0_i32 : i32
  }
  func.func @transform_1(%arg0: i32) -> i32 {
    %c0_i32 = arith.constant 0 : i32
    %c0_i32_0 = arith.constant 0 : i32
    return %c0_i32 : i32
  }
  func.func @transform_2(%arg0: i32) -> (i32, i32) {
    %c0_i32 = arith.constant 0 : i32
    %c0_i32_0 = arith.constant 0 : i32
    return %arg0, %c0_i32 : i32, i32
  }
  func.func @transform_3(%arg0: i32) -> (i32, i32) {
    %c0_i32 = arith.constant 0 : i32
    %c0_i32_0 = arith.constant 0 : i32
    return %arg0, %c0_i32 : i32, i32
  }
}

module attributes {stable_mosaic.version = 11 : i64} {
  func.func @_gc_map_kernel(%arg0: i32, %arg1: memref<6xf32, #tpu.memory_space<smem>>, %arg2: memref<128x128xf32, #tpu.memory_space<vmem>>, %arg3: memref<128x128xf32, #tpu.memory_space<vmem>>) attributes {dimension_semantics = [#tpu.dimension_semantics<parallel>], iteration_bounds = array<i64: 1>, scalar_prefetch = 0 : i64, scratch_operands = 0 : i64, tpu.core_type = #tpu.core_type<tc>, window_params = [{transform_indices = @transform_0, window_bounds = array<i64: 6>}, {transform_indices = @transform_1, window_bounds = array<i64: 128, 128>}, {transform_indices = @transform_2, window_bounds = array<i64: 128, 128>}]} {
    %c0 = arith.constant 0 : index
    %0 = memref.load %arg1[%c0] : memref<6xf32, #tpu.memory_space<smem>>
    %c1 = arith.constant 1 : index
    %1 = memref.load %arg1[%c1] : memref<6xf32, #tpu.memory_space<smem>>
    %c2 = arith.constant 2 : index
    %2 = memref.load %arg1[%c2] : memref<6xf32, #tpu.memory_space<smem>>
    %c3 = arith.constant 3 : index
    %3 = memref.load %arg1[%c3] : memref<6xf32, #tpu.memory_space<smem>>
    %c4 = arith.constant 4 : index
    %4 = memref.load %arg1[%c4] : memref<6xf32, #tpu.memory_space<smem>>
    %c5 = arith.constant 5 : index
    %5 = memref.load %arg1[%c5] : memref<6xf32, #tpu.memory_space<smem>>
    %c0_0 = arith.constant 0 : index
    %c0_1 = arith.constant 0 : index
    %6 = vector.load %arg2[%c0_0, %c0_1] : memref<128x128xf32, #tpu.memory_space<vmem>>, vector<128x128xf32>
    %7 = vector.broadcast %0 : f32 to vector<128x128xf32>
    %8 = arith.subf %6, %7 : vector<128x128xf32>
    %9 = vector.broadcast %1 : f32 to vector<128x128xf32>
    %10 = arith.subf %8, %9 : vector<128x128xf32>
    %11 = vector.broadcast %3 : f32 to vector<128x128xf32>
    %12 = arith.mulf %10, %11 : vector<128x128xf32>
    %13 = vector.broadcast %4 : f32 to vector<128x128xf32>
    %14 = arith.mulf %12, %13 : vector<128x128xf32>
    %15 = vector.broadcast %1 : f32 to vector<128x128xf32>
    %16 = arith.addf %14, %15 : vector<128x128xf32>
    %17 = vector.broadcast %1 : f32 to vector<128x128xf32>
    %18 = arith.subf %8, %17 : vector<128x128xf32>
    %cst = arith.constant 0.000000e+00 : f32
    %19 = vector.broadcast %cst : f32 to vector<128x128xf32>
    %20 = arith.maximumf %18, %19 : vector<128x128xf32>
    %21 = vector.broadcast %3 : f32 to vector<128x128xf32>
    %22 = arith.mulf %20, %21 : vector<128x128xf32>
    %cst_2 = arith.constant 1.000000e-30 : f32
    %23 = vector.broadcast %cst_2 : f32 to vector<128x128xf32>
    %24 = arith.maximumf %22, %23 : vector<128x128xf32>
    %25 = math.log %24 : vector<128x128xf32>
    %26 = vector.broadcast %5 : f32 to vector<128x128xf32>
    %27 = arith.mulf %26, %25 : vector<128x128xf32>
    %28 = math.exp %27 : vector<128x128xf32>
    %29 = vector.broadcast %4 : f32 to vector<128x128xf32>
    %30 = arith.mulf %28, %29 : vector<128x128xf32>
    %31 = vector.broadcast %1 : f32 to vector<128x128xf32>
    %32 = arith.addf %30, %31 : vector<128x128xf32>
    %33 = vector.broadcast %1 : f32 to vector<128x128xf32>
    %34 = arith.cmpf ole, %8, %33 : vector<128x128xf32>
    %35 = vector.broadcast %2 : f32 to vector<128x128xf32>
    %36 = arith.cmpf ogt, %8, %35 : vector<128x128xf32>
    %37 = arith.select %36, %16, %32 : vector<128x128xi1>, vector<128x128xf32>
    %38 = arith.select %34, %8, %37 : vector<128x128xi1>, vector<128x128xf32>
    %c0_3 = arith.constant 0 : index
    %c0_4 = arith.constant 0 : index
    %39 = vector.load %arg3[%c0_3, %c0_4] : memref<128x128xf32, #tpu.memory_space<vmem>>, vector<128x128xf32>
    tpu.vector_store %arg3[%c0_3, %c0_4], %38 {strides = array<i32>} : memref<128x128xf32, #tpu.memory_space<vmem>>, vector<128x128xf32>,
    return
  }
  func.func @transform_0(%arg0: i32) -> i32 {
    %c0_i32 = arith.constant 0 : i32
    %c0_i32_0 = arith.constant 0 : i32
    return %c0_i32 : i32
  }
  func.func @transform_1(%arg0: i32) -> (i32, i32) {
    %c0_i32 = arith.constant 0 : i32
    %c0_i32_0 = arith.constant 0 : i32
    return %arg0, %c0_i32 : i32, i32
  }
  func.func @transform_2(%arg0: i32) -> (i32, i32) {
    %c0_i32 = arith.constant 0 : i32
    %c0_i32_0 = arith.constant 0 : i32
    return %arg0, %c0_i32 : i32, i32
  }
}

module attributes {stable_mosaic.version = 11 : i64} {
  func.func @_block_mean_kernel(%arg0: i32, %arg1: memref<128x8xf32, #tpu.memory_space<vmem>>, %arg2: memref<128x128xf32, #tpu.memory_space<vmem>>, %arg3: memref<128x8xf32, #tpu.memory_space<vmem>>, %arg4: memref<8x8xf32, #tpu.memory_space<vmem>>) attributes {dimension_semantics = [#tpu.dimension_semantics<arbitrary>], iteration_bounds = array<i64: 1>, scalar_prefetch = 0 : i64, scratch_operands = 0 : i64, tpu.core_type = #tpu.core_type<tc>, window_params = [{transform_indices = @transform_0, window_bounds = array<i64: 128, 8>}, {transform_indices = @transform_1, window_bounds = array<i64: 128, 128>}, {pipeline_mode = #tpu.pipeline_mode<synchronous>, transform_indices = @transform_2, window_bounds = array<i64: 128, 8>}, {pipeline_mode = #tpu.pipeline_mode<synchronous>, transform_indices = @transform_3, window_bounds = array<i64: 8, 8>}]} {
    %c0 = arith.constant 0 : index
    %c0_0 = arith.constant 0 : index
    %0 = vector.load %arg1[%c0, %c0_0] : memref<128x8xf32, #tpu.memory_space<vmem>>, vector<128x8xf32>
    %c0_1 = arith.constant 0 : index
    %c0_2 = arith.constant 0 : index
    %1 = vector.load %arg2[%c0_1, %c0_2] : memref<128x128xf32, #tpu.memory_space<vmem>>, vector<128x128xf32>
    %cst = arith.constant dense<0.000000e+00> : vector<8x128xf32>
    %2 = tpu.matmul %0, %1, %cst {dimension_numbers = #tpu.dot_dimension_numbers<[0], [0], [1], [1], [0, 1, 1, 1], [], []>} : vector<128x8xf32>, vector<128x128xf32>, vector<8x128xf32> -> vector<8x128xf32>
    %c0_3 = arith.constant 0 : index
    %c0_4 = arith.constant 0 : index
    %3 = vector.load %arg3[%c0_3, %c0_4] : memref<128x8xf32, #tpu.memory_space<vmem>>, vector<128x8xf32>
    %cst_5 = arith.constant dense<0.000000e+00> : vector<8x8xf32>
    %4 = tpu.matmul %2, %3, %cst_5 {dimension_numbers = #tpu.dot_dimension_numbers<[1], [0], [0], [1], [0, 0, 1, 1], [], []>} : vector<8x128xf32>, vector<128x8xf32>, vector<8x8xf32> -> vector<8x8xf32>
    %c0_i32 = arith.constant 0 : i32
    %5 = arith.cmpi eq, %arg0, %c0_i32 : i32
    %6 = arith.extui %5 : i1 to i32
    %c0_i32_6 = arith.constant 0 : i32
    %7 = arith.cmpi ne, %6, %c0_i32_6 : i32
    scf.if %7 {
      %c0_9 = arith.constant 0 : index
      %c0_10 = arith.constant 0 : index
      %11 = vector.load %arg4[%c0_9, %c0_10] : memref<8x8xf32, #tpu.memory_space<vmem>>, vector<8x8xf32>
      tpu.vector_store %arg4[%c0_9, %c0_10], %4 {strides = array<i32>} : memref<8x8xf32, #tpu.memory_space<vmem>>, vector<8x8xf32>,
    } else {
    }
    %c0_i32_7 = arith.constant 0 : i32
    %8 = arith.cmpi sgt, %arg0, %c0_i32_7 : i32
    %9 = arith.extui %8 : i1 to i32
    %c0_i32_8 = arith.constant 0 : i32
    %10 = arith.cmpi ne, %9, %c0_i32_8 : i32
    scf.if %10 {
      %c0_9 = arith.constant 0 : index
      %c0_10 = arith.constant 0 : index
      %11 = vector.load %arg4[%c0_9, %c0_10] : memref<8x8xf32, #tpu.memory_space<vmem>>, vector<8x8xf32>
      %12 = arith.addf %11, %4 : vector<8x8xf32>
      %c0_11 = arith.constant 0 : index
      %c0_12 = arith.constant 0 : index
      %13 = vector.load %arg4[%c0_11, %c0_12] : memref<8x8xf32, #tpu.memory_space<vmem>>, vector<8x8xf32>
      tpu.vector_store %arg4[%c0_11, %c0_12], %12 {strides = array<i32>} : memref<8x8xf32, #tpu.memory_space<vmem>>, vector<8x8xf32>,
    } else {
    }
    return
  }
  func.func @transform_0(%arg0: i32) -> (i32, i32) {
    %c0_i32 = arith.constant 0 : i32
    %c0_i32_0 = arith.constant 0 : i32
    return %arg0, %c0_i32 : i32, i32
  }
  func.func @transform_1(%arg0: i32) -> (i32, i32) {
    %c0_i32 = arith.constant 0 : i32
    %c0_i32_0 = arith.constant 0 : i32
    return %arg0, %c0_i32 : i32, i32
  }
  func.func @transform_2(%arg0: i32) -> (i32, i32) {
    %c0_i32 = arith.constant 0 : i32
    %c0_i32_0 = arith.constant 0 : i32
    %c0_i32_1 = arith.constant 0 : i32
    return %c0_i32, %c0_i32_0 : i32, i32
  }
  func.func @transform_3(%arg0: i32) -> (i32, i32) {
    %c0_i32 = arith.constant 0 : i32
    %c0_i32_0 = arith.constant 0 : i32
    %c0_i32_1 = arith.constant 0 : i32
    return %c0_i32, %c0_i32_0 : i32, i32
  }
}

module attributes {stable_mosaic.version = 11 : i64} {
  func.func @_upsample_fuse_kernel(%arg0: i32, %arg1: memref<1xi32, #tpu.memory_space<smem>>, %arg2: memref<3xf32, #tpu.memory_space<smem>>, %arg3: memref<128x128xf32, #tpu.memory_space<vmem>>, %arg4: memref<128x128xf32, #tpu.memory_space<vmem>>, %arg5: memref<128x128xf32, #tpu.memory_space<vmem>>, %arg6: memref<8x8xf32, #tpu.memory_space<vmem>>, %arg7: memref<128x8xf32, #tpu.memory_space<vmem>>, %arg8: memref<8x128xf32, #tpu.memory_space<vmem>>, %arg9: memref<128x128xf32, #tpu.memory_space<vmem>>, %arg10: memref<1x1xf32, #tpu.memory_space<vmem>>) attributes {dimension_semantics = [#tpu.dimension_semantics<arbitrary>], iteration_bounds = array<i64: 1>, scalar_prefetch = 0 : i64, scratch_operands = 0 : i64, tpu.core_type = #tpu.core_type<tc>, window_params = [{transform_indices = @transform_0, window_bounds = array<i64: 1>}, {transform_indices = @transform_1, window_bounds = array<i64: 3>}, {transform_indices = @transform_2, window_bounds = array<i64: 128, 128>}, {transform_indices = @transform_3, window_bounds = array<i64: 128, 128>}, {transform_indices = @transform_4, window_bounds = array<i64: 128, 128>}, {pipeline_mode = #tpu.pipeline_mode<synchronous>, transform_indices = @transform_5, window_bounds = array<i64: 8, 8>}, {transform_indices = @transform_6, window_bounds = array<i64: 128, 8>}, {pipeline_mode = #tpu.pipeline_mode<synchronous>, transform_indices = @transform_7, window_bounds = array<i64: 8, 128>}, {transform_indices = @transform_8, window_bounds = array<i64: 128, 128>}, {pipeline_mode = #tpu.pipeline_mode<synchronous>, transform_indices = @transform_9, window_bounds = array<i64: 1, 1>}]} {
    %c128_i32 = arith.constant 128 : i32
    %0 = arith.muli %arg0, %c128_i32 : i32
    %c0 = arith.constant 0 : index
    %1 = memref.load %arg1[%c0] : memref<1xi32, #tpu.memory_space<smem>>
    %c0_0 = arith.constant 0 : index
    %c0_1 = arith.constant 0 : index
    %2 = vector.load %arg3[%c0_0, %c0_1] : memref<128x128xf32, #tpu.memory_space<vmem>>, vector<128x128xf32>
    %3 = tpu.iota {dimensions = array<i32: 0>} : vector<128x128xi32>
    %4 = vector.broadcast %0 : i32 to vector<128x128xi32>
    %5 = arith.addi %3, %4 : vector<128x128xi32>
    %6 = tpu.iota {dimensions = array<i32: 1>} : vector<128x128xi32>
    %c-1640531535_i32 = arith.constant -1640531535 : i32
    %7 = vector.broadcast %c-1640531535_i32 : i32 to vector<128x128xi32>
    %8 = arith.muli %5, %7 : vector<128x128xi32>
    %c-2048144777_i32 = arith.constant -2048144777 : i32
    %9 = vector.broadcast %c-2048144777_i32 : i32 to vector<128x128xi32>
    %10 = arith.muli %6, %9 : vector<128x128xi32>
    %11 = arith.addi %8, %10 : vector<128x128xi32>
    %c668265263_i32 = arith.constant 668265263 : i32
    %12 = arith.muli %1, %c668265263_i32 : i32
    %13 = vector.broadcast %12 : i32 to vector<128x128xi32>
    %14 = arith.addi %11, %13 : vector<128x128xi32>
    %c283337694_i32 = arith.constant 283337694 : i32
    %15 = vector.broadcast %c283337694_i32 : i32 to vector<128x128xi32>
    %16 = arith.addi %14, %15 : vector<128x128xi32>
    %c16_i32 = arith.constant 16 : i32
    %17 = vector.broadcast %c16_i32 : i32 to vector<128x128xi32>
    %18 = arith.shrui %16, %17 : vector<128x128xi32>
    %19 = arith.xori %16, %18 : vector<128x128xi32>
    %c2146121005_i32 = arith.constant 2146121005 : i32
    %20 = vector.broadcast %c2146121005_i32 : i32 to vector<128x128xi32>
    %21 = arith.muli %19, %20 : vector<128x128xi32>
    %c15_i32 = arith.constant 15 : i32
    %22 = vector.broadcast %c15_i32 : i32 to vector<128x128xi32>
    %23 = arith.shrui %21, %22 : vector<128x128xi32>
    %24 = arith.xori %21, %23 : vector<128x128xi32>
    %c-2073254261_i32 = arith.constant -2073254261 : i32
    %25 = vector.broadcast %c-2073254261_i32 : i32 to vector<128x128xi32>
    %26 = arith.muli %24, %25 : vector<128x128xi32>
    %c16_i32_2 = arith.constant 16 : i32
    %27 = vector.broadcast %c16_i32_2 : i32 to vector<128x128xi32>
    %28 = arith.shrui %26, %27 : vector<128x128xi32>
    %29 = arith.xori %26, %28 : vector<128x128xi32>
    %c8388607_i32 = arith.constant 8388607 : i32
    %30 = vector.broadcast %c8388607_i32 : i32 to vector<128x128xi32>
    %31 = arith.andi %29, %30 : vector<128x128xi32>
    %32 = arith.sitofp %31 : vector<128x128xi32> to vector<128x128xf32>
    %cst = arith.constant 1.1920929E-7 : f32
    %33 = vector.broadcast %cst : f32 to vector<128x128xf32>
    %34 = arith.mulf %32, %33 : vector<128x128xf32>
    %cst_3 = arith.constant 1.000000e+00 : f32
    %35 = vector.broadcast %cst_3 : f32 to vector<128x128xf32>
    %36 = arith.subf %35, %34 : vector<128x128xf32>
    %cst_4 = arith.constant 9.99999996E-13 : f32
    %37 = vector.broadcast %cst_4 : f32 to vector<128x128xf32>
    %38 = arith.maximumf %36, %37 : vector<128x128xf32>
    %39 = math.log %38 : vector<128x128xf32>
    %cst_5 = arith.constant -2.000000e+00 : f32
    %40 = vector.broadcast %cst_5 : f32 to vector<128x128xf32>
    %41 = arith.mulf %40, %39 : vector<128x128xf32>
    %42 = math.sqrt %41 : vector<128x128xf32>
    %cst_6 = arith.constant 1.000000e-01 : f32
    %43 = vector.broadcast %cst_6 : f32 to vector<128x128xf32>
    %44 = arith.mulf %43, %42 : vector<128x128xf32>
    %cst_7 = arith.constant 1.000000e+00 : f32
    %45 = vector.broadcast %cst_7 : f32 to vector<128x128xf32>
    %46 = arith.addf %44, %45 : vector<128x128xf32>
    %c0_8 = arith.constant 0 : index
    %c0_9 = arith.constant 0 : index
    %47 = vector.load %arg4[%c0_8, %c0_9] : memref<128x128xf32, #tpu.memory_space<vmem>>, vector<128x128xf32>
    %48 = arith.mulf %46, %47 : vector<128x128xf32>
    %49 = tpu.iota {dimensions = array<i32: 0>} : vector<128x128xi32>
    %50 = vector.broadcast %0 : i32 to vector<128x128xi32>
    %51 = arith.addi %49, %50 : vector<128x128xi32>
    %52 = tpu.iota {dimensions = array<i32: 1>} : vector<128x128xi32>
    %c-1640531535_i32_10 = arith.constant -1640531535 : i32
    %53 = vector.broadcast %c-1640531535_i32_10 : i32 to vector<128x128xi32>
    %54 = arith.muli %51, %53 : vector<128x128xi32>
    %c-2048144777_i32_11 = arith.constant -2048144777 : i32
    %55 = vector.broadcast %c-2048144777_i32_11 : i32 to vector<128x128xi32>
    %56 = arith.muli %52, %55 : vector<128x128xi32>
    %57 = arith.addi %54, %56 : vector<128x128xi32>
    %c668265263_i32_12 = arith.constant 668265263 : i32
    %58 = arith.muli %1, %c668265263_i32_12 : i32
    %59 = vector.broadcast %58 : i32 to vector<128x128xi32>
    %60 = arith.addi %57, %59 : vector<128x128xi32>
    %c2071795850_i32 = arith.constant 2071795850 : i32
    %61 = vector.broadcast %c2071795850_i32 : i32 to vector<128x128xi32>
    %62 = arith.addi %60, %61 : vector<128x128xi32>
    %c16_i32_13 = arith.constant 16 : i32
    %63 = vector.broadcast %c16_i32_13 : i32 to vector<128x128xi32>
    %64 = arith.shrui %62, %63 : vector<128x128xi32>
    %65 = arith.xori %62, %64 : vector<128x128xi32>
    %c2146121005_i32_14 = arith.constant 2146121005 : i32
    %66 = vector.broadcast %c2146121005_i32_14 : i32 to vector<128x128xi32>
    %67 = arith.muli %65, %66 : vector<128x128xi32>
    %c15_i32_15 = arith.constant 15 : i32
    %68 = vector.broadcast %c15_i32_15 : i32 to vector<128x128xi32>
    %69 = arith.shrui %67, %68 : vector<128x128xi32>
    %70 = arith.xori %67, %69 : vector<128x128xi32>
    %c-2073254261_i32_16 = arith.constant -2073254261 : i32
    %71 = vector.broadcast %c-2073254261_i32_16 : i32 to vector<128x128xi32>
    %72 = arith.muli %70, %71 : vector<128x128xi32>
    %c16_i32_17 = arith.constant 16 : i32
    %73 = vector.broadcast %c16_i32_17 : i32 to vector<128x128xi32>
    %74 = arith.shrui %72, %73 : vector<128x128xi32>
    %75 = arith.xori %72, %74 : vector<128x128xi32>
    %c8388607_i32_18 = arith.constant 8388607 : i32
    %76 = vector.broadcast %c8388607_i32_18 : i32 to vector<128x128xi32>
    %77 = arith.andi %75, %76 : vector<128x128xi32>
    %78 = arith.sitofp %77 : vector<128x128xi32> to vector<128x128xf32>
    %cst_19 = arith.constant 1.1920929E-7 : f32
    %79 = vector.broadcast %cst_19 : f32 to vector<128x128xf32>
    %80 = arith.mulf %78, %79 : vector<128x128xf32>
    %81 = tpu.iota {dimensions = array<i32: 0>} : vector<128x128xi32>
    %82 = vector.broadcast %0 : i32 to vector<128x128xi32>
    %83 = arith.addi %81, %82 : vector<128x128xi32>
    %84 = tpu.iota {dimensions = array<i32: 1>} : vector<128x128xi32>
    %c-1640531535_i32_20 = arith.constant -1640531535 : i32
    %85 = vector.broadcast %c-1640531535_i32_20 : i32 to vector<128x128xi32>
    %86 = arith.muli %83, %85 : vector<128x128xi32>
    %c-2048144777_i32_21 = arith.constant -2048144777 : i32
    %87 = vector.broadcast %c-2048144777_i32_21 : i32 to vector<128x128xi32>
    %88 = arith.muli %84, %87 : vector<128x128xi32>
    %89 = arith.addi %86, %88 : vector<128x128xi32>
    %c668265263_i32_22 = arith.constant 668265263 : i32
    %90 = arith.muli %1, %c668265263_i32_22 : i32
    %91 = vector.broadcast %90 : i32 to vector<128x128xi32>
    %92 = arith.addi %89, %91 : vector<128x128xi32>
    %c-1316263359_i32 = arith.constant -1316263359 : i32
    %93 = vector.broadcast %c-1316263359_i32 : i32 to vector<128x128xi32>
    %94 = arith.addi %92, %93 : vector<128x128xi32>
    %c16_i32_23 = arith.constant 16 : i32
    %95 = vector.broadcast %c16_i32_23 : i32 to vector<128x128xi32>
    %96 = arith.shrui %94, %95 : vector<128x128xi32>
    %97 = arith.xori %94, %96 : vector<128x128xi32>
    %c2146121005_i32_24 = arith.constant 2146121005 : i32
    %98 = vector.broadcast %c2146121005_i32_24 : i32 to vector<128x128xi32>
    %99 = arith.muli %97, %98 : vector<128x128xi32>
    %c15_i32_25 = arith.constant 15 : i32
    %100 = vector.broadcast %c15_i32_25 : i32 to vector<128x128xi32>
    %101 = arith.shrui %99, %100 : vector<128x128xi32>
    %102 = arith.xori %99, %101 : vector<128x128xi32>
    %c-2073254261_i32_26 = arith.constant -2073254261 : i32
    %103 = vector.broadcast %c-2073254261_i32_26 : i32 to vector<128x128xi32>
    %104 = arith.muli %102, %103 : vector<128x128xi32>
    %c16_i32_27 = arith.constant 16 : i32
    %105 = vector.broadcast %c16_i32_27 : i32 to vector<128x128xi32>
    %106 = arith.shrui %104, %105 : vector<128x128xi32>
    %107 = arith.xori %104, %106 : vector<128x128xi32>
    %c8388607_i32_28 = arith.constant 8388607 : i32
    %108 = vector.broadcast %c8388607_i32_28 : i32 to vector<128x128xi32>
    %109 = arith.andi %107, %108 : vector<128x128xi32>
    %110 = arith.sitofp %109 : vector<128x128xi32> to vector<128x128xf32>
    %cst_29 = arith.constant 1.1920929E-7 : f32
    %111 = vector.broadcast %cst_29 : f32 to vector<128x128xf32>
    %112 = arith.mulf %110, %111 : vector<128x128xf32>
    %cst_30 = arith.constant 1.000000e+00 : f32
    %113 = vector.broadcast %cst_30 : f32 to vector<128x128xf32>
    %114 = arith.subf %113, %80 : vector<128x128xf32>
    %cst_31 = arith.constant 9.99999996E-13 : f32
    %115 = vector.broadcast %cst_31 : f32 to vector<128x128xf32>
    %116 = arith.maximumf %114, %115 : vector<128x128xf32>
    %117 = math.log %116 : vector<128x128xf32>
    %cst_32 = arith.constant -2.000000e+00 : f32
    %118 = vector.broadcast %cst_32 : f32 to vector<128x128xf32>
    %119 = arith.mulf %118, %117 : vector<128x128xf32>
    %120 = math.sqrt %119 : vector<128x128xf32>
    %cst_33 = arith.constant 6.28318548 : f32
    %121 = vector.broadcast %cst_33 : f32 to vector<128x128xf32>
    %122 = arith.mulf %112, %121 : vector<128x128xf32>
    %123 = math.cos %122 : vector<128x128xf32>
    %124 = arith.mulf %120, %123 : vector<128x128xf32>
    %cst_34 = arith.constant 2.000000e+01 : f32
    %125 = vector.broadcast %cst_34 : f32 to vector<128x128xf32>
    %126 = arith.mulf %125, %124 : vector<128x128xf32>
    %127 = arith.addf %48, %126 : vector<128x128xf32>
    %c0_35 = arith.constant 0 : index
    %128 = memref.load %arg2[%c0_35] : memref<3xf32, #tpu.memory_space<smem>>
    %c1 = arith.constant 1 : index
    %129 = memref.load %arg2[%c1] : memref<3xf32, #tpu.memory_space<smem>>
    %c2 = arith.constant 2 : index
    %130 = memref.load %arg2[%c2] : memref<3xf32, #tpu.memory_space<smem>>
    %131 = vector.broadcast %128 : f32 to vector<128x128xf32>
    %132 = arith.cmpf olt, %2, %131 : vector<128x128xf32>
    %133 = vector.broadcast %129 : f32 to vector<128x128xf32>
    %134 = arith.subf %2, %133 : vector<128x128xf32>
    %135 = arith.subf %128, %129 : f32
    %136 = vector.broadcast %135 : f32 to vector<128x128xf32>
    %137 = arith.divf %134, %136 : vector<128x128xf32>
    %138 = vector.broadcast %130 : f32 to vector<128x128xf32>
    %139 = arith.subf %138, %2 : vector<128x128xf32>
    %140 = arith.subf %130, %128 : f32
    %141 = vector.broadcast %140 : f32 to vector<128x128xf32>
    %142 = arith.divf %139, %141 : vector<128x128xf32>
    %143 = arith.select %132, %137, %142 : vector<128x128xi1>, vector<128x128xf32>
    %c0_36 = arith.constant 0 : index
    %c0_37 = arith.constant 0 : index
    %144 = vector.load %arg7[%c0_36, %c0_37] : memref<128x8xf32, #tpu.memory_space<vmem>>, vector<128x8xf32>
    %c0_38 = arith.constant 0 : index
    %c0_39 = arith.constant 0 : index
    %145 = vector.load %arg6[%c0_38, %c0_39] : memref<8x8xf32, #tpu.memory_space<vmem>>, vector<8x8xf32>
    %cst_40 = arith.constant dense<0.000000e+00> : vector<128x8xf32>
    %146 = tpu.matmul %144, %145, %cst_40 {dimension_numbers = #tpu.dot_dimension_numbers<[1], [0], [0], [1], [0, 0, 1, 1], [], []>} : vector<128x8xf32>, vector<8x8xf32>, vector<128x8xf32> -> vector<128x8xf32>
    %c0_41 = arith.constant 0 : index
    %c0_42 = arith.constant 0 : index
    %147 = vector.load %arg8[%c0_41, %c0_42] : memref<8x128xf32, #tpu.memory_space<vmem>>, vector<8x128xf32>
    %cst_43 = arith.constant dense<0.000000e+00> : vector<128x128xf32>
    %148 = tpu.matmul %146, %147, %cst_43 {dimension_numbers = #tpu.dot_dimension_numbers<[1], [0], [0], [1], [0, 0, 1, 1], [], []>} : vector<128x8xf32>, vector<8x128xf32>, vector<128x128xf32> -> vector<128x128xf32>
    %c0_44 = arith.constant 0 : index
    %c0_45 = arith.constant 0 : index
    %149 = vector.load %arg5[%c0_44, %c0_45] : memref<128x128xf32, #tpu.memory_space<vmem>>, vector<128x128xf32>
    %150 = arith.subf %149, %148 : vector<128x128xf32>
    %151 = arith.mulf %150, %143 : vector<128x128xf32>
    %152 = arith.addf %127, %151 : vector<128x128xf32>
    %c0_46 = arith.constant 0 : index
    %c0_47 = arith.constant 0 : index
    %153 = vector.load %arg9[%c0_46, %c0_47] : memref<128x128xf32, #tpu.memory_space<vmem>>, vector<128x128xf32>
    tpu.vector_store %arg9[%c0_46, %c0_47], %152 {strides = array<i32>} : memref<128x128xf32, #tpu.memory_space<vmem>>, vector<128x128xf32>,
    %154 = vector.shape_cast %152 : vector<128x128xf32> to vector<1x128x128xf32>
    %cst_48 = arith.constant dense<0xFF800000> : vector<1xf32>
    %155 = vector.multi_reduction <maximumf>, %154, %cst_48 [1, 2] : vector<1x128x128xf32> to vector<1xf32>
    %156 = vector.shape_cast %155 : vector<1xf32> to vector<1x1x1xf32>
    %157 = vector.extract %156[0, 0, 0] : f32 from vector<1x1x1xf32>
    %158 = vector.broadcast %157 : f32 to vector<1x1xf32>
    %c0_i32 = arith.constant 0 : i32
    %159 = arith.cmpi eq, %arg0, %c0_i32 : i32
    %160 = arith.extui %159 : i1 to i32
    %c0_i32_49 = arith.constant 0 : i32
    %161 = arith.cmpi ne, %160, %c0_i32_49 : i32
    scf.if %161 {
      %c0_52 = arith.constant 0 : index
      %c0_53 = arith.constant 0 : index
      %165 = vector.load %arg10[%c0_52, %c0_53] : memref<1x1xf32, #tpu.memory_space<vmem>>, vector<1x1xf32>
      tpu.vector_store %arg10[%c0_52, %c0_53], %158 {strides = array<i32>} : memref<1x1xf32, #tpu.memory_space<vmem>>, vector<1x1xf32>,
    } else {
    }
    %c0_i32_50 = arith.constant 0 : i32
    %162 = arith.cmpi sgt, %arg0, %c0_i32_50 : i32
    %163 = arith.extui %162 : i1 to i32
    %c0_i32_51 = arith.constant 0 : i32
    %164 = arith.cmpi ne, %163, %c0_i32_51 : i32
    scf.if %164 {
      %c0_52 = arith.constant 0 : index
      %c0_53 = arith.constant 0 : index
      %165 = vector.load %arg10[%c0_52, %c0_53] : memref<1x1xf32, #tpu.memory_space<vmem>>, vector<1x1xf32>
      %166 = arith.maximumf %165, %158 : vector<1x1xf32>
      %c0_54 = arith.constant 0 : index
      %c0_55 = arith.constant 0 : index
      %167 = vector.load %arg10[%c0_54, %c0_55] : memref<1x1xf32, #tpu.memory_space<vmem>>, vector<1x1xf32>
      tpu.vector_store %arg10[%c0_54, %c0_55], %166 {strides = array<i32>} : memref<1x1xf32, #tpu.memory_space<vmem>>, vector<1x1xf32>,
    } else {
    }
    return
  }
  func.func @transform_0(%arg0: i32) -> i32 {
    %c0_i32 = arith.constant 0 : i32
    %c0_i32_0 = arith.constant 0 : i32
    return %c0_i32 : i32
  }
  func.func @transform_1(%arg0: i32) -> i32 {
    %c0_i32 = arith.constant 0 : i32
    %c0_i32_0 = arith.constant 0 : i32
    return %c0_i32 : i32
  }
  func.func @transform_2(%arg0: i32) -> (i32, i32) {
    %c0_i32 = arith.constant 0 : i32
    %c0_i32_0 = arith.constant 0 : i32
    return %arg0, %c0_i32 : i32, i32
  }
  func.func @transform_3(%arg0: i32) -> (i32, i32) {
    %c0_i32 = arith.constant 0 : i32
    %c0_i32_0 = arith.constant 0 : i32
    return %arg0, %c0_i32 : i32, i32
  }
  func.func @transform_4(%arg0: i32) -> (i32, i32) {
    %c0_i32 = arith.constant 0 : i32
    %c0_i32_0 = arith.constant 0 : i32
    return %arg0, %c0_i32 : i32, i32
  }
  func.func @transform_5(%arg0: i32) -> (i32, i32) {
    %c0_i32 = arith.constant 0 : i32
    %c0_i32_0 = arith.constant 0 : i32
    %c0_i32_1 = arith.constant 0 : i32
    return %c0_i32, %c0_i32_0 : i32, i32
  }
  func.func @transform_6(%arg0: i32) -> (i32, i32) {
    %c0_i32 = arith.constant 0 : i32
    %c0_i32_0 = arith.constant 0 : i32
    return %arg0, %c0_i32 : i32, i32
  }
  func.func @transform_7(%arg0: i32) -> (i32, i32) {
    %c0_i32 = arith.constant 0 : i32
    %c0_i32_0 = arith.constant 0 : i32
    %c0_i32_1 = arith.constant 0 : i32
    return %c0_i32, %c0_i32_0 : i32, i32
  }
  func.func @transform_8(%arg0: i32) -> (i32, i32) {
    %c0_i32 = arith.constant 0 : i32
    %c0_i32_0 = arith.constant 0 : i32
    return %arg0, %c0_i32 : i32, i32
  }
  func.func @transform_9(%arg0: i32) -> (i32, i32) {
    %c0_i32 = arith.constant 0 : i32
    %c0_i32_0 = arith.constant 0 : i32
    %c0_i32_1 = arith.constant 0 : i32
    return %c0_i32, %c0_i32_0 : i32, i32
  }
}

module attributes {stable_mosaic.version = 11 : i64} {
  func.func @_clip_avg_kernel(%arg0: i32, %arg1: memref<1xf32, #tpu.memory_space<smem>>, %arg2: memref<128x128xf32, #tpu.memory_space<vmem>>, %arg3: memref<128x128xf32, #tpu.memory_space<vmem>>, %arg4: memref<128x128xf32, #tpu.memory_space<vmem>>) attributes {dimension_semantics = [#tpu.dimension_semantics<parallel>], iteration_bounds = array<i64: 1>, scalar_prefetch = 0 : i64, scratch_operands = 0 : i64, tpu.core_type = #tpu.core_type<tc>, window_params = [{transform_indices = @transform_0, window_bounds = array<i64: 1>}, {transform_indices = @transform_1, window_bounds = array<i64: 128, 128>}, {transform_indices = @transform_2, window_bounds = array<i64: 128, 128>}, {transform_indices = @transform_3, window_bounds = array<i64: 128, 128>}]} {
    %c0 = arith.constant 0 : index
    %c0_0 = arith.constant 0 : index
    %0 = vector.load %arg2[%c0, %c0_0] : memref<128x128xf32, #tpu.memory_space<vmem>>, vector<128x128xf32>
    %c0_1 = arith.constant 0 : index
    %1 = memref.load %arg1[%c0_1] : memref<1xf32, #tpu.memory_space<smem>>
    %cst = arith.constant 0.000000e+00 : f32
    %2 = vector.broadcast %cst : f32 to vector<128x128xf32>
    %3 = arith.maximumf %2, %0 : vector<128x128xf32>
    %4 = vector.broadcast %1 : f32 to vector<128x128xf32>
    %5 = arith.minimumf %4, %3 : vector<128x128xf32>
    %c0_2 = arith.constant 0 : index
    %c0_3 = arith.constant 0 : index
    %6 = vector.load %arg3[%c0_2, %c0_3] : memref<128x128xf32, #tpu.memory_space<vmem>>, vector<128x128xf32>
    %7 = arith.addf %5, %6 : vector<128x128xf32>
    %cst_4 = arith.constant 5.000000e-01 : f32
    %8 = vector.broadcast %cst_4 : f32 to vector<128x128xf32>
    %9 = arith.mulf %7, %8 : vector<128x128xf32>
    %c0_5 = arith.constant 0 : index
    %c0_6 = arith.constant 0 : index
    %10 = vector.load %arg4[%c0_5, %c0_6] : memref<128x128xf32, #tpu.memory_space<vmem>>, vector<128x128xf32>
    tpu.vector_store %arg4[%c0_5, %c0_6], %9 {strides = array<i32>} : memref<128x128xf32, #tpu.memory_space<vmem>>, vector<128x128xf32>,
    return
  }
  func.func @transform_0(%arg0: i32) -> i32 {
    %c0_i32 = arith.constant 0 : i32
    %c0_i32_0 = arith.constant 0 : i32
    return %c0_i32 : i32
  }
  func.func @transform_1(%arg0: i32) -> (i32, i32) {
    %c0_i32 = arith.constant 0 : i32
    %c0_i32_0 = arith.constant 0 : i32
    return %arg0, %c0_i32 : i32, i32
  }
  func.func @transform_2(%arg0: i32) -> (i32, i32) {
    %c0_i32 = arith.constant 0 : i32
    %c0_i32_0 = arith.constant 0 : i32
    return %arg0, %c0_i32 : i32, i32
  }
  func.func @transform_3(%arg0: i32) -> (i32, i32) {
    %c0_i32 = arith.constant 0 : i32
    %c0_i32_0 = arith.constant 0 : i32
    return %arg0, %c0_i32 : i32, i32
  }
}

</mosaic_0001>

<llo_original>
// kernel: _lambda_.19
$region0: #{_lambda_.19}
  #allocation0 [shape = 'u32[]', space=smem, size = 0x4, offset = 0x4, fixed_abs, tag = 'smem constant byte address 0x4 - core index']
  #allocation1 [shape = 'u32[72,128]{1,0:T(1,128)}', space=vmem, size = 0x9000, scoped, tag = 'internal scratch']
  %s0 = inlined_call_operand.vmem [shape: f32[64,64], index: 0, kind: input, shape index: {}]
  %s1 = inlined_call_operand.vmem [shape: f32[64,64], index: 1, kind: input, shape index: {}]
  %s2 = inlined_call_operand.vmem [shape: f32[64,64], index: 2, kind: input, shape index: {}]
  %s3 = inlined_call_operand.vmem [shape: f32[64,64], index: 3, kind: input, shape index: {}]
  %s4 = inlined_call_operand.vmem [shape: f32[64,64], index: 4, kind: output, shape index: {}]
  %s5 = sld [smem:[#allocation0]]
  $region26: #{_lambda_.19} parent=0
    _
  %s7 = ssub.s32 1, %s5
  %s8 = scalar_select 0, %s7, %s5
  // Predicated region
  $region2: #{_lambda_.19} parent=0 // pred_check
    _
  $region3: #{_lambda_.19} parent=0 // pred_check_branch
    %10 = sbr.rel (0) target = $region5
  $region4: #{_lambda_.19} parent=0 // pred_region
    _
  $region5: #{_lambda_.19} parent=0 // pred_fallthru
    _
  // Predicated region
  $region6: #{_lambda_.19} parent=0 // pred_check
    _
  $region7: #{_lambda_.19} parent=0 // pred_check_branch
    %12 = sbr.rel (0) target = $region9
  $region8: #{_lambda_.19} parent=0 // pred_region
    _
  $region9: #{_lambda_.19} parent=0 // pred_fallthru
    _
  // Predicated region
  $region10: #{_lambda_.19} parent=0 // pred_check
    _
  $region11: #{_lambda_.19} parent=0 // pred_check_branch
    %14 = sbr.rel (0) target = $region13
  $region12: #{_lambda_.19} parent=0 // pred_region
    _
  $region13: #{_lambda_.19} parent=0 // pred_fallthru
    _
  // Predicated region
  $region14: #{_lambda_.19} parent=0 // pred_check
    _
  $region15: #{_lambda_.19} parent=0 // pred_check_branch
    %16 = sbr.rel (0) target = $region17
  $region16: #{_lambda_.19} parent=0 // pred_region
    _
  $region17: #{_lambda_.19} parent=0 // pred_fallthru
    _
  %v17 = vld [vmem:[%s0] sm:$0xff]
  %v18 = vld [vmem:[%s0 + $0x8] sm:$0xff]
  %v19 = vld [vmem:[%s0 + $0x10] sm:$0xff]
  %v20 = vld [vmem:[%s0 + $0x18] sm:$0xff]
  %v21 = vld [vmem:[%s0 + $0x20] sm:$0xff]
  %v22 = vld [vmem:[%s0 + $0x28] sm:$0xff]
  %v23 = vld [vmem:[%s0 + $0x30] sm:$0xff]
  %v24 = vld [vmem:[%s0 + $0x38] sm:$0xff]
  %v25 = vld [vmem:[%s1] sm:$0xff]
  %v26 = vld [vmem:[%s1 + $0x8] sm:$0xff]
  %v27 = vld [vmem:[%s1 + $0x10] sm:$0xff]
  %v28 = vld [vmem:[%s1 + $0x18] sm:$0xff]
  %v29 = vld [vmem:[%s1 + $0x20] sm:$0xff]
  %v30 = vld [vmem:[%s1 + $0x28] sm:$0xff]
  %v31 = vld [vmem:[%s1 + $0x30] sm:$0xff]
  %v32 = vld [vmem:[%s1 + $0x38] sm:$0xff]
  %v33 = vmax.f32 %v17, %v25
  %v34 = vmax.f32 %v18, %v26
  %v35 = vmax.f32 %v19, %v27
  %v36 = vmax.f32 %v20, %v28
  %v37 = vmax.f32 %v21, %v29
  %v38 = vmax.f32 %v22, %v30
  %v39 = vmax.f32 %v23, %v31
  %v40 = vmax.f32 %v24, %v32
  %v41 = vld [vmem:[%s2] sm:$0xff]
  %v42 = vld [vmem:[%s2 + $0x8] sm:$0xff]
  %v43 = vld [vmem:[%s2 + $0x10] sm:$0xff]
  %v44 = vld [vmem:[%s2 + $0x18] sm:$0xff]
  %v45 = vld [vmem:[%s2 + $0x20] sm:$0xff]
  %v46 = vld [vmem:[%s2 + $0x28] sm:$0xff]
  %v47 = vld [vmem:[%s2 + $0x30] sm:$0xff]
  %v48 = vld [vmem:[%s2 + $0x38] sm:$0xff]
  %v49 = vld [vmem:[%s3] sm:$0xff]
  %v50 = vld [vmem:[%s3 + $0x8] sm:$0xff]
  %v51 = vld [vmem:[%s3 + $0x10] sm:$0xff]
  %v52 = vld [vmem:[%s3 + $0x18] sm:$0xff]
  %v53 = vld [vmem:[%s3 + $0x20] sm:$0xff]
  %v54 = vld [vmem:[%s3 + $0x28] sm:$0xff]
  %v55 = vld [vmem:[%s3 + $0x30] sm:$0xff]
  %v56 = vld [vmem:[%s3 + $0x38] sm:$0xff]
  %v57 = vmax.f32 %v41, %v49
  %v58 = vmax.f32 %v42, %v50
  %v59 = vmax.f32 %v43, %v51
  %v60 = vmax.f32 %v44, %v52
  %v61 = vmax.f32 %v45, %v53
  %v62 = vmax.f32 %v46, %v54
  %v63 = vmax.f32 %v47, %v55
  %v64 = vmax.f32 %v48, %v56
  %v65 = vmax.f32 %v33, %v57
  %v66 = vmax.f32 %v34, %v58
  %v67 = vmax.f32 %v35, %v59
  %v68 = vmax.f32 %v36, %v60
  %v69 = vmax.f32 %v37, %v61
  %v70 = vmax.f32 %v38, %v62
  %v71 = vmax.f32 %v39, %v63
  %v72 = vmax.f32 %v40, %v64
  %vm73 = vcmask 523264
  %74 = vst.msk [vmem:[%s4] sm:$0xff] %vm73, %v65
  %75 = vst.msk [vmem:[%s4 + $0x8] sm:$0xff] %vm73, %v66
  %76 = vst.msk [vmem:[%s4 + $0x10] sm:$0xff] %vm73, %v67
  %77 = vst.msk [vmem:[%s4 + $0x18] sm:$0xff] %vm73, %v68
  %78 = vst.msk [vmem:[%s4 + $0x20] sm:$0xff] %vm73, %v69
  %79 = vst.msk [vmem:[%s4 + $0x28] sm:$0xff] %vm73, %v70
  %80 = vst.msk [vmem:[%s4 + $0x30] sm:$0xff] %vm73, %v71
  %81 = vst.msk [vmem:[%s4 + $0x38] sm:$0xff] %vm73, %v72
  // Predicated region
  $region18: #{_lambda_.19} parent=0 // pred_check
    _
  $region19: #{_lambda_.19} parent=0 // pred_check_branch
    %83 = sbr.rel (0) target = $region21
  $region20: #{_lambda_.19} parent=0 // pred_region
    _
  $region21: #{_lambda_.19} parent=0 // pred_fallthru
    _
  // Predicated region
  $region22: #{_lambda_.19} parent=0 // pred_check
    _
  $region23: #{_lambda_.19} parent=0 // pred_check_branch
    %85 = sbr.rel (0) target = $region25
  $region24: #{_lambda_.19} parent=0 // pred_region
    _
  $region25: #{_lambda_.19} parent=0 // pred_fallthru
    _

// kernel: _lambda_.20
$region0: #{_lambda_.20}
  #allocation0 [shape = 'u32[]', space=smem, size = 0x4, offset = 0x4, fixed_abs, tag = 'smem constant byte address 0x4 - core index']
  #allocation1 [shape = 'u32[72,128]{1,0:T(1,128)}', space=vmem, size = 0x9000, scoped, tag = 'internal scratch']
  %s0 = inlined_call_operand.vmem [shape: f32[32,32], index: 0, kind: input, shape index: {}]
  %s1 = inlined_call_operand.vmem [shape: f32[32,32], index: 1, kind: input, shape index: {}]
  %s2 = inlined_call_operand.vmem [shape: f32[32,32], index: 2, kind: input, shape index: {}]
  %s3 = inlined_call_operand.vmem [shape: f32[32,32], index: 3, kind: input, shape index: {}]
  %s4 = inlined_call_operand.vmem [shape: f32[32,32], index: 4, kind: output, shape index: {}]
  %s5 = sld [smem:[#allocation0]]
  $region26: #{_lambda_.20} parent=0
    _
  %s7 = ssub.s32 1, %s5
  %s8 = scalar_select 0, %s7, %s5
  // Predicated region
  $region2: #{_lambda_.20} parent=0 // pred_check
    _
  $region3: #{_lambda_.20} parent=0 // pred_check_branch
    %10 = sbr.rel (0) target = $region5
  $region4: #{_lambda_.20} parent=0 // pred_region
    _
  $region5: #{_lambda_.20} parent=0 // pred_fallthru
    _
  // Predicated region
  $region6: #{_lambda_.20} parent=0 // pred_check
    _
  $region7: #{_lambda_.20} parent=0 // pred_check_branch
    %12 = sbr.rel (0) target = $region9
  $region8: #{_lambda_.20} parent=0 // pred_region
    _
  $region9: #{_lambda_.20} parent=0 // pred_fallthru
    _
  // Predicated region
  $region10: #{_lambda_.20} parent=0 // pred_check
    _
  $region11: #{_lambda_.20} parent=0 // pred_check_branch
    %14 = sbr.rel (0) target = $region13
  $region12: #{_lambda_.20} parent=0 // pred_region
    _
  $region13: #{_lambda_.20} parent=0 // pred_fallthru
    _
  // Predicated region
  $region14: #{_lambda_.20} parent=0 // pred_check
    _
  $region15: #{_lambda_.20} parent=0 // pred_check_branch
    %16 = sbr.rel (0) target = $region17
  $region16: #{_lambda_.20} parent=0 // pred_region
    _
  $region17: #{_lambda_.20} parent=0 // pred_fallthru
    _
  %v17 = vld [vmem:[%s0] sm:$0xff]
  %v18 = vld [vmem:[%s0 + $0x8] sm:$0xff]
  %v19 = vld [vmem:[%s0 + $0x10] sm:$0xff]
  %v20 = vld [vmem:[%s0 + $0x18] sm:$0xff]
  %v21 = vld [vmem:[%s1] sm:$0xff]
  %v22 = vld [vmem:[%s1 + $0x8] sm:$0xff]
  %v23 = vld [vmem:[%s1 + $0x10] sm:$0xff]
  %v24 = vld [vmem:[%s1 + $0x18] sm:$0xff]
  %v25 = vmax.f32 %v17, %v21
  %v26 = vmax.f32 %v18, %v22
  %v27 = vmax.f32 %v19, %v23
  %v28 = vmax.f32 %v20, %v24
  %v29 = vld [vmem:[%s2] sm:$0xff]
  %v30 = vld [vmem:[%s2 + $0x8] sm:$0xff]
  %v31 = vld [vmem:[%s2 + $0x10] sm:$0xff]
  %v32 = vld [vmem:[%s2 + $0x18] sm:$0xff]
  %v33 = vld [vmem:[%s3] sm:$0xff]
  %v34 = vld [vmem:[%s3 + $0x8] sm:$0xff]
  %v35 = vld [vmem:[%s3 + $0x10] sm:$0xff]
  %v36 = vld [vmem:[%s3 + $0x18] sm:$0xff]
  %v37 = vmax.f32 %v29, %v33
  %v38 = vmax.f32 %v30, %v34
  %v39 = vmax.f32 %v31, %v35
  %v40 = vmax.f32 %v32, %v36
  %v41 = vmax.f32 %v25, %v37
  %v42 = vmax.f32 %v26, %v38
  %v43 = vmax.f32 %v27, %v39
  %v44 = vmax.f32 %v28, %v40
  %vm45 = vcmask 261120
  %46 = vst.msk [vmem:[%s4] sm:$0xff] %vm45, %v41
  %47 = vst.msk [vmem:[%s4 + $0x8] sm:$0xff] %vm45, %v42
  %48 = vst.msk [vmem:[%s4 + $0x10] sm:$0xff] %vm45, %v43
  %49 = vst.msk [vmem:[%s4 + $0x18] sm:$0xff] %vm45, %v44
  // Predicated region
  $region18: #{_lambda_.20} parent=0 // pred_check
    _
  $region19: #{_lambda_.20} parent=0 // pred_check_branch
    %51 = sbr.rel (0) target = $region21
  $region20: #{_lambda_.20} parent=0 // pred_region
    _
  $region21: #{_lambda_.20} parent=0 // pred_fallthru
    _
  // Predicated region
  $region22: #{_lambda_.20} parent=0 // pred_check
    _
  $region23: #{_lambda_.20} parent=0 // pred_check_branch
    %53 = sbr.rel (0) target = $region25
  $region24: #{_lambda_.20} parent=0 // pred_region
    _
  $region25: #{_lambda_.20} parent=0 // pred_fallthru
    _

// kernel: _lambda_.21
$region0: #{_lambda_.21}
  #allocation0 [shape = 'u32[]', space=smem, size = 0x4, offset = 0x4, fixed_abs, tag = 'smem constant byte address 0x4 - core index']
  #allocation1 [shape = 'u32[72,128]{1,0:T(1,128)}', space=vmem, size = 0x9000, scoped, tag = 'internal scratch']
  %s0 = inlined_call_operand.vmem [shape: f32[16,16], index: 0, kind: input, shape index: {}]
  %s1 = inlined_call_operand.vmem [shape: f32[16,16], index: 1, kind: input, shape index: {}]
  %s2 = inlined_call_operand.vmem [shape: f32[16,16], index: 2, kind: input, shape index: {}]
  %s3 = inlined_call_operand.vmem [shape: f32[16,16], index: 3, kind: input, shape index: {}]
  %s4 = inlined_call_operand.vmem [shape: f32[16,16], index: 4, kind: output, shape index: {}]
  %s5 = sld [smem:[#allocation0]]
  $region26: #{_lambda_.21} parent=0
    _
  %s7 = ssub.s32 1, %s5
  %s8 = scalar_select 0, %s7, %s5
  // Predicated region
  $region2: #{_lambda_.21} parent=0 // pred_check
    _
  $region3: #{_lambda_.21} parent=0 // pred_check_branch
    %10 = sbr.rel (0) target = $region5
  $region4: #{_lambda_.21} parent=0 // pred_region
    _
  $region5: #{_lambda_.21} parent=0 // pred_fallthru
    _
  // Predicated region
  $region6: #{_lambda_.21} parent=0 // pred_check
    _
  $region7: #{_lambda_.21} parent=0 // pred_check_branch
    %12 = sbr.rel (0) target = $region9
  $region8: #{_lambda_.21} parent=0 // pred_region
    _
  $region9: #{_lambda_.21} parent=0 // pred_fallthru
    _
  // Predicated region
  $region10: #{_lambda_.21} parent=0 // pred_check
    _
  $region11: #{_lambda_.21} parent=0 // pred_check_branch
    %14 = sbr.rel (0) target = $region13
  $region12: #{_lambda_.21} parent=0 // pred_region
    _
  $region13: #{_lambda_.21} parent=0 // pred_fallthru
    _
  // Predicated region
  $region14: #{_lambda_.21} parent=0 // pred_check
    _
  $region15: #{_lambda_.21} parent=0 // pred_check_branch
    %16 = sbr.rel (0) target = $region17
  $region16: #{_lambda_.21} parent=0 // pred_region
    _
  $region17: #{_lambda_.21} parent=0 // pred_fallthru
    _
  %v17 = vld [vmem:[%s0] sm:$0xff]
  %v18 = vld [vmem:[%s0 + $0x8] sm:$0xff]
  %v19 = vld [vmem:[%s1] sm:$0xff]
  %v20 = vld [vmem:[%s1 + $0x8] sm:$0xff]
  %v21 = vmax.f32 %v17, %v19
  %v22 = vmax.f32 %v18, %v20
  %v23 = vld [vmem:[%s2] sm:$0xff]
  %v24 = vld [vmem:[%s2 + $0x8] sm:$0xff]
  %v25 = vld [vmem:[%s3] sm:$0xff]
  %v26 = vld [vmem:[%s3 + $0x8] sm:$0xff]
  %v27 = vmax.f32 %v23, %v25
  %v28 = vmax.f32 %v24, %v26
  %v29 = vmax.f32 %v21, %v27
  %v30 = vmax.f32 %v22, %v28
  %vm31 = vcmask 130048
  %32 = vst.msk [vmem:[%s4] sm:$0xff] %vm31, %v29
  %33 = vst.msk [vmem:[%s4 + $0x8] sm:$0xff] %vm31, %v30
  // Predicated region
  $region18: #{_lambda_.21} parent=0 // pred_check
    _
  $region19: #{_lambda_.21} parent=0 // pred_check_branch
    %35 = sbr.rel (0) target = $region21
  $region20: #{_lambda_.21} parent=0 // pred_region
    _
  $region21: #{_lambda_.21} parent=0 // pred_fallthru
    _
  // Predicated region
  $region22: #{_lambda_.21} parent=0 // pred_check
    _
  $region23: #{_lambda_.21} parent=0 // pred_check_branch
    %37 = sbr.rel (0) target = $region25
  $region24: #{_lambda_.21} parent=0 // pred_region
    _
  $region25: #{_lambda_.21} parent=0 // pred_fallthru
    _

// kernel: _lambda_.31
$region0: #{_lambda_.31}
  #allocation0 [shape = 'u32[]', space=smem, size = 0x4, offset = 0x4, fixed_abs, tag = 'smem constant byte address 0x4 - core index']
  #allocation1 [shape = 'u32[72,128]{1,0:T(1,128)}', space=vmem, size = 0x9000, scoped, tag = 'internal scratch']
  #allocation2 [shape = 's32[1]{0:T(128)S(6)}', space=smem, size = 0x200, scoped, tag = 'scoped memory for _lambda_.31']
  #allocation3 [shape = 'f32[1]{0:T(128)S(6)}', space=smem, size = 0x200, scoped, tag = 'scoped memory for _lambda_.31']
  %s0 = inlined_call_operand.<no memory space> [shape: s32[1], index: 0, kind: input, shape index: {}]
  %s1 = inlined_call_operand.<no memory space> [shape: f32[1], index: 1, kind: input, shape index: {}]
  %s2 = inlined_call_operand.vmem [shape: f32[16,16], index: 2, kind: input, shape index: {}]
  %s3 = inlined_call_operand.vmem [shape: f32[16,16], index: 3, kind: output, shape index: {}]
  %s4 = sld [smem:[#allocation0]]
  $region22: #{_lambda_.31} parent=0
    _
  %s6 = ssub.s32 1, %s4
  %s7 = scalar_select 0, %s6, %s4
  %8 = sst [smem:[#allocation2]] %s0
  %9 = sst [smem:[#allocation3]] %s1
  // Predicated region
  $region2: #{_lambda_.31} parent=0 // pred_check
    _
  $region3: #{_lambda_.31} parent=0 // pred_check_branch
    %11 = sbr.rel (0) target = $region5
  $region4: #{_lambda_.31} parent=0 // pred_region
    _
  $region5: #{_lambda_.31} parent=0 // pred_fallthru
    _
  // Predicated region
  $region6: #{_lambda_.31} parent=0 // pred_check
    _
  $region7: #{_lambda_.31} parent=0 // pred_check_branch
    %13 = sbr.rel (0) target = $region9
  $region8: #{_lambda_.31} parent=0 // pred_region
    _
  $region9: #{_lambda_.31} parent=0 // pred_fallthru
    _
  // Predicated region
  $region10: #{_lambda_.31} parent=0 // pred_check
    _
  $region11: #{_lambda_.31} parent=0 // pred_check_branch
    %15 = sbr.rel (0) target = $region13
  $region12: #{_lambda_.31} parent=0 // pred_region
    _
  $region13: #{_lambda_.31} parent=0 // pred_fallthru
    _
  %v16 = vld [vmem:[%s2] sm:$0xff]
  %v17 = vld [vmem:[%s2 + $0x8] sm:$0xff]
  %s18 = sld [smem:[#allocation2]]
  %s19 = smul.u32 0, 16
  %v20 = vlaneseq
  %v21 = vshrl.u32 %v20, 7
  %v22 = vadd.s32 %v21, 8
  %v23 = vstv %s19
  %v24 = vadd.s32 %v21, %v23
  %v25 = vadd.s32 %v22, %v23
  %v26 = vlaneseq
  %v27 = vand.u32 %v26, 127
  %v28 = vmul.u32 %v24, 2654435761
  %v29 = vmul.u32 %v25, 2654435761
  %v30 = vmul.u32 %v27, 2246822519
  %v31 = vadd.s32 %v28, %v30
  %v32 = vadd.s32 %v29, %v30
  %s33 = smul.u32 %s18, 668265263
  %v34 = vstv %s33
  %v35 = vadd.s32 %v31, %v34
  %v36 = vadd.s32 %v32, %v34
  %v37 = vadd.s32 %v35, 4043101404
  %v38 = vadd.s32 %v36, 4043101404
  %v39 = vshrl.u32 %v37, 16
  %v40 = vshrl.u32 %v38, 16
  %v41 = vxor.u32 %v37, %v39
  %v42 = vxor.u32 %v38, %v40
  %v43 = vmul.u32 %v41, 2146121005
  %v44 = vmul.u32 %v42, 2146121005
  %v45 = vshrl.u32 %v43, 15
  %v46 = vshrl.u32 %v44, 15
  %v47 = vxor.u32 %v43, %v45
  %v48 = vxor.u32 %v44, %v46
  %v49 = vmul.u32 %v47, 2221713035
  %v50 = vmul.u32 %v48, 2221713035
  %v51 = vshrl.u32 %v49, 16
  %v52 = vshrl.u32 %v50, 16
  %v53 = vxor.u32 %v49, %v51
  %v54 = vxor.u32 %v50, %v52
  %v55 = vand.u32 %v53, 8388607
  %v56 = vand.u32 %v54, 8388607
  %v57 = vcvt.s32.f32 %v55
  %v58 = vcvt.s32.f32 %v56
  %v59 = vmul.f32 %v57, 1.1920929e-07
  %v60 = vmul.f32 %v58, 1.1920929e-07
  %v61 = vmul.f32 %v59, 0.5
  %v62 = vmul.f32 %v60, 0.5
  %v63 = vsub.f32 %v61, 1.0
  %v64 = vsub.f32 %v62, 1.0
  %v65 = vadd.f32 %v16, %v63
  %v66 = vadd.f32 %v17, %v64
  %s67 = sld [smem:[#allocation3]]
  %v68 = vmax.f32 %v65, 0.0
  %v69 = vmax.f32 %v66, 0.0
  %v70 = vstv %s67
  %v71 = vmin.f32 %v70, %v68
  %v72 = vmin.f32 %v70, %v69
  %vm73 = vcmask 130048
  %74 = vst.msk [vmem:[%s3] sm:$0xff] %vm73, %v71
  %75 = vst.msk [vmem:[%s3 + $0x8] sm:$0xff] %vm73, %v72
  // Predicated region
  $region14: #{_lambda_.31} parent=0 // pred_check
    _
  $region15: #{_lambda_.31} parent=0 // pred_check_branch
    %77 = sbr.rel (0) target = $region17
  $region16: #{_lambda_.31} parent=0 // pred_region
    _
  $region17: #{_lambda_.31} parent=0 // pred_fallthru
    _
  // Predicated region
  $region18: #{_lambda_.31} parent=0 // pred_check
    _
  $region19: #{_lambda_.31} parent=0 // pred_check_branch
    %79 = sbr.rel (0) target = $region21
  $region20: #{_lambda_.31} parent=0 // pred_region
    _
  $region21: #{_lambda_.31} parent=0 // pred_fallthru
    _

// kernel: _lambda_.32
$region0: #{_lambda_.32}
  #allocation0 [shape = 'u32[]', space=smem, size = 0x4, offset = 0x4, fixed_abs, tag = 'smem constant byte address 0x4 - core index']
  #allocation1 [shape = 'u32[72,128]{1,0:T(1,128)}', space=vmem, size = 0x9000, scoped, tag = 'internal scratch']
  %s0 = inlined_call_operand.vmem [shape: f32[6], index: 0, kind: input, shape index: {}]
  %s1 = inlined_call_operand.vmem [shape: f32[16,16], index: 1, kind: input, shape index: {}]
  %s2 = inlined_call_operand.vmem [shape: f32[16,16], index: 2, kind: output, shape index: {}]
  %s3 = sld [smem:[#allocation0]]
  $region22: #{_lambda_.32} parent=0
    _
  %s5 = ssub.s32 1, %s3
  %s6 = scalar_select 0, %s5, %s3
  $region1: #{_lambda_.32} parent=0
    #allocation2 [shape = 'u8[512]{0}', space=smem, size = 0x200, scoped, tag = 'input window, operand 0, single buffered']
    #allocation3 [shape = 's32[1]{0}', space=sflag, size = 0x4, scoped, tag = 'scoped memory for _lambda_.32']
    %7 = vsyncpa [#allocation3], 0
    // Predicated region
    $region2: #{_lambda_.32} parent=1 // pred_check
      _
    $region3: #{_lambda_.32} parent=1 // pred_check_branch
      %9 = sbr.rel (0) target = $region5
    $region4: #{_lambda_.32} parent=1 // pred_region
      %11 = vsyncadd [#allocation3], 0
      %s13 = sshll.u32 %s0, 4
      %s14 = int_to_ptr.vmem [resolvable:$true] %s13
      %16 = dma.vmem_to_smem %s14, 16, [#allocation2], [#allocation3]
    $region5: #{_lambda_.32} parent=1 // pred_fallthru
      _
    // Predicated region
    $region6: #{_lambda_.32} parent=1 // pred_check
      _
    $region7: #{_lambda_.32} parent=1 // pred_check_branch
      %18 = sbr.rel (0) target = $region9
    $region8: #{_lambda_.32} parent=1 // pred_region
      _
    $region9: #{_lambda_.32} parent=1 // pred_fallthru
      _
    // Predicated region
    $region10: #{_lambda_.32} parent=1 // pred_check
      _
    $region11: #{_lambda_.32} parent=1 // pred_check_branch
      %20 = sbr.rel (0) target = $region13
    $region12: #{_lambda_.32} parent=1 // pred_region
      %22 = dma.done [#allocation3], 16
    $region13: #{_lambda_.32} parent=1 // pred_fallthru
      _
    %23 = sfence
    %s24 = sld [smem:[#allocation2]]
    %s25 = sld [smem:[#allocation2 + $0x1]]
    %s26 = sld [smem:[#allocation2 + $0x2]]
    %s27 = sld [smem:[#allocation2 + $0x3]]
    %s28 = sld [smem:[#allocation2 + $0x4]]
    %s29 = sld [smem:[#allocation2 + $0x5]]
    %v30 = vld [vmem:[%s1] sm:$0xff]
    %v31 = vld [vmem:[%s1 + $0x8] sm:$0xff]
    %v32 = vstv %s24
    %v33 = vsub.f32 %v30, %v32
    %v34 = vsub.f32 %v31, %v32
    %v35 = vstv %s25
    %v36 = vsub.f32 %v33, %v35
    %v37 = vsub.f32 %v34, %v35
    %v38 = vstv %s27
    %v39 = vmul.f32 %v36, %v38
    %v40 = vmul.f32 %v37, %v38
    %v41 = vstv %s28
    %v42 = vmul.f32 %v39, %v41
    %v43 = vmul.f32 %v40, %v41
    %v44 = vadd.f32 %v42, %v35
    %v45 = vadd.f32 %v43, %v35
    %v46 = vmax.f32 %v36, 0.0
    %v47 = vmax.f32 %v37, 0.0
    %v48 = vmul.f32 %v46, %v38
    %v49 = vmul.f32 %v47, %v38
    %v50 = vmax.f32 %v48, 1e-30
    %v51 = vmax.f32 %v49, 1e-30
    %v52 = vlog2.pop %v50
    %v53 = vmul.f32 %v52, 0.6931472
    %v54 = vlog2.pop %v51
    %v55 = vmul.f32 %v54, 0.6931472
    %v56 = vstv %s29
    %v57 = vmul.f32 %v56, %v53
    %v58 = vmul.f32 %v56, %v55
    %v59 = vmul.f32 %v57, 1.442695
    %v60 = vpow.pop %v59
    %v61 = vmul.f32 %v58, 1.442695
    %v62 = vpow.pop %v61
    %v63 = vmul.f32 %v60, %v41
    %v64 = vmul.f32 %v62, %v41
    %v65 = vadd.f32 %v63, %v35
    %v66 = vadd.f32 %v64, %v35
    %vm67 = vcmp.le.f32.partialorder %v33, %v35
    %vm68 = vcmp.le.f32.partialorder %v34, %v35
    %v69 = vstv %s26
    %vm70 = vcmp.gt.f32.partialorder %v33, %v69
    %vm71 = vcmp.gt.f32.partialorder %v34, %v69
    %v72 = vsel %vm70, %v44, %v65
    %v73 = vsel %vm71, %v45, %v66
    %v74 = vsel %vm67, %v33, %v72
    %v75 = vsel %vm68, %v34, %v73
    %vm76 = vcmask 130048
    %77 = vst.msk [vmem:[%s2] sm:$0xff] %vm76, %v74
    %78 = vst.msk [vmem:[%s2 + $0x8] sm:$0xff] %vm76, %v75
    // Predicated region
    $region14: #{_lambda_.32} parent=1 // pred_check
      _
    $region15: #{_lambda_.32} parent=1 // pred_check_branch
      %80 = sbr.rel (0) target = $region17
    $region16: #{_lambda_.32} parent=1 // pred_region
      _
    $region17: #{_lambda_.32} parent=1 // pred_fallthru
      _
    // Predicated region
    $region18: #{_lambda_.32} parent=1 // pred_check
      _
    $region19: #{_lambda_.32} parent=1 // pred_check_branch
      %82 = sbr.rel (0) target = $region21
    $region20: #{_lambda_.32} parent=1 // pred_region
      _
    $region21: #{_lambda_.32} parent=1 // pred_fallthru
      _
    %83 = vsyncpa [#allocation3], 1

// kernel: _lambda_.29
$region0: #{_lambda_.29}
  #allocation0 [shape = 'u32[]', space=smem, size = 0x4, offset = 0x4, fixed_abs, tag = 'smem constant byte address 0x4 - core index']
  #allocation1 [shape = 'u32[72,128]{1,0:T(1,128)}', space=vmem, size = 0x9000, scoped, tag = 'internal scratch']
  #allocation2 [shape = 's32[1]{0:T(128)S(6)}', space=smem, size = 0x200, scoped, tag = 'scoped memory for _lambda_.29']
  #allocation3 [shape = 'f32[1]{0:T(128)S(6)}', space=smem, size = 0x200, scoped, tag = 'scoped memory for _lambda_.29']
  %s0 = inlined_call_operand.<no memory space> [shape: s32[1], index: 0, kind: input, shape index: {}]
  %s1 = inlined_call_operand.<no memory space> [shape: f32[1], index: 1, kind: input, shape index: {}]
  %s2 = inlined_call_operand.vmem [shape: f32[32,32], index: 2, kind: input, shape index: {}]
  %s3 = inlined_call_operand.vmem [shape: f32[32,32], index: 3, kind: output, shape index: {}]
  %s4 = sld [smem:[#allocation0]]
  $region22: #{_lambda_.29} parent=0
    _
  %s6 = ssub.s32 1, %s4
  %s7 = scalar_select 0, %s6, %s4
  %8 = sst [smem:[#allocation2]] %s0
  %9 = sst [smem:[#allocation3]] %s1
  // Predicated region
  $region2: #{_lambda_.29} parent=0 // pred_check
    _
  $region3: #{_lambda_.29} parent=0 // pred_check_branch
    %11 = sbr.rel (0) target = $region5
  $region4: #{_lambda_.29} parent=0 // pred_region
    _
  $region5: #{_lambda_.29} parent=0 // pred_fallthru
    _
  // Predicated region
  $region6: #{_lambda_.29} parent=0 // pred_check
    _
  $region7: #{_lambda_.29} parent=0 // pred_check_branch
    %13 = sbr.rel (0) target = $region9
  $region8: #{_lambda_.29} parent=0 // pred_region
    _
  $region9: #{_lambda_.29} parent=0 // pred_fallthru
    _
  // Predicated region
  $region10: #{_lambda_.29} parent=0 // pred_check
    _
  $region11: #{_lambda_.29} parent=0 // pred_check_branch
    %15 = sbr.rel (0) target = $region13
  $region12: #{_lambda_.29} parent=0 // pred_region
    _
  $region13: #{_lambda_.29} parent=0 // pred_fallthru
    _
  %v16 = vld [vmem:[%s2] sm:$0xff]
  %v17 = vld [vmem:[%s2 + $0x8] sm:$0xff]
  %v18 = vld [vmem:[%s2 + $0x10] sm:$0xff]
  %v19 = vld [vmem:[%s2 + $0x18] sm:$0xff]
  %s20 = sld [smem:[#allocation2]]
  %s21 = smul.u32 0, 32
  %v22 = vlaneseq
  %v23 = vshrl.u32 %v22, 7
  %v24 = vadd.s32 %v23, 8
  %v25 = vadd.s32 %v23, 16
  %v26 = vadd.s32 %v23, 24
  %v27 = vstv %s21
  %v28 = vadd.s32 %v23, %v27
  %v29 = vadd.s32 %v24, %v27
  %v30 = vadd.s32 %v25, %v27
  %v31 = vadd.s32 %v26, %v27
  %v32 = vlaneseq
  %v33 = vand.u32 %v32, 127
  %v34 = vmul.u32 %v28, 2654435761
  %v35 = vmul.u32 %v29, 2654435761
  %v36 = vmul.u32 %v30, 2654435761
  %v37 = vmul.u32 %v31, 2654435761
  %v38 = vmul.u32 %v33, 2246822519
  %v39 = vadd.s32 %v34, %v38
  %v40 = vadd.s32 %v35, %v38
  %v41 = vadd.s32 %v36, %v38
  %v42 = vadd.s32 %v37, %v38
  %s43 = smul.u32 %s20, 668265263
  %v44 = vstv %s43
  %v45 = vadd.s32 %v39, %v44
  %v46 = vadd.s32 %v40, %v44
  %v47 = vadd.s32 %v41, %v44
  %v48 = vadd.s32 %v42, %v44
  %v49 = vadd.s32 %v45, 4043101404
  %v50 = vadd.s32 %v46, 4043101404
  %v51 = vadd.s32 %v47, 4043101404
  %v52 = vadd.s32 %v48, 4043101404
  %v53 = vshrl.u32 %v49, 16
  %v54 = vshrl.u32 %v50, 16
  %v55 = vshrl.u32 %v51, 16
  %v56 = vshrl.u32 %v52, 16
  %v57 = vxor.u32 %v49, %v53
  %v58 = vxor.u32 %v50, %v54
  %v59 = vxor.u32 %v51, %v55
  %v60 = vxor.u32 %v52, %v56
  %v61 = vmul.u32 %v57, 2146121005
  %v62 = vmul.u32 %v58, 2146121005
  %v63 = vmul.u32 %v59, 2146121005
  %v64 = vmul.u32 %v60, 2146121005
  %v65 = vshrl.u32 %v61, 15
  %v66 = vshrl.u32 %v62, 15
  %v67 = vshrl.u32 %v63, 15
  %v68 = vshrl.u32 %v64, 15
  %v69 = vxor.u32 %v61, %v65
  %v70 = vxor.u32 %v62, %v66
  %v71 = vxor.u32 %v63, %v67
  %v72 = vxor.u32 %v64, %v68
  %v73 = vmul.u32 %v69, 2221713035
  %v74 = vmul.u32 %v70, 2221713035
  %v75 = vmul.u32 %v71, 2221713035
  %v76 = vmul.u32 %v72, 2221713035
  %v77 = vshrl.u32 %v73, 16
  %v78 = vshrl.u32 %v74, 16
  %v79 = vshrl.u32 %v75, 16
  %v80 = vshrl.u32 %v76, 16
  %v81 = vxor.u32 %v73, %v77
  %v82 = vxor.u32 %v74, %v78
  %v83 = vxor.u32 %v75, %v79
  %v84 = vxor.u32 %v76, %v80
  %v85 = vand.u32 %v81, 8388607
  %v86 = vand.u32 %v82, 8388607
  %v87 = vand.u32 %v83, 8388607
  %v88 = vand.u32 %v84, 8388607
  %v89 = vcvt.s32.f32 %v85
  %v90 = vcvt.s32.f32 %v86
  %v91 = vcvt.s32.f32 %v87
  %v92 = vcvt.s32.f32 %v88
  %v93 = vmul.f32 %v89, 1.1920929e-07
  %v94 = vmul.f32 %v90, 1.1920929e-07
  %v95 = vmul.f32 %v91, 1.1920929e-07
  %v96 = vmul.f32 %v92, 1.1920929e-07
  %v97 = vmul.f32 %v93, 0.5
  %v98 = vmul.f32 %v94, 0.5
  %v99 = vmul.f32 %v95, 0.5
  %v100 = vmul.f32 %v96, 0.5
  %v101 = vsub.f32 %v97, 1.0
  %v102 = vsub.f32 %v98, 1.0
  %v103 = vsub.f32 %v99, 1.0
  %v104 = vsub.f32 %v100, 1.0
  %v105 = vadd.f32 %v16, %v101
  %v106 = vadd.f32 %v17, %v102
  %v107 = vadd.f32 %v18, %v103
  %v108 = vadd.f32 %v19, %v104
  %s109 = sld [smem:[#allocation3]]
  %v110 = vmax.f32 %v105, 0.0
  %v111 = vmax.f32 %v106, 0.0
  %v112 = vmax.f32 %v107, 0.0
  %v113 = vmax.f32 %v108, 0.0
  %v114 = vstv %s109
  %v115 = vmin.f32 %v114, %v110
  %v116 = vmin.f32 %v114, %v111
  %v117 = vmin.f32 %v114, %v112
  %v118 = vmin.f32 %v114, %v113
  %vm119 = vcmask 261120
  %120 = vst.msk [vmem:[%s3] sm:$0xff] %vm119, %v115
  %121 = vst.msk [vmem:[%s3 + $0x8] sm:$0xff] %vm119, %v116
  %122 = vst.msk [vmem:[%s3 + $0x10] sm:$0xff] %vm119, %v117
  %123 = vst.msk [vmem:[%s3 + $0x18] sm:$0xff] %vm119, %v118
  // Predicated region
  $region14: #{_lambda_.29} parent=0 // pred_check
    _
  $region15: #{_lambda_.29} parent=0 // pred_check_branch
    %125 = sbr.rel (0) target = $region17
  $region16: #{_lambda_.29} parent=0 // pred_region
    _
  $region17: #{_lambda_.29} parent=0 // pred_fallthru
    _
  // Predicated region
  $region18: #{_lambda_.29} parent=0 // pred_check
    _
  $region19: #{_lambda_.29} parent=0 // pred_check_branch
    %127 = sbr.rel (0) target = $region21
  $region20: #{_lambda_.29} parent=0 // pred_region
    _
  $region21: #{_lambda_.29} parent=0 // pred_fallthru
    _

// kernel: _lambda_.30
$region0: #{_lambda_.30}
  #allocation0 [shape = 'u32[]', space=smem, size = 0x4, offset = 0x4, fixed_abs, tag = 'smem constant byte address 0x4 - core index']
  #allocation1 [shape = 'u32[72,128]{1,0:T(1,128)}', space=vmem, size = 0x9000, scoped, tag = 'internal scratch']
  %s0 = inlined_call_operand.vmem [shape: f32[6], index: 0, kind: input, shape index: {}]
  %s1 = inlined_call_operand.vmem [shape: f32[32,32], index: 1, kind: input, shape index: {}]
  %s2 = inlined_call_operand.vmem [shape: f32[32,32], index: 2, kind: output, shape index: {}]
  %s3 = sld [smem:[#allocation0]]
  $region22: #{_lambda_.30} parent=0
    _
  %s5 = ssub.s32 1, %s3
  %s6 = scalar_select 0, %s5, %s3
  $region1: #{_lambda_.30} parent=0
    #allocation2 [shape = 'u8[512]{0}', space=smem, size = 0x200, scoped, tag = 'input window, operand 0, single buffered']
    #allocation3 [shape = 's32[1]{0}', space=sflag, size = 0x4, scoped, tag = 'scoped memory for _lambda_.30']
    %7 = vsyncpa [#allocation3], 0
    // Predicated region
    $region2: #{_lambda_.30} parent=1 // pred_check
      _
    $region3: #{_lambda_.30} parent=1 // pred_check_branch
      %9 = sbr.rel (0) target = $region5
    $region4: #{_lambda_.30} parent=1 // pred_region
      %11 = vsyncadd [#allocation3], 0
      %s13 = sshll.u32 %s0, 4
      %s14 = int_to_ptr.vmem [resolvable:$true] %s13
      %16 = dma.vmem_to_smem %s14, 16, [#allocation2], [#allocation3]
    $region5: #{_lambda_.30} parent=1 // pred_fallthru
      _
    // Predicated region
    $region6: #{_lambda_.30} parent=1 // pred_check
      _
    $region7: #{_lambda_.30} parent=1 // pred_check_branch
      %18 = sbr.rel (0) target = $region9
    $region8: #{_lambda_.30} parent=1 // pred_region
      _
    $region9: #{_lambda_.30} parent=1 // pred_fallthru
      _
    // Predicated region
    $region10: #{_lambda_.30} parent=1 // pred_check
      _
    $region11: #{_lambda_.30} parent=1 // pred_check_branch
      %20 = sbr.rel (0) target = $region13
    $region12: #{_lambda_.30} parent=1 // pred_region
      %22 = dma.done [#allocation3], 16
    $region13: #{_lambda_.30} parent=1 // pred_fallthru
      _
    %23 = sfence
    %s24 = sld [smem:[#allocation2]]
    %s25 = sld [smem:[#allocation2 + $0x1]]
    %s26 = sld [smem:[#allocation2 + $0x2]]
    %s27 = sld [smem:[#allocation2 + $0x3]]
    %s28 = sld [smem:[#allocation2 + $0x4]]
    %s29 = sld [smem:[#allocation2 + $0x5]]
    %v30 = vld [vmem:[%s1] sm:$0xff]
    %v31 = vld [vmem:[%s1 + $0x8] sm:$0xff]
    %v32 = vld [vmem:[%s1 + $0x10] sm:$0xff]
    %v33 = vld [vmem:[%s1 + $0x18] sm:$0xff]
    %v34 = vstv %s24
    %v35 = vsub.f32 %v30, %v34
    %v36 = vsub.f32 %v31, %v34
    %v37 = vsub.f32 %v32, %v34
    %v38 = vsub.f32 %v33, %v34
    %v39 = vstv %s25
    %v40 = vsub.f32 %v35, %v39
    %v41 = vsub.f32 %v36, %v39
    %v42 = vsub.f32 %v37, %v39
    %v43 = vsub.f32 %v38, %v39
    %v44 = vstv %s27
    %v45 = vmul.f32 %v40, %v44
    %v46 = vmul.f32 %v41, %v44
    %v47 = vmul.f32 %v42, %v44
    %v48 = vmul.f32 %v43, %v44
    %v49 = vstv %s28
    %v50 = vmul.f32 %v45, %v49
    %v51 = vmul.f32 %v46, %v49
    %v52 = vmul.f32 %v47, %v49
    %v53 = vmul.f32 %v48, %v49
    %v54 = vadd.f32 %v50, %v39
    %v55 = vadd.f32 %v51, %v39
    %v56 = vadd.f32 %v52, %v39
    %v57 = vadd.f32 %v53, %v39
    %v58 = vmax.f32 %v40, 0.0
    %v59 = vmax.f32 %v41, 0.0
    %v60 = vmax.f32 %v42, 0.0
    %v61 = vmax.f32 %v43, 0.0
    %v62 = vmul.f32 %v58, %v44
    %v63 = vmul.f32 %v59, %v44
    %v64 = vmul.f32 %v60, %v44
    %v65 = vmul.f32 %v61, %v44
    %v66 = vmax.f32 %v62, 1e-30
    %v67 = vmax.f32 %v63, 1e-30
    %v68 = vmax.f32 %v64, 1e-30
    %v69 = vmax.f32 %v65, 1e-30
    %v70 = vlog2.pop %v66
    %v71 = vmul.f32 %v70, 0.6931472
    %v72 = vlog2.pop %v67
    %v73 = vmul.f32 %v72, 0.6931472
    %v74 = vlog2.pop %v68
    %v75 = vmul.f32 %v74, 0.6931472
    %v76 = vlog2.pop %v69
    %v77 = vmul.f32 %v76, 0.6931472
    %v78 = vstv %s29
    %v79 = vmul.f32 %v78, %v71
    %v80 = vmul.f32 %v78, %v73
    %v81 = vmul.f32 %v78, %v75
    %v82 = vmul.f32 %v78, %v77
    %v83 = vmul.f32 %v79, 1.442695
    %v84 = vpow.pop %v83
    %v85 = vmul.f32 %v80, 1.442695
    %v86 = vpow.pop %v85
    %v87 = vmul.f32 %v81, 1.442695
    %v88 = vpow.pop %v87
    %v89 = vmul.f32 %v82, 1.442695
    %v90 = vpow.pop %v89
    %v91 = vmul.f32 %v84, %v49
    %v92 = vmul.f32 %v86, %v49
    %v93 = vmul.f32 %v88, %v49
    %v94 = vmul.f32 %v90, %v49
    %v95 = vadd.f32 %v91, %v39
    %v96 = vadd.f32 %v92, %v39
    %v97 = vadd.f32 %v93, %v39
    %v98 = vadd.f32 %v94, %v39
    %vm99 = vcmp.le.f32.partialorder %v35, %v39
    %vm100 = vcmp.le.f32.partialorder %v36, %v39
    %vm101 = vcmp.le.f32.partialorder %v37, %v39
    %vm102 = vcmp.le.f32.partialorder %v38, %v39
    %v103 = vstv %s26
    %vm104 = vcmp.gt.f32.partialorder %v35, %v103
    %vm105 = vcmp.gt.f32.partialorder %v36, %v103
    %vm106 = vcmp.gt.f32.partialorder %v37, %v103
    %vm107 = vcmp.gt.f32.partialorder %v38, %v103
    %v108 = vsel %vm104, %v54, %v95
    %v109 = vsel %vm105, %v55, %v96
    %v110 = vsel %vm106, %v56, %v97
    %v111 = vsel %vm107, %v57, %v98
    %v112 = vsel %vm99, %v35, %v108
    %v113 = vsel %vm100, %v36, %v109
    %v114 = vsel %vm101, %v37, %v110
    %v115 = vsel %vm102, %v38, %v111
    %vm116 = vcmask 261120
    %117 = vst.msk [vmem:[%s2] sm:$0xff] %vm116, %v112
    %118 = vst.msk [vmem:[%s2 + $0x8] sm:$0xff] %vm116, %v113
    %119 = vst.msk [vmem:[%s2 + $0x10] sm:$0xff] %vm116, %v114
    %120 = vst.msk [vmem:[%s2 + $0x18] sm:$0xff] %vm116, %v115
    // Predicated region
    $region14: #{_lambda_.30} parent=1 // pred_check
      _
    $region15: #{_lambda_.30} parent=1 // pred_check_branch
      %122 = sbr.rel (0) target = $region17
    $region16: #{_lambda_.30} parent=1 // pred_region
      _
    $region17: #{_lambda_.30} parent=1 // pred_fallthru
      _
    // Predicated region
    $region18: #{_lambda_.30} parent=1 // pred_check
      _
    $region19: #{_lambda_.30} parent=1 // pred_check_branch
      %124 = sbr.rel (0) target = $region21
    $region20: #{_lambda_.30} parent=1 // pred_region
      _
    $region21: #{_lambda_.30} parent=1 // pred_fallthru
      _
    %125 = vsyncpa [#allocation3], 1

// kernel: _lambda_.33
$region0: #{_lambda_.33}
  #allocation0 [shape = 'u32[]', space=smem, size = 0x4, offset = 0x4, fixed_abs, tag = 'smem constant byte address 0x4 - core index']
  #allocation1 [shape = 'u32[72,128]{1,0:T(1,128)}', space=vmem, size = 0x9000, scoped, tag = 'internal scratch']
  #allocation2 [shape = 's32[1]{0:T(128)S(6)}', space=smem, size = 0x200, scoped, tag = 'scoped memory for _lambda_.33']
  %s0 = inlined_call_operand.<no memory space> [shape: s32[1], index: 0, kind: input, shape index: {}]
  %s1 = inlined_call_operand.vmem [shape: f32[32,32], index: 1, kind: input, shape index: {}]
  %s2 = inlined_call_operand.vmem [shape: f32[32,32], index: 2, kind: input, shape index: {}]
  %s3 = inlined_call_operand.vmem [shape: f32[32,32], index: 3, kind: output, shape index: {}]
  %s4 = sld [smem:[#allocation0]]
  $region22: #{_lambda_.33} parent=0
    _
  %s6 = ssub.s32 1, %s4
  %s7 = scalar_select 0, %s6, %s4
  %8 = sst [smem:[#allocation2]] %s0
  // Predicated region
  $region2: #{_lambda_.33} parent=0 // pred_check
    _
  $region3: #{_lambda_.33} parent=0 // pred_check_branch
    %10 = sbr.rel (0) target = $region5
  $region4: #{_lambda_.33} parent=0 // pred_region
    _
  $region5: #{_lambda_.33} parent=0 // pred_fallthru
    _
  // Predicated region
  $region6: #{_lambda_.33} parent=0 // pred_check
    _
  $region7: #{_lambda_.33} parent=0 // pred_check_branch
    %12 = sbr.rel (0) target = $region9
  $region8: #{_lambda_.33} parent=0 // pred_region
    _
  $region9: #{_lambda_.33} parent=0 // pred_fallthru
    _
  // Predicated region
  $region10: #{_lambda_.33} parent=0 // pred_check
    _
  $region11: #{_lambda_.33} parent=0 // pred_check_branch
    %14 = sbr.rel (0) target = $region13
  $region12: #{_lambda_.33} parent=0 // pred_region
    _
  $region13: #{_lambda_.33} parent=0 // pred_fallthru
    _
  %s15 = smul.u32 0, 32
  %v16 = vld [vmem:[%s1] sm:$0xff]
  %v17 = vld [vmem:[%s1 + $0x8] sm:$0xff]
  %v18 = vld [vmem:[%s1 + $0x10] sm:$0xff]
  %v19 = vld [vmem:[%s1 + $0x18] sm:$0xff]
  %s20 = sld [smem:[#allocation2]]
  %v21 = vlaneseq
  %v22 = vshrl.u32 %v21, 7
  %v23 = vadd.s32 %v22, 8
  %v24 = vadd.s32 %v22, 16
  %v25 = vadd.s32 %v22, 24
  %v26 = vstv %s15
  %v27 = vadd.s32 %v22, %v26
  %v28 = vadd.s32 %v23, %v26
  %v29 = vadd.s32 %v24, %v26
  %v30 = vadd.s32 %v25, %v26
  %v31 = vlaneseq
  %v32 = vand.u32 %v31, 127
  %v33 = vmul.u32 %v27, 2654435761
  %v34 = vmul.u32 %v28, 2654435761
  %v35 = vmul.u32 %v29, 2654435761
  %v36 = vmul.u32 %v30, 2654435761
  %v37 = vmul.u32 %v32, 2246822519
  %v38 = vadd.s32 %v33, %v37
  %v39 = vadd.s32 %v34, %v37
  %v40 = vadd.s32 %v35, %v37
  %v41 = vadd.s32 %v36, %v37
  %s42 = smul.u32 %s20, 668265263
  %v43 = vstv %s42
  %v44 = vadd.s32 %v38, %v43
  %v45 = vadd.s32 %v39, %v43
  %v46 = vadd.s32 %v40, %v43
  %v47 = vadd.s32 %v41, %v43
  %v48 = vadd.s32 %v44, 3803751076
  %v49 = vadd.s32 %v45, 3803751076
  %v50 = vadd.s32 %v46, 3803751076
  %v51 = vadd.s32 %v47, 3803751076
  %v52 = vshrl.u32 %v48, 16
  %v53 = vshrl.u32 %v49, 16
  %v54 = vshrl.u32 %v50, 16
  %v55 = vshrl.u32 %v51, 16
  %v56 = vxor.u32 %v48, %v52
  %v57 = vxor.u32 %v49, %v53
  %v58 = vxor.u32 %v50, %v54
  %v59 = vxor.u32 %v51, %v55
  %v60 = vmul.u32 %v56, 2146121005
  %v61 = vmul.u32 %v57, 2146121005
  %v62 = vmul.u32 %v58, 2146121005
  %v63 = vmul.u32 %v59, 2146121005
  %v64 = vshrl.u32 %v60, 15
  %v65 = vshrl.u32 %v61, 15
  %v66 = vshrl.u32 %v62, 15
  %v67 = vshrl.u32 %v63, 15
  %v68 = vxor.u32 %v60, %v64
  %v69 = vxor.u32 %v61, %v65
  %v70 = vxor.u32 %v62, %v66
  %v71 = vxor.u32 %v63, %v67
  %v72 = vmul.u32 %v68, 2221713035
  %v73 = vmul.u32 %v69, 2221713035
  %v74 = vmul.u32 %v70, 2221713035
  %v75 = vmul.u32 %v71, 2221713035
  %v76 = vshrl.u32 %v72, 16
  %v77 = vshrl.u32 %v73, 16
  %v78 = vshrl.u32 %v74, 16
  %v79 = vshrl.u32 %v75, 16
  %v80 = vxor.u32 %v72, %v76
  %v81 = vxor.u32 %v73, %v77
  %v82 = vxor.u32 %v74, %v78
  %v83 = vxor.u32 %v75, %v79
  %v84 = vand.u32 %v80, 8388607
  %v85 = vand.u32 %v81, 8388607
  %v86 = vand.u32 %v82, 8388607
  %v87 = vand.u32 %v83, 8388607
  %v88 = vcvt.s32.f32 %v84
  %v89 = vcvt.s32.f32 %v85
  %v90 = vcvt.s32.f32 %v86
  %v91 = vcvt.s32.f32 %v87
  %v92 = vmul.f32 %v88, 1.1920929e-07
  %v93 = vmul.f32 %v89, 1.1920929e-07
  %v94 = vmul.f32 %v90, 1.1920929e-07
  %v95 = vmul.f32 %v91, 1.1920929e-07
  %v96 = vsub.f32 1.0, %v92
  %v97 = vsub.f32 1.0, %v93
  %v98 = vsub.f32 1.0, %v94
  %v99 = vsub.f32 1.0, %v95
  %v100 = vmax.f32 %v96, 1e-12
  %v101 = vmax.f32 %v97, 1e-12
  %v102 = vmax.f32 %v98, 1e-12
  %v103 = vmax.f32 %v99, 1e-12
  %v104 = vlog2.pop %v100
  %v105 = vmul.f32 %v104, 0.6931472
  %v106 = vlog2.pop %v101
  %v107 = vmul.f32 %v106, 0.6931472
  %v108 = vlog2.pop %v102
  %v109 = vmul.f32 %v108, 0.6931472
  %v110 = vlog2.pop %v103
  %v111 = vmul.f32 %v110, 0.6931472
  %v112 = vmul.f32 %v105, -2.0
  %v113 = vmul.f32 %v107, -2.0
  %v114 = vmul.f32 %v109, -2.0
  %v115 = vmul.f32 %v111, -2.0
  %v116 = vrsqrt.pop %v112
  %v117 = vmul.f32 %v116, %v112
  %v118 = vmul.f32 %v117, %v116
  %v119 = vmul.f32 0.5, %v118
  %v120 = vsub.f32 1.5, %v119
  %v121 = vmul.f32 %v116, %v120
  %v122 = vmul.f32 %v112, %v121
  %vm123 = vcmp.eq.f32.partialorder %v112, inf
  %v124 = vsel %vm123, %v112, %v122
  %vm125 = vcmp.eq.f32.partialorder %v112, 0.0
  %v126 = vand.u32 %v112, 2147483648
  %v127 = vsel %vm125, %v126, %v124
  %v128 = vrsqrt.pop %v113
  %v129 = vmul.f32 %v128, %v113
  %v130 = vmul.f32 %v129, %v128
  %v131 = vmul.f32 0.5, %v130
  %v132 = vsub.f32 1.5, %v131
  %v133 = vmul.f32 %v128, %v132
  %v134 = vmul.f32 %v113, %v133
  %vm135 = vcmp.eq.f32.partialorder %v113, inf
  %v136 = vsel %vm135, %v113, %v134
  %vm137 = vcmp.eq.f32.partialorder %v113, 0.0
  %v138 = vand.u32 %v113, 2147483648
  %v139 = vsel %vm137, %v138, %v136
  %v140 = vrsqrt.pop %v114
  %v141 = vmul.f32 %v140, %v114
  %v142 = vmul.f32 %v141, %v140
  %v143 = vmul.f32 0.5, %v142
  %v144 = vsub.f32 1.5, %v143
  %v145 = vmul.f32 %v140, %v144
  %v146 = vmul.f32 %v114, %v145
  %vm147 = vcmp.eq.f32.partialorder %v114, inf
  %v148 = vsel %vm147, %v114, %v146
  %vm149 = vcmp.eq.f32.partialorder %v114, 0.0
  %v150 = vand.u32 %v114, 2147483648
  %v151 = vsel %vm149, %v150, %v148
  %v152 = vrsqrt.pop %v115
  %v153 = vmul.f32 %v152, %v115
  %v154 = vmul.f32 %v153, %v152
  %v155 = vmul.f32 0.5, %v154
  %v156 = vsub.f32 1.5, %v155
  %v157 = vmul.f32 %v152, %v156
  %v158 = vmul.f32 %v115, %v157
  %vm159 = vcmp.eq.f32.partialorder %v115, inf
  %v160 = vsel %vm159, %v115, %v158
  %vm161 = vcmp.eq.f32.partialorder %v115, 0.0
  %v162 = vand.u32 %v115, 2147483648
  %v163 = vsel %vm161, %v162, %v160
  %v164 = vmul.f32 %v127, 0.05
  %v165 = vmul.f32 %v139, 0.05
  %v166 = vmul.f32 %v151, 0.05
  %v167 = vmul.f32 %v163, 0.05
  %v168 = vadd.f32 %v164, 1.0
  %v169 = vadd.f32 %v165, 1.0
  %v170 = vadd.f32 %v166, 1.0
  %v171 = vadd.f32 %v167, 1.0
  %v172 = vld [vmem:[%s2] sm:$0xff]
  %v173 = vld [vmem:[%s2 + $0x8] sm:$0xff]
  %v174 = vld [vmem:[%s2 + $0x10] sm:$0xff]
  %v175 = vld [vmem:[%s2 + $0x18] sm:$0xff]
  %v176 = vmul.f32 %v168, %v172
  %v177 = vmul.f32 %v169, %v173
  %v178 = vmul.f32 %v170, %v174
  %v179 = vmul.f32 %v171, %v175
  %v180 = vadd.f32 %v176, %v16
  %v181 = vadd.f32 %v177, %v17
  %v182 = vadd.f32 %v178, %v18
  %v183 = vadd.f32 %v179, %v19
  %v184 = vmul.f32 %v180, 0.5
  %v185 = vmul.f32 %v181, 0.5
  %v186 = vmul.f32 %v182, 0.5
  %v187 = vmul.f32 %v183, 0.5
  %vm188 = vcmask 261120
  %189 = vst.msk [vmem:[%s3] sm:$0xff] %vm188, %v184
  %190 = vst.msk [vmem:[%s3 + $0x8] sm:$0xff] %vm188, %v185
  %191 = vst.msk [vmem:[%s3 + $0x10] sm:$0xff] %vm188, %v186
  %192 = vst.msk [vmem:[%s3 + $0x18] sm:$0xff] %vm188, %v187
  // Predicated region
  $region14: #{_lambda_.33} parent=0 // pred_check
    _
  $region15: #{_lambda_.33} parent=0 // pred_check_branch
    %194 = sbr.rel (0) target = $region17
  $region16: #{_lambda_.33} parent=0 // pred_region
    _
  $region17: #{_lambda_.33} parent=0 // pred_fallthru
    _
  // Predicated region
  $region18: #{_lambda_.33} parent=0 // pred_check
    _
  $region19: #{_lambda_.33} parent=0 // pred_check_branch
    %196 = sbr.rel (0) target = $region21
  $region20: #{_lambda_.33} parent=0 // pred_region
    _
  $region21: #{_lambda_.33} parent=0 // pred_fallthru
    _

// kernel: _lambda_.27
$region0: #{_lambda_.27}
  #allocation0 [shape = 'u32[]', space=smem, size = 0x4, offset = 0x4, fixed_abs, tag = 'smem constant byte address 0x4 - core index']
  #allocation1 [shape = 'u32[72,128]{1,0:T(1,128)}', space=vmem, size = 0x9000, scoped, tag = 'internal scratch']
  #allocation2 [shape = 's32[1]{0:T(128)S(6)}', space=smem, size = 0x200, scoped, tag = 'scoped memory for _lambda_.27']
  #allocation3 [shape = 'f32[1]{0:T(128)S(6)}', space=smem, size = 0x200, scoped, tag = 'scoped memory for _lambda_.27']
  %s0 = inlined_call_operand.<no memory space> [shape: s32[1], index: 0, kind: input, shape index: {}]
  %s1 = inlined_call_operand.<no memory space> [shape: f32[1], index: 1, kind: input, shape index: {}]
  %s2 = inlined_call_operand.vmem [shape: f32[64,64], index: 2, kind: input, shape index: {}]
  %s3 = inlined_call_operand.vmem [shape: f32[64,64], index: 3, kind: output, shape index: {}]
  %s4 = sld [smem:[#allocation0]]
  $region22: #{_lambda_.27} parent=0
    _
  %s6 = ssub.s32 1, %s4
  %s7 = scalar_select 0, %s6, %s4
  %8 = sst [smem:[#allocation2]] %s0
  %9 = sst [smem:[#allocation3]] %s1
  // Predicated region
  $region2: #{_lambda_.27} parent=0 // pred_check
    _
  $region3: #{_lambda_.27} parent=0 // pred_check_branch
    %11 = sbr.rel (0) target = $region5
  $region4: #{_lambda_.27} parent=0 // pred_region
    _
  $region5: #{_lambda_.27} parent=0 // pred_fallthru
    _
  // Predicated region
  $region6: #{_lambda_.27} parent=0 // pred_check
    _
  $region7: #{_lambda_.27} parent=0 // pred_check_branch
    %13 = sbr.rel (0) target = $region9
  $region8: #{_lambda_.27} parent=0 // pred_region
    _
  $region9: #{_lambda_.27} parent=0 // pred_fallthru
    _
  // Predicated region
  $region10: #{_lambda_.27} parent=0 // pred_check
    _
  $region11: #{_lambda_.27} parent=0 // pred_check_branch
    %15 = sbr.rel (0) target = $region13
  $region12: #{_lambda_.27} parent=0 // pred_region
    _
  $region13: #{_lambda_.27} parent=0 // pred_fallthru
    _
  %v16 = vld [vmem:[%s2] sm:$0xff]
  %v17 = vld [vmem:[%s2 + $0x8] sm:$0xff]
  %v18 = vld [vmem:[%s2 + $0x10] sm:$0xff]
  %v19 = vld [vmem:[%s2 + $0x18] sm:$0xff]
  %v20 = vld [vmem:[%s2 + $0x20] sm:$0xff]
  %v21 = vld [vmem:[%s2 + $0x28] sm:$0xff]
  %v22 = vld [vmem:[%s2 + $0x30] sm:$0xff]
  %v23 = vld [vmem:[%s2 + $0x38] sm:$0xff]
  %s24 = sld [smem:[#allocation2]]
  %s25 = smul.u32 0, 64
  %v26 = vlaneseq
  %v27 = vshrl.u32 %v26, 7
  %v28 = vadd.s32 %v27, 8
  %v29 = vadd.s32 %v27, 16
  %v30 = vadd.s32 %v27, 24
  %v31 = vadd.s32 %v27, 32
  %v32 = vadd.s32 %v27, 40
  %v33 = vadd.s32 %v27, 48
  %v34 = vadd.s32 %v27, 56
  %v35 = vstv %s25
  %v36 = vadd.s32 %v27, %v35
  %v37 = vadd.s32 %v28, %v35
  %v38 = vadd.s32 %v29, %v35
  %v39 = vadd.s32 %v30, %v35
  %v40 = vadd.s32 %v31, %v35
  %v41 = vadd.s32 %v32, %v35
  %v42 = vadd.s32 %v33, %v35
  %v43 = vadd.s32 %v34, %v35
  %v44 = vlaneseq
  %v45 = vand.u32 %v44, 127
  %v46 = vmul.u32 %v36, 2654435761
  %v47 = vmul.u32 %v37, 2654435761
  %v48 = vmul.u32 %v38, 2654435761
  %v49 = vmul.u32 %v39, 2654435761
  %v50 = vmul.u32 %v40, 2654435761
  %v51 = vmul.u32 %v41, 2654435761
  %v52 = vmul.u32 %v42, 2654435761
  %v53 = vmul.u32 %v43, 2654435761
  %v54 = vmul.u32 %v45, 2246822519
  %v55 = vadd.s32 %v46, %v54
  %v56 = vadd.s32 %v47, %v54
  %v57 = vadd.s32 %v48, %v54
  %v58 = vadd.s32 %v49, %v54
  %v59 = vadd.s32 %v50, %v54
  %v60 = vadd.s32 %v51, %v54
  %v61 = vadd.s32 %v52, %v54
  %v62 = vadd.s32 %v53, %v54
  %s63 = smul.u32 %s24, 668265263
  %v64 = vstv %s63
  %v65 = vadd.s32 %v55, %v64
  %v66 = vadd.s32 %v56, %v64
  %v67 = vadd.s32 %v57, %v64
  %v68 = vadd.s32 %v58, %v64
  %v69 = vadd.s32 %v59, %v64
  %v70 = vadd.s32 %v60, %v64
  %v71 = vadd.s32 %v61, %v64
  %v72 = vadd.s32 %v62, %v64
  %v73 = vadd.s32 %v65, 4043101404
  %v74 = vadd.s32 %v66, 4043101404
  %v75 = vadd.s32 %v67, 4043101404
  %v76 = vadd.s32 %v68, 4043101404
  %v77 = vadd.s32 %v69, 4043101404
  %v78 = vadd.s32 %v70, 4043101404
  %v79 = vadd.s32 %v71, 4043101404
  %v80 = vadd.s32 %v72, 4043101404
  %v81 = vshrl.u32 %v73, 16
  %v82 = vshrl.u32 %v74, 16
  %v83 = vshrl.u32 %v75, 16
  %v84 = vshrl.u32 %v76, 16
  %v85 = vshrl.u32 %v77, 16
  %v86 = vshrl.u32 %v78, 16
  %v87 = vshrl.u32 %v79, 16
  %v88 = vshrl.u32 %v80, 16
  %v89 = vxor.u32 %v73, %v81
  %v90 = vxor.u32 %v74, %v82
  %v91 = vxor.u32 %v75, %v83
  %v92 = vxor.u32 %v76, %v84
  %v93 = vxor.u32 %v77, %v85
  %v94 = vxor.u32 %v78, %v86
  %v95 = vxor.u32 %v79, %v87
  %v96 = vxor.u32 %v80, %v88
  %v97 = vmul.u32 %v89, 2146121005
  %v98 = vmul.u32 %v90, 2146121005
  %v99 = vmul.u32 %v91, 2146121005
  %v100 = vmul.u32 %v92, 2146121005
  %v101 = vmul.u32 %v93, 2146121005
  %v102 = vmul.u32 %v94, 2146121005
  %v103 = vmul.u32 %v95, 2146121005
  %v104 = vmul.u32 %v96, 2146121005
  %v105 = vshrl.u32 %v97, 15
  %v106 = vshrl.u32 %v98, 15
  %v107 = vshrl.u32 %v99, 15
  %v108 = vshrl.u32 %v100, 15
  %v109 = vshrl.u32 %v101, 15
  %v110 = vshrl.u32 %v102, 15
  %v111 = vshrl.u32 %v103, 15
  %v112 = vshrl.u32 %v104, 15
  %v113 = vxor.u32 %v97, %v105
  %v114 = vxor.u32 %v98, %v106
  %v115 = vxor.u32 %v99, %v107
  %v116 = vxor.u32 %v100, %v108
  %v117 = vxor.u32 %v101, %v109
  %v118 = vxor.u32 %v102, %v110
  %v119 = vxor.u32 %v103, %v111
  %v120 = vxor.u32 %v104, %v112
  %v121 = vmul.u32 %v113, 2221713035
  %v122 = vmul.u32 %v114, 2221713035
  %v123 = vmul.u32 %v115, 2221713035
  %v124 = vmul.u32 %v116, 2221713035
  %v125 = vmul.u32 %v117, 2221713035
  %v126 = vmul.u32 %v118, 2221713035
  %v127 = vmul.u32 %v119, 2221713035
  %v128 = vmul.u32 %v120, 2221713035
  %v129 = vshrl.u32 %v121, 16
  %v130 = vshrl.u32 %v122, 16
  %v131 = vshrl.u32 %v123, 16
  %v132 = vshrl.u32 %v124, 16
  %v133 = vshrl.u32 %v125, 16
  %v134 = vshrl.u32 %v126, 16
  %v135 = vshrl.u32 %v127, 16
  %v136 = vshrl.u32 %v128, 16
  %v137 = vxor.u32 %v121, %v129
  %v138 = vxor.u32 %v122, %v130
  %v139 = vxor.u32 %v123, %v131
  %v140 = vxor.u32 %v124, %v132
  %v141 = vxor.u32 %v125, %v133
  %v142 = vxor.u32 %v126, %v134
  %v143 = vxor.u32 %v127, %v135
  %v144 = vxor.u32 %v128, %v136
  %v145 = vand.u32 %v137, 8388607
  %v146 = vand.u32 %v138, 8388607
  %v147 = vand.u32 %v139, 8388607
  %v148 = vand.u32 %v140, 8388607
  %v149 = vand.u32 %v141, 8388607
  %v150 = vand.u32 %v142, 8388607
  %v151 = vand.u32 %v143, 8388607
  %v152 = vand.u32 %v144, 8388607
  %v153 = vcvt.s32.f32 %v145
  %v154 = vcvt.s32.f32 %v146
  %v155 = vcvt.s32.f32 %v147
  %v156 = vcvt.s32.f32 %v148
  %v157 = vcvt.s32.f32 %v149
  %v158 = vcvt.s32.f32 %v150
  %v159 = vcvt.s32.f32 %v151
  %v160 = vcvt.s32.f32 %v152
  %v161 = vmul.f32 %v153, 1.1920929e-07
  %v162 = vmul.f32 %v154, 1.1920929e-07
  %v163 = vmul.f32 %v155, 1.1920929e-07
  %v164 = vmul.f32 %v156, 1.1920929e-07
  %v165 = vmul.f32 %v157, 1.1920929e-07
  %v166 = vmul.f32 %v158, 1.1920929e-07
  %v167 = vmul.f32 %v159, 1.1920929e-07
  %v168 = vmul.f32 %v160, 1.1920929e-07
  %v169 = vmul.f32 %v161, 0.5
  %v170 = vmul.f32 %v162, 0.5
  %v171 = vmul.f32 %v163, 0.5
  %v172 = vmul.f32 %v164, 0.5
  %v173 = vmul.f32 %v165, 0.5
  %v174 = vmul.f32 %v166, 0.5
  %v175 = vmul.f32 %v167, 0.5
  %v176 = vmul.f32 %v168, 0.5
  %v177 = vsub.f32 %v169, 1.0
  %v178 = vsub.f32 %v170, 1.0
  %v179 = vsub.f32 %v171, 1.0
  %v180 = vsub.f32 %v172, 1.0
  %v181 = vsub.f32 %v173, 1.0
  %v182 = vsub.f32 %v174, 1.0
  %v183 = vsub.f32 %v175, 1.0
  %v184 = vsub.f32 %v176, 1.0
  %v185 = vadd.f32 %v16, %v177
  %v186 = vadd.f32 %v17, %v178
  %v187 = vadd.f32 %v18, %v179
  %v188 = vadd.f32 %v19, %v180
  %v189 = vadd.f32 %v20, %v181
  %v190 = vadd.f32 %v21, %v182
  %v191 = vadd.f32 %v22, %v183
  %v192 = vadd.f32 %v23, %v184
  %s193 = sld [smem:[#allocation3]]
  %v194 = vmax.f32 %v185, 0.0
  %v195 = vmax.f32 %v186, 0.0
  %v196 = vmax.f32 %v187, 0.0
  %v197 = vmax.f32 %v188, 0.0
  %v198 = vmax.f32 %v189, 0.0
  %v199 = vmax.f32 %v190, 0.0
  %v200 = vmax.f32 %v191, 0.0
  %v201 = vmax.f32 %v192, 0.0
  %v202 = vstv %s193
  %v203 = vmin.f32 %v202, %v194
  %v204 = vmin.f32 %v202, %v195
  %v205 = vmin.f32 %v202, %v196
  %v206 = vmin.f32 %v202, %v197
  %v207 = vmin.f32 %v202, %v198
  %v208 = vmin.f32 %v202, %v199
  %v209 = vmin.f32 %v202, %v200
  %v210 = vmin.f32 %v202, %v201
  %vm211 = vcmask 523264
  %212 = vst.msk [vmem:[%s3] sm:$0xff] %vm211, %v203
  %213 = vst.msk [vmem:[%s3 + $0x8] sm:$0xff] %vm211, %v204
  %214 = vst.msk [vmem:[%s3 + $0x10] sm:$0xff] %vm211, %v205
  %215 = vst.msk [vmem:[%s3 + $0x18] sm:$0xff] %vm211, %v206
  %216 = vst.msk [vmem:[%s3 + $0x20] sm:$0xff] %vm211, %v207
  %217 = vst.msk [vmem:[%s3 + $0x28] sm:$0xff] %vm211, %v208
  %218 = vst.msk [vmem:[%s3 + $0x30] sm:$0xff] %vm211, %v209
  %219 = vst.msk [vmem:[%s3 + $0x38] sm:$0xff] %vm211, %v210
  // Predicated region
  $region14: #{_lambda_.27} parent=0 // pred_check
    _
  $region15: #{_lambda_.27} parent=0 // pred_check_branch
    %221 = sbr.rel (0) target = $region17
  $region16: #{_lambda_.27} parent=0 // pred_region
    _
  $region17: #{_lambda_.27} parent=0 // pred_fallthru
    _
  // Predicated region
  $region18: #{_lambda_.27} parent=0 // pred_check
    _
  $region19: #{_lambda_.27} parent=0 // pred_check_branch
    %223 = sbr.rel (0) target = $region21
  $region20: #{_lambda_.27} parent=0 // pred_region
    _
  $region21: #{_lambda_.27} parent=0 // pred_fallthru
    _

// kernel: _lambda_.34
$region0: #{_lambda_.34}
  #allocation0 [shape = 'u32[]', space=smem, size = 0x4, offset = 0x4, fixed_abs, tag = 'smem constant byte address 0x4 - core index']
  #allocation1 [shape = 'u32[72,128]{1,0:T(1,128)}', space=vmem, size = 0x9000, scoped, tag = 'internal scratch']
  #allocation2 [shape = 's32[1]{0:T(128)S(6)}', space=smem, size = 0x200, scoped, tag = 'scoped memory for _lambda_.34']
  %s0 = inlined_call_operand.<no memory space> [shape: s32[1], index: 0, kind: input, shape index: {}]
  %s1 = inlined_call_operand.vmem [shape: f32[64,64], index: 1, kind: input, shape index: {}]
  %s2 = inlined_call_operand.vmem [shape: f32[64,64], index: 2, kind: input, shape index: {}]
  %s3 = inlined_call_operand.vmem [shape: f32[64,64], index: 3, kind: output, shape index: {}]
  %s4 = sld [smem:[#allocation0]]
  $region22: #{_lambda_.34} parent=0
    _
  %s6 = ssub.s32 1, %s4
  %s7 = scalar_select 0, %s6, %s4
  %8 = sst [smem:[#allocation2]] %s0
  // Predicated region
  $region2: #{_lambda_.34} parent=0 // pred_check
    _
  $region3: #{_lambda_.34} parent=0 // pred_check_branch
    %10 = sbr.rel (0) target = $region5
  $region4: #{_lambda_.34} parent=0 // pred_region
    _
  $region5: #{_lambda_.34} parent=0 // pred_fallthru
    _
  // Predicated region
  $region6: #{_lambda_.34} parent=0 // pred_check
    _
  $region7: #{_lambda_.34} parent=0 // pred_check_branch
    %12 = sbr.rel (0) target = $region9
  $region8: #{_lambda_.34} parent=0 // pred_region
    _
  $region9: #{_lambda_.34} parent=0 // pred_fallthru
    _
  // Predicated region
  $region10: #{_lambda_.34} parent=0 // pred_check
    _
  $region11: #{_lambda_.34} parent=0 // pred_check_branch
    %14 = sbr.rel (0) target = $region13
  $region12: #{_lambda_.34} parent=0 // pred_region
    _
  $region13: #{_lambda_.34} parent=0 // pred_fallthru
    _
  %s15 = smul.u32 0, 64
  %v16 = vld [vmem:[%s1] sm:$0xff]
  %v17 = vld [vmem:[%s1 + $0x8] sm:$0xff]
  %v18 = vld [vmem:[%s1 + $0x10] sm:$0xff]
  %v19 = vld [vmem:[%s1 + $0x18] sm:$0xff]
  %v20 = vld [vmem:[%s1 + $0x20] sm:$0xff]
  %v21 = vld [vmem:[%s1 + $0x28] sm:$0xff]
  %v22 = vld [vmem:[%s1 + $0x30] sm:$0xff]
  %v23 = vld [vmem:[%s1 + $0x38] sm:$0xff]
  %s24 = sld [smem:[#allocation2]]
  %v25 = vlaneseq
  %v26 = vshrl.u32 %v25, 7
  %v27 = vadd.s32 %v26, 8
  %v28 = vadd.s32 %v26, 16
  %v29 = vadd.s32 %v26, 24
  %v30 = vadd.s32 %v26, 32
  %v31 = vadd.s32 %v26, 40
  %v32 = vadd.s32 %v26, 48
  %v33 = vadd.s32 %v26, 56
  %v34 = vstv %s15
  %v35 = vadd.s32 %v26, %v34
  %v36 = vadd.s32 %v27, %v34
  %v37 = vadd.s32 %v28, %v34
  %v38 = vadd.s32 %v29, %v34
  %v39 = vadd.s32 %v30, %v34
  %v40 = vadd.s32 %v31, %v34
  %v41 = vadd.s32 %v32, %v34
  %v42 = vadd.s32 %v33, %v34
  %v43 = vlaneseq
  %v44 = vand.u32 %v43, 127
  %v45 = vmul.u32 %v35, 2654435761
  %v46 = vmul.u32 %v36, 2654435761
  %v47 = vmul.u32 %v37, 2654435761
  %v48 = vmul.u32 %v38, 2654435761
  %v49 = vmul.u32 %v39, 2654435761
  %v50 = vmul.u32 %v40, 2654435761
  %v51 = vmul.u32 %v41, 2654435761
  %v52 = vmul.u32 %v42, 2654435761
  %v53 = vmul.u32 %v44, 2246822519
  %v54 = vadd.s32 %v45, %v53
  %v55 = vadd.s32 %v46, %v53
  %v56 = vadd.s32 %v47, %v53
  %v57 = vadd.s32 %v48, %v53
  %v58 = vadd.s32 %v49, %v53
  %v59 = vadd.s32 %v50, %v53
  %v60 = vadd.s32 %v51, %v53
  %v61 = vadd.s32 %v52, %v53
  %s62 = smul.u32 %s24, 668265263
  %v63 = vstv %s62
  %v64 = vadd.s32 %v54, %v63
  %v65 = vadd.s32 %v55, %v63
  %v66 = vadd.s32 %v56, %v63
  %v67 = vadd.s32 %v57, %v63
  %v68 = vadd.s32 %v58, %v63
  %v69 = vadd.s32 %v59, %v63
  %v70 = vadd.s32 %v60, %v63
  %v71 = vadd.s32 %v61, %v63
  %v72 = vadd.s32 %v64, 3803751076
  %v73 = vadd.s32 %v65, 3803751076
  %v74 = vadd.s32 %v66, 3803751076
  %v75 = vadd.s32 %v67, 3803751076
  %v76 = vadd.s32 %v68, 3803751076
  %v77 = vadd.s32 %v69, 3803751076
  %v78 = vadd.s32 %v70, 3803751076
  %v79 = vadd.s32 %v71, 3803751076
  %v80 = vshrl.u32 %v72, 16
  %v81 = vshrl.u32 %v73, 16
  %v82 = vshrl.u32 %v74, 16
  %v83 = vshrl.u32 %v75, 16
  %v84 = vshrl.u32 %v76, 16
  %v85 = vshrl.u32 %v77, 16
  %v86 = vshrl.u32 %v78, 16
  %v87 = vshrl.u32 %v79, 16
  %v88 = vxor.u32 %v72, %v80
  %v89 = vxor.u32 %v73, %v81
  %v90 = vxor.u32 %v74, %v82
  %v91 = vxor.u32 %v75, %v83
  %v92 = vxor.u32 %v76, %v84
  %v93 = vxor.u32 %v77, %v85
  %v94 = vxor.u32 %v78, %v86
  %v95 = vxor.u32 %v79, %v87
  %v96 = vmul.u32 %v88, 2146121005
  %v97 = vmul.u32 %v89, 2146121005
  %v98 = vmul.u32 %v90, 2146121005
  %v99 = vmul.u32 %v91, 2146121005
  %v100 = vmul.u32 %v92, 2146121005
  %v101 = vmul.u32 %v93, 2146121005
  %v102 = vmul.u32 %v94, 2146121005
  %v103 = vmul.u32 %v95, 2146121005
  %v104 = vshrl.u32 %v96, 15
  %v105 = vshrl.u32 %v97, 15
  %v106 = vshrl.u32 %v98, 15
  %v107 = vshrl.u32 %v99, 15
  %v108 = vshrl.u32 %v100, 15
  %v109 = vshrl.u32 %v101, 15
  %v110 = vshrl.u32 %v102, 15
  %v111 = vshrl.u32 %v103, 15
  %v112 = vxor.u32 %v96, %v104
  %v113 = vxor.u32 %v97, %v105
  %v114 = vxor.u32 %v98, %v106
  %v115 = vxor.u32 %v99, %v107
  %v116 = vxor.u32 %v100, %v108
  %v117 = vxor.u32 %v101, %v109
  %v118 = vxor.u32 %v102, %v110
  %v119 = vxor.u32 %v103, %v111
  %v120 = vmul.u32 %v112, 2221713035
  %v121 = vmul.u32 %v113, 2221713035
  %v122 = vmul.u32 %v114, 2221713035
  %v123 = vmul.u32 %v115, 2221713035
  %v124 = vmul.u32 %v116, 2221713035
  %v125 = vmul.u32 %v117, 2221713035
  %v126 = vmul.u32 %v118, 2221713035
  %v127 = vmul.u32 %v119, 2221713035
  %v128 = vshrl.u32 %v120, 16
  %v129 = vshrl.u32 %v121, 16
  %v130 = vshrl.u32 %v122, 16
  %v131 = vshrl.u32 %v123, 16
  %v132 = vshrl.u32 %v124, 16
  %v133 = vshrl.u32 %v125, 16
  %v134 = vshrl.u32 %v126, 16
  %v135 = vshrl.u32 %v127, 16
  %v136 = vxor.u32 %v120, %v128
  %v137 = vxor.u32 %v121, %v129
  %v138 = vxor.u32 %v122, %v130
  %v139 = vxor.u32 %v123, %v131
  %v140 = vxor.u32 %v124, %v132
  %v141 = vxor.u32 %v125, %v133
  %v142 = vxor.u32 %v126, %v134
  %v143 = vxor.u32 %v127, %v135
  %v144 = vand.u32 %v136, 8388607
  %v145 = vand.u32 %v137, 8388607
  %v146 = vand.u32 %v138, 8388607
  %v147 = vand.u32 %v139, 8388607
  %v148 = vand.u32 %v140, 8388607
  %v149 = vand.u32 %v141, 8388607
  %v150 = vand.u32 %v142, 8388607
  %v151 = vand.u32 %v143, 8388607
  %v152 = vcvt.s32.f32 %v144
  %v153 = vcvt.s32.f32 %v145
  %v154 = vcvt.s32.f32 %v146
  %v155 = vcvt.s32.f32 %v147
  %v156 = vcvt.s32.f32 %v148
  %v157 = vcvt.s32.f32 %v149
  %v158 = vcvt.s32.f32 %v150
  %v159 = vcvt.s32.f32 %v151
  %v160 = vmul.f32 %v152, 1.1920929e-07
  %v161 = vmul.f32 %v153, 1.1920929e-07
  %v162 = vmul.f32 %v154, 1.1920929e-07
  %v163 = vmul.f32 %v155, 1.1920929e-07
  %v164 = vmul.f32 %v156, 1.1920929e-07
  %v165 = vmul.f32 %v157, 1.1920929e-07
  %v166 = vmul.f32 %v158, 1.1920929e-07
  %v167 = vmul.f32 %v159, 1.1920929e-07
  %v168 = vsub.f32 1.0, %v160
  %v169 = vsub.f32 1.0, %v161
  %v170 = vsub.f32 1.0, %v162
  %v171 = vsub.f32 1.0, %v163
  %v172 = vsub.f32 1.0, %v164
  %v173 = vsub.f32 1.0, %v165
  %v174 = vsub.f32 1.0, %v166
  %v175 = vsub.f32 1.0, %v167
  %v176 = vmax.f32 %v168, 1e-12
  %v177 = vmax.f32 %v169, 1e-12
  %v178 = vmax.f32 %v170, 1e-12
  %v179 = vmax.f32 %v171, 1e-12
  %v180 = vmax.f32 %v172, 1e-12
  %v181 = vmax.f32 %v173, 1e-12
  %v182 = vmax.f32 %v174, 1e-12
  %v183 = vmax.f32 %v175, 1e-12
  %v184 = vlog2.pop %v176
  %v185 = vmul.f32 %v184, 0.6931472
  %v186 = vlog2.pop %v177
  %v187 = vmul.f32 %v186, 0.6931472
  %v188 = vlog2.pop %v178
  %v189 = vmul.f32 %v188, 0.6931472
  %v190 = vlog2.pop %v179
  %v191 = vmul.f32 %v190, 0.6931472
  %v192 = vlog2.pop %v180
  %v193 = vmul.f32 %v192, 0.6931472
  %v194 = vlog2.pop %v181
  %v195 = vmul.f32 %v194, 0.6931472
  %v196 = vlog2.pop %v182
  %v197 = vmul.f32 %v196, 0.6931472
  %v198 = vlog2.pop %v183
  %v199 = vmul.f32 %v198, 0.6931472
  %v200 = vmul.f32 %v185, -2.0
  %v201 = vmul.f32 %v187, -2.0
  %v202 = vmul.f32 %v189, -2.0
  %v203 = vmul.f32 %v191, -2.0
  %v204 = vmul.f32 %v193, -2.0
  %v205 = vmul.f32 %v195, -2.0
  %v206 = vmul.f32 %v197, -2.0
  %v207 = vmul.f32 %v199, -2.0
  %v208 = vrsqrt.pop %v200
  %v209 = vmul.f32 %v208, %v200
  %v210 = vmul.f32 %v209, %v208
  %v211 = vmul.f32 0.5, %v210
  %v212 = vsub.f32 1.5, %v211
  %v213 = vmul.f32 %v208, %v212
  %v214 = vmul.f32 %v200, %v213
  %vm215 = vcmp.eq.f32.partialorder %v200, inf
  %v216 = vsel %vm215, %v200, %v214
  %vm217 = vcmp.eq.f32.partialorder %v200, 0.0
  %v218 = vand.u32 %v200, 2147483648
  %v219 = vsel %vm217, %v218, %v216
  %v220 = vrsqrt.pop %v201
  %v221 = vmul.f32 %v220, %v201
  %v222 = vmul.f32 %v221, %v220
  %v223 = vmul.f32 0.5, %v222
  %v224 = vsub.f32 1.5, %v223
  %v225 = vmul.f32 %v220, %v224
  %v226 = vmul.f32 %v201, %v225
  %vm227 = vcmp.eq.f32.partialorder %v201, inf
  %v228 = vsel %vm227, %v201, %v226
  %vm229 = vcmp.eq.f32.partialorder %v201, 0.0
  %v230 = vand.u32 %v201, 2147483648
  %v231 = vsel %vm229, %v230, %v228
  %v232 = vrsqrt.pop %v202
  %v233 = vmul.f32 %v232, %v202
  %v234 = vmul.f32 %v233, %v232
  %v235 = vmul.f32 0.5, %v234
  %v236 = vsub.f32 1.5, %v235
  %v237 = vmul.f32 %v232, %v236
  %v238 = vmul.f32 %v202, %v237
  %vm239 = vcmp.eq.f32.partialorder %v202, inf
  %v240 = vsel %vm239, %v202, %v238
  %vm241 = vcmp.eq.f32.partialorder %v202, 0.0
  %v242 = vand.u32 %v202, 2147483648
  %v243 = vsel %vm241, %v242, %v240
  %v244 = vrsqrt.pop %v203
  %v245 = vmul.f32 %v244, %v203
  %v246 = vmul.f32 %v245, %v244
  %v247 = vmul.f32 0.5, %v246
  %v248 = vsub.f32 1.5, %v247
  %v249 = vmul.f32 %v244, %v248
  %v250 = vmul.f32 %v203, %v249
  %vm251 = vcmp.eq.f32.partialorder %v203, inf
  %v252 = vsel %vm251, %v203, %v250
  %vm253 = vcmp.eq.f32.partialorder %v203, 0.0
  %v254 = vand.u32 %v203, 2147483648
  %v255 = vsel %vm253, %v254, %v252
  %v256 = vrsqrt.pop %v204
  %v257 = vmul.f32 %v256, %v204
  %v258 = vmul.f32 %v257, %v256
  %v259 = vmul.f32 0.5, %v258
  %v260 = vsub.f32 1.5, %v259
  %v261 = vmul.f32 %v256, %v260
  %v262 = vmul.f32 %v204, %v261
  %vm263 = vcmp.eq.f32.partialorder %v204, inf
  %v264 = vsel %vm263, %v204, %v262
  %vm265 = vcmp.eq.f32.partialorder %v204, 0.0
  %v266 = vand.u32 %v204, 2147483648
  %v267 = vsel %vm265, %v266, %v264
  %v268 = vrsqrt.pop %v205
  %v269 = vmul.f32 %v268, %v205
  %v270 = vmul.f32 %v269, %v268
  %v271 = vmul.f32 0.5, %v270
  %v272 = vsub.f32 1.5, %v271
  %v273 = vmul.f32 %v268, %v272
  %v274 = vmul.f32 %v205, %v273
  %vm275 = vcmp.eq.f32.partialorder %v205, inf
  %v276 = vsel %vm275, %v205, %v274
  %vm277 = vcmp.eq.f32.partialorder %v205, 0.0
  %v278 = vand.u32 %v205, 2147483648
  %v279 = vsel %vm277, %v278, %v276
  %v280 = vrsqrt.pop %v206
  %v281 = vmul.f32 %v280, %v206
  %v282 = vmul.f32 %v281, %v280
  %v283 = vmul.f32 0.5, %v282
  %v284 = vsub.f32 1.5, %v283
  %v285 = vmul.f32 %v280, %v284
  %v286 = vmul.f32 %v206, %v285
  %vm287 = vcmp.eq.f32.partialorder %v206, inf
  %v288 = vsel %vm287, %v206, %v286
  %vm289 = vcmp.eq.f32.partialorder %v206, 0.0
  %v290 = vand.u32 %v206, 2147483648
  %v291 = vsel %vm289, %v290, %v288
  %v292 = vrsqrt.pop %v207
  %v293 = vmul.f32 %v292, %v207
  %v294 = vmul.f32 %v293, %v292
  %v295 = vmul.f32 0.5, %v294
  %v296 = vsub.f32 1.5, %v295
  %v297 = vmul.f32 %v292, %v296
  %v298 = vmul.f32 %v207, %v297
  %vm299 = vcmp.eq.f32.partialorder %v207, inf
  %v300 = vsel %vm299, %v207, %v298
  %vm301 = vcmp.eq.f32.partialorder %v207, 0.0
  %v302 = vand.u32 %v207, 2147483648
  %v303 = vsel %vm301, %v302, %v300
  %v304 = vmul.f32 %v219, 0.05
  %v305 = vmul.f32 %v231, 0.05
  %v306 = vmul.f32 %v243, 0.05
  %v307 = vmul.f32 %v255, 0.05
  %v308 = vmul.f32 %v267, 0.05
  %v309 = vmul.f32 %v279, 0.05
  %v310 = vmul.f32 %v291, 0.05
  %v311 = vmul.f32 %v303, 0.05
  %v312 = vadd.f32 %v304, 1.0
  %v313 = vadd.f32 %v305, 1.0
  %v314 = vadd.f32 %v306, 1.0
  %v315 = vadd.f32 %v307, 1.0
  %v316 = vadd.f32 %v308, 1.0
  %v317 = vadd.f32 %v309, 1.0
  %v318 = vadd.f32 %v310, 1.0
  %v319 = vadd.f32 %v311, 1.0
  %v320 = vld [vmem:[%s2] sm:$0xff]
  %v321 = vld [vmem:[%s2 + $0x8] sm:$0xff]
  %v322 = vld [vmem:[%s2 + $0x10] sm:$0xff]
  %v323 = vld [vmem:[%s2 + $0x18] sm:$0xff]
  %v324 = vld [vmem:[%s2 + $0x20] sm:$0xff]
  %v325 = vld [vmem:[%s2 + $0x28] sm:$0xff]
  %v326 = vld [vmem:[%s2 + $0x30] sm:$0xff]
  %v327 = vld [vmem:[%s2 + $0x38] sm:$0xff]
  %v328 = vmul.f32 %v312, %v320
  %v329 = vmul.f32 %v313, %v321
  %v330 = vmul.f32 %v314, %v322
  %v331 = vmul.f32 %v315, %v323
  %v332 = vmul.f32 %v316, %v324
  %v333 = vmul.f32 %v317, %v325
  %v334 = vmul.f32 %v318, %v326
  %v335 = vmul.f32 %v319, %v327
  %v336 = vadd.f32 %v328, %v16
  %v337 = vadd.f32 %v329, %v17
  %v338 = vadd.f32 %v330, %v18
  %v339 = vadd.f32 %v331, %v19
  %v340 = vadd.f32 %v332, %v20
  %v341 = vadd.f32 %v333, %v21
  %v342 = vadd.f32 %v334, %v22
  %v343 = vadd.f32 %v335, %v23
  %v344 = vmul.f32 %v336, 0.5
  %v345 = vmul.f32 %v337, 0.5
  %v346 = vmul.f32 %v338, 0.5
  %v347 = vmul.f32 %v339, 0.5
  %v348 = vmul.f32 %v340, 0.5
  %v349 = vmul.f32 %v341, 0.5
  %v350 = vmul.f32 %v342, 0.5
  %v351 = vmul.f32 %v343, 0.5
  %vm352 = vcmask 523264
  %353 = vst.msk [vmem:[%s3] sm:$0xff] %vm352, %v344
  %354 = vst.msk [vmem:[%s3 + $0x8] sm:$0xff] %vm352, %v345
  %355 = vst.msk [vmem:[%s3 + $0x10] sm:$0xff] %vm352, %v346
  %356 = vst.msk [vmem:[%s3 + $0x18] sm:$0xff] %vm352, %v347
  %357 = vst.msk [vmem:[%s3 + $0x20] sm:$0xff] %vm352, %v348
  %358 = vst.msk [vmem:[%s3 + $0x28] sm:$0xff] %vm352, %v349
  %359 = vst.msk [vmem:[%s3 + $0x30] sm:$0xff] %vm352, %v350
  %360 = vst.msk [vmem:[%s3 + $0x38] sm:$0xff] %vm352, %v351
  // Predicated region
  $region14: #{_lambda_.34} parent=0 // pred_check
    _
  $region15: #{_lambda_.34} parent=0 // pred_check_branch
    %362 = sbr.rel (0) target = $region17
  $region16: #{_lambda_.34} parent=0 // pred_region
    _
  $region17: #{_lambda_.34} parent=0 // pred_fallthru
    _
  // Predicated region
  $region18: #{_lambda_.34} parent=0 // pred_check
    _
  $region19: #{_lambda_.34} parent=0 // pred_check_branch
    %364 = sbr.rel (0) target = $region21
  $region20: #{_lambda_.34} parent=0 // pred_region
    _
  $region21: #{_lambda_.34} parent=0 // pred_fallthru
    _

// kernel: _lambda_.28
$region0: #{_lambda_.28}
  #allocation0 [shape = 'u32[]', space=smem, size = 0x4, offset = 0x4, fixed_abs, tag = 'smem constant byte address 0x4 - core index']
  #allocation1 [shape = 'u32[72,128]{1,0:T(1,128)}', space=vmem, size = 0x9000, scoped, tag = 'internal scratch']
  %s0 = inlined_call_operand.vmem [shape: f32[6], index: 0, kind: input, shape index: {}]
  %s1 = inlined_call_operand.vmem [shape: f32[64,64], index: 1, kind: input, shape index: {}]
  %s2 = inlined_call_operand.vmem [shape: f32[64,64], index: 2, kind: output, shape index: {}]
  %s3 = sld [smem:[#allocation0]]
  $region22: #{_lambda_.28} parent=0
    _
  %s5 = ssub.s32 1, %s3
  %s6 = scalar_select 0, %s5, %s3
  $region1: #{_lambda_.28} parent=0
    #allocation2 [shape = 'u8[512]{0}', space=smem, size = 0x200, scoped, tag = 'input window, operand 0, single buffered']
    #allocation3 [shape = 's32[1]{0}', space=sflag, size = 0x4, scoped, tag = 'scoped memory for _lambda_.28']
    %7 = vsyncpa [#allocation3], 0
    // Predicated region
    $region2: #{_lambda_.28} parent=1 // pred_check
      _
    $region3: #{_lambda_.28} parent=1 // pred_check_branch
      %9 = sbr.rel (0) target = $region5
    $region4: #{_lambda_.28} parent=1 // pred_region
      %11 = vsyncadd [#allocation3], 0
      %s13 = sshll.u32 %s0, 4
      %s14 = int_to_ptr.vmem [resolvable:$true] %s13
      %16 = dma.vmem_to_smem %s14, 16, [#allocation2], [#allocation3]
    $region5: #{_lambda_.28} parent=1 // pred_fallthru
      _
    // Predicated region
    $region6: #{_lambda_.28} parent=1 // pred_check
      _
    $region7: #{_lambda_.28} parent=1 // pred_check_branch
      %18 = sbr.rel (0) target = $region9
    $region8: #{_lambda_.28} parent=1 // pred_region
      _
    $region9: #{_lambda_.28} parent=1 // pred_fallthru
      _
    // Predicated region
    $region10: #{_lambda_.28} parent=1 // pred_check
      _
    $region11: #{_lambda_.28} parent=1 // pred_check_branch
      %20 = sbr.rel (0) target = $region13
    $region12: #{_lambda_.28} parent=1 // pred_region
      %22 = dma.done [#allocation3], 16
    $region13: #{_lambda_.28} parent=1 // pred_fallthru
      _
    %23 = sfence
    %s24 = sld [smem:[#allocation2]]
    %s25 = sld [smem:[#allocation2 + $0x1]]
    %s26 = sld [smem:[#allocation2 + $0x2]]
    %s27 = sld [smem:[#allocation2 + $0x3]]
    %s28 = sld [smem:[#allocation2 + $0x4]]
    %s29 = sld [smem:[#allocation2 + $0x5]]
    %v30 = vld [vmem:[%s1] sm:$0xff]
    %v31 = vld [vmem:[%s1 + $0x8] sm:$0xff]
    %v32 = vld [vmem:[%s1 + $0x10] sm:$0xff]
    %v33 = vld [vmem:[%s1 + $0x18] sm:$0xff]
    %v34 = vld [vmem:[%s1 + $0x20] sm:$0xff]
    %v35 = vld [vmem:[%s1 + $0x28] sm:$0xff]
    %v36 = vld [vmem:[%s1 + $0x30] sm:$0xff]
    %v37 = vld [vmem:[%s1 + $0x38] sm:$0xff]
    %v38 = vstv %s24
    %v39 = vsub.f32 %v30, %v38
    %v40 = vsub.f32 %v31, %v38
    %v41 = vsub.f32 %v32, %v38
    %v42 = vsub.f32 %v33, %v38
    %v43 = vsub.f32 %v34, %v38
    %v44 = vsub.f32 %v35, %v38
    %v45 = vsub.f32 %v36, %v38
    %v46 = vsub.f32 %v37, %v38
    %v47 = vstv %s25
    %v48 = vsub.f32 %v39, %v47
    %v49 = vsub.f32 %v40, %v47
    %v50 = vsub.f32 %v41, %v47
    %v51 = vsub.f32 %v42, %v47
    %v52 = vsub.f32 %v43, %v47
    %v53 = vsub.f32 %v44, %v47
    %v54 = vsub.f32 %v45, %v47
    %v55 = vsub.f32 %v46, %v47
    %v56 = vstv %s27
    %v57 = vmul.f32 %v48, %v56
    %v58 = vmul.f32 %v49, %v56
    %v59 = vmul.f32 %v50, %v56
    %v60 = vmul.f32 %v51, %v56
    %v61 = vmul.f32 %v52, %v56
    %v62 = vmul.f32 %v53, %v56
    %v63 = vmul.f32 %v54, %v56
    %v64 = vmul.f32 %v55, %v56
    %v65 = vstv %s28
    %v66 = vmul.f32 %v57, %v65
    %v67 = vmul.f32 %v58, %v65
    %v68 = vmul.f32 %v59, %v65
    %v69 = vmul.f32 %v60, %v65
    %v70 = vmul.f32 %v61, %v65
    %v71 = vmul.f32 %v62, %v65
    %v72 = vmul.f32 %v63, %v65
    %v73 = vmul.f32 %v64, %v65
    %v74 = vadd.f32 %v66, %v47
    %v75 = vadd.f32 %v67, %v47
    %v76 = vadd.f32 %v68, %v47
    %v77 = vadd.f32 %v69, %v47
    %v78 = vadd.f32 %v70, %v47
    %v79 = vadd.f32 %v71, %v47
    %v80 = vadd.f32 %v72, %v47
    %v81 = vadd.f32 %v73, %v47
    %v82 = vmax.f32 %v48, 0.0
    %v83 = vmax.f32 %v49, 0.0
    %v84 = vmax.f32 %v50, 0.0
    %v85 = vmax.f32 %v51, 0.0
    %v86 = vmax.f32 %v52, 0.0
    %v87 = vmax.f32 %v53, 0.0
    %v88 = vmax.f32 %v54, 0.0
    %v89 = vmax.f32 %v55, 0.0
    %v90 = vmul.f32 %v82, %v56
    %v91 = vmul.f32 %v83, %v56
    %v92 = vmul.f32 %v84, %v56
    %v93 = vmul.f32 %v85, %v56
    %v94 = vmul.f32 %v86, %v56
    %v95 = vmul.f32 %v87, %v56
    %v96 = vmul.f32 %v88, %v56
    %v97 = vmul.f32 %v89, %v56
    %v98 = vmax.f32 %v90, 1e-30
    %v99 = vmax.f32 %v91, 1e-30
    %v100 = vmax.f32 %v92, 1e-30
    %v101 = vmax.f32 %v93, 1e-30
    %v102 = vmax.f32 %v94, 1e-30
    %v103 = vmax.f32 %v95, 1e-30
    %v104 = vmax.f32 %v96, 1e-30
    %v105 = vmax.f32 %v97, 1e-30
    %v106 = vlog2.pop %v98
    %v107 = vmul.f32 %v106, 0.6931472
    %v108 = vlog2.pop %v99
    %v109 = vmul.f32 %v108, 0.6931472
    %v110 = vlog2.pop %v100
    %v111 = vmul.f32 %v110, 0.6931472
    %v112 = vlog2.pop %v101
    %v113 = vmul.f32 %v112, 0.6931472
    %v114 = vlog2.pop %v102
    %v115 = vmul.f32 %v114, 0.6931472
    %v116 = vlog2.pop %v103
    %v117 = vmul.f32 %v116, 0.6931472
    %v118 = vlog2.pop %v104
    %v119 = vmul.f32 %v118, 0.6931472
    %v120 = vlog2.pop %v105
    %v121 = vmul.f32 %v120, 0.6931472
    %v122 = vstv %s29
    %v123 = vmul.f32 %v122, %v107
    %v124 = vmul.f32 %v122, %v109
    %v125 = vmul.f32 %v122, %v111
    %v126 = vmul.f32 %v122, %v113
    %v127 = vmul.f32 %v122, %v115
    %v128 = vmul.f32 %v122, %v117
    %v129 = vmul.f32 %v122, %v119
    %v130 = vmul.f32 %v122, %v121
    %v131 = vmul.f32 %v123, 1.442695
    %v132 = vpow.pop %v131
    %v133 = vmul.f32 %v124, 1.442695
    %v134 = vpow.pop %v133
    %v135 = vmul.f32 %v125, 1.442695
    %v136 = vpow.pop %v135
    %v137 = vmul.f32 %v126, 1.442695
    %v138 = vpow.pop %v137
    %v139 = vmul.f32 %v127, 1.442695
    %v140 = vpow.pop %v139
    %v141 = vmul.f32 %v128, 1.442695
    %v142 = vpow.pop %v141
    %v143 = vmul.f32 %v129, 1.442695
    %v144 = vpow.pop %v143
    %v145 = vmul.f32 %v130, 1.442695
    %v146 = vpow.pop %v145
    %v147 = vmul.f32 %v132, %v65
    %v148 = vmul.f32 %v134, %v65
    %v149 = vmul.f32 %v136, %v65
    %v150 = vmul.f32 %v138, %v65
    %v151 = vmul.f32 %v140, %v65
    %v152 = vmul.f32 %v142, %v65
    %v153 = vmul.f32 %v144, %v65
    %v154 = vmul.f32 %v146, %v65
    %v155 = vadd.f32 %v147, %v47
    %v156 = vadd.f32 %v148, %v47
    %v157 = vadd.f32 %v149, %v47
    %v158 = vadd.f32 %v150, %v47
    %v159 = vadd.f32 %v151, %v47
    %v160 = vadd.f32 %v152, %v47
    %v161 = vadd.f32 %v153, %v47
    %v162 = vadd.f32 %v154, %v47
    %vm163 = vcmp.le.f32.partialorder %v39, %v47
    %vm164 = vcmp.le.f32.partialorder %v40, %v47
    %vm165 = vcmp.le.f32.partialorder %v41, %v47
    %vm166 = vcmp.le.f32.partialorder %v42, %v47
    %vm167 = vcmp.le.f32.partialorder %v43, %v47
    %vm168 = vcmp.le.f32.partialorder %v44, %v47
    %vm169 = vcmp.le.f32.partialorder %v45, %v47
    %vm170 = vcmp.le.f32.partialorder %v46, %v47
    %v171 = vstv %s26
    %vm172 = vcmp.gt.f32.partialorder %v39, %v171
    %vm173 = vcmp.gt.f32.partialorder %v40, %v171
    %vm174 = vcmp.gt.f32.partialorder %v41, %v171
    %vm175 = vcmp.gt.f32.partialorder %v42, %v171
    %vm176 = vcmp.gt.f32.partialorder %v43, %v171
    %vm177 = vcmp.gt.f32.partialorder %v44, %v171
    %vm178 = vcmp.gt.f32.partialorder %v45, %v171
    %vm179 = vcmp.gt.f32.partialorder %v46, %v171
    %v180 = vsel %vm172, %v74, %v155
    %v181 = vsel %vm173, %v75, %v156
    %v182 = vsel %vm174, %v76, %v157
    %v183 = vsel %vm175, %v77, %v158
    %v184 = vsel %vm176, %v78, %v159
    %v185 = vsel %vm177, %v79, %v160
    %v186 = vsel %vm178, %v80, %v161
    %v187 = vsel %vm179, %v81, %v162
    %v188 = vsel %vm163, %v39, %v180
    %v189 = vsel %vm164, %v40, %v181
    %v190 = vsel %vm165, %v41, %v182
    %v191 = vsel %vm166, %v42, %v183
    %v192 = vsel %vm167, %v43, %v184
    %v193 = vsel %vm168, %v44, %v185
    %v194 = vsel %vm169, %v45, %v186
    %v195 = vsel %vm170, %v46, %v187
    %vm196 = vcmask 523264
    %197 = vst.msk [vmem:[%s2] sm:$0xff] %vm196, %v188
    %198 = vst.msk [vmem:[%s2 + $0x8] sm:$0xff] %vm196, %v189
    %199 = vst.msk [vmem:[%s2 + $0x10] sm:$0xff] %vm196, %v190
    %200 = vst.msk [vmem:[%s2 + $0x18] sm:$0xff] %vm196, %v191
    %201 = vst.msk [vmem:[%s2 + $0x20] sm:$0xff] %vm196, %v192
    %202 = vst.msk [vmem:[%s2 + $0x28] sm:$0xff] %vm196, %v193
    %203 = vst.msk [vmem:[%s2 + $0x30] sm:$0xff] %vm196, %v194
    %204 = vst.msk [vmem:[%s2 + $0x38] sm:$0xff] %vm196, %v195
    // Predicated region
    $region14: #{_lambda_.28} parent=1 // pred_check
      _
    $region15: #{_lambda_.28} parent=1 // pred_check_branch
      %206 = sbr.rel (0) target = $region17
    $region16: #{_lambda_.28} parent=1 // pred_region
      _
    $region17: #{_lambda_.28} parent=1 // pred_fallthru
      _
    // Predicated region
    $region18: #{_lambda_.28} parent=1 // pred_check
      _
    $region19: #{_lambda_.28} parent=1 // pred_check_branch
      %208 = sbr.rel (0) target = $region21
    $region20: #{_lambda_.28} parent=1 // pred_region
      _
    $region21: #{_lambda_.28} parent=1 // pred_fallthru
      _
    %209 = vsyncpa [#allocation3], 1

// kernel: _lambda_.25
$region0: #{_lambda_.25}
  #allocation0 [shape = 'u32[]', space=smem, size = 0x4, offset = 0x4, fixed_abs, tag = 'smem constant byte address 0x4 - core index']
  #allocation1 [shape = 'u32[72,128]{1,0:T(1,128)}', space=vmem, size = 0x9000, scoped, tag = 'internal scratch']
  #allocation2 [shape = 's32[1]{0:T(128)S(6)}', space=smem, size = 0x200, scoped, tag = 'scoped memory for _lambda_.25']
  #allocation3 [shape = 'f32[1]{0:T(128)S(6)}', space=smem, size = 0x200, scoped, tag = 'scoped memory for _lambda_.25']
  %s0 = inlined_call_operand.<no memory space> [shape: s32[1], index: 0, kind: input, shape index: {}]
  %s1 = inlined_call_operand.<no memory space> [shape: f32[1], index: 1, kind: input, shape index: {}]
  %s2 = inlined_call_operand.vmem [shape: f32[128,128], index: 2, kind: input, shape index: {}]
  %s3 = inlined_call_operand.vmem [shape: f32[128,128], index: 3, kind: output, shape index: {}]
  %s4 = sld [smem:[#allocation0]]
  $region22: #{_lambda_.25} parent=0
    _
  %s6 = ssub.s32 1, %s4
  %s7 = scalar_select 0, %s6, %s4
  %8 = sst [smem:[#allocation2]] %s0
  %9 = sst [smem:[#allocation3]] %s1
  // Predicated region
  $region2: #{_lambda_.25} parent=0 // pred_check
    _
  $region3: #{_lambda_.25} parent=0 // pred_check_branch
    %11 = sbr.rel (0) target = $region5
  $region4: #{_lambda_.25} parent=0 // pred_region
    _
  $region5: #{_lambda_.25} parent=0 // pred_fallthru
    _
  // Predicated region
  $region6: #{_lambda_.25} parent=0 // pred_check
    _
  $region7: #{_lambda_.25} parent=0 // pred_check_branch
    %13 = sbr.rel (0) target = $region9
  $region8: #{_lambda_.25} parent=0 // pred_region
    _
  $region9: #{_lambda_.25} parent=0 // pred_fallthru
    _
  // Predicated region
  $region10: #{_lambda_.25} parent=0 // pred_check
    _
  $region11: #{_lambda_.25} parent=0 // pred_check_branch
    %15 = sbr.rel (0) target = $region13
  $region12: #{_lambda_.25} parent=0 // pred_region
    _
  $region13: #{_lambda_.25} parent=0 // pred_fallthru
    _
  %v16 = vld [vmem:[%s2] sm:$0xff]
  %v17 = vld [vmem:[%s2 + $0x8] sm:$0xff]
  %v18 = vld [vmem:[%s2 + $0x10] sm:$0xff]
  %v19 = vld [vmem:[%s2 + $0x18] sm:$0xff]
  %v20 = vld [vmem:[%s2 + $0x20] sm:$0xff]
  %v21 = vld [vmem:[%s2 + $0x28] sm:$0xff]
  %v22 = vld [vmem:[%s2 + $0x30] sm:$0xff]
  %v23 = vld [vmem:[%s2 + $0x38] sm:$0xff]
  %v24 = vld [vmem:[%s2 + $0x40] sm:$0xff]
  %v25 = vld [vmem:[%s2 + $0x48] sm:$0xff]
  %v26 = vld [vmem:[%s2 + $0x50] sm:$0xff]
  %v27 = vld [vmem:[%s2 + $0x58] sm:$0xff]
  %v28 = vld [vmem:[%s2 + $0x60] sm:$0xff]
  %v29 = vld [vmem:[%s2 + $0x68] sm:$0xff]
  %v30 = vld [vmem:[%s2 + $0x70] sm:$0xff]
  %v31 = vld [vmem:[%s2 + $0x78] sm:$0xff]
  %s32 = sld [smem:[#allocation2]]
  %s33 = smul.u32 0, 128
  %v34 = vlaneseq
  %v35 = vshrl.u32 %v34, 7
  %v36 = vadd.s32 %v35, 8
  %v37 = vadd.s32 %v35, 16
  %v38 = vadd.s32 %v35, 24
  %v39 = vadd.s32 %v35, 32
  %v40 = vadd.s32 %v35, 40
  %v41 = vadd.s32 %v35, 48
  %v42 = vadd.s32 %v35, 56
  %v43 = vadd.s32 %v35, 64
  %v44 = vadd.s32 %v35, 72
  %v45 = vadd.s32 %v35, 80
  %v46 = vadd.s32 %v35, 88
  %v47 = vadd.s32 %v35, 96
  %v48 = vadd.s32 %v35, 104
  %v49 = vadd.s32 %v35, 112
  %v50 = vadd.s32 %v35, 120
  %v51 = vstv %s33
  %v52 = vadd.s32 %v35, %v51
  %v53 = vadd.s32 %v36, %v51
  %v54 = vadd.s32 %v37, %v51
  %v55 = vadd.s32 %v38, %v51
  %v56 = vadd.s32 %v39, %v51
  %v57 = vadd.s32 %v40, %v51
  %v58 = vadd.s32 %v41, %v51
  %v59 = vadd.s32 %v42, %v51
  %v60 = vadd.s32 %v43, %v51
  %v61 = vadd.s32 %v44, %v51
  %v62 = vadd.s32 %v45, %v51
  %v63 = vadd.s32 %v46, %v51
  %v64 = vadd.s32 %v47, %v51
  %v65 = vadd.s32 %v48, %v51
  %v66 = vadd.s32 %v49, %v51
  %v67 = vadd.s32 %v50, %v51
  %v68 = vlaneseq
  %v69 = vand.u32 %v68, 127
  %v70 = vmul.u32 %v52, 2654435761
  %v71 = vmul.u32 %v53, 2654435761
  %v72 = vmul.u32 %v54, 2654435761
  %v73 = vmul.u32 %v55, 2654435761
  %v74 = vmul.u32 %v56, 2654435761
  %v75 = vmul.u32 %v57, 2654435761
  %v76 = vmul.u32 %v58, 2654435761
  %v77 = vmul.u32 %v59, 2654435761
  %v78 = vmul.u32 %v60, 2654435761
  %v79 = vmul.u32 %v61, 2654435761
  %v80 = vmul.u32 %v62, 2654435761
  %v81 = vmul.u32 %v63, 2654435761
  %v82 = vmul.u32 %v64, 2654435761
  %v83 = vmul.u32 %v65, 2654435761
  %v84 = vmul.u32 %v66, 2654435761
  %v85 = vmul.u32 %v67, 2654435761
  %v86 = vmul.u32 %v69, 2246822519
  %v87 = vadd.s32 %v70, %v86
  %v88 = vadd.s32 %v71, %v86
  %v89 = vadd.s32 %v72, %v86
  %v90 = vadd.s32 %v73, %v86
  %v91 = vadd.s32 %v74, %v86
  %v92 = vadd.s32 %v75, %v86
  %v93 = vadd.s32 %v76, %v86
  %v94 = vadd.s32 %v77, %v86
  %v95 = vadd.s32 %v78, %v86
  %v96 = vadd.s32 %v79, %v86
  %v97 = vadd.s32 %v80, %v86
  %v98 = vadd.s32 %v81, %v86
  %v99 = vadd.s32 %v82, %v86
  %v100 = vadd.s32 %v83, %v86
  %v101 = vadd.s32 %v84, %v86
  %v102 = vadd.s32 %v85, %v86
  %s103 = smul.u32 %s32, 668265263
  %v104 = vstv %s103
  %v105 = vadd.s32 %v87, %v104
  %v106 = vadd.s32 %v88, %v104
  %v107 = vadd.s32 %v89, %v104
  %v108 = vadd.s32 %v90, %v104
  %v109 = vadd.s32 %v91, %v104
  %v110 = vadd.s32 %v92, %v104
  %v111 = vadd.s32 %v93, %v104
  %v112 = vadd.s32 %v94, %v104
  %v113 = vadd.s32 %v95, %v104
  %v114 = vadd.s32 %v96, %v104
  %v115 = vadd.s32 %v97, %v104
  %v116 = vadd.s32 %v98, %v104
  %v117 = vadd.s32 %v99, %v104
  %v118 = vadd.s32 %v100, %v104
  %v119 = vadd.s32 %v101, %v104
  %v120 = vadd.s32 %v102, %v104
  %v121 = vadd.s32 %v105, 4043101404
  %v122 = vadd.s32 %v106, 4043101404
  %v123 = vadd.s32 %v107, 4043101404
  %v124 = vadd.s32 %v108, 4043101404
  %v125 = vadd.s32 %v109, 4043101404
  %v126 = vadd.s32 %v110, 4043101404
  %v127 = vadd.s32 %v111, 4043101404
  %v128 = vadd.s32 %v112, 4043101404
  %v129 = vadd.s32 %v113, 4043101404
  %v130 = vadd.s32 %v114, 4043101404
  %v131 = vadd.s32 %v115, 4043101404
  %v132 = vadd.s32 %v116, 4043101404
  %v133 = vadd.s32 %v117, 4043101404
  %v134 = vadd.s32 %v118, 4043101404
  %v135 = vadd.s32 %v119, 4043101404
  %v136 = vadd.s32 %v120, 4043101404
  %v137 = vshrl.u32 %v121, 16
  %v138 = vshrl.u32 %v122, 16
  %v139 = vshrl.u32 %v123, 16
  %v140 = vshrl.u32 %v124, 16
  %v141 = vshrl.u32 %v125, 16
  %v142 = vshrl.u32 %v126, 16
  %v143 = vshrl.u32 %v127, 16
  %v144 = vshrl.u32 %v128, 16
  %v145 = vshrl.u32 %v129, 16
  %v146 = vshrl.u32 %v130, 16
  %v147 = vshrl.u32 %v131, 16
  %v148 = vshrl.u32 %v132, 16
  %v149 = vshrl.u32 %v133, 16
  %v150 = vshrl.u32 %v134, 16
  %v151 = vshrl.u32 %v135, 16
  %v152 = vshrl.u32 %v136, 16
  %v153 = vxor.u32 %v121, %v137
  %v154 = vxor.u32 %v122, %v138
  %v155 = vxor.u32 %v123, %v139
  %v156 = vxor.u32 %v124, %v140
  %v157 = vxor.u32 %v125, %v141
  %v158 = vxor.u32 %v126, %v142
  %v159 = vxor.u32 %v127, %v143
  %v160 = vxor.u32 %v128, %v144
  %v161 = vxor.u32 %v129, %v145
  %v162 = vxor.u32 %v130, %v146
  %v163 = vxor.u32 %v131, %v147
  %v164 = vxor.u32 %v132, %v148
  %v165 = vxor.u32 %v133, %v149
  %v166 = vxor.u32 %v134, %v150
  %v167 = vxor.u32 %v135, %v151
  %v168 = vxor.u32 %v136, %v152
  %v169 = vmul.u32 %v153, 2146121005
  %v170 = vmul.u32 %v154, 2146121005
  %v171 = vmul.u32 %v155, 2146121005
  %v172 = vmul.u32 %v156, 2146121005
  %v173 = vmul.u32 %v157, 2146121005
  %v174 = vmul.u32 %v158, 2146121005
  %v175 = vmul.u32 %v159, 2146121005
  %v176 = vmul.u32 %v160, 2146121005
  %v177 = vmul.u32 %v161, 2146121005
  %v178 = vmul.u32 %v162, 2146121005
  %v179 = vmul.u32 %v163, 2146121005
  %v180 = vmul.u32 %v164, 2146121005
  %v181 = vmul.u32 %v165, 2146121005
  %v182 = vmul.u32 %v166, 2146121005
  %v183 = vmul.u32 %v167, 2146121005
  %v184 = vmul.u32 %v168, 2146121005
  %v185 = vshrl.u32 %v169, 15
  %v186 = vshrl.u32 %v170, 15
  %v187 = vshrl.u32 %v171, 15
  %v188 = vshrl.u32 %v172, 15
  %v189 = vshrl.u32 %v173, 15
  %v190 = vshrl.u32 %v174, 15
  %v191 = vshrl.u32 %v175, 15
  %v192 = vshrl.u32 %v176, 15
  %v193 = vshrl.u32 %v177, 15
  %v194 = vshrl.u32 %v178, 15
  %v195 = vshrl.u32 %v179, 15
  %v196 = vshrl.u32 %v180, 15
  %v197 = vshrl.u32 %v181, 15
  %v198 = vshrl.u32 %v182, 15
  %v199 = vshrl.u32 %v183, 15
  %v200 = vshrl.u32 %v184, 15
  %v201 = vxor.u32 %v169, %v185
  %v202 = vxor.u32 %v170, %v186
  %v203 = vxor.u32 %v171, %v187
  %v204 = vxor.u32 %v172, %v188
  %v205 = vxor.u32 %v173, %v189
  %v206 = vxor.u32 %v174, %v190
  %v207 = vxor.u32 %v175, %v191
  %v208 = vxor.u32 %v176, %v192
  %v209 = vxor.u32 %v177, %v193
  %v210 = vxor.u32 %v178, %v194
  %v211 = vxor.u32 %v179, %v195
  %v212 = vxor.u32 %v180, %v196
  %v213 = vxor.u32 %v181, %v197
  %v214 = vxor.u32 %v182, %v198
  %v215 = vxor.u32 %v183, %v199
  %v216 = vxor.u32 %v184, %v200
  %v217 = vmul.u32 %v201, 2221713035
  %v218 = vmul.u32 %v202, 2221713035
  %v219 = vmul.u32 %v203, 2221713035
  %v220 = vmul.u32 %v204, 2221713035
  %v221 = vmul.u32 %v205, 2221713035
  %v222 = vmul.u32 %v206, 2221713035
  %v223 = vmul.u32 %v207, 2221713035
  %v224 = vmul.u32 %v208, 2221713035
  %v225 = vmul.u32 %v209, 2221713035
  %v226 = vmul.u32 %v210, 2221713035
  %v227 = vmul.u32 %v211, 2221713035
  %v228 = vmul.u32 %v212, 2221713035
  %v229 = vmul.u32 %v213, 2221713035
  %v230 = vmul.u32 %v214, 2221713035
  %v231 = vmul.u32 %v215, 2221713035
  %v232 = vmul.u32 %v216, 2221713035
  %v233 = vshrl.u32 %v217, 16
  %v234 = vshrl.u32 %v218, 16
  %v235 = vshrl.u32 %v219, 16
  %v236 = vshrl.u32 %v220, 16
  %v237 = vshrl.u32 %v221, 16
  %v238 = vshrl.u32 %v222, 16
  %v239 = vshrl.u32 %v223, 16
  %v240 = vshrl.u32 %v224, 16
  %v241 = vshrl.u32 %v225, 16
  %v242 = vshrl.u32 %v226, 16
  %v243 = vshrl.u32 %v227, 16
  %v244 = vshrl.u32 %v228, 16
  %v245 = vshrl.u32 %v229, 16
  %v246 = vshrl.u32 %v230, 16
  %v247 = vshrl.u32 %v231, 16
  %v248 = vshrl.u32 %v232, 16
  %v249 = vxor.u32 %v217, %v233
  %v250 = vxor.u32 %v218, %v234
  %v251 = vxor.u32 %v219, %v235
  %v252 = vxor.u32 %v220, %v236
  %v253 = vxor.u32 %v221, %v237
  %v254 = vxor.u32 %v222, %v238
  %v255 = vxor.u32 %v223, %v239
  %v256 = vxor.u32 %v224, %v240
  %v257 = vxor.u32 %v225, %v241
  %v258 = vxor.u32 %v226, %v242
  %v259 = vxor.u32 %v227, %v243
  %v260 = vxor.u32 %v228, %v244
  %v261 = vxor.u32 %v229, %v245
  %v262 = vxor.u32 %v230, %v246
  %v263 = vxor.u32 %v231, %v247
  %v264 = vxor.u32 %v232, %v248
  %v265 = vand.u32 %v249, 8388607
  %v266 = vand.u32 %v250, 8388607
  %v267 = vand.u32 %v251, 8388607
  %v268 = vand.u32 %v252, 8388607
  %v269 = vand.u32 %v253, 8388607
  %v270 = vand.u32 %v254, 8388607
  %v271 = vand.u32 %v255, 8388607
  %v272 = vand.u32 %v256, 8388607
  %v273 = vand.u32 %v257, 8388607
  %v274 = vand.u32 %v258, 8388607
  %v275 = vand.u32 %v259, 8388607
  %v276 = vand.u32 %v260, 8388607
  %v277 = vand.u32 %v261, 8388607
  %v278 = vand.u32 %v262, 8388607
  %v279 = vand.u32 %v263, 8388607
  %v280 = vand.u32 %v264, 8388607
  %v281 = vcvt.s32.f32 %v265
  %v282 = vcvt.s32.f32 %v266
  %v283 = vcvt.s32.f32 %v267
  %v284 = vcvt.s32.f32 %v268
  %v285 = vcvt.s32.f32 %v269
  %v286 = vcvt.s32.f32 %v270
  %v287 = vcvt.s32.f32 %v271
  %v288 = vcvt.s32.f32 %v272
  %v289 = vcvt.s32.f32 %v273
  %v290 = vcvt.s32.f32 %v274
  %v291 = vcvt.s32.f32 %v275
  %v292 = vcvt.s32.f32 %v276
  %v293 = vcvt.s32.f32 %v277
  %v294 = vcvt.s32.f32 %v278
  %v295 = vcvt.s32.f32 %v279
  %v296 = vcvt.s32.f32 %v280
  %v297 = vmul.f32 %v281, 1.1920929e-07
  %v298 = vmul.f32 %v282, 1.1920929e-07
  %v299 = vmul.f32 %v283, 1.1920929e-07
  %v300 = vmul.f32 %v284, 1.1920929e-07
  %v301 = vmul.f32 %v285, 1.1920929e-07
  %v302 = vmul.f32 %v286, 1.1920929e-07
  %v303 = vmul.f32 %v287, 1.1920929e-07
  %v304 = vmul.f32 %v288, 1.1920929e-07
  %v305 = vmul.f32 %v289, 1.1920929e-07
  %v306 = vmul.f32 %v290, 1.1920929e-07
  %v307 = vmul.f32 %v291, 1.1920929e-07
  %v308 = vmul.f32 %v292, 1.1920929e-07
  %v309 = vmul.f32 %v293, 1.1920929e-07
  %v310 = vmul.f32 %v294, 1.1920929e-07
  %v311 = vmul.f32 %v295, 1.1920929e-07
  %v312 = vmul.f32 %v296, 1.1920929e-07
  %v313 = vmul.f32 %v297, 0.5
  %v314 = vmul.f32 %v298, 0.5
  %v315 = vmul.f32 %v299, 0.5
  %v316 = vmul.f32 %v300, 0.5
  %v317 = vmul.f32 %v301, 0.5
  %v318 = vmul.f32 %v302, 0.5
  %v319 = vmul.f32 %v303, 0.5
  %v320 = vmul.f32 %v304, 0.5
  %v321 = vmul.f32 %v305, 0.5
  %v322 = vmul.f32 %v306, 0.5
  %v323 = vmul.f32 %v307, 0.5
  %v324 = vmul.f32 %v308, 0.5
  %v325 = vmul.f32 %v309, 0.5
  %v326 = vmul.f32 %v310, 0.5
  %v327 = vmul.f32 %v311, 0.5
  %v328 = vmul.f32 %v312, 0.5
  %v329 = vsub.f32 %v313, 1.0
  %v330 = vsub.f32 %v314, 1.0
  %v331 = vsub.f32 %v315, 1.0
  %v332 = vsub.f32 %v316, 1.0
  %v333 = vsub.f32 %v317, 1.0
  %v334 = vsub.f32 %v318, 1.0
  %v335 = vsub.f32 %v319, 1.0
  %v336 = vsub.f32 %v320, 1.0
  %v337 = vsub.f32 %v321, 1.0
  %v338 = vsub.f32 %v322, 1.0
  %v339 = vsub.f32 %v323, 1.0
  %v340 = vsub.f32 %v324, 1.0
  %v341 = vsub.f32 %v325, 1.0
  %v342 = vsub.f32 %v326, 1.0
  %v343 = vsub.f32 %v327, 1.0
  %v344 = vsub.f32 %v328, 1.0
  %v345 = vadd.f32 %v16, %v329
  %v346 = vadd.f32 %v17, %v330
  %v347 = vadd.f32 %v18, %v331
  %v348 = vadd.f32 %v19, %v332
  %v349 = vadd.f32 %v20, %v333
  %v350 = vadd.f32 %v21, %v334
  %v351 = vadd.f32 %v22, %v335
  %v352 = vadd.f32 %v23, %v336
  %v353 = vadd.f32 %v24, %v337
  %v354 = vadd.f32 %v25, %v338
  %v355 = vadd.f32 %v26, %v339
  %v356 = vadd.f32 %v27, %v340
  %v357 = vadd.f32 %v28, %v341
  %v358 = vadd.f32 %v29, %v342
  %v359 = vadd.f32 %v30, %v343
  %v360 = vadd.f32 %v31, %v344
  %s361 = sld [smem:[#allocation3]]
  %v362 = vmax.f32 %v345, 0.0
  %v363 = vmax.f32 %v346, 0.0
  %v364 = vmax.f32 %v347, 0.0
  %v365 = vmax.f32 %v348, 0.0
  %v366 = vmax.f32 %v349, 0.0
  %v367 = vmax.f32 %v350, 0.0
  %v368 = vmax.f32 %v351, 0.0
  %v369 = vmax.f32 %v352, 0.0
  %v370 = vmax.f32 %v353, 0.0
  %v371 = vmax.f32 %v354, 0.0
  %v372 = vmax.f32 %v355, 0.0
  %v373 = vmax.f32 %v356, 0.0
  %v374 = vmax.f32 %v357, 0.0
  %v375 = vmax.f32 %v358, 0.0
  %v376 = vmax.f32 %v359, 0.0
  %v377 = vmax.f32 %v360, 0.0
  %v378 = vstv %s361
  %v379 = vmin.f32 %v378, %v362
  %v380 = vmin.f32 %v378, %v363
  %v381 = vmin.f32 %v378, %v364
  %v382 = vmin.f32 %v378, %v365
  %v383 = vmin.f32 %v378, %v366
  %v384 = vmin.f32 %v378, %v367
  %v385 = vmin.f32 %v378, %v368
  %v386 = vmin.f32 %v378, %v369
  %v387 = vmin.f32 %v378, %v370
  %v388 = vmin.f32 %v378, %v371
  %v389 = vmin.f32 %v378, %v372
  %v390 = vmin.f32 %v378, %v373
  %v391 = vmin.f32 %v378, %v374
  %v392 = vmin.f32 %v378, %v375
  %v393 = vmin.f32 %v378, %v376
  %v394 = vmin.f32 %v378, %v377
  %395 = vst [vmem:[%s3] sm:$0xff] %v379
  %396 = vst [vmem:[%s3 + $0x8] sm:$0xff] %v380
  %397 = vst [vmem:[%s3 + $0x10] sm:$0xff] %v381
  %398 = vst [vmem:[%s3 + $0x18] sm:$0xff] %v382
  %399 = vst [vmem:[%s3 + $0x20] sm:$0xff] %v383
  %400 = vst [vmem:[%s3 + $0x28] sm:$0xff] %v384
  %401 = vst [vmem:[%s3 + $0x30] sm:$0xff] %v385
  %402 = vst [vmem:[%s3 + $0x38] sm:$0xff] %v386
  %403 = vst [vmem:[%s3 + $0x40] sm:$0xff] %v387
  %404 = vst [vmem:[%s3 + $0x48] sm:$0xff] %v388
  %405 = vst [vmem:[%s3 + $0x50] sm:$0xff] %v389
  %406 = vst [vmem:[%s3 + $0x58] sm:$0xff] %v390
  %407 = vst [vmem:[%s3 + $0x60] sm:$0xff] %v391
  %408 = vst [vmem:[%s3 + $0x68] sm:$0xff] %v392
  %409 = vst [vmem:[%s3 + $0x70] sm:$0xff] %v393
  %410 = vst [vmem:[%s3 + $0x78] sm:$0xff] %v394
  // Predicated region
  $region14: #{_lambda_.25} parent=0 // pred_check
    _
  $region15: #{_lambda_.25} parent=0 // pred_check_branch
    %412 = sbr.rel (0) target = $region17
  $region16: #{_lambda_.25} parent=0 // pred_region
    _
  $region17: #{_lambda_.25} parent=0 // pred_fallthru
    _
  // Predicated region
  $region18: #{_lambda_.25} parent=0 // pred_check
    _
  $region19: #{_lambda_.25} parent=0 // pred_check_branch
    %414 = sbr.rel (0) target = $region21
  $region20: #{_lambda_.25} parent=0 // pred_region
    _
  $region21: #{_lambda_.25} parent=0 // pred_fallthru
    _

// kernel: _lambda_.26
$region0: #{_lambda_.26}
  #allocation0 [shape = 'u32[]', space=smem, size = 0x4, offset = 0x4, fixed_abs, tag = 'smem constant byte address 0x4 - core index']
  #allocation1 [shape = 'u32[72,128]{1,0:T(1,128)}', space=vmem, size = 0x9000, scoped, tag = 'internal scratch']
  %s0 = inlined_call_operand.vmem [shape: f32[6], index: 0, kind: input, shape index: {}]
  %s1 = inlined_call_operand.vmem [shape: f32[128,128], index: 1, kind: input, shape index: {}]
  %s2 = inlined_call_operand.vmem [shape: f32[128,128], index: 2, kind: output, shape index: {}]
  %s3 = sld [smem:[#allocation0]]
  $region22: #{_lambda_.26} parent=0
    _
  %s5 = ssub.s32 1, %s3
  %s6 = scalar_select 0, %s5, %s3
  $region1: #{_lambda_.26} parent=0
    #allocation2 [shape = 'u8[512]{0}', space=smem, size = 0x200, scoped, tag = 'input window, operand 0, single buffered']
    #allocation3 [shape = 's32[1]{0}', space=sflag, size = 0x4, scoped, tag = 'scoped memory for _lambda_.26']
    %7 = vsyncpa [#allocation3], 0
    // Predicated region
    $region2: #{_lambda_.26} parent=1 // pred_check
      _
    $region3: #{_lambda_.26} parent=1 // pred_check_branch
      %9 = sbr.rel (0) target = $region5
    $region4: #{_lambda_.26} parent=1 // pred_region
      %11 = vsyncadd [#allocation3], 0
      %s13 = sshll.u32 %s0, 4
      %s14 = int_to_ptr.vmem [resolvable:$true] %s13
      %16 = dma.vmem_to_smem %s14, 16, [#allocation2], [#allocation3]
    $region5: #{_lambda_.26} parent=1 // pred_fallthru
      _
    // Predicated region
    $region6: #{_lambda_.26} parent=1 // pred_check
      _
    $region7: #{_lambda_.26} parent=1 // pred_check_branch
      %18 = sbr.rel (0) target = $region9
    $region8: #{_lambda_.26} parent=1 // pred_region
      _
    $region9: #{_lambda_.26} parent=1 // pred_fallthru
      _
    // Predicated region
    $region10: #{_lambda_.26} parent=1 // pred_check
      _
    $region11: #{_lambda_.26} parent=1 // pred_check_branch
      %20 = sbr.rel (0) target = $region13
    $region12: #{_lambda_.26} parent=1 // pred_region
      %22 = dma.done [#allocation3], 16
    $region13: #{_lambda_.26} parent=1 // pred_fallthru
      _
    %23 = sfence
    %s24 = sld [smem:[#allocation2]]
    %s25 = sld [smem:[#allocation2 + $0x1]]
    %s26 = sld [smem:[#allocation2 + $0x2]]
    %s27 = sld [smem:[#allocation2 + $0x3]]
    %s28 = sld [smem:[#allocation2 + $0x4]]
    %s29 = sld [smem:[#allocation2 + $0x5]]
    %v30 = vld [vmem:[%s1] sm:$0xff]
    %v31 = vld [vmem:[%s1 + $0x8] sm:$0xff]
    %v32 = vld [vmem:[%s1 + $0x10] sm:$0xff]
    %v33 = vld [vmem:[%s1 + $0x18] sm:$0xff]
    %v34 = vld [vmem:[%s1 + $0x20] sm:$0xff]
    %v35 = vld [vmem:[%s1 + $0x28] sm:$0xff]
    %v36 = vld [vmem:[%s1 + $0x30] sm:$0xff]
    %v37 = vld [vmem:[%s1 + $0x38] sm:$0xff]
    %v38 = vld [vmem:[%s1 + $0x40] sm:$0xff]
    %v39 = vld [vmem:[%s1 + $0x48] sm:$0xff]
    %v40 = vld [vmem:[%s1 + $0x50] sm:$0xff]
    %v41 = vld [vmem:[%s1 + $0x58] sm:$0xff]
    %v42 = vld [vmem:[%s1 + $0x60] sm:$0xff]
    %v43 = vld [vmem:[%s1 + $0x68] sm:$0xff]
    %v44 = vld [vmem:[%s1 + $0x70] sm:$0xff]
    %v45 = vld [vmem:[%s1 + $0x78] sm:$0xff]
    %v46 = vstv %s24
    %v47 = vsub.f32 %v30, %v46
    %v48 = vsub.f32 %v31, %v46
    %v49 = vsub.f32 %v32, %v46
    %v50 = vsub.f32 %v33, %v46
    %v51 = vsub.f32 %v34, %v46
    %v52 = vsub.f32 %v35, %v46
    %v53 = vsub.f32 %v36, %v46
    %v54 = vsub.f32 %v37, %v46
    %v55 = vsub.f32 %v38, %v46
    %v56 = vsub.f32 %v39, %v46
    %v57 = vsub.f32 %v40, %v46
    %v58 = vsub.f32 %v41, %v46
    %v59 = vsub.f32 %v42, %v46
    %v60 = vsub.f32 %v43, %v46
    %v61 = vsub.f32 %v44, %v46
    %v62 = vsub.f32 %v45, %v46
    %v63 = vstv %s25
    %v64 = vsub.f32 %v47, %v63
    %v65 = vsub.f32 %v48, %v63
    %v66 = vsub.f32 %v49, %v63
    %v67 = vsub.f32 %v50, %v63
    %v68 = vsub.f32 %v51, %v63
    %v69 = vsub.f32 %v52, %v63
    %v70 = vsub.f32 %v53, %v63
    %v71 = vsub.f32 %v54, %v63
    %v72 = vsub.f32 %v55, %v63
    %v73 = vsub.f32 %v56, %v63
    %v74 = vsub.f32 %v57, %v63
    %v75 = vsub.f32 %v58, %v63
    %v76 = vsub.f32 %v59, %v63
    %v77 = vsub.f32 %v60, %v63
    %v78 = vsub.f32 %v61, %v63
    %v79 = vsub.f32 %v62, %v63
    %v80 = vstv %s27
    %v81 = vmul.f32 %v64, %v80
    %v82 = vmul.f32 %v65, %v80
    %v83 = vmul.f32 %v66, %v80
    %v84 = vmul.f32 %v67, %v80
    %v85 = vmul.f32 %v68, %v80
    %v86 = vmul.f32 %v69, %v80
    %v87 = vmul.f32 %v70, %v80
    %v88 = vmul.f32 %v71, %v80
    %v89 = vmul.f32 %v72, %v80
    %v90 = vmul.f32 %v73, %v80
    %v91 = vmul.f32 %v74, %v80
    %v92 = vmul.f32 %v75, %v80
    %v93 = vmul.f32 %v76, %v80
    %v94 = vmul.f32 %v77, %v80
    %v95 = vmul.f32 %v78, %v80
    %v96 = vmul.f32 %v79, %v80
    %v97 = vstv %s28
    %v98 = vmul.f32 %v81, %v97
    %v99 = vmul.f32 %v82, %v97
    %v100 = vmul.f32 %v83, %v97
    %v101 = vmul.f32 %v84, %v97
    %v102 = vmul.f32 %v85, %v97
    %v103 = vmul.f32 %v86, %v97
    %v104 = vmul.f32 %v87, %v97
    %v105 = vmul.f32 %v88, %v97
    %v106 = vmul.f32 %v89, %v97
    %v107 = vmul.f32 %v90, %v97
    %v108 = vmul.f32 %v91, %v97
    %v109 = vmul.f32 %v92, %v97
    %v110 = vmul.f32 %v93, %v97
    %v111 = vmul.f32 %v94, %v97
    %v112 = vmul.f32 %v95, %v97
    %v113 = vmul.f32 %v96, %v97
    %v114 = vadd.f32 %v98, %v63
    %v115 = vadd.f32 %v99, %v63
    %v116 = vadd.f32 %v100, %v63
    %v117 = vadd.f32 %v101, %v63
    %v118 = vadd.f32 %v102, %v63
    %v119 = vadd.f32 %v103, %v63
    %v120 = vadd.f32 %v104, %v63
    %v121 = vadd.f32 %v105, %v63
    %v122 = vadd.f32 %v106, %v63
    %v123 = vadd.f32 %v107, %v63
    %v124 = vadd.f32 %v108, %v63
    %v125 = vadd.f32 %v109, %v63
    %v126 = vadd.f32 %v110, %v63
    %v127 = vadd.f32 %v111, %v63
    %v128 = vadd.f32 %v112, %v63
    %v129 = vadd.f32 %v113, %v63
    %v130 = vmax.f32 %v64, 0.0
    %v131 = vmax.f32 %v65, 0.0
    %v132 = vmax.f32 %v66, 0.0
    %v133 = vmax.f32 %v67, 0.0
    %v134 = vmax.f32 %v68, 0.0
    %v135 = vmax.f32 %v69, 0.0
    %v136 = vmax.f32 %v70, 0.0
    %v137 = vmax.f32 %v71, 0.0
    %v138 = vmax.f32 %v72, 0.0
    %v139 = vmax.f32 %v73, 0.0
    %v140 = vmax.f32 %v74, 0.0
    %v141 = vmax.f32 %v75, 0.0
    %v142 = vmax.f32 %v76, 0.0
    %v143 = vmax.f32 %v77, 0.0
    %v144 = vmax.f32 %v78, 0.0
    %v145 = vmax.f32 %v79, 0.0
    %v146 = vmul.f32 %v130, %v80
    %v147 = vmul.f32 %v131, %v80
    %v148 = vmul.f32 %v132, %v80
    %v149 = vmul.f32 %v133, %v80
    %v150 = vmul.f32 %v134, %v80
    %v151 = vmul.f32 %v135, %v80
    %v152 = vmul.f32 %v136, %v80
    %v153 = vmul.f32 %v137, %v80
    %v154 = vmul.f32 %v138, %v80
    %v155 = vmul.f32 %v139, %v80
    %v156 = vmul.f32 %v140, %v80
    %v157 = vmul.f32 %v141, %v80
    %v158 = vmul.f32 %v142, %v80
    %v159 = vmul.f32 %v143, %v80
    %v160 = vmul.f32 %v144, %v80
    %v161 = vmul.f32 %v145, %v80
    %v162 = vmax.f32 %v146, 1e-30
    %v163 = vmax.f32 %v147, 1e-30
    %v164 = vmax.f32 %v148, 1e-30
    %v165 = vmax.f32 %v149, 1e-30
    %v166 = vmax.f32 %v150, 1e-30
    %v167 = vmax.f32 %v151, 1e-30
    %v168 = vmax.f32 %v152, 1e-30
    %v169 = vmax.f32 %v153, 1e-30
    %v170 = vmax.f32 %v154, 1e-30
    %v171 = vmax.f32 %v155, 1e-30
    %v172 = vmax.f32 %v156, 1e-30
    %v173 = vmax.f32 %v157, 1e-30
    %v174 = vmax.f32 %v158, 1e-30
    %v175 = vmax.f32 %v159, 1e-30
    %v176 = vmax.f32 %v160, 1e-30
    %v177 = vmax.f32 %v161, 1e-30
    %v178 = vlog2.pop %v162
    %v179 = vmul.f32 %v178, 0.6931472
    %v180 = vlog2.pop %v163
    %v181 = vmul.f32 %v180, 0.6931472
    %v182 = vlog2.pop %v164
    %v183 = vmul.f32 %v182, 0.6931472
    %v184 = vlog2.pop %v165
    %v185 = vmul.f32 %v184, 0.6931472
    %v186 = vlog2.pop %v166
    %v187 = vmul.f32 %v186, 0.6931472
    %v188 = vlog2.pop %v167
    %v189 = vmul.f32 %v188, 0.6931472
    %v190 = vlog2.pop %v168
    %v191 = vmul.f32 %v190, 0.6931472
    %v192 = vlog2.pop %v169
    %v193 = vmul.f32 %v192, 0.6931472
    %v194 = vlog2.pop %v170
    %v195 = vmul.f32 %v194, 0.6931472
    %v196 = vlog2.pop %v171
    %v197 = vmul.f32 %v196, 0.6931472
    %v198 = vlog2.pop %v172
    %v199 = vmul.f32 %v198, 0.6931472
    %v200 = vlog2.pop %v173
    %v201 = vmul.f32 %v200, 0.6931472
    %v202 = vlog2.pop %v174
    %v203 = vmul.f32 %v202, 0.6931472
    %v204 = vlog2.pop %v175
    %v205 = vmul.f32 %v204, 0.6931472
    %v206 = vlog2.pop %v176
    %v207 = vmul.f32 %v206, 0.6931472
    %v208 = vlog2.pop %v177
    %v209 = vmul.f32 %v208, 0.6931472
    %v210 = vstv %s29
    %v211 = vmul.f32 %v210, %v179
    %v212 = vmul.f32 %v210, %v181
    %v213 = vmul.f32 %v210, %v183
    %v214 = vmul.f32 %v210, %v185
    %v215 = vmul.f32 %v210, %v187
    %v216 = vmul.f32 %v210, %v189
    %v217 = vmul.f32 %v210, %v191
    %v218 = vmul.f32 %v210, %v193
    %v219 = vmul.f32 %v210, %v195
    %v220 = vmul.f32 %v210, %v197
    %v221 = vmul.f32 %v210, %v199
    %v222 = vmul.f32 %v210, %v201
    %v223 = vmul.f32 %v210, %v203
    %v224 = vmul.f32 %v210, %v205
    %v225 = vmul.f32 %v210, %v207
    %v226 = vmul.f32 %v210, %v209
    %v227 = vmul.f32 %v211, 1.442695
    %v228 = vpow.pop %v227
    %v229 = vmul.f32 %v212, 1.442695
    %v230 = vpow.pop %v229
    %v231 = vmul.f32 %v213, 1.442695
    %v232 = vpow.pop %v231
    %v233 = vmul.f32 %v214, 1.442695
    %v234 = vpow.pop %v233
    %v235 = vmul.f32 %v215, 1.442695
    %v236 = vpow.pop %v235
    %v237 = vmul.f32 %v216, 1.442695
    %v238 = vpow.pop %v237
    %v239 = vmul.f32 %v217, 1.442695
    %v240 = vpow.pop %v239
    %v241 = vmul.f32 %v218, 1.442695
    %v242 = vpow.pop %v241
    %v243 = vmul.f32 %v219, 1.442695
    %v244 = vpow.pop %v243
    %v245 = vmul.f32 %v220, 1.442695
    %v246 = vpow.pop %v245
    %v247 = vmul.f32 %v221, 1.442695
    %v248 = vpow.pop %v247
    %v249 = vmul.f32 %v222, 1.442695
    %v250 = vpow.pop %v249
    %v251 = vmul.f32 %v223, 1.442695
    %v252 = vpow.pop %v251
    %v253 = vmul.f32 %v224, 1.442695
    %v254 = vpow.pop %v253
    %v255 = vmul.f32 %v225, 1.442695
    %v256 = vpow.pop %v255
    %v257 = vmul.f32 %v226, 1.442695
    %v258 = vpow.pop %v257
    %v259 = vmul.f32 %v228, %v97
    %v260 = vmul.f32 %v230, %v97
    %v261 = vmul.f32 %v232, %v97
    %v262 = vmul.f32 %v234, %v97
    %v263 = vmul.f32 %v236, %v97
    %v264 = vmul.f32 %v238, %v97
    %v265 = vmul.f32 %v240, %v97
    %v266 = vmul.f32 %v242, %v97
    %v267 = vmul.f32 %v244, %v97
    %v268 = vmul.f32 %v246, %v97
    %v269 = vmul.f32 %v248, %v97
    %v270 = vmul.f32 %v250, %v97
    %v271 = vmul.f32 %v252, %v97
    %v272 = vmul.f32 %v254, %v97
    %v273 = vmul.f32 %v256, %v97
    %v274 = vmul.f32 %v258, %v97
    %v275 = vadd.f32 %v259, %v63
    %v276 = vadd.f32 %v260, %v63
    %v277 = vadd.f32 %v261, %v63
    %v278 = vadd.f32 %v262, %v63
    %v279 = vadd.f32 %v263, %v63
    %v280 = vadd.f32 %v264, %v63
    %v281 = vadd.f32 %v265, %v63
    %v282 = vadd.f32 %v266, %v63
    %v283 = vadd.f32 %v267, %v63
    %v284 = vadd.f32 %v268, %v63
    %v285 = vadd.f32 %v269, %v63
    %v286 = vadd.f32 %v270, %v63
    %v287 = vadd.f32 %v271, %v63
    %v288 = vadd.f32 %v272, %v63
    %v289 = vadd.f32 %v273, %v63
    %v290 = vadd.f32 %v274, %v63
    %vm291 = vcmp.le.f32.partialorder %v47, %v63
    %vm292 = vcmp.le.f32.partialorder %v48, %v63
    %vm293 = vcmp.le.f32.partialorder %v49, %v63
    %vm294 = vcmp.le.f32.partialorder %v50, %v63
    %vm295 = vcmp.le.f32.partialorder %v51, %v63
    %vm296 = vcmp.le.f32.partialorder %v52, %v63
    %vm297 = vcmp.le.f32.partialorder %v53, %v63
    %vm298 = vcmp.le.f32.partialorder %v54, %v63
    %vm299 = vcmp.le.f32.partialorder %v55, %v63
    %vm300 = vcmp.le.f32.partialorder %v56, %v63
    %vm301 = vcmp.le.f32.partialorder %v57, %v63
    %vm302 = vcmp.le.f32.partialorder %v58, %v63
    %vm303 = vcmp.le.f32.partialorder %v59, %v63
    %vm304 = vcmp.le.f32.partialorder %v60, %v63
    %vm305 = vcmp.le.f32.partialorder %v61, %v63
    %vm306 = vcmp.le.f32.partialorder %v62, %v63
    %v307 = vstv %s26
    %vm308 = vcmp.gt.f32.partialorder %v47, %v307
    %vm309 = vcmp.gt.f32.partialorder %v48, %v307
    %vm310 = vcmp.gt.f32.partialorder %v49, %v307
    %vm311 = vcmp.gt.f32.partialorder %v50, %v307
    %vm312 = vcmp.gt.f32.partialorder %v51, %v307
    %vm313 = vcmp.gt.f32.partialorder %v52, %v307
    %vm314 = vcmp.gt.f32.partialorder %v53, %v307
    %vm315 = vcmp.gt.f32.partialorder %v54, %v307
    %vm316 = vcmp.gt.f32.partialorder %v55, %v307
    %vm317 = vcmp.gt.f32.partialorder %v56, %v307
    %vm318 = vcmp.gt.f32.partialorder %v57, %v307
    %vm319 = vcmp.gt.f32.partialorder %v58, %v307
    %vm320 = vcmp.gt.f32.partialorder %v59, %v307
    %vm321 = vcmp.gt.f32.partialorder %v60, %v307
    %vm322 = vcmp.gt.f32.partialorder %v61, %v307
    %vm323 = vcmp.gt.f32.partialorder %v62, %v307
    %v324 = vsel %vm308, %v114, %v275
    %v325 = vsel %vm309, %v115, %v276
    %v326 = vsel %vm310, %v116, %v277
    %v327 = vsel %vm311, %v117, %v278
    %v328 = vsel %vm312, %v118, %v279
    %v329 = vsel %vm313, %v119, %v280
    %v330 = vsel %vm314, %v120, %v281
    %v331 = vsel %vm315, %v121, %v282
    %v332 = vsel %vm316, %v122, %v283
    %v333 = vsel %vm317, %v123, %v284
    %v334 = vsel %vm318, %v124, %v285
    %v335 = vsel %vm319, %v125, %v286
    %v336 = vsel %vm320, %v126, %v287
    %v337 = vsel %vm321, %v127, %v288
    %v338 = vsel %vm322, %v128, %v289
    %v339 = vsel %vm323, %v129, %v290
    %v340 = vsel %vm291, %v47, %v324
    %v341 = vsel %vm292, %v48, %v325
    %v342 = vsel %vm293, %v49, %v326
    %v343 = vsel %vm294, %v50, %v327
    %v344 = vsel %vm295, %v51, %v328
    %v345 = vsel %vm296, %v52, %v329
    %v346 = vsel %vm297, %v53, %v330
    %v347 = vsel %vm298, %v54, %v331
    %v348 = vsel %vm299, %v55, %v332
    %v349 = vsel %vm300, %v56, %v333
    %v350 = vsel %vm301, %v57, %v334
    %v351 = vsel %vm302, %v58, %v335
    %v352 = vsel %vm303, %v59, %v336
    %v353 = vsel %vm304, %v60, %v337
    %v354 = vsel %vm305, %v61, %v338
    %v355 = vsel %vm306, %v62, %v339
    %356 = vst [vmem:[%s2] sm:$0xff] %v340
    %357 = vst [vmem:[%s2 + $0x8] sm:$0xff] %v341
    %358 = vst [vmem:[%s2 + $0x10] sm:$0xff] %v342
    %359 = vst [vmem:[%s2 + $0x18] sm:$0xff] %v343
    %360 = vst [vmem:[%s2 + $0x20] sm:$0xff] %v344
    %361 = vst [vmem:[%s2 + $0x28] sm:$0xff] %v345
    %362 = vst [vmem:[%s2 + $0x30] sm:$0xff] %v346
    %363 = vst [vmem:[%s2 + $0x38] sm:$0xff] %v347
    %364 = vst [vmem:[%s2 + $0x40] sm:$0xff] %v348
    %365 = vst [vmem:[%s2 + $0x48] sm:$0xff] %v349
    %366 = vst [vmem:[%s2 + $0x50] sm:$0xff] %v350
    %367 = vst [vmem:[%s2 + $0x58] sm:$0xff] %v351
    %368 = vst [vmem:[%s2 + $0x60] sm:$0xff] %v352
    %369 = vst [vmem:[%s2 + $0x68] sm:$0xff] %v353
    %370 = vst [vmem:[%s2 + $0x70] sm:$0xff] %v354
    %371 = vst [vmem:[%s2 + $0x78] sm:$0xff] %v355
    // Predicated region
    $region14: #{_lambda_.26} parent=1 // pred_check
      _
    $region15: #{_lambda_.26} parent=1 // pred_check_branch
      %373 = sbr.rel (0) target = $region17
    $region16: #{_lambda_.26} parent=1 // pred_region
      _
    $region17: #{_lambda_.26} parent=1 // pred_fallthru
      _
    // Predicated region
    $region18: #{_lambda_.26} parent=1 // pred_check
      _
    $region19: #{_lambda_.26} parent=1 // pred_check_branch
      %375 = sbr.rel (0) target = $region21
    $region20: #{_lambda_.26} parent=1 // pred_region
      _
    $region21: #{_lambda_.26} parent=1 // pred_fallthru
      _
    %376 = vsyncpa [#allocation3], 1

// kernel: _lambda_.35
$region0: #{_lambda_.35}
  #allocation0 [shape = 'u32[]', space=smem, size = 0x4, offset = 0x4, fixed_abs, tag = 'smem constant byte address 0x4 - core index']
  #allocation1 [shape = 'u32[72,128]{1,0:T(1,128)}', space=vmem, size = 0x9000, scoped, tag = 'internal scratch']
  %s0 = inlined_call_operand.vmem [shape: f32[128,8], index: 0, kind: input, shape index: {}, may-alias: {0,2}]
  %s1 = inlined_call_operand.vmem [shape: f32[128,128], index: 1, kind: input, shape index: {}]
  %s2 = inlined_call_operand.vmem [shape: f32[128,8], index: 2, kind: input, shape index: {}, may-alias: {0,2}]
  %s3 = inlined_call_operand.vmem [shape: f32[8,8], index: 3, kind: output, shape index: {}]
  %s4 = sld [smem:[#allocation0]]
  $region30: #{_lambda_.35} parent=0
    _
  %s6 = ssub.s32 1, %s4
  %s7 = scalar_select 0, %s6, %s4
  // Predicated region
  $region2: #{_lambda_.35} parent=0 // pred_check
    _
  $region3: #{_lambda_.35} parent=0 // pred_check_branch
    %9 = sbr.rel (0) target = $region5
  $region4: #{_lambda_.35} parent=0 // pred_region
    _
  $region5: #{_lambda_.35} parent=0 // pred_fallthru
    _
  // Predicated region
  $region6: #{_lambda_.35} parent=0 // pred_check
    _
  $region7: #{_lambda_.35} parent=0 // pred_check_branch
    %11 = sbr.rel (0) target = $region9
  $region8: #{_lambda_.35} parent=0 // pred_region
    _
  $region9: #{_lambda_.35} parent=0 // pred_fallthru
    _
  // Predicated region
  $region10: #{_lambda_.35} parent=0 // pred_check
    _
  $region11: #{_lambda_.35} parent=0 // pred_check_branch
    %13 = sbr.rel (0) target = $region13
  $region12: #{_lambda_.35} parent=0 // pred_region
    _
  $region13: #{_lambda_.35} parent=0 // pred_fallthru
    _
  %v14 = vld [vmem:[%s0] sm:$0xff]
  %v15 = vld [vmem:[%s0 + $0x8] sm:$0xff]
  %v16 = vld [vmem:[%s0 + $0x10] sm:$0xff]
  %v17 = vld [vmem:[%s0 + $0x18] sm:$0xff]
  %v18 = vld [vmem:[%s0 + $0x20] sm:$0xff]
  %v19 = vld [vmem:[%s0 + $0x28] sm:$0xff]
  %v20 = vld [vmem:[%s0 + $0x30] sm:$0xff]
  %v21 = vld [vmem:[%s0 + $0x38] sm:$0xff]
  %v22 = vld [vmem:[%s0 + $0x40] sm:$0xff]
  %v23 = vld [vmem:[%s0 + $0x48] sm:$0xff]
  %v24 = vld [vmem:[%s0 + $0x50] sm:$0xff]
  %v25 = vld [vmem:[%s0 + $0x58] sm:$0xff]
  %v26 = vld [vmem:[%s0 + $0x60] sm:$0xff]
  %v27 = vld [vmem:[%s0 + $0x68] sm:$0xff]
  %v28 = vld [vmem:[%s0 + $0x70] sm:$0xff]
  %v29 = vld [vmem:[%s0 + $0x78] sm:$0xff]
  %v30 = vld [vmem:[%s1] sm:$0xff]
  %v31 = vld [vmem:[%s1 + $0x8] sm:$0xff]
  %v32 = vld [vmem:[%s1 + $0x10] sm:$0xff]
  %v33 = vld [vmem:[%s1 + $0x18] sm:$0xff]
  %v34 = vld [vmem:[%s1 + $0x20] sm:$0xff]
  %v35 = vld [vmem:[%s1 + $0x28] sm:$0xff]
  %v36 = vld [vmem:[%s1 + $0x30] sm:$0xff]
  %v37 = vld [vmem:[%s1 + $0x38] sm:$0xff]
  %v38 = vld [vmem:[%s1 + $0x40] sm:$0xff]
  %v39 = vld [vmem:[%s1 + $0x48] sm:$0xff]
  %v40 = vld [vmem:[%s1 + $0x50] sm:$0xff]
  %v41 = vld [vmem:[%s1 + $0x58] sm:$0xff]
  %v42 = vld [vmem:[%s1 + $0x60] sm:$0xff]
  %v43 = vld [vmem:[%s1 + $0x68] sm:$0xff]
  %v44 = vld [vmem:[%s1 + $0x70] sm:$0xff]
  %v45 = vld [vmem:[%s1 + $0x78] sm:$0xff]
  %46 = vxpose.xlu0.b32.start [1/16] %v14, 128
  %47 = vxpose.xlu0.b32.cont [2/16] %v15, 128
  %48 = vxpose.xlu0.b32.cont [3/16] %v16, 128
  %49 = vxpose.xlu0.b32.cont [4/16] %v17, 128
  %50 = vxpose.xlu0.b32.cont [5/16] %v18, 128
  %51 = vxpose.xlu0.b32.cont [6/16] %v19, 128
  %52 = vxpose.xlu0.b32.cont [7/16] %v20, 128
  %53 = vxpose.xlu0.b32.cont [8/16] %v21, 128
  %54 = vxpose.xlu0.b32.cont [9/16] %v22, 128
  %55 = vxpose.xlu0.b32.cont [10/16] %v23, 128
  %56 = vxpose.xlu0.b32.cont [11/16] %v24, 128
  %57 = vxpose.xlu0.b32.cont [12/16] %v25, 128
  %58 = vxpose.xlu0.b32.cont [13/16] %v26, 128
  %59 = vxpose.xlu0.b32.cont [14/16] %v27, 128
  %60 = vxpose.xlu0.b32.cont [15/16] %v28, 128
  %61 = vxpose.xlu0.b32.end [16/16] %v29, 128
  %v62 = vpop.trf.xlu0
  %v63 = vpop.trf.xlu0
  %v64 = vpop.trf.xlu0
  %v65 = vpop.trf.xlu0
  %v66 = vpop.trf.xlu0
  %v67 = vpop.trf.xlu0
  %v68 = vpop.trf.xlu0
  %v69 = vpop.trf.xlu0
  %v70 = vpop.trf.xlu0
  %v71 = vpop.trf.xlu0
  %v72 = vpop.trf.xlu0
  %v73 = vpop.trf.xlu0
  %v74 = vpop.trf.xlu0
  %v75 = vpop.trf.xlu0
  %v76 = vpop.trf.xlu0
  %v77 = vpop.trf.xlu0
  %78 = vmatpush.msra.mxu0 %v45
  %79 = vmatpush.msra.mxu0 %v44
  %80 = vmatpush.msra.mxu0 %v43
  %81 = vmatpush.msra.mxu0 %v42
  %82 = vmatpush.msra.mxu0 %v41
  %83 = vmatpush.msra.mxu0 %v40
  %84 = vmatpush.msra.mxu0 %v39
  %85 = vmatpush.msra.mxu0 %v38
  %86 = vmatpush.msra.mxu0 %v37
  %87 = vmatpush.msra.mxu0 %v36
  %88 = vmatpush.msra.mxu0 %v35
  %89 = vmatpush.msra.mxu0 %v34
  %90 = vmatpush.msra.mxu0 %v33
  %91 = vmatpush.msra.mxu0 %v32
  %92 = vmatpush.msra.mxu0 %v31
  %93 = vmatpush.msra.mxu0 %v30
  %94 = vmatmul.f32.gmra.mxu0 %v62
  %v95 = vpop.f32.mrf.mxu0
  %v96 = vadd.f32 0.0, %v95
  %97 = vdwg.mxu0
  %v98 = vld [vmem:[%s2] sm:$0xff]
  %v99 = vld [vmem:[%s2 + $0x8] sm:$0xff]
  %v100 = vld [vmem:[%s2 + $0x10] sm:$0xff]
  %v101 = vld [vmem:[%s2 + $0x18] sm:$0xff]
  %v102 = vld [vmem:[%s2 + $0x20] sm:$0xff]
  %v103 = vld [vmem:[%s2 + $0x28] sm:$0xff]
  %v104 = vld [vmem:[%s2 + $0x30] sm:$0xff]
  %v105 = vld [vmem:[%s2 + $0x38] sm:$0xff]
  %v106 = vld [vmem:[%s2 + $0x40] sm:$0xff]
  %v107 = vld [vmem:[%s2 + $0x48] sm:$0xff]
  %v108 = vld [vmem:[%s2 + $0x50] sm:$0xff]
  %v109 = vld [vmem:[%s2 + $0x58] sm:$0xff]
  %v110 = vld [vmem:[%s2 + $0x60] sm:$0xff]
  %v111 = vld [vmem:[%s2 + $0x68] sm:$0xff]
  %v112 = vld [vmem:[%s2 + $0x70] sm:$0xff]
  %v113 = vld [vmem:[%s2 + $0x78] sm:$0xff]
  %114 = vmatpush.msra.mxu0 %v113
  %115 = vmatpush.msra.mxu0 %v112
  %116 = vmatpush.msra.mxu0 %v111
  %117 = vmatpush.msra.mxu0 %v110
  %118 = vmatpush.msra.mxu0 %v109
  %119 = vmatpush.msra.mxu0 %v108
  %120 = vmatpush.msra.mxu0 %v107
  %121 = vmatpush.msra.mxu0 %v106
  %122 = vmatpush.msra.mxu0 %v105
  %123 = vmatpush.msra.mxu0 %v104
  %124 = vmatpush.msra.mxu0 %v103
  %125 = vmatpush.msra.mxu0 %v102
  %126 = vmatpush.msra.mxu0 %v101
  %127 = vmatpush.msra.mxu0 %v100
  %128 = vmatpush.msra.mxu0 %v99
  %129 = vmatpush.msra.mxu0 %v98
  %130 = vmatmul.f32.gmra.mxu0 %v96
  %v131 = vpop.f32.mrf.mxu0
  %v132 = vadd.f32 0.0, %v131
  %133 = vdwg.mxu0
  %p134 = scmp.eq.s32.totalorder 0, 0
  // Predicated region
  $region14: #{_lambda_.35} parent=0 // pred_check
    %p135 = pneg %p134
  $region15: #{_lambda_.35} parent=0 // pred_check_branch
    %137 = sbr.rel (%p135) target = $region17
  $region16: #{_lambda_.35} parent=0 // pred_region
    %vm138 = vcmask 64512
    %139 = vst.msk [vmem:[%s3] sm:$0xff] %vm138, %v132
  $region17: #{_lambda_.35} parent=0 // pred_fallthru
    _
  %p140 = scmp.gt.s32.totalorder 0, 0
  // Predicated region
  $region18: #{_lambda_.35} parent=0 // pred_check
    %p141 = pneg %p140
  $region19: #{_lambda_.35} parent=0 // pred_check_branch
    %143 = sbr.rel (%p141) target = $region21
  $region20: #{_lambda_.35} parent=0 // pred_region
    %v144 = vld [vmem:[%s3] sm:$0xff]
    %v145 = vadd.f32 %v144, %v132
    %vm146 = vcmask 64512
    %147 = vst.msk [vmem:[%s3] sm:$0xff] %vm146, %v145
  $region21: #{_lambda_.35} parent=0 // pred_fallthru
    _
  // Predicated region
  $region22: #{_lambda_.35} parent=0 // pred_check
    _
  $region23: #{_lambda_.35} parent=0 // pred_check_branch
    %149 = sbr.rel (0) target = $region25
  $region24: #{_lambda_.35} parent=0 // pred_region
    _
  $region25: #{_lambda_.35} parent=0 // pred_fallthru
    _
  // Predicated region
  $region26: #{_lambda_.35} parent=0 // pred_check
    _
  $region27: #{_lambda_.35} parent=0 // pred_check_branch
    %151 = sbr.rel (0) target = $region29
  $region28: #{_lambda_.35} parent=0 // pred_region
    _
  $region29: #{_lambda_.35} parent=0 // pred_fallthru
    _

// kernel: _lambda_.37
$region0: #{_lambda_.37}
  #allocation0 [shape = 'u32[]', space=smem, size = 0x4, offset = 0x4, fixed_abs, tag = 'smem constant byte address 0x4 - core index']
  #allocation1 [shape = 'u32[72,128]{1,0:T(1,128)}', space=vmem, size = 0x9000, scoped, tag = 'internal scratch']
  #allocation2 [shape = 'f32[1]{0:T(128)S(6)}', space=smem, size = 0x200, scoped, tag = 'scoped memory for _lambda_.37']
  %s0 = inlined_call_operand.<no memory space> [shape: f32[1], index: 0, kind: input, shape index: {}]
  %s1 = inlined_call_operand.vmem [shape: f32[128,128], index: 1, kind: input, shape index: {}]
  %s2 = inlined_call_operand.vmem [shape: f32[128,128], index: 2, kind: input, shape index: {}]
  %s3 = inlined_call_operand.hbm [shape: f32[128,128], index: 3, kind: output, shape index: {}]
  %s4 = sld [smem:[#allocation0]]
  $region22: #{_lambda_.37} parent=0
    _
  %s6 = ssub.s32 1, %s4
  %s7 = scalar_select 0, %s6, %s4
  %8 = sst [smem:[#allocation2]] %s0
  $region1: #{_lambda_.37} parent=0
    #allocation3 [shape = 'u8[65536]{0}', space=vmem, size = 0x10000, scoped, tag = 'output window, operand 0, single buffered']
    #allocation4 [shape = 's32[1]{0}', space=sflag, size = 0x4, scoped, tag = 'scoped memory for _lambda_.37']
    %9 = vsyncpa [#allocation4], 0
    // Predicated region
    $region2: #{_lambda_.37} parent=1 // pred_check
      _
    $region3: #{_lambda_.37} parent=1 // pred_check_branch
      %11 = sbr.rel (0) target = $region5
    $region4: #{_lambda_.37} parent=1 // pred_region
      _
    $region5: #{_lambda_.37} parent=1 // pred_fallthru
      _
    // Predicated region
    $region6: #{_lambda_.37} parent=1 // pred_check
      _
    $region7: #{_lambda_.37} parent=1 // pred_check_branch
      %13 = sbr.rel (0) target = $region9
    $region8: #{_lambda_.37} parent=1 // pred_region
      _
    $region9: #{_lambda_.37} parent=1 // pred_fallthru
      _
    // Predicated region
    $region10: #{_lambda_.37} parent=1 // pred_check
      _
    $region11: #{_lambda_.37} parent=1 // pred_check_branch
      %15 = sbr.rel (0) target = $region13
    $region12: #{_lambda_.37} parent=1 // pred_region
      _
    $region13: #{_lambda_.37} parent=1 // pred_fallthru
      _
    %v16 = vld [vmem:[%s1] sm:$0xff]
    %v17 = vld [vmem:[%s1 + $0x8] sm:$0xff]
    %v18 = vld [vmem:[%s1 + $0x10] sm:$0xff]
    %v19 = vld [vmem:[%s1 + $0x18] sm:$0xff]
    %v20 = vld [vmem:[%s1 + $0x20] sm:$0xff]
    %v21 = vld [vmem:[%s1 + $0x28] sm:$0xff]
    %v22 = vld [vmem:[%s1 + $0x30] sm:$0xff]
    %v23 = vld [vmem:[%s1 + $0x38] sm:$0xff]
    %v24 = vld [vmem:[%s1 + $0x40] sm:$0xff]
    %v25 = vld [vmem:[%s1 + $0x48] sm:$0xff]
    %v26 = vld [vmem:[%s1 + $0x50] sm:$0xff]
    %v27 = vld [vmem:[%s1 + $0x58] sm:$0xff]
    %v28 = vld [vmem:[%s1 + $0x60] sm:$0xff]
    %v29 = vld [vmem:[%s1 + $0x68] sm:$0xff]
    %v30 = vld [vmem:[%s1 + $0x70] sm:$0xff]
    %v31 = vld [vmem:[%s1 + $0x78] sm:$0xff]
    %s32 = sld [smem:[#allocation2]]
    %v33 = vmax.f32 %v16, 0.0
    %v34 = vmax.f32 %v17, 0.0
    %v35 = vmax.f32 %v18, 0.0
    %v36 = vmax.f32 %v19, 0.0
    %v37 = vmax.f32 %v20, 0.0
    %v38 = vmax.f32 %v21, 0.0
    %v39 = vmax.f32 %v22, 0.0
    %v40 = vmax.f32 %v23, 0.0
    %v41 = vmax.f32 %v24, 0.0
    %v42 = vmax.f32 %v25, 0.0
    %v43 = vmax.f32 %v26, 0.0
    %v44 = vmax.f32 %v27, 0.0
    %v45 = vmax.f32 %v28, 0.0
    %v46 = vmax.f32 %v29, 0.0
    %v47 = vmax.f32 %v30, 0.0
    %v48 = vmax.f32 %v31, 0.0
    %v49 = vstv %s32
    %v50 = vmin.f32 %v49, %v33
    %v51 = vmin.f32 %v49, %v34
    %v52 = vmin.f32 %v49, %v35
    %v53 = vmin.f32 %v49, %v36
    %v54 = vmin.f32 %v49, %v37
    %v55 = vmin.f32 %v49, %v38
    %v56 = vmin.f32 %v49, %v39
    %v57 = vmin.f32 %v49, %v40
    %v58 = vmin.f32 %v49, %v41
    %v59 = vmin.f32 %v49, %v42
    %v60 = vmin.f32 %v49, %v43
    %v61 = vmin.f32 %v49, %v44
    %v62 = vmin.f32 %v49, %v45
    %v63 = vmin.f32 %v49, %v46
    %v64 = vmin.f32 %v49, %v47
    %v65 = vmin.f32 %v49, %v48
    %v66 = vld [vmem:[%s2] sm:$0xff]
    %v67 = vld [vmem:[%s2 + $0x8] sm:$0xff]
    %v68 = vld [vmem:[%s2 + $0x10] sm:$0xff]
    %v69 = vld [vmem:[%s2 + $0x18] sm:$0xff]
    %v70 = vld [vmem:[%s2 + $0x20] sm:$0xff]
    %v71 = vld [vmem:[%s2 + $0x28] sm:$0xff]
    %v72 = vld [vmem:[%s2 + $0x30] sm:$0xff]
    %v73 = vld [vmem:[%s2 + $0x38] sm:$0xff]
    %v74 = vld [vmem:[%s2 + $0x40] sm:$0xff]
    %v75 = vld [vmem:[%s2 + $0x48] sm:$0xff]
    %v76 = vld [vmem:[%s2 + $0x50] sm:$0xff]
    %v77 = vld [vmem:[%s2 + $0x58] sm:$0xff]
    %v78 = vld [vmem:[%s2 + $0x60] sm:$0xff]
    %v79 = vld [vmem:[%s2 + $0x68] sm:$0xff]
    %v80 = vld [vmem:[%s2 + $0x70] sm:$0xff]
    %v81 = vld [vmem:[%s2 + $0x78] sm:$0xff]
    %v82 = vadd.f32 %v50, %v66
    %v83 = vadd.f32 %v51, %v67
    %v84 = vadd.f32 %v52, %v68
    %v85 = vadd.f32 %v53, %v69
    %v86 = vadd.f32 %v54, %v70
    %v87 = vadd.f32 %v55, %v71
    %v88 = vadd.f32 %v56, %v72
    %v89 = vadd.f32 %v57, %v73
    %v90 = vadd.f32 %v58, %v74
    %v91 = vadd.f32 %v59, %v75
    %v92 = vadd.f32 %v60, %v76
    %v93 = vadd.f32 %v61, %v77
    %v94 = vadd.f32 %v62, %v78
    %v95 = vadd.f32 %v63, %v79
    %v96 = vadd.f32 %v64, %v80
    %v97 = vadd.f32 %v65, %v81
    %v98 = vmul.f32 %v82, 0.5
    %v99 = vmul.f32 %v83, 0.5
    %v100 = vmul.f32 %v84, 0.5
    %v101 = vmul.f32 %v85, 0.5
    %v102 = vmul.f32 %v86, 0.5
    %v103 = vmul.f32 %v87, 0.5
    %v104 = vmul.f32 %v88, 0.5
    %v105 = vmul.f32 %v89, 0.5
    %v106 = vmul.f32 %v90, 0.5
    %v107 = vmul.f32 %v91, 0.5
    %v108 = vmul.f32 %v92, 0.5
    %v109 = vmul.f32 %v93, 0.5
    %v110 = vmul.f32 %v94, 0.5
    %v111 = vmul.f32 %v95, 0.5
    %v112 = vmul.f32 %v96, 0.5
    %v113 = vmul.f32 %v97, 0.5
    %114 = vst [vmem:[#allocation3] sm:$0xff] %v98
    %115 = vst [vmem:[#allocation3 + $0x8] sm:$0xff] %v99
    %116 = vst [vmem:[#allocation3 + $0x10] sm:$0xff] %v100
    %117 = vst [vmem:[#allocation3 + $0x18] sm:$0xff] %v101
    %118 = vst [vmem:[#allocation3 + $0x20] sm:$0xff] %v102
    %119 = vst [vmem:[#allocation3 + $0x28] sm:$0xff] %v103
    %120 = vst [vmem:[#allocation3 + $0x30] sm:$0xff] %v104
    %121 = vst [vmem:[#allocation3 + $0x38] sm:$0xff] %v105
    %122 = vst [vmem:[#allocation3 + $0x40] sm:$0xff] %v106
    %123 = vst [vmem:[#allocation3 + $0x48] sm:$0xff] %v107
    %124 = vst [vmem:[#allocation3 + $0x50] sm:$0xff] %v108
    %125 = vst [vmem:[#allocation3 + $0x58] sm:$0xff] %v109
    %126 = vst [vmem:[#allocation3 + $0x60] sm:$0xff] %v110
    %127 = vst [vmem:[#allocation3 + $0x68] sm:$0xff] %v111
    %128 = vst [vmem:[#allocation3 + $0x70] sm:$0xff] %v112
    %129 = vst [vmem:[#allocation3 + $0x78] sm:$0xff] %v113
    // Predicated region
    $region14: #{_lambda_.37} parent=1 // pred_check
      _
    $region15: #{_lambda_.37} parent=1 // pred_check_branch
      %131 = sbr.rel (0) target = $region17
    $region16: #{_lambda_.37} parent=1 // pred_region
      %133 = vsyncadd [#allocation4], 0
      %s134 = sshll.u32 [#allocation3], 4
      %s135 = int_to_ptr.vmem [resolvable:$true] %s134
      %s136 = sshll.u32 %s3, 4
      %s137 = int_to_ptr.hbm [resolvable:$true] %s136
      %142 = dma.vmem_to_hbm [thread:$0]  %s135, 2048, %s137, [#allocation4], 128, 128, 8
    $region17: #{_lambda_.37} parent=1 // pred_fallthru
      _
    // Predicated region
    $region18: #{_lambda_.37} parent=1 // pred_check
      _
    $region19: #{_lambda_.37} parent=1 // pred_check_branch
      %144 = sbr.rel (0) target = $region21
    $region20: #{_lambda_.37} parent=1 // pred_region
      %146 = dma.done [#allocation4], 2048
    $region21: #{_lambda_.37} parent=1 // pred_fallthru
      _
    %147 = vsyncpa [#allocation4], 1

// kernel: _lambda_.36
$region0: #{_lambda_.36}
  #allocation0 [shape = 'u32[]', space=smem, size = 0x4, offset = 0x4, fixed_abs, tag = 'smem constant byte address 0x4 - core index']
  #allocation1 [shape = 'u32[72,128]{1,0:T(1,128)}', space=vmem, size = 0x9000, scoped, tag = 'internal scratch']
  #allocation2 [shape = 's32[1]{0:T(128)S(6)}', space=smem, size = 0x200, scoped, tag = 'scoped memory for _lambda_.36']
  %s0 = inlined_call_operand.<no memory space> [shape: s32[1], index: 0, kind: input, shape index: {}]
  %s1 = inlined_call_operand.vmem [shape: f32[3], index: 1, kind: input, shape index: {}]
  %s2 = inlined_call_operand.vmem [shape: f32[128,128], index: 2, kind: input, shape index: {}]
  %s3 = inlined_call_operand.vmem [shape: f32[128,128], index: 3, kind: input, shape index: {}]
  %s4 = inlined_call_operand.vmem [shape: f32[128,128], index: 4, kind: input, shape index: {}]
  %s5 = inlined_call_operand.vmem [shape: f32[8,8], index: 5, kind: input, shape index: {}]
  %s6 = inlined_call_operand.vmem [shape: f32[128,8], index: 6, kind: input, shape index: {}]
  %s7 = inlined_call_operand.vmem [shape: f32[8,128], index: 7, kind: input, shape index: {}]
  %s8 = inlined_call_operand.vmem [shape: f32[128,128], index: 8, kind: output, shape index: {0}]
  %s9 = inlined_call_operand.hbm [shape: f32[1,1], index: 9, kind: output, shape index: {1}]
  %10 = xla_tuple %s8, %s9
  %s11 = sld [smem:[#allocation0]]
  $region62: #{_lambda_.36} parent=0
    _
  %s13 = ssub.s32 1, %s11
  %s14 = scalar_select 0, %s13, %s11
  %15 = sst [smem:[#allocation2]] %s0
  $region1: #{_lambda_.36} parent=0
    #allocation3 [shape = 'u8[512]{0}', space=smem, size = 0x200, scoped, tag = 'input window, operand 1, single buffered']
    #allocation4 [shape = 's32[1]{0}', space=sflag, size = 0x4, scoped, tag = 'scoped memory for _lambda_.36']
    #allocation5 [shape = 's32[1]{0}', space=sflag, size = 0x4, scoped, tag = 'scoped memory for _lambda_.36']
    #allocation6 [shape = 'u8[512]{0}', space=vmem, size = 0x400, scoped, tag = 'output window, operand 1, single buffered']
    %16 = vsyncpa [#allocation5], 0
    %17 = vsyncpa [#allocation4], 0
    // Predicated region
    $region2: #{_lambda_.36} parent=1 // pred_check
      _
    $region3: #{_lambda_.36} parent=1 // pred_check_branch
      %19 = sbr.rel (0) target = $region5
    $region4: #{_lambda_.36} parent=1 // pred_region
      _
    $region5: #{_lambda_.36} parent=1 // pred_fallthru
      _
    // Predicated region
    $region6: #{_lambda_.36} parent=1 // pred_check
      _
    $region7: #{_lambda_.36} parent=1 // pred_check_branch
      %21 = sbr.rel (0) target = $region9
    $region8: #{_lambda_.36} parent=1 // pred_region
      %23 = vsyncadd [#allocation5], 0
      %s25 = sshll.u32 %s1, 4
      %s26 = int_to_ptr.vmem [resolvable:$true] %s25
      %28 = dma.vmem_to_smem %s26, 16, [#allocation3], [#allocation5]
    $region9: #{_lambda_.36} parent=1 // pred_fallthru
      _
    // Predicated region
    $region10: #{_lambda_.36} parent=1 // pred_check
      _
    $region11: #{_lambda_.36} parent=1 // pred_check_branch
      %30 = sbr.rel (0) target = $region13
    $region12: #{_lambda_.36} parent=1 // pred_region
      _
    $region13: #{_lambda_.36} parent=1 // pred_fallthru
      _
    // Predicated region
    $region14: #{_lambda_.36} parent=1 // pred_check
      _
    $region15: #{_lambda_.36} parent=1 // pred_check_branch
      %32 = sbr.rel (0) target = $region17
    $region16: #{_lambda_.36} parent=1 // pred_region
      _
    $region17: #{_lambda_.36} parent=1 // pred_fallthru
      _
    // Predicated region
    $region18: #{_lambda_.36} parent=1 // pred_check
      _
    $region19: #{_lambda_.36} parent=1 // pred_check_branch
      %34 = sbr.rel (0) target = $region21
    $region20: #{_lambda_.36} parent=1 // pred_region
      _
    $region21: #{_lambda_.36} parent=1 // pred_fallthru
      _
    // Predicated region
    $region22: #{_lambda_.36} parent=1 // pred_check
      _
    $region23: #{_lambda_.36} parent=1 // pred_check_branch
      %36 = sbr.rel (0) target = $region25
    $region24: #{_lambda_.36} parent=1 // pred_region
      _
    $region25: #{_lambda_.36} parent=1 // pred_fallthru
      _
    // Predicated region
    $region26: #{_lambda_.36} parent=1 // pred_check
      _
    $region27: #{_lambda_.36} parent=1 // pred_check_branch
      %38 = sbr.rel (0) target = $region29
    $region28: #{_lambda_.36} parent=1 // pred_region
      _
    $region29: #{_lambda_.36} parent=1 // pred_fallthru
      _
    // Predicated region
    $region30: #{_lambda_.36} parent=1 // pred_check
      _
    $region31: #{_lambda_.36} parent=1 // pred_check_branch
      %40 = sbr.rel (0) target = $region33
    $region32: #{_lambda_.36} parent=1 // pred_region
      _
    $region33: #{_lambda_.36} parent=1 // pred_fallthru
      _
    // Predicated region
    $region34: #{_lambda_.36} parent=1 // pred_check
      _
    $region35: #{_lambda_.36} parent=1 // pred_check_branch
      %42 = sbr.rel (0) target = $region37
    $region36: #{_lambda_.36} parent=1 // pred_region
      %44 = dma.done [#allocation5], 16
    $region37: #{_lambda_.36} parent=1 // pred_fallthru
      _
    %45 = sfence
    %s46 = smul.u32 0, 128
    %s47 = sld [smem:[#allocation2]]
    %v48 = vld [vmem:[%s2] sm:$0xff]
    %v49 = vld [vmem:[%s2 + $0x8] sm:$0xff]
    %v50 = vld [vmem:[%s2 + $0x10] sm:$0xff]
    %v51 = vld [vmem:[%s2 + $0x18] sm:$0xff]
    %v52 = vld [vmem:[%s2 + $0x20] sm:$0xff]
    %v53 = vld [vmem:[%s2 + $0x28] sm:$0xff]
    %v54 = vld [vmem:[%s2 + $0x30] sm:$0xff]
    %v55 = vld [vmem:[%s2 + $0x38] sm:$0xff]
    %v56 = vld [vmem:[%s2 + $0x40] sm:$0xff]
    %v57 = vld [vmem:[%s2 + $0x48] sm:$0xff]
    %v58 = vld [vmem:[%s2 + $0x50] sm:$0xff]
    %v59 = vld [vmem:[%s2 + $0x58] sm:$0xff]
    %v60 = vld [vmem:[%s2 + $0x60] sm:$0xff]
    %v61 = vld [vmem:[%s2 + $0x68] sm:$0xff]
    %v62 = vld [vmem:[%s2 + $0x70] sm:$0xff]
    %v63 = vld [vmem:[%s2 + $0x78] sm:$0xff]
    %v64 = vlaneseq
    %v65 = vshrl.u32 %v64, 7
    %v66 = vadd.s32 %v65, 8
    %v67 = vadd.s32 %v65, 16
    %v68 = vadd.s32 %v65, 24
    %v69 = vadd.s32 %v65, 32
    %v70 = vadd.s32 %v65, 40
    %v71 = vadd.s32 %v65, 48
    %v72 = vadd.s32 %v65, 56
    %v73 = vadd.s32 %v65, 64
    %v74 = vadd.s32 %v65, 72
    %v75 = vadd.s32 %v65, 80
    %v76 = vadd.s32 %v65, 88
    %v77 = vadd.s32 %v65, 96
    %v78 = vadd.s32 %v65, 104
    %v79 = vadd.s32 %v65, 112
    %v80 = vadd.s32 %v65, 120
    %v81 = vstv %s46
    %v82 = vadd.s32 %v65, %v81
    %v83 = vadd.s32 %v66, %v81
    %v84 = vadd.s32 %v67, %v81
    %v85 = vadd.s32 %v68, %v81
    %v86 = vadd.s32 %v69, %v81
    %v87 = vadd.s32 %v70, %v81
    %v88 = vadd.s32 %v71, %v81
    %v89 = vadd.s32 %v72, %v81
    %v90 = vadd.s32 %v73, %v81
    %v91 = vadd.s32 %v74, %v81
    %v92 = vadd.s32 %v75, %v81
    %v93 = vadd.s32 %v76, %v81
    %v94 = vadd.s32 %v77, %v81
    %v95 = vadd.s32 %v78, %v81
    %v96 = vadd.s32 %v79, %v81
    %v97 = vadd.s32 %v80, %v81
    %v98 = vlaneseq
    %v99 = vand.u32 %v98, 127
    %v100 = vmul.u32 %v82, 2654435761
    %v101 = vmul.u32 %v83, 2654435761
    %v102 = vmul.u32 %v84, 2654435761
    %v103 = vmul.u32 %v85, 2654435761
    %v104 = vmul.u32 %v86, 2654435761
    %v105 = vmul.u32 %v87, 2654435761
    %v106 = vmul.u32 %v88, 2654435761
    %v107 = vmul.u32 %v89, 2654435761
    %v108 = vmul.u32 %v90, 2654435761
    %v109 = vmul.u32 %v91, 2654435761
    %v110 = vmul.u32 %v92, 2654435761
    %v111 = vmul.u32 %v93, 2654435761
    %v112 = vmul.u32 %v94, 2654435761
    %v113 = vmul.u32 %v95, 2654435761
    %v114 = vmul.u32 %v96, 2654435761
    %v115 = vmul.u32 %v97, 2654435761
    %v116 = vmul.u32 %v99, 2246822519
    %v117 = vadd.s32 %v100, %v116
    %v118 = vadd.s32 %v101, %v116
    %v119 = vadd.s32 %v102, %v116
    %v120 = vadd.s32 %v103, %v116
    %v121 = vadd.s32 %v104, %v116
    %v122 = vadd.s32 %v105, %v116
    %v123 = vadd.s32 %v106, %v116
    %v124 = vadd.s32 %v107, %v116
    %v125 = vadd.s32 %v108, %v116
    %v126 = vadd.s32 %v109, %v116
    %v127 = vadd.s32 %v110, %v116
    %v128 = vadd.s32 %v111, %v116
    %v129 = vadd.s32 %v112, %v116
    %v130 = vadd.s32 %v113, %v116
    %v131 = vadd.s32 %v114, %v116
    %v132 = vadd.s32 %v115, %v116
    %s133 = smul.u32 %s47, 668265263
    %v134 = vstv %s133
    %v135 = vadd.s32 %v117, %v134
    %v136 = vadd.s32 %v118, %v134
    %v137 = vadd.s32 %v119, %v134
    %v138 = vadd.s32 %v120, %v134
    %v139 = vadd.s32 %v121, %v134
    %v140 = vadd.s32 %v122, %v134
    %v141 = vadd.s32 %v123, %v134
    %v142 = vadd.s32 %v124, %v134
    %v143 = vadd.s32 %v125, %v134
    %v144 = vadd.s32 %v126, %v134
    %v145 = vadd.s32 %v127, %v134
    %v146 = vadd.s32 %v128, %v134
    %v147 = vadd.s32 %v129, %v134
    %v148 = vadd.s32 %v130, %v134
    %v149 = vadd.s32 %v131, %v134
    %v150 = vadd.s32 %v132, %v134
    %v151 = vadd.s32 %v135, 283337694
    %v152 = vadd.s32 %v136, 283337694
    %v153 = vadd.s32 %v137, 283337694
    %v154 = vadd.s32 %v138, 283337694
    %v155 = vadd.s32 %v139, 283337694
    %v156 = vadd.s32 %v140, 283337694
    %v157 = vadd.s32 %v141, 283337694
    %v158 = vadd.s32 %v142, 283337694
    %v159 = vadd.s32 %v143, 283337694
    %v160 = vadd.s32 %v144, 283337694
    %v161 = vadd.s32 %v145, 283337694
    %v162 = vadd.s32 %v146, 283337694
    %v163 = vadd.s32 %v147, 283337694
    %v164 = vadd.s32 %v148, 283337694
    %v165 = vadd.s32 %v149, 283337694
    %v166 = vadd.s32 %v150, 283337694
    %v167 = vshrl.u32 %v151, 16
    %v168 = vshrl.u32 %v152, 16
    %v169 = vshrl.u32 %v153, 16
    %v170 = vshrl.u32 %v154, 16
    %v171 = vshrl.u32 %v155, 16
    %v172 = vshrl.u32 %v156, 16
    %v173 = vshrl.u32 %v157, 16
    %v174 = vshrl.u32 %v158, 16
    %v175 = vshrl.u32 %v159, 16
    %v176 = vshrl.u32 %v160, 16
    %v177 = vshrl.u32 %v161, 16
    %v178 = vshrl.u32 %v162, 16
    %v179 = vshrl.u32 %v163, 16
    %v180 = vshrl.u32 %v164, 16
    %v181 = vshrl.u32 %v165, 16
    %v182 = vshrl.u32 %v166, 16
    %v183 = vxor.u32 %v151, %v167
    %v184 = vxor.u32 %v152, %v168
    %v185 = vxor.u32 %v153, %v169
    %v186 = vxor.u32 %v154, %v170
    %v187 = vxor.u32 %v155, %v171
    %v188 = vxor.u32 %v156, %v172
    %v189 = vxor.u32 %v157, %v173
    %v190 = vxor.u32 %v158, %v174
    %v191 = vxor.u32 %v159, %v175
    %v192 = vxor.u32 %v160, %v176
    %v193 = vxor.u32 %v161, %v177
    %v194 = vxor.u32 %v162, %v178
    %v195 = vxor.u32 %v163, %v179
    %v196 = vxor.u32 %v164, %v180
    %v197 = vxor.u32 %v165, %v181
    %v198 = vxor.u32 %v166, %v182
    %v199 = vmul.u32 %v183, 2146121005
    %v200 = vmul.u32 %v184, 2146121005
    %v201 = vmul.u32 %v185, 2146121005
    %v202 = vmul.u32 %v186, 2146121005
    %v203 = vmul.u32 %v187, 2146121005
    %v204 = vmul.u32 %v188, 2146121005
    %v205 = vmul.u32 %v189, 2146121005
    %v206 = vmul.u32 %v190, 2146121005
    %v207 = vmul.u32 %v191, 2146121005
    %v208 = vmul.u32 %v192, 2146121005
    %v209 = vmul.u32 %v193, 2146121005
    %v210 = vmul.u32 %v194, 2146121005
    %v211 = vmul.u32 %v195, 2146121005
    %v212 = vmul.u32 %v196, 2146121005
    %v213 = vmul.u32 %v197, 2146121005
    %v214 = vmul.u32 %v198, 2146121005
    %v215 = vshrl.u32 %v199, 15
    %v216 = vshrl.u32 %v200, 15
    %v217 = vshrl.u32 %v201, 15
    %v218 = vshrl.u32 %v202, 15
    %v219 = vshrl.u32 %v203, 15
    %v220 = vshrl.u32 %v204, 15
    %v221 = vshrl.u32 %v205, 15
    %v222 = vshrl.u32 %v206, 15
    %v223 = vshrl.u32 %v207, 15
    %v224 = vshrl.u32 %v208, 15
    %v225 = vshrl.u32 %v209, 15
    %v226 = vshrl.u32 %v210, 15
    %v227 = vshrl.u32 %v211, 15
    %v228 = vshrl.u32 %v212, 15
    %v229 = vshrl.u32 %v213, 15
    %v230 = vshrl.u32 %v214, 15
    %v231 = vxor.u32 %v199, %v215
    %v232 = vxor.u32 %v200, %v216
    %v233 = vxor.u32 %v201, %v217
    %v234 = vxor.u32 %v202, %v218
    %v235 = vxor.u32 %v203, %v219
    %v236 = vxor.u32 %v204, %v220
    %v237 = vxor.u32 %v205, %v221
    %v238 = vxor.u32 %v206, %v222
    %v239 = vxor.u32 %v207, %v223
    %v240 = vxor.u32 %v208, %v224
    %v241 = vxor.u32 %v209, %v225
    %v242 = vxor.u32 %v210, %v226
    %v243 = vxor.u32 %v211, %v227
    %v244 = vxor.u32 %v212, %v228
    %v245 = vxor.u32 %v213, %v229
    %v246 = vxor.u32 %v214, %v230
    %v247 = vmul.u32 %v231, 2221713035
    %v248 = vmul.u32 %v232, 2221713035
    %v249 = vmul.u32 %v233, 2221713035
    %v250 = vmul.u32 %v234, 2221713035
    %v251 = vmul.u32 %v235, 2221713035
    %v252 = vmul.u32 %v236, 2221713035
    %v253 = vmul.u32 %v237, 2221713035
    %v254 = vmul.u32 %v238, 2221713035
    %v255 = vmul.u32 %v239, 2221713035
    %v256 = vmul.u32 %v240, 2221713035
    %v257 = vmul.u32 %v241, 2221713035
    %v258 = vmul.u32 %v242, 2221713035
    %v259 = vmul.u32 %v243, 2221713035
    %v260 = vmul.u32 %v244, 2221713035
    %v261 = vmul.u32 %v245, 2221713035
    %v262 = vmul.u32 %v246, 2221713035
    %v263 = vshrl.u32 %v247, 16
    %v264 = vshrl.u32 %v248, 16
    %v265 = vshrl.u32 %v249, 16
    %v266 = vshrl.u32 %v250, 16
    %v267 = vshrl.u32 %v251, 16
    %v268 = vshrl.u32 %v252, 16
    %v269 = vshrl.u32 %v253, 16
    %v270 = vshrl.u32 %v254, 16
    %v271 = vshrl.u32 %v255, 16
    %v272 = vshrl.u32 %v256, 16
    %v273 = vshrl.u32 %v257, 16
    %v274 = vshrl.u32 %v258, 16
    %v275 = vshrl.u32 %v259, 16
    %v276 = vshrl.u32 %v260, 16
    %v277 = vshrl.u32 %v261, 16
    %v278 = vshrl.u32 %v262, 16
    %v279 = vxor.u32 %v247, %v263
    %v280 = vxor.u32 %v248, %v264
    %v281 = vxor.u32 %v249, %v265
    %v282 = vxor.u32 %v250, %v266
    %v283 = vxor.u32 %v251, %v267
    %v284 = vxor.u32 %v252, %v268
    %v285 = vxor.u32 %v253, %v269
    %v286 = vxor.u32 %v254, %v270
    %v287 = vxor.u32 %v255, %v271
    %v288 = vxor.u32 %v256, %v272
    %v289 = vxor.u32 %v257, %v273
    %v290 = vxor.u32 %v258, %v274
    %v291 = vxor.u32 %v259, %v275
    %v292 = vxor.u32 %v260, %v276
    %v293 = vxor.u32 %v261, %v277
    %v294 = vxor.u32 %v262, %v278
    %v295 = vand.u32 %v279, 8388607
    %v296 = vand.u32 %v280, 8388607
    %v297 = vand.u32 %v281, 8388607
    %v298 = vand.u32 %v282, 8388607
    %v299 = vand.u32 %v283, 8388607
    %v300 = vand.u32 %v284, 8388607
    %v301 = vand.u32 %v285, 8388607
    %v302 = vand.u32 %v286, 8388607
    %v303 = vand.u32 %v287, 8388607
    %v304 = vand.u32 %v288, 8388607
    %v305 = vand.u32 %v289, 8388607
    %v306 = vand.u32 %v290, 8388607
    %v307 = vand.u32 %v291, 8388607
    %v308 = vand.u32 %v292, 8388607
    %v309 = vand.u32 %v293, 8388607
    %v310 = vand.u32 %v294, 8388607
    %v311 = vcvt.s32.f32 %v295
    %v312 = vcvt.s32.f32 %v296
    %v313 = vcvt.s32.f32 %v297
    %v314 = vcvt.s32.f32 %v298
    %v315 = vcvt.s32.f32 %v299
    %v316 = vcvt.s32.f32 %v300
    %v317 = vcvt.s32.f32 %v301
    %v318 = vcvt.s32.f32 %v302
    %v319 = vcvt.s32.f32 %v303
    %v320 = vcvt.s32.f32 %v304
    %v321 = vcvt.s32.f32 %v305
    %v322 = vcvt.s32.f32 %v306
    %v323 = vcvt.s32.f32 %v307
    %v324 = vcvt.s32.f32 %v308
    %v325 = vcvt.s32.f32 %v309
    %v326 = vcvt.s32.f32 %v310
    %v327 = vmul.f32 %v311, 1.1920929e-07
    %v328 = vmul.f32 %v312, 1.1920929e-07
    %v329 = vmul.f32 %v313, 1.1920929e-07
    %v330 = vmul.f32 %v314, 1.1920929e-07
    %v331 = vmul.f32 %v315, 1.1920929e-07
    %v332 = vmul.f32 %v316, 1.1920929e-07
    %v333 = vmul.f32 %v317, 1.1920929e-07
    %v334 = vmul.f32 %v318, 1.1920929e-07
    %v335 = vmul.f32 %v319, 1.1920929e-07
    %v336 = vmul.f32 %v320, 1.1920929e-07
    %v337 = vmul.f32 %v321, 1.1920929e-07
    %v338 = vmul.f32 %v322, 1.1920929e-07
    %v339 = vmul.f32 %v323, 1.1920929e-07
    %v340 = vmul.f32 %v324, 1.1920929e-07
    %v341 = vmul.f32 %v325, 1.1920929e-07
    %v342 = vmul.f32 %v326, 1.1920929e-07
    %v343 = vsub.f32 1.0, %v327
    %v344 = vsub.f32 1.0, %v328
    %v345 = vsub.f32 1.0, %v329
    %v346 = vsub.f32 1.0, %v330
    %v347 = vsub.f32 1.0, %v331
    %v348 = vsub.f32 1.0, %v332
    %v349 = vsub.f32 1.0, %v333
    %v350 = vsub.f32 1.0, %v334
    %v351 = vsub.f32 1.0, %v335
    %v352 = vsub.f32 1.0, %v336
    %v353 = vsub.f32 1.0, %v337
    %v354 = vsub.f32 1.0, %v338
    %v355 = vsub.f32 1.0, %v339
    %v356 = vsub.f32 1.0, %v340
    %v357 = vsub.f32 1.0, %v341
    %v358 = vsub.f32 1.0, %v342
    %v359 = vmax.f32 %v343, 1e-12
    %v360 = vmax.f32 %v344, 1e-12
    %v361 = vmax.f32 %v345, 1e-12
    %v362 = vmax.f32 %v346, 1e-12
    %v363 = vmax.f32 %v347, 1e-12
    %v364 = vmax.f32 %v348, 1e-12
    %v365 = vmax.f32 %v349, 1e-12
    %v366 = vmax.f32 %v350, 1e-12
    %v367 = vmax.f32 %v351, 1e-12
    %v368 = vmax.f32 %v352, 1e-12
    %v369 = vmax.f32 %v353, 1e-12
    %v370 = vmax.f32 %v354, 1e-12
    %v371 = vmax.f32 %v355, 1e-12
    %v372 = vmax.f32 %v356, 1e-12
    %v373 = vmax.f32 %v357, 1e-12
    %v374 = vmax.f32 %v358, 1e-12
    %v375 = vlog2.pop %v359
    %v376 = vmul.f32 %v375, 0.6931472
    %v377 = vlog2.pop %v360
    %v378 = vmul.f32 %v377, 0.6931472
    %v379 = vlog2.pop %v361
    %v380 = vmul.f32 %v379, 0.6931472
    %v381 = vlog2.pop %v362
    %v382 = vmul.f32 %v381, 0.6931472
    %v383 = vlog2.pop %v363
    %v384 = vmul.f32 %v383, 0.6931472
    %v385 = vlog2.pop %v364
    %v386 = vmul.f32 %v385, 0.6931472
    %v387 = vlog2.pop %v365
    %v388 = vmul.f32 %v387, 0.6931472
    %v389 = vlog2.pop %v366
    %v390 = vmul.f32 %v389, 0.6931472
    %v391 = vlog2.pop %v367
    %v392 = vmul.f32 %v391, 0.6931472
    %v393 = vlog2.pop %v368
    %v394 = vmul.f32 %v393, 0.6931472
    %v395 = vlog2.pop %v369
    %v396 = vmul.f32 %v395, 0.6931472
    %v397 = vlog2.pop %v370
    %v398 = vmul.f32 %v397, 0.6931472
    %v399 = vlog2.pop %v371
    %v400 = vmul.f32 %v399, 0.6931472
    %v401 = vlog2.pop %v372
    %v402 = vmul.f32 %v401, 0.6931472
    %v403 = vlog2.pop %v373
    %v404 = vmul.f32 %v403, 0.6931472
    %v405 = vlog2.pop %v374
    %v406 = vmul.f32 %v405, 0.6931472
    %v407 = vmul.f32 %v376, -2.0
    %v408 = vmul.f32 %v378, -2.0
    %v409 = vmul.f32 %v380, -2.0
    %v410 = vmul.f32 %v382, -2.0
    %v411 = vmul.f32 %v384, -2.0
    %v412 = vmul.f32 %v386, -2.0
    %v413 = vmul.f32 %v388, -2.0
    %v414 = vmul.f32 %v390, -2.0
    %v415 = vmul.f32 %v392, -2.0
    %v416 = vmul.f32 %v394, -2.0
    %v417 = vmul.f32 %v396, -2.0
    %v418 = vmul.f32 %v398, -2.0
    %v419 = vmul.f32 %v400, -2.0
    %v420 = vmul.f32 %v402, -2.0
    %v421 = vmul.f32 %v404, -2.0
    %v422 = vmul.f32 %v406, -2.0
    %v423 = vrsqrt.pop %v407
    %v424 = vmul.f32 %v423, %v407
    %v425 = vmul.f32 %v424, %v423
    %v426 = vmul.f32 0.5, %v425
    %v427 = vsub.f32 1.5, %v426
    %v428 = vmul.f32 %v423, %v427
    %v429 = vmul.f32 %v407, %v428
    %vm430 = vcmp.eq.f32.partialorder %v407, inf
    %v431 = vsel %vm430, %v407, %v429
    %vm432 = vcmp.eq.f32.partialorder %v407, 0.0
    %v433 = vand.u32 %v407, 2147483648
    %v434 = vsel %vm432, %v433, %v431
    %v435 = vrsqrt.pop %v408
    %v436 = vmul.f32 %v435, %v408
    %v437 = vmul.f32 %v436, %v435
    %v438 = vmul.f32 0.5, %v437
    %v439 = vsub.f32 1.5, %v438
    %v440 = vmul.f32 %v435, %v439
    %v441 = vmul.f32 %v408, %v440
    %vm442 = vcmp.eq.f32.partialorder %v408, inf
    %v443 = vsel %vm442, %v408, %v441
    %vm444 = vcmp.eq.f32.partialorder %v408, 0.0
    %v445 = vand.u32 %v408, 2147483648
    %v446 = vsel %vm444, %v445, %v443
    %v447 = vrsqrt.pop %v409
    %v448 = vmul.f32 %v447, %v409
    %v449 = vmul.f32 %v448, %v447
    %v450 = vmul.f32 0.5, %v449
    %v451 = vsub.f32 1.5, %v450
    %v452 = vmul.f32 %v447, %v451
    %v453 = vmul.f32 %v409, %v452
    %vm454 = vcmp.eq.f32.partialorder %v409, inf
    %v455 = vsel %vm454, %v409, %v453
    %vm456 = vcmp.eq.f32.partialorder %v409, 0.0
    %v457 = vand.u32 %v409, 2147483648
    %v458 = vsel %vm456, %v457, %v455
    %v459 = vrsqrt.pop %v410
    %v460 = vmul.f32 %v459, %v410
    %v461 = vmul.f32 %v460, %v459
    %v462 = vmul.f32 0.5, %v461
    %v463 = vsub.f32 1.5, %v462
    %v464 = vmul.f32 %v459, %v463
    %v465 = vmul.f32 %v410, %v464
    %vm466 = vcmp.eq.f32.partialorder %v410, inf
    %v467 = vsel %vm466, %v410, %v465
    %vm468 = vcmp.eq.f32.partialorder %v410, 0.0
    %v469 = vand.u32 %v410, 2147483648
    %v470 = vsel %vm468, %v469, %v467
    %v471 = vrsqrt.pop %v411
    %v472 = vmul.f32 %v471, %v411
    %v473 = vmul.f32 %v472, %v471
    %v474 = vmul.f32 0.5, %v473
    %v475 = vsub.f32 1.5, %v474
    %v476 = vmul.f32 %v471, %v475
    %v477 = vmul.f32 %v411, %v476
    %vm478 = vcmp.eq.f32.partialorder %v411, inf
    %v479 = vsel %vm478, %v411, %v477
    %vm480 = vcmp.eq.f32.partialorder %v411, 0.0
    %v481 = vand.u32 %v411, 2147483648
    %v482 = vsel %vm480, %v481, %v479
    %v483 = vrsqrt.pop %v412
    %v484 = vmul.f32 %v483, %v412
    %v485 = vmul.f32 %v484, %v483
    %v486 = vmul.f32 0.5, %v485
    %v487 = vsub.f32 1.5, %v486
    %v488 = vmul.f32 %v483, %v487
    %v489 = vmul.f32 %v412, %v488
    %vm490 = vcmp.eq.f32.partialorder %v412, inf
    %v491 = vsel %vm490, %v412, %v489
    %vm492 = vcmp.eq.f32.partialorder %v412, 0.0
    %v493 = vand.u32 %v412, 2147483648
    %v494 = vsel %vm492, %v493, %v491
    %v495 = vrsqrt.pop %v413
    %v496 = vmul.f32 %v495, %v413
    %v497 = vmul.f32 %v496, %v495
    %v498 = vmul.f32 0.5, %v497
    %v499 = vsub.f32 1.5, %v498
    %v500 = vmul.f32 %v495, %v499
    %v501 = vmul.f32 %v413, %v500
    %vm502 = vcmp.eq.f32.partialorder %v413, inf
    %v503 = vsel %vm502, %v413, %v501
    %vm504 = vcmp.eq.f32.partialorder %v413, 0.0
    %v505 = vand.u32 %v413, 2147483648
    %v506 = vsel %vm504, %v505, %v503
    %v507 = vrsqrt.pop %v414
    %v508 = vmul.f32 %v507, %v414
    %v509 = vmul.f32 %v508, %v507
    %v510 = vmul.f32 0.5, %v509
    %v511 = vsub.f32 1.5, %v510
    %v512 = vmul.f32 %v507, %v511
    %v513 = vmul.f32 %v414, %v512
    %vm514 = vcmp.eq.f32.partialorder %v414, inf
    %v515 = vsel %vm514, %v414, %v513
    %vm516 = vcmp.eq.f32.partialorder %v414, 0.0
    %v517 = vand.u32 %v414, 2147483648
    %v518 = vsel %vm516, %v517, %v515
    %v519 = vrsqrt.pop %v415
    %v520 = vmul.f32 %v519, %v415
    %v521 = vmul.f32 %v520, %v519
    %v522 = vmul.f32 0.5, %v521
    %v523 = vsub.f32 1.5, %v522
    %v524 = vmul.f32 %v519, %v523
    %v525 = vmul.f32 %v415, %v524
    %vm526 = vcmp.eq.f32.partialorder %v415, inf
    %v527 = vsel %vm526, %v415, %v525
    %vm528 = vcmp.eq.f32.partialorder %v415, 0.0
    %v529 = vand.u32 %v415, 2147483648
    %v530 = vsel %vm528, %v529, %v527
    %v531 = vrsqrt.pop %v416
    %v532 = vmul.f32 %v531, %v416
    %v533 = vmul.f32 %v532, %v531
    %v534 = vmul.f32 0.5, %v533
    %v535 = vsub.f32 1.5, %v534
    %v536 = vmul.f32 %v531, %v535
    %v537 = vmul.f32 %v416, %v536
    %vm538 = vcmp.eq.f32.partialorder %v416, inf
    %v539 = vsel %vm538, %v416, %v537
    %vm540 = vcmp.eq.f32.partialorder %v416, 0.0
    %v541 = vand.u32 %v416, 2147483648
    %v542 = vsel %vm540, %v541, %v539
    %v543 = vrsqrt.pop %v417
    %v544 = vmul.f32 %v543, %v417
    %v545 = vmul.f32 %v544, %v543
    %v546 = vmul.f32 0.5, %v545
    %v547 = vsub.f32 1.5, %v546
    %v548 = vmul.f32 %v543, %v547
    %v549 = vmul.f32 %v417, %v548
    %vm550 = vcmp.eq.f32.partialorder %v417, inf
    %v551 = vsel %vm550, %v417, %v549
    %vm552 = vcmp.eq.f32.partialorder %v417, 0.0
    %v553 = vand.u32 %v417, 2147483648
    %v554 = vsel %vm552, %v553, %v551
    %v555 = vrsqrt.pop %v418
    %v556 = vmul.f32 %v555, %v418
    %v557 = vmul.f32 %v556, %v555
    %v558 = vmul.f32 0.5, %v557
    %v559 = vsub.f32 1.5, %v558
    %v560 = vmul.f32 %v555, %v559
    %v561 = vmul.f32 %v418, %v560
    %vm562 = vcmp.eq.f32.partialorder %v418, inf
    %v563 = vsel %vm562, %v418, %v561
    %vm564 = vcmp.eq.f32.partialorder %v418, 0.0
    %v565 = vand.u32 %v418, 2147483648
    %v566 = vsel %vm564, %v565, %v563
    %v567 = vrsqrt.pop %v419
    %v568 = vmul.f32 %v567, %v419
    %v569 = vmul.f32 %v568, %v567
    %v570 = vmul.f32 0.5, %v569
    %v571 = vsub.f32 1.5, %v570
    %v572 = vmul.f32 %v567, %v571
    %v573 = vmul.f32 %v419, %v572
    %vm574 = vcmp.eq.f32.partialorder %v419, inf
    %v575 = vsel %vm574, %v419, %v573
    %vm576 = vcmp.eq.f32.partialorder %v419, 0.0
    %v577 = vand.u32 %v419, 2147483648
    %v578 = vsel %vm576, %v577, %v575
    %v579 = vrsqrt.pop %v420
    %v580 = vmul.f32 %v579, %v420
    %v581 = vmul.f32 %v580, %v579
    %v582 = vmul.f32 0.5, %v581
    %v583 = vsub.f32 1.5, %v582
    %v584 = vmul.f32 %v579, %v583
    %v585 = vmul.f32 %v420, %v584
    %vm586 = vcmp.eq.f32.partialorder %v420, inf
    %v587 = vsel %vm586, %v420, %v585
    %vm588 = vcmp.eq.f32.partialorder %v420, 0.0
    %v589 = vand.u32 %v420, 2147483648
    %v590 = vsel %vm588, %v589, %v587
    %v591 = vrsqrt.pop %v421
    %v592 = vmul.f32 %v591, %v421
    %v593 = vmul.f32 %v592, %v591
    %v594 = vmul.f32 0.5, %v593
    %v595 = vsub.f32 1.5, %v594
    %v596 = vmul.f32 %v591, %v595
    %v597 = vmul.f32 %v421, %v596
    %vm598 = vcmp.eq.f32.partialorder %v421, inf
    %v599 = vsel %vm598, %v421, %v597
    %vm600 = vcmp.eq.f32.partialorder %v421, 0.0
    %v601 = vand.u32 %v421, 2147483648
    %v602 = vsel %vm600, %v601, %v599
    %v603 = vrsqrt.pop %v422
    %v604 = vmul.f32 %v603, %v422
    %v605 = vmul.f32 %v604, %v603
    %v606 = vmul.f32 0.5, %v605
    %v607 = vsub.f32 1.5, %v606
    %v608 = vmul.f32 %v603, %v607
    %v609 = vmul.f32 %v422, %v608
    %vm610 = vcmp.eq.f32.partialorder %v422, inf
    %v611 = vsel %vm610, %v422, %v609
    %vm612 = vcmp.eq.f32.partialorder %v422, 0.0
    %v613 = vand.u32 %v422, 2147483648
    %v614 = vsel %vm612, %v613, %v611
    %v615 = vmul.f32 %v434, 0.1
    %v616 = vmul.f32 %v446, 0.1
    %v617 = vmul.f32 %v458, 0.1
    %v618 = vmul.f32 %v470, 0.1
    %v619 = vmul.f32 %v482, 0.1
    %v620 = vmul.f32 %v494, 0.1
    %v621 = vmul.f32 %v506, 0.1
    %v622 = vmul.f32 %v518, 0.1
    %v623 = vmul.f32 %v530, 0.1
    %v624 = vmul.f32 %v542, 0.1
    %v625 = vmul.f32 %v554, 0.1
    %v626 = vmul.f32 %v566, 0.1
    %v627 = vmul.f32 %v578, 0.1
    %v628 = vmul.f32 %v590, 0.1
    %v629 = vmul.f32 %v602, 0.1
    %v630 = vmul.f32 %v614, 0.1
    %v631 = vadd.f32 %v615, 1.0
    %v632 = vadd.f32 %v616, 1.0
    %v633 = vadd.f32 %v617, 1.0
    %v634 = vadd.f32 %v618, 1.0
    %v635 = vadd.f32 %v619, 1.0
    %v636 = vadd.f32 %v620, 1.0
    %v637 = vadd.f32 %v621, 1.0
    %v638 = vadd.f32 %v622, 1.0
    %v639 = vadd.f32 %v623, 1.0
    %v640 = vadd.f32 %v624, 1.0
    %v641 = vadd.f32 %v625, 1.0
    %v642 = vadd.f32 %v626, 1.0
    %v643 = vadd.f32 %v627, 1.0
    %v644 = vadd.f32 %v628, 1.0
    %v645 = vadd.f32 %v629, 1.0
    %v646 = vadd.f32 %v630, 1.0
    %v647 = vld [vmem:[%s3] sm:$0xff]
    %v648 = vld [vmem:[%s3 + $0x8] sm:$0xff]
    %v649 = vld [vmem:[%s3 + $0x10] sm:$0xff]
    %v650 = vld [vmem:[%s3 + $0x18] sm:$0xff]
    %v651 = vld [vmem:[%s3 + $0x20] sm:$0xff]
    %v652 = vld [vmem:[%s3 + $0x28] sm:$0xff]
    %v653 = vld [vmem:[%s3 + $0x30] sm:$0xff]
    %v654 = vld [vmem:[%s3 + $0x38] sm:$0xff]
    %v655 = vld [vmem:[%s3 + $0x40] sm:$0xff]
    %v656 = vld [vmem:[%s3 + $0x48] sm:$0xff]
    %v657 = vld [vmem:[%s3 + $0x50] sm:$0xff]
    %v658 = vld [vmem:[%s3 + $0x58] sm:$0xff]
    %v659 = vld [vmem:[%s3 + $0x60] sm:$0xff]
    %v660 = vld [vmem:[%s3 + $0x68] sm:$0xff]
    %v661 = vld [vmem:[%s3 + $0x70] sm:$0xff]
    %v662 = vld [vmem:[%s3 + $0x78] sm:$0xff]
    %v663 = vmul.f32 %v631, %v647
    %v664 = vmul.f32 %v632, %v648
    %v665 = vmul.f32 %v633, %v649
    %v666 = vmul.f32 %v634, %v650
    %v667 = vmul.f32 %v635, %v651
    %v668 = vmul.f32 %v636, %v652
    %v669 = vmul.f32 %v637, %v653
    %v670 = vmul.f32 %v638, %v654
    %v671 = vmul.f32 %v639, %v655
    %v672 = vmul.f32 %v640, %v656
    %v673 = vmul.f32 %v641, %v657
    %v674 = vmul.f32 %v642, %v658
    %v675 = vmul.f32 %v643, %v659
    %v676 = vmul.f32 %v644, %v660
    %v677 = vmul.f32 %v645, %v661
    %v678 = vmul.f32 %v646, %v662
    %v679 = vadd.s32 %v135, 2071795850
    %v680 = vadd.s32 %v136, 2071795850
    %v681 = vadd.s32 %v137, 2071795850
    %v682 = vadd.s32 %v138, 2071795850
    %v683 = vadd.s32 %v139, 2071795850
    %v684 = vadd.s32 %v140, 2071795850
    %v685 = vadd.s32 %v141, 2071795850
    %v686 = vadd.s32 %v142, 2071795850
    %v687 = vadd.s32 %v143, 2071795850
    %v688 = vadd.s32 %v144, 2071795850
    %v689 = vadd.s32 %v145, 2071795850
    %v690 = vadd.s32 %v146, 2071795850
    %v691 = vadd.s32 %v147, 2071795850
    %v692 = vadd.s32 %v148, 2071795850
    %v693 = vadd.s32 %v149, 2071795850
    %v694 = vadd.s32 %v150, 2071795850
    %v695 = vshrl.u32 %v679, 16
    %v696 = vshrl.u32 %v680, 16
    %v697 = vshrl.u32 %v681, 16
    %v698 = vshrl.u32 %v682, 16
    %v699 = vshrl.u32 %v683, 16
    %v700 = vshrl.u32 %v684, 16
    %v701 = vshrl.u32 %v685, 16
    %v702 = vshrl.u32 %v686, 16
    %v703 = vshrl.u32 %v687, 16
    %v704 = vshrl.u32 %v688, 16
    %v705 = vshrl.u32 %v689, 16
    %v706 = vshrl.u32 %v690, 16
    %v707 = vshrl.u32 %v691, 16
    %v708 = vshrl.u32 %v692, 16
    %v709 = vshrl.u32 %v693, 16
    %v710 = vshrl.u32 %v694, 16
    %v711 = vxor.u32 %v679, %v695
    %v712 = vxor.u32 %v680, %v696
    %v713 = vxor.u32 %v681, %v697
    %v714 = vxor.u32 %v682, %v698
    %v715 = vxor.u32 %v683, %v699
    %v716 = vxor.u32 %v684, %v700
    %v717 = vxor.u32 %v685, %v701
    %v718 = vxor.u32 %v686, %v702
    %v719 = vxor.u32 %v687, %v703
    %v720 = vxor.u32 %v688, %v704
    %v721 = vxor.u32 %v689, %v705
    %v722 = vxor.u32 %v690, %v706
    %v723 = vxor.u32 %v691, %v707
    %v724 = vxor.u32 %v692, %v708
    %v725 = vxor.u32 %v693, %v709
    %v726 = vxor.u32 %v694, %v710
    %v727 = vmul.u32 %v711, 2146121005
    %v728 = vmul.u32 %v712, 2146121005
    %v729 = vmul.u32 %v713, 2146121005
    %v730 = vmul.u32 %v714, 2146121005
    %v731 = vmul.u32 %v715, 2146121005
    %v732 = vmul.u32 %v716, 2146121005
    %v733 = vmul.u32 %v717, 2146121005
    %v734 = vmul.u32 %v718, 2146121005
    %v735 = vmul.u32 %v719, 2146121005
    %v736 = vmul.u32 %v720, 2146121005
    %v737 = vmul.u32 %v721, 2146121005
    %v738 = vmul.u32 %v722, 2146121005
    %v739 = vmul.u32 %v723, 2146121005
    %v740 = vmul.u32 %v724, 2146121005
    %v741 = vmul.u32 %v725, 2146121005
    %v742 = vmul.u32 %v726, 2146121005
    %v743 = vshrl.u32 %v727, 15
    %v744 = vshrl.u32 %v728, 15
    %v745 = vshrl.u32 %v729, 15
    %v746 = vshrl.u32 %v730, 15
    %v747 = vshrl.u32 %v731, 15
    %v748 = vshrl.u32 %v732, 15
    %v749 = vshrl.u32 %v733, 15
    %v750 = vshrl.u32 %v734, 15
    %v751 = vshrl.u32 %v735, 15
    %v752 = vshrl.u32 %v736, 15
    %v753 = vshrl.u32 %v737, 15
    %v754 = vshrl.u32 %v738, 15
    %v755 = vshrl.u32 %v739, 15
    %v756 = vshrl.u32 %v740, 15
    %v757 = vshrl.u32 %v741, 15
    %v758 = vshrl.u32 %v742, 15
    %v759 = vxor.u32 %v727, %v743
    %v760 = vxor.u32 %v728, %v744
    %v761 = vxor.u32 %v729, %v745
    %v762 = vxor.u32 %v730, %v746
    %v763 = vxor.u32 %v731, %v747
    %v764 = vxor.u32 %v732, %v748
    %v765 = vxor.u32 %v733, %v749
    %v766 = vxor.u32 %v734, %v750
    %v767 = vxor.u32 %v735, %v751
    %v768 = vxor.u32 %v736, %v752
    %v769 = vxor.u32 %v737, %v753
    %v770 = vxor.u32 %v738, %v754
    %v771 = vxor.u32 %v739, %v755
    %v772 = vxor.u32 %v740, %v756
    %v773 = vxor.u32 %v741, %v757
    %v774 = vxor.u32 %v742, %v758
    %v775 = vmul.u32 %v759, 2221713035
    %v776 = vmul.u32 %v760, 2221713035
    %v777 = vmul.u32 %v761, 2221713035
    %v778 = vmul.u32 %v762, 2221713035
    %v779 = vmul.u32 %v763, 2221713035
    %v780 = vmul.u32 %v764, 2221713035
    %v781 = vmul.u32 %v765, 2221713035
    %v782 = vmul.u32 %v766, 2221713035
    %v783 = vmul.u32 %v767, 2221713035
    %v784 = vmul.u32 %v768, 2221713035
    %v785 = vmul.u32 %v769, 2221713035
    %v786 = vmul.u32 %v770, 2221713035
    %v787 = vmul.u32 %v771, 2221713035
    %v788 = vmul.u32 %v772, 2221713035
    %v789 = vmul.u32 %v773, 2221713035
    %v790 = vmul.u32 %v774, 2221713035
    %v791 = vshrl.u32 %v775, 16
    %v792 = vshrl.u32 %v776, 16
    %v793 = vshrl.u32 %v777, 16
    %v794 = vshrl.u32 %v778, 16
    %v795 = vshrl.u32 %v779, 16
    %v796 = vshrl.u32 %v780, 16
    %v797 = vshrl.u32 %v781, 16
    %v798 = vshrl.u32 %v782, 16
    %v799 = vshrl.u32 %v783, 16
    %v800 = vshrl.u32 %v784, 16
    %v801 = vshrl.u32 %v785, 16
    %v802 = vshrl.u32 %v786, 16
    %v803 = vshrl.u32 %v787, 16
    %v804 = vshrl.u32 %v788, 16
    %v805 = vshrl.u32 %v789, 16
    %v806 = vshrl.u32 %v790, 16
    %v807 = vxor.u32 %v775, %v791
    %v808 = vxor.u32 %v776, %v792
    %v809 = vxor.u32 %v777, %v793
    %v810 = vxor.u32 %v778, %v794
    %v811 = vxor.u32 %v779, %v795
    %v812 = vxor.u32 %v780, %v796
    %v813 = vxor.u32 %v781, %v797
    %v814 = vxor.u32 %v782, %v798
    %v815 = vxor.u32 %v783, %v799
    %v816 = vxor.u32 %v784, %v800
    %v817 = vxor.u32 %v785, %v801
    %v818 = vxor.u32 %v786, %v802
    %v819 = vxor.u32 %v787, %v803
    %v820 = vxor.u32 %v788, %v804
    %v821 = vxor.u32 %v789, %v805
    %v822 = vxor.u32 %v790, %v806
    %v823 = vand.u32 %v807, 8388607
    %v824 = vand.u32 %v808, 8388607
    %v825 = vand.u32 %v809, 8388607
    %v826 = vand.u32 %v810, 8388607
    %v827 = vand.u32 %v811, 8388607
    %v828 = vand.u32 %v812, 8388607
    %v829 = vand.u32 %v813, 8388607
    %v830 = vand.u32 %v814, 8388607
    %v831 = vand.u32 %v815, 8388607
    %v832 = vand.u32 %v816, 8388607
    %v833 = vand.u32 %v817, 8388607
    %v834 = vand.u32 %v818, 8388607
    %v835 = vand.u32 %v819, 8388607
    %v836 = vand.u32 %v820, 8388607
    %v837 = vand.u32 %v821, 8388607
    %v838 = vand.u32 %v822, 8388607
    %v839 = vcvt.s32.f32 %v823
    %v840 = vcvt.s32.f32 %v824
    %v841 = vcvt.s32.f32 %v825
    %v842 = vcvt.s32.f32 %v826
    %v843 = vcvt.s32.f32 %v827
    %v844 = vcvt.s32.f32 %v828
    %v845 = vcvt.s32.f32 %v829
    %v846 = vcvt.s32.f32 %v830
    %v847 = vcvt.s32.f32 %v831
    %v848 = vcvt.s32.f32 %v832
    %v849 = vcvt.s32.f32 %v833
    %v850 = vcvt.s32.f32 %v834
    %v851 = vcvt.s32.f32 %v835
    %v852 = vcvt.s32.f32 %v836
    %v853 = vcvt.s32.f32 %v837
    %v854 = vcvt.s32.f32 %v838
    %v855 = vmul.f32 %v839, 1.1920929e-07
    %v856 = vmul.f32 %v840, 1.1920929e-07
    %v857 = vmul.f32 %v841, 1.1920929e-07
    %v858 = vmul.f32 %v842, 1.1920929e-07
    %v859 = vmul.f32 %v843, 1.1920929e-07
    %v860 = vmul.f32 %v844, 1.1920929e-07
    %v861 = vmul.f32 %v845, 1.1920929e-07
    %v862 = vmul.f32 %v846, 1.1920929e-07
    %v863 = vmul.f32 %v847, 1.1920929e-07
    %v864 = vmul.f32 %v848, 1.1920929e-07
    %v865 = vmul.f32 %v849, 1.1920929e-07
    %v866 = vmul.f32 %v850, 1.1920929e-07
    %v867 = vmul.f32 %v851, 1.1920929e-07
    %v868 = vmul.f32 %v852, 1.1920929e-07
    %v869 = vmul.f32 %v853, 1.1920929e-07
    %v870 = vmul.f32 %v854, 1.1920929e-07
    %v871 = vadd.s32 %v135, 2978703937
    %v872 = vadd.s32 %v136, 2978703937
    %v873 = vadd.s32 %v137, 2978703937
    %v874 = vadd.s32 %v138, 2978703937
    %v875 = vadd.s32 %v139, 2978703937
    %v876 = vadd.s32 %v140, 2978703937
    %v877 = vadd.s32 %v141, 2978703937
    %v878 = vadd.s32 %v142, 2978703937
    %v879 = vadd.s32 %v143, 2978703937
    %v880 = vadd.s32 %v144, 2978703937
    %v881 = vadd.s32 %v145, 2978703937
    %v882 = vadd.s32 %v146, 2978703937
    %v883 = vadd.s32 %v147, 2978703937
    %v884 = vadd.s32 %v148, 2978703937
    %v885 = vadd.s32 %v149, 2978703937
    %v886 = vadd.s32 %v150, 2978703937
    %v887 = vshrl.u32 %v871, 16
    %v888 = vshrl.u32 %v872, 16
    %v889 = vshrl.u32 %v873, 16
    %v890 = vshrl.u32 %v874, 16
    %v891 = vshrl.u32 %v875, 16
    %v892 = vshrl.u32 %v876, 16
    %v893 = vshrl.u32 %v877, 16
    %v894 = vshrl.u32 %v878, 16
    %v895 = vshrl.u32 %v879, 16
    %v896 = vshrl.u32 %v880, 16
    %v897 = vshrl.u32 %v881, 16
    %v898 = vshrl.u32 %v882, 16
    %v899 = vshrl.u32 %v883, 16
    %v900 = vshrl.u32 %v884, 16
    %v901 = vshrl.u32 %v885, 16
    %v902 = vshrl.u32 %v886, 16
    %v903 = vxor.u32 %v871, %v887
    %v904 = vxor.u32 %v872, %v888
    %v905 = vxor.u32 %v873, %v889
    %v906 = vxor.u32 %v874, %v890
    %v907 = vxor.u32 %v875, %v891
    %v908 = vxor.u32 %v876, %v892
    %v909 = vxor.u32 %v877, %v893
    %v910 = vxor.u32 %v878, %v894
    %v911 = vxor.u32 %v879, %v895
    %v912 = vxor.u32 %v880, %v896
    %v913 = vxor.u32 %v881, %v897
    %v914 = vxor.u32 %v882, %v898
    %v915 = vxor.u32 %v883, %v899
    %v916 = vxor.u32 %v884, %v900
    %v917 = vxor.u32 %v885, %v901
    %v918 = vxor.u32 %v886, %v902
    %v919 = vmul.u32 %v903, 2146121005
    %v920 = vmul.u32 %v904, 2146121005
    %v921 = vmul.u32 %v905, 2146121005
    %v922 = vmul.u32 %v906, 2146121005
    %v923 = vmul.u32 %v907, 2146121005
    %v924 = vmul.u32 %v908, 2146121005
    %v925 = vmul.u32 %v909, 2146121005
    %v926 = vmul.u32 %v910, 2146121005
    %v927 = vmul.u32 %v911, 2146121005
    %v928 = vmul.u32 %v912, 2146121005
    %v929 = vmul.u32 %v913, 2146121005
    %v930 = vmul.u32 %v914, 2146121005
    %v931 = vmul.u32 %v915, 2146121005
    %v932 = vmul.u32 %v916, 2146121005
    %v933 = vmul.u32 %v917, 2146121005
    %v934 = vmul.u32 %v918, 2146121005
    %v935 = vshrl.u32 %v919, 15
    %v936 = vshrl.u32 %v920, 15
    %v937 = vshrl.u32 %v921, 15
    %v938 = vshrl.u32 %v922, 15
    %v939 = vshrl.u32 %v923, 15
    %v940 = vshrl.u32 %v924, 15
    %v941 = vshrl.u32 %v925, 15
    %v942 = vshrl.u32 %v926, 15
    %v943 = vshrl.u32 %v927, 15
    %v944 = vshrl.u32 %v928, 15
    %v945 = vshrl.u32 %v929, 15
    %v946 = vshrl.u32 %v930, 15
    %v947 = vshrl.u32 %v931, 15
    %v948 = vshrl.u32 %v932, 15
    %v949 = vshrl.u32 %v933, 15
    %v950 = vshrl.u32 %v934, 15
    %v951 = vxor.u32 %v919, %v935
    %v952 = vxor.u32 %v920, %v936
    %v953 = vxor.u32 %v921, %v937
    %v954 = vxor.u32 %v922, %v938
    %v955 = vxor.u32 %v923, %v939
    %v956 = vxor.u32 %v924, %v940
    %v957 = vxor.u32 %v925, %v941
    %v958 = vxor.u32 %v926, %v942
    %v959 = vxor.u32 %v927, %v943
    %v960 = vxor.u32 %v928, %v944
    %v961 = vxor.u32 %v929, %v945
    %v962 = vxor.u32 %v930, %v946
    %v963 = vxor.u32 %v931, %v947
    %v964 = vxor.u32 %v932, %v948
    %v965 = vxor.u32 %v933, %v949
    %v966 = vxor.u32 %v934, %v950
    %v967 = vmul.u32 %v951, 2221713035
    %v968 = vmul.u32 %v952, 2221713035
    %v969 = vmul.u32 %v953, 2221713035
    %v970 = vmul.u32 %v954, 2221713035
    %v971 = vmul.u32 %v955, 2221713035
    %v972 = vmul.u32 %v956, 2221713035
    %v973 = vmul.u32 %v957, 2221713035
    %v974 = vmul.u32 %v958, 2221713035
    %v975 = vmul.u32 %v959, 2221713035
    %v976 = vmul.u32 %v960, 2221713035
    %v977 = vmul.u32 %v961, 2221713035
    %v978 = vmul.u32 %v962, 2221713035
    %v979 = vmul.u32 %v963, 2221713035
    %v980 = vmul.u32 %v964, 2221713035
    %v981 = vmul.u32 %v965, 2221713035
    %v982 = vmul.u32 %v966, 2221713035
    %v983 = vshrl.u32 %v967, 16
    %v984 = vshrl.u32 %v968, 16
    %v985 = vshrl.u32 %v969, 16
    %v986 = vshrl.u32 %v970, 16
    %v987 = vshrl.u32 %v971, 16
    %v988 = vshrl.u32 %v972, 16
    %v989 = vshrl.u32 %v973, 16
    %v990 = vshrl.u32 %v974, 16
    %v991 = vshrl.u32 %v975, 16
    %v992 = vshrl.u32 %v976, 16
    %v993 = vshrl.u32 %v977, 16
    %v994 = vshrl.u32 %v978, 16
    %v995 = vshrl.u32 %v979, 16
    %v996 = vshrl.u32 %v980, 16
    %v997 = vshrl.u32 %v981, 16
    %v998 = vshrl.u32 %v982, 16
    %v999 = vxor.u32 %v967, %v983
    %v1000 = vxor.u32 %v968, %v984
    %v1001 = vxor.u32 %v969, %v985
    %v1002 = vxor.u32 %v970, %v986
    %v1003 = vxor.u32 %v971, %v987
    %v1004 = vxor.u32 %v972, %v988
    %v1005 = vxor.u32 %v973, %v989
    %v1006 = vxor.u32 %v974, %v990
    %v1007 = vxor.u32 %v975, %v991
    %v1008 = vxor.u32 %v976, %v992
    %v1009 = vxor.u32 %v977, %v993
    %v1010 = vxor.u32 %v978, %v994
    %v1011 = vxor.u32 %v979, %v995
    %v1012 = vxor.u32 %v980, %v996
    %v1013 = vxor.u32 %v981, %v997
    %v1014 = vxor.u32 %v982, %v998
    %v1015 = vand.u32 %v999, 8388607
    %v1016 = vand.u32 %v1000, 8388607
    %v1017 = vand.u32 %v1001, 8388607
    %v1018 = vand.u32 %v1002, 8388607
    %v1019 = vand.u32 %v1003, 8388607
    %v1020 = vand.u32 %v1004, 8388607
    %v1021 = vand.u32 %v1005, 8388607
    %v1022 = vand.u32 %v1006, 8388607
    %v1023 = vand.u32 %v1007, 8388607
    %v1024 = vand.u32 %v1008, 8388607
    %v1025 = vand.u32 %v1009, 8388607
    %v1026 = vand.u32 %v1010, 8388607
    %v1027 = vand.u32 %v1011, 8388607
    %v1028 = vand.u32 %v1012, 8388607
    %v1029 = vand.u32 %v1013, 8388607
    %v1030 = vand.u32 %v1014, 8388607
    %v1031 = vcvt.s32.f32 %v1015
    %v1032 = vcvt.s32.f32 %v1016
    %v1033 = vcvt.s32.f32 %v1017
    %v1034 = vcvt.s32.f32 %v1018
    %v1035 = vcvt.s32.f32 %v1019
    %v1036 = vcvt.s32.f32 %v1020
    %v1037 = vcvt.s32.f32 %v1021
    %v1038 = vcvt.s32.f32 %v1022
    %v1039 = vcvt.s32.f32 %v1023
    %v1040 = vcvt.s32.f32 %v1024
    %v1041 = vcvt.s32.f32 %v1025
    %v1042 = vcvt.s32.f32 %v1026
    %v1043 = vcvt.s32.f32 %v1027
    %v1044 = vcvt.s32.f32 %v1028
    %v1045 = vcvt.s32.f32 %v1029
    %v1046 = vcvt.s32.f32 %v1030
    %v1047 = vmul.f32 %v1031, 1.1920929e-07
    %v1048 = vmul.f32 %v1032, 1.1920929e-07
    %v1049 = vmul.f32 %v1033, 1.1920929e-07
    %v1050 = vmul.f32 %v1034, 1.1920929e-07
    %v1051 = vmul.f32 %v1035, 1.1920929e-07
    %v1052 = vmul.f32 %v1036, 1.1920929e-07
    %v1053 = vmul.f32 %v1037, 1.1920929e-07
    %v1054 = vmul.f32 %v1038, 1.1920929e-07
    %v1055 = vmul.f32 %v1039, 1.1920929e-07
    %v1056 = vmul.f32 %v1040, 1.1920929e-07
    %v1057 = vmul.f32 %v1041, 1.1920929e-07
    %v1058 = vmul.f32 %v1042, 1.1920929e-07
    %v1059 = vmul.f32 %v1043, 1.1920929e-07
    %v1060 = vmul.f32 %v1044, 1.1920929e-07
    %v1061 = vmul.f32 %v1045, 1.1920929e-07
    %v1062 = vmul.f32 %v1046, 1.1920929e-07
    %v1063 = vsub.f32 1.0, %v855
    %v1064 = vsub.f32 1.0, %v856
    %v1065 = vsub.f32 1.0, %v857
    %v1066 = vsub.f32 1.0, %v858
    %v1067 = vsub.f32 1.0, %v859
    %v1068 = vsub.f32 1.0, %v860
    %v1069 = vsub.f32 1.0, %v861
    %v1070 = vsub.f32 1.0, %v862
    %v1071 = vsub.f32 1.0, %v863
    %v1072 = vsub.f32 1.0, %v864
    %v1073 = vsub.f32 1.0, %v865
    %v1074 = vsub.f32 1.0, %v866
    %v1075 = vsub.f32 1.0, %v867
    %v1076 = vsub.f32 1.0, %v868
    %v1077 = vsub.f32 1.0, %v869
    %v1078 = vsub.f32 1.0, %v870
    %v1079 = vmax.f32 %v1063, 1e-12
    %v1080 = vmax.f32 %v1064, 1e-12
    %v1081 = vmax.f32 %v1065, 1e-12
    %v1082 = vmax.f32 %v1066, 1e-12
    %v1083 = vmax.f32 %v1067, 1e-12
    %v1084 = vmax.f32 %v1068, 1e-12
    %v1085 = vmax.f32 %v1069, 1e-12
    %v1086 = vmax.f32 %v1070, 1e-12
    %v1087 = vmax.f32 %v1071, 1e-12
    %v1088 = vmax.f32 %v1072, 1e-12
    %v1089 = vmax.f32 %v1073, 1e-12
    %v1090 = vmax.f32 %v1074, 1e-12
    %v1091 = vmax.f32 %v1075, 1e-12
    %v1092 = vmax.f32 %v1076, 1e-12
    %v1093 = vmax.f32 %v1077, 1e-12
    %v1094 = vmax.f32 %v1078, 1e-12
    %v1095 = vlog2.pop %v1079
    %v1096 = vmul.f32 %v1095, 0.6931472
    %v1097 = vlog2.pop %v1080
    %v1098 = vmul.f32 %v1097, 0.6931472
    %v1099 = vlog2.pop %v1081
    %v1100 = vmul.f32 %v1099, 0.6931472
    %v1101 = vlog2.pop %v1082
    %v1102 = vmul.f32 %v1101, 0.6931472
    %v1103 = vlog2.pop %v1083
    %v1104 = vmul.f32 %v1103, 0.6931472
    %v1105 = vlog2.pop %v1084
    %v1106 = vmul.f32 %v1105, 0.6931472
    %v1107 = vlog2.pop %v1085
    %v1108 = vmul.f32 %v1107, 0.6931472
    %v1109 = vlog2.pop %v1086
    %v1110 = vmul.f32 %v1109, 0.6931472
    %v1111 = vlog2.pop %v1087
    %v1112 = vmul.f32 %v1111, 0.6931472
    %v1113 = vlog2.pop %v1088
    %v1114 = vmul.f32 %v1113, 0.6931472
    %v1115 = vlog2.pop %v1089
    %v1116 = vmul.f32 %v1115, 0.6931472
    %v1117 = vlog2.pop %v1090
    %v1118 = vmul.f32 %v1117, 0.6931472
    %v1119 = vlog2.pop %v1091
    %v1120 = vmul.f32 %v1119, 0.6931472
    %v1121 = vlog2.pop %v1092
    %v1122 = vmul.f32 %v1121, 0.6931472
    %v1123 = vlog2.pop %v1093
    %v1124 = vmul.f32 %v1123, 0.6931472
    %v1125 = vlog2.pop %v1094
    %v1126 = vmul.f32 %v1125, 0.6931472
    %v1127 = vmul.f32 %v1096, -2.0
    %v1128 = vmul.f32 %v1098, -2.0
    %v1129 = vmul.f32 %v1100, -2.0
    %v1130 = vmul.f32 %v1102, -2.0
    %v1131 = vmul.f32 %v1104, -2.0
    %v1132 = vmul.f32 %v1106, -2.0
    %v1133 = vmul.f32 %v1108, -2.0
    %v1134 = vmul.f32 %v1110, -2.0
    %v1135 = vmul.f32 %v1112, -2.0
    %v1136 = vmul.f32 %v1114, -2.0
    %v1137 = vmul.f32 %v1116, -2.0
    %v1138 = vmul.f32 %v1118, -2.0
    %v1139 = vmul.f32 %v1120, -2.0
    %v1140 = vmul.f32 %v1122, -2.0
    %v1141 = vmul.f32 %v1124, -2.0
    %v1142 = vmul.f32 %v1126, -2.0
    %v1143 = vrsqrt.pop %v1127
    %v1144 = vmul.f32 %v1143, %v1127
    %v1145 = vmul.f32 %v1144, %v1143
    %v1146 = vmul.f32 0.5, %v1145
    %v1147 = vsub.f32 1.5, %v1146
    %v1148 = vmul.f32 %v1143, %v1147
    %v1149 = vmul.f32 %v1127, %v1148
    %vm1150 = vcmp.eq.f32.partialorder %v1127, inf
    %v1151 = vsel %vm1150, %v1127, %v1149
    %vm1152 = vcmp.eq.f32.partialorder %v1127, 0.0
    %v1153 = vand.u32 %v1127, 2147483648
    %v1154 = vsel %vm1152, %v1153, %v1151
    %v1155 = vrsqrt.pop %v1128
    %v1156 = vmul.f32 %v1155, %v1128
    %v1157 = vmul.f32 %v1156, %v1155
    %v1158 = vmul.f32 0.5, %v1157
    %v1159 = vsub.f32 1.5, %v1158
    %v1160 = vmul.f32 %v1155, %v1159
    %v1161 = vmul.f32 %v1128, %v1160
    %vm1162 = vcmp.eq.f32.partialorder %v1128, inf
    %v1163 = vsel %vm1162, %v1128, %v1161
    %vm1164 = vcmp.eq.f32.partialorder %v1128, 0.0
    %v1165 = vand.u32 %v1128, 2147483648
    %v1166 = vsel %vm1164, %v1165, %v1163
    %v1167 = vrsqrt.pop %v1129
    %v1168 = vmul.f32 %v1167, %v1129
    %v1169 = vmul.f32 %v1168, %v1167
    %v1170 = vmul.f32 0.5, %v1169
    %v1171 = vsub.f32 1.5, %v1170
    %v1172 = vmul.f32 %v1167, %v1171
    %v1173 = vmul.f32 %v1129, %v1172
    %vm1174 = vcmp.eq.f32.partialorder %v1129, inf
    %v1175 = vsel %vm1174, %v1129, %v1173
    %vm1176 = vcmp.eq.f32.partialorder %v1129, 0.0
    %v1177 = vand.u32 %v1129, 2147483648
    %v1178 = vsel %vm1176, %v1177, %v1175
    %v1179 = vrsqrt.pop %v1130
    %v1180 = vmul.f32 %v1179, %v1130
    %v1181 = vmul.f32 %v1180, %v1179
    %v1182 = vmul.f32 0.5, %v1181
    %v1183 = vsub.f32 1.5, %v1182
    %v1184 = vmul.f32 %v1179, %v1183
    %v1185 = vmul.f32 %v1130, %v1184
    %vm1186 = vcmp.eq.f32.partialorder %v1130, inf
    %v1187 = vsel %vm1186, %v1130, %v1185
    %vm1188 = vcmp.eq.f32.partialorder %v1130, 0.0
    %v1189 = vand.u32 %v1130, 2147483648
    %v1190 = vsel %vm1188, %v1189, %v1187
    %v1191 = vrsqrt.pop %v1131
    %v1192 = vmul.f32 %v1191, %v1131
    %v1193 = vmul.f32 %v1192, %v1191
    %v1194 = vmul.f32 0.5, %v1193
    %v1195 = vsub.f32 1.5, %v1194
    %v1196 = vmul.f32 %v1191, %v1195
    %v1197 = vmul.f32 %v1131, %v1196
    %vm1198 = vcmp.eq.f32.partialorder %v1131, inf
    %v1199 = vsel %vm1198, %v1131, %v1197
    %vm1200 = vcmp.eq.f32.partialorder %v1131, 0.0
    %v1201 = vand.u32 %v1131, 2147483648
    %v1202 = vsel %vm1200, %v1201, %v1199
    %v1203 = vrsqrt.pop %v1132
    %v1204 = vmul.f32 %v1203, %v1132
    %v1205 = vmul.f32 %v1204, %v1203
    %v1206 = vmul.f32 0.5, %v1205
    %v1207 = vsub.f32 1.5, %v1206
    %v1208 = vmul.f32 %v1203, %v1207
    %v1209 = vmul.f32 %v1132, %v1208
    %vm1210 = vcmp.eq.f32.partialorder %v1132, inf
    %v1211 = vsel %vm1210, %v1132, %v1209
    %vm1212 = vcmp.eq.f32.partialorder %v1132, 0.0
    %v1213 = vand.u32 %v1132, 2147483648
    %v1214 = vsel %vm1212, %v1213, %v1211
    %v1215 = vrsqrt.pop %v1133
    %v1216 = vmul.f32 %v1215, %v1133
    %v1217 = vmul.f32 %v1216, %v1215
    %v1218 = vmul.f32 0.5, %v1217
    %v1219 = vsub.f32 1.5, %v1218
    %v1220 = vmul.f32 %v1215, %v1219
    %v1221 = vmul.f32 %v1133, %v1220
    %vm1222 = vcmp.eq.f32.partialorder %v1133, inf
    %v1223 = vsel %vm1222, %v1133, %v1221
    %vm1224 = vcmp.eq.f32.partialorder %v1133, 0.0
    %v1225 = vand.u32 %v1133, 2147483648
    %v1226 = vsel %vm1224, %v1225, %v1223
    %v1227 = vrsqrt.pop %v1134
    %v1228 = vmul.f32 %v1227, %v1134
    %v1229 = vmul.f32 %v1228, %v1227
    %v1230 = vmul.f32 0.5, %v1229
    %v1231 = vsub.f32 1.5, %v1230
    %v1232 = vmul.f32 %v1227, %v1231
    %v1233 = vmul.f32 %v1134, %v1232
    %vm1234 = vcmp.eq.f32.partialorder %v1134, inf
    %v1235 = vsel %vm1234, %v1134, %v1233
    %vm1236 = vcmp.eq.f32.partialorder %v1134, 0.0
    %v1237 = vand.u32 %v1134, 2147483648
    %v1238 = vsel %vm1236, %v1237, %v1235
    %v1239 = vrsqrt.pop %v1135
    %v1240 = vmul.f32 %v1239, %v1135
    %v1241 = vmul.f32 %v1240, %v1239
    %v1242 = vmul.f32 0.5, %v1241
    %v1243 = vsub.f32 1.5, %v1242
    %v1244 = vmul.f32 %v1239, %v1243
    %v1245 = vmul.f32 %v1135, %v1244
    %vm1246 = vcmp.eq.f32.partialorder %v1135, inf
    %v1247 = vsel %vm1246, %v1135, %v1245
    %vm1248 = vcmp.eq.f32.partialorder %v1135, 0.0
    %v1249 = vand.u32 %v1135, 2147483648
    %v1250 = vsel %vm1248, %v1249, %v1247
    %v1251 = vrsqrt.pop %v1136
    %v1252 = vmul.f32 %v1251, %v1136
    %v1253 = vmul.f32 %v1252, %v1251
    %v1254 = vmul.f32 0.5, %v1253
    %v1255 = vsub.f32 1.5, %v1254
    %v1256 = vmul.f32 %v1251, %v1255
    %v1257 = vmul.f32 %v1136, %v1256
    %vm1258 = vcmp.eq.f32.partialorder %v1136, inf
    %v1259 = vsel %vm1258, %v1136, %v1257
    %vm1260 = vcmp.eq.f32.partialorder %v1136, 0.0
    %v1261 = vand.u32 %v1136, 2147483648
    %v1262 = vsel %vm1260, %v1261, %v1259
    %v1263 = vrsqrt.pop %v1137
    %v1264 = vmul.f32 %v1263, %v1137
    %v1265 = vmul.f32 %v1264, %v1263
    %v1266 = vmul.f32 0.5, %v1265
    %v1267 = vsub.f32 1.5, %v1266
    %v1268 = vmul.f32 %v1263, %v1267
    %v1269 = vmul.f32 %v1137, %v1268
    %vm1270 = vcmp.eq.f32.partialorder %v1137, inf
    %v1271 = vsel %vm1270, %v1137, %v1269
    %vm1272 = vcmp.eq.f32.partialorder %v1137, 0.0
    %v1273 = vand.u32 %v1137, 2147483648
    %v1274 = vsel %vm1272, %v1273, %v1271
    %v1275 = vrsqrt.pop %v1138
    %v1276 = vmul.f32 %v1275, %v1138
    %v1277 = vmul.f32 %v1276, %v1275
    %v1278 = vmul.f32 0.5, %v1277
    %v1279 = vsub.f32 1.5, %v1278
    %v1280 = vmul.f32 %v1275, %v1279
    %v1281 = vmul.f32 %v1138, %v1280
    %vm1282 = vcmp.eq.f32.partialorder %v1138, inf
    %v1283 = vsel %vm1282, %v1138, %v1281
    %vm1284 = vcmp.eq.f32.partialorder %v1138, 0.0
    %v1285 = vand.u32 %v1138, 2147483648
    %v1286 = vsel %vm1284, %v1285, %v1283
    %v1287 = vrsqrt.pop %v1139
    %v1288 = vmul.f32 %v1287, %v1139
    %v1289 = vmul.f32 %v1288, %v1287
    %v1290 = vmul.f32 0.5, %v1289
    %v1291 = vsub.f32 1.5, %v1290
    %v1292 = vmul.f32 %v1287, %v1291
    %v1293 = vmul.f32 %v1139, %v1292
    %vm1294 = vcmp.eq.f32.partialorder %v1139, inf
    %v1295 = vsel %vm1294, %v1139, %v1293
    %vm1296 = vcmp.eq.f32.partialorder %v1139, 0.0
    %v1297 = vand.u32 %v1139, 2147483648
    %v1298 = vsel %vm1296, %v1297, %v1295
    %v1299 = vrsqrt.pop %v1140
    %v1300 = vmul.f32 %v1299, %v1140
    %v1301 = vmul.f32 %v1300, %v1299
    %v1302 = vmul.f32 0.5, %v1301
    %v1303 = vsub.f32 1.5, %v1302
    %v1304 = vmul.f32 %v1299, %v1303
    %v1305 = vmul.f32 %v1140, %v1304
    %vm1306 = vcmp.eq.f32.partialorder %v1140, inf
    %v1307 = vsel %vm1306, %v1140, %v1305
    %vm1308 = vcmp.eq.f32.partialorder %v1140, 0.0
    %v1309 = vand.u32 %v1140, 2147483648
    %v1310 = vsel %vm1308, %v1309, %v1307
    %v1311 = vrsqrt.pop %v1141
    %v1312 = vmul.f32 %v1311, %v1141
    %v1313 = vmul.f32 %v1312, %v1311
    %v1314 = vmul.f32 0.5, %v1313
    %v1315 = vsub.f32 1.5, %v1314
    %v1316 = vmul.f32 %v1311, %v1315
    %v1317 = vmul.f32 %v1141, %v1316
    %vm1318 = vcmp.eq.f32.partialorder %v1141, inf
    %v1319 = vsel %vm1318, %v1141, %v1317
    %vm1320 = vcmp.eq.f32.partialorder %v1141, 0.0
    %v1321 = vand.u32 %v1141, 2147483648
    %v1322 = vsel %vm1320, %v1321, %v1319
    %v1323 = vrsqrt.pop %v1142
    %v1324 = vmul.f32 %v1323, %v1142
    %v1325 = vmul.f32 %v1324, %v1323
    %v1326 = vmul.f32 0.5, %v1325
    %v1327 = vsub.f32 1.5, %v1326
    %v1328 = vmul.f32 %v1323, %v1327
    %v1329 = vmul.f32 %v1142, %v1328
    %vm1330 = vcmp.eq.f32.partialorder %v1142, inf
    %v1331 = vsel %vm1330, %v1142, %v1329
    %vm1332 = vcmp.eq.f32.partialorder %v1142, 0.0
    %v1333 = vand.u32 %v1142, 2147483648
    %v1334 = vsel %vm1332, %v1333, %v1331
    %v1335 = vmul.f32 %v1047, 6.2831855
    %v1336 = vmul.f32 %v1048, 6.2831855
    %v1337 = vmul.f32 %v1049, 6.2831855
    %v1338 = vmul.f32 %v1050, 6.2831855
    %v1339 = vmul.f32 %v1051, 6.2831855
    %v1340 = vmul.f32 %v1052, 6.2831855
    %v1341 = vmul.f32 %v1053, 6.2831855
    %v1342 = vmul.f32 %v1054, 6.2831855
    %v1343 = vmul.f32 %v1055, 6.2831855
    %v1344 = vmul.f32 %v1056, 6.2831855
    %v1345 = vmul.f32 %v1057, 6.2831855
    %v1346 = vmul.f32 %v1058, 6.2831855
    %v1347 = vmul.f32 %v1059, 6.2831855
    %v1348 = vmul.f32 %v1060, 6.2831855
    %v1349 = vmul.f32 %v1061, 6.2831855
    %v1350 = vmul.f32 %v1062, 6.2831855
    %v1351 = vand.u32 2147483647, %v1335
    %vm1352 = vcmp.le.f32.partialorder %v1351, 0.7853982
    %vm1353 = vcmp.lt.s32.totalorder %v1335, 0
    %v1354 = vand.u32 %v1335, 2139095040
    %v1355 = vshrl.u32 %v1354, 23
    %v1356 = vsub.s32 %v1355, 127
    %v1357 = vand.u32 2147483647, %v1335
    %v1358 = vand.u32 %v1357, 8388607
    %v1359 = vor.u32 %v1358, 8388608
    %v1360 = vsub.s32 0, %v1359
    %v1361 = vadd.s32 %v1356, 1
    %vm1362 = vcmp.gt.s32.totalorder %v1361, 0
    %v1363 = vsel %vm1362, %v1361, 0
    %v1364 = vshrl.u32 %v1363, 5
    %v1365 = vand.u32 %v1363, 31
    %v1366 = vsub.s32 32, %v1365
    %v1367 = vshrl.u32 683565275, %v1366
    %v1368 = vshll.u32 683565275, %v1365
    %v1369 = vshrl.u32 2475754826, %v1366
    %v1370 = vor.u32 %v1368, %v1369
    %v1371 = vshll.u32 2475754826, %v1365
    %v1372 = vshrl.u32 2131351028, %v1366
    %v1373 = vor.u32 %v1371, %v1372
    %v1374 = vshll.u32 2131351028, %v1365
    %v1375 = vshrl.u32 2102212464, %v1366
    %v1376 = vor.u32 %v1374, %v1375
    %v1377 = vshll.u32 2102212464, %v1365
    %v1378 = vshrl.u32 920167782, %v1366
    %v1379 = vor.u32 %v1377, %v1378
    %v1380 = vshll.u32 920167782, %v1365
    %v1381 = vshrl.u32 1326507024, %v1366
    %v1382 = vor.u32 %v1380, %v1381
    %vm1383 = vcmp.lt.s32.totalorder %v1364, 1
    %vm1384 = vcmp.lt.s32.totalorder %v1364, 2
    %vm1385 = vcmp.lt.s32.totalorder %v1364, 3
    %vm1386 = vcmp.lt.s32.totalorder %v1364, 4
    %v1387 = vsel %vm1383, %v1367, %v1370
    %v1388 = vsel %vm1386, %v1376, 2102212464
    %v1389 = vsel %vm1385, %v1373, %v1388
    %v1390 = vsel %vm1384, %v1387, %v1389
    %v1391 = vsel %vm1383, %v1370, %v1373
    %v1392 = vsel %vm1386, %v1379, 920167782
    %v1393 = vsel %vm1385, %v1376, %v1392
    %v1394 = vsel %vm1384, %v1391, %v1393
    %v1395 = vsel %vm1383, %v1373, %v1376
    %v1396 = vsel %vm1386, %v1382, 1326507024
    %v1397 = vsel %vm1385, %v1379, %v1396
    %v1398 = vsel %vm1384, %v1395, %v1397
    %v1399 = vshll.u32 %v1359, 8
    %v1400 = vand.u32 %v1399, 65535
    %v1401 = vshrl.u32 %v1399, 16
    %v1402 = vand.u32 %v1398, 65535
    %v1403 = vshrl.u32 %v1398, 16
    %v1404 = vmul.u32 %v1400, %v1402
    %v1405 = vmul.u32 %v1400, %v1403
    %v1406 = vmul.u32 %v1401, %v1402
    %v1407 = vmul.u32 %v1401, %v1403
    %v1408 = vshll.u32 %v1405, 16
    %v1409 = vshrl.u32 %v1405, 16
    %v1410 = vshll.u32 %v1406, 16
    %v1411 = vshrl.u32 %v1406, 16
    %vm1412 = vc.u32 %v1404, %v1408
    %v1413 = vsel %vm1412, 1, 0
    %v1414 = vadd.s32 %v1404, %v1408
    %v1415 = vadd.s32 %v1407, %v1413
    %vm1416 = vc.u32 %v1414, %v1410
    %v1417 = vsel %vm1416, 1, 0
    %v1418 = vadd.s32 %v1414, %v1410
    %v1419 = vadd.s32 %v1415, %v1417
    %v1420 = vadd.s32 %v1419, %v1409
    %v1421 = vadd.s32 %v1420, %v1411
    %v1422 = vand.u32 %v1399, 65535
    %v1423 = vshrl.u32 %v1399, 16
    %v1424 = vand.u32 %v1394, 65535
    %v1425 = vshrl.u32 %v1394, 16
    %v1426 = vmul.u32 %v1422, %v1424
    %v1427 = vmul.u32 %v1422, %v1425
    %v1428 = vmul.u32 %v1423, %v1424
    %v1429 = vmul.u32 %v1423, %v1425
    %v1430 = vshll.u32 %v1427, 16
    %v1431 = vshrl.u32 %v1427, 16
    %v1432 = vshll.u32 %v1428, 16
    %v1433 = vshrl.u32 %v1428, 16
    %vm1434 = vc.u32 %v1426, %v1430
    %v1435 = vsel %vm1434, 1, 0
    %v1436 = vadd.s32 %v1426, %v1430
    %v1437 = vadd.s32 %v1429, %v1435
    %vm1438 = vc.u32 %v1436, %v1432
    %v1439 = vsel %vm1438, 1, 0
    %v1440 = vadd.s32 %v1436, %v1432
    %v1441 = vadd.s32 %v1437, %v1439
    %v1442 = vadd.s32 %v1441, %v1431
    %v1443 = vadd.s32 %v1442, %v1433
    %v1444 = vmul.u32 %v1399, %v1390
    %v1445 = vadd.s32 %v1421, %v1440
    %vm1446 = vc.u32 %v1421, %v1440
    %v1447 = vadd.s32 %v1443, 1
    %v1448 = vsel %vm1446, %v1447, %v1443
    %v1449 = vadd.s32 %v1444, %v1448
    %v1450 = vadd.s32 %v1449, 536870912
    %v1451 = vshrl.u32 %v1450, 30
    %v1452 = vshll.u32 %v1451, 30
    %v1453 = vsub.s32 %v1449, %v1452
    %vm1454 = vcmp.lt.s32.totalorder %v1453, 0
    %v1455 = vsub.s32 0, %v1453
    %v1456 = vsel %vm1454, %v1455, %v1453
    %v1457 = vclz %v1456
    %v1458 = vsub.s32 %v1457, 2
    %vm1459 = vcmp.gt.s32.totalorder 0, %v1458
    %v1460 = vsel %vm1459, 0, %v1458
    %v1461 = vsub.s32 32, %v1460
    %v1462 = vshll.u32 %v1453, %v1460
    %v1463 = vshrl.u32 %v1445, %v1461
    %v1464 = vor.u32 %v1462, %v1463
    %v1465 = vsub.s32 4294967266, %v1460
    %v1466 = vadd.s32 %v1465, 127
    %v1467 = vshll.u32 %v1466, 23
    %v1468 = vor.u32 4788187, %v1467
    %v1469 = vand.u32 2147483647, %v1468
    %v1471 = vcvt.s32.f32 %v1464
    %v1472 = vmul.f32 %v1471, %v1469
    %v1473 = vxor.u32 %v1472, 2147483648
    %v1474 = vsel %vm1353, %v1473, %v1472
    %v1475 = vsub.s32 4, %v1451
    %v1476 = vsel %vm1353, %v1475, %v1451
    %v1477 = vsel %vm1352, %v1335, %v1474
    %v1478 = vsel %vm1352, 0, %v1476
    %v1479 = vmul.f32 %v1477, %v1477
    %v1480 = vmul.f32 %v1479, -0.001358992
    %v1481 = vadd.f32 %v1480, 0.041655596
    %v1482 = vmul.f32 %v1479, %v1481
    %v1483 = vadd.f32 %v1482, -0.4999988
    %v1484 = vmul.f32 %v1479, %v1483
    %v1485 = vadd.f32 1.0, %v1484
    %v1486 = vmul.f32 %v1477, %v1477
    %v1487 = vmul.f32 %v1486, -0.00019511016
    %v1488 = vadd.f32 %v1487, 0.008332121
    %v1489 = vmul.f32 %v1486, %v1488
    %v1490 = vadd.f32 %v1489, -0.16666654
    %v1491 = vmul.f32 %v1486, %v1490
    %v1492 = vadd.f32 %v1491, 1.0
    %v1493 = vmul.f32 %v1492, %v1477
    %vm1494 = vweird.f32 %v1335
    %v1495 = vand.u32 %v1478, 3
    %vm1496 = vcmp.lt.s32.totalorder %v1495, 2
    %vm1497 = vcmp.eq.s32.totalorder %v1495, 0
    %v1498 = vxor.u32 %v1493, 2147483648
    %v1499 = vsel %vm1497, %v1485, %v1498
    %vm1500 = vcmp.eq.s32.totalorder %v1495, 2
    %v1501 = vxor.u32 %v1485, 2147483648
    %v1502 = vsel %vm1500, %v1501, %v1493
    %v1503 = vsel %vm1496, %v1499, %v1502
    %v1504 = vsel %vm1494, nan, %v1503
    %v1505 = vand.u32 2147483647, %v1336
    %vm1506 = vcmp.le.f32.partialorder %v1505, 0.7853982
    %vm1507 = vcmp.lt.s32.totalorder %v1336, 0
    %v1508 = vand.u32 %v1336, 2139095040
    %v1509 = vshrl.u32 %v1508, 23
    %v1510 = vsub.s32 %v1509, 127
    %v1511 = vand.u32 2147483647, %v1336
    %v1512 = vand.u32 %v1511, 8388607
    %v1513 = vor.u32 %v1512, 8388608
    %v1514 = vsub.s32 0, %v1513
    %v1515 = vadd.s32 %v1510, 1
    %vm1516 = vcmp.gt.s32.totalorder %v1515, 0
    %v1517 = vsel %vm1516, %v1515, 0
    %v1518 = vshrl.u32 %v1517, 5
    %v1519 = vand.u32 %v1517, 31
    %v1520 = vsub.s32 32, %v1519
    %v1521 = vshrl.u32 683565275, %v1520
    %v1522 = vshll.u32 683565275, %v1519
    %v1523 = vshrl.u32 2475754826, %v1520
    %v1524 = vor.u32 %v1522, %v1523
    %v1525 = vshll.u32 2475754826, %v1519
    %v1526 = vshrl.u32 2131351028, %v1520
    %v1527 = vor.u32 %v1525, %v1526
    %v1528 = vshll.u32 2131351028, %v1519
    %v1529 = vshrl.u32 2102212464, %v1520
    %v1530 = vor.u32 %v1528, %v1529
    %v1531 = vshll.u32 2102212464, %v1519
    %v1532 = vshrl.u32 920167782, %v1520
    %v1533 = vor.u32 %v1531, %v1532
    %v1534 = vshll.u32 920167782, %v1519
    %v1535 = vshrl.u32 1326507024, %v1520
    %v1536 = vor.u32 %v1534, %v1535
    %vm1537 = vcmp.lt.s32.totalorder %v1518, 1
    %vm1538 = vcmp.lt.s32.totalorder %v1518, 2
    %vm1539 = vcmp.lt.s32.totalorder %v1518, 3
    %vm1540 = vcmp.lt.s32.totalorder %v1518, 4
    %v1541 = vsel %vm1537, %v1521, %v1524
    %v1542 = vsel %vm1540, %v1530, 2102212464
    %v1543 = vsel %vm1539, %v1527, %v1542
    %v1544 = vsel %vm1538, %v1541, %v1543
    %v1545 = vsel %vm1537, %v1524, %v1527
    %v1546 = vsel %vm1540, %v1533, 920167782
    %v1547 = vsel %vm1539, %v1530, %v1546
    %v1548 = vsel %vm1538, %v1545, %v1547
    %v1549 = vsel %vm1537, %v1527, %v1530
    %v1550 = vsel %vm1540, %v1536, 1326507024
    %v1551 = vsel %vm1539, %v1533, %v1550
    %v1552 = vsel %vm1538, %v1549, %v1551
    %v1553 = vshll.u32 %v1513, 8
    %v1554 = vand.u32 %v1553, 65535
    %v1555 = vshrl.u32 %v1553, 16
    %v1556 = vand.u32 %v1552, 65535
    %v1557 = vshrl.u32 %v1552, 16
    %v1558 = vmul.u32 %v1554, %v1556
    %v1559 = vmul.u32 %v1554, %v1557
    %v1560 = vmul.u32 %v1555, %v1556
    %v1561 = vmul.u32 %v1555, %v1557
    %v1562 = vshll.u32 %v1559, 16
    %v1563 = vshrl.u32 %v1559, 16
    %v1564 = vshll.u32 %v1560, 16
    %v1565 = vshrl.u32 %v1560, 16
    %vm1566 = vc.u32 %v1558, %v1562
    %v1567 = vsel %vm1566, 1, 0
    %v1568 = vadd.s32 %v1558, %v1562
    %v1569 = vadd.s32 %v1561, %v1567
    %vm1570 = vc.u32 %v1568, %v1564
    %v1571 = vsel %vm1570, 1, 0
    %v1572 = vadd.s32 %v1568, %v1564
    %v1573 = vadd.s32 %v1569, %v1571
    %v1574 = vadd.s32 %v1573, %v1563
    %v1575 = vadd.s32 %v1574, %v1565
    %v1576 = vand.u32 %v1553, 65535
    %v1577 = vshrl.u32 %v1553, 16
    %v1578 = vand.u32 %v1548, 65535
    %v1579 = vshrl.u32 %v1548, 16
    %v1580 = vmul.u32 %v1576, %v1578
    %v1581 = vmul.u32 %v1576, %v1579
    %v1582 = vmul.u32 %v1577, %v1578
    %v1583 = vmul.u32 %v1577, %v1579
    %v1584 = vshll.u32 %v1581, 16
    %v1585 = vshrl.u32 %v1581, 16
    %v1586 = vshll.u32 %v1582, 16
    %v1587 = vshrl.u32 %v1582, 16
    %vm1588 = vc.u32 %v1580, %v1584
    %v1589 = vsel %vm1588, 1, 0
    %v1590 = vadd.s32 %v1580, %v1584
    %v1591 = vadd.s32 %v1583, %v1589
    %vm1592 = vc.u32 %v1590, %v1586
    %v1593 = vsel %vm1592, 1, 0
    %v1594 = vadd.s32 %v1590, %v1586
    %v1595 = vadd.s32 %v1591, %v1593
    %v1596 = vadd.s32 %v1595, %v1585
    %v1597 = vadd.s32 %v1596, %v1587
    %v1598 = vmul.u32 %v1553, %v1544
    %v1599 = vadd.s32 %v1575, %v1594
    %vm1600 = vc.u32 %v1575, %v1594
    %v1601 = vadd.s32 %v1597, 1
    %v1602 = vsel %vm1600, %v1601, %v1597
    %v1603 = vadd.s32 %v1598, %v1602
    %v1604 = vadd.s32 %v1603, 536870912
    %v1605 = vshrl.u32 %v1604, 30
    %v1606 = vshll.u32 %v1605, 30
    %v1607 = vsub.s32 %v1603, %v1606
    %vm1608 = vcmp.lt.s32.totalorder %v1607, 0
    %v1609 = vsub.s32 0, %v1607
    %v1610 = vsel %vm1608, %v1609, %v1607
    %v1611 = vclz %v1610
    %v1612 = vsub.s32 %v1611, 2
    %vm1613 = vcmp.gt.s32.totalorder 0, %v1612
    %v1614 = vsel %vm1613, 0, %v1612
    %v1615 = vsub.s32 32, %v1614
    %v1616 = vshll.u32 %v1607, %v1614
    %v1617 = vshrl.u32 %v1599, %v1615
    %v1618 = vor.u32 %v1616, %v1617
    %v1619 = vsub.s32 4294967266, %v1614
    %v1620 = vadd.s32 %v1619, 127
    %v1621 = vshll.u32 %v1620, 23
    %v1622 = vor.u32 4788187, %v1621
    %v1623 = vand.u32 2147483647, %v1622
    %v1625 = vcvt.s32.f32 %v1618
    %v1626 = vmul.f32 %v1625, %v1623
    %v1627 = vxor.u32 %v1626, 2147483648
    %v1628 = vsel %vm1507, %v1627, %v1626
    %v1629 = vsub.s32 4, %v1605
    %v1630 = vsel %vm1507, %v1629, %v1605
    %v1631 = vsel %vm1506, %v1336, %v1628
    %v1632 = vsel %vm1506, 0, %v1630
    %v1633 = vmul.f32 %v1631, %v1631
    %v1634 = vmul.f32 %v1633, -0.001358992
    %v1635 = vadd.f32 %v1634, 0.041655596
    %v1636 = vmul.f32 %v1633, %v1635
    %v1637 = vadd.f32 %v1636, -0.4999988
    %v1638 = vmul.f32 %v1633, %v1637
    %v1639 = vadd.f32 1.0, %v1638
    %v1640 = vmul.f32 %v1631, %v1631
    %v1641 = vmul.f32 %v1640, -0.00019511016
    %v1642 = vadd.f32 %v1641, 0.008332121
    %v1643 = vmul.f32 %v1640, %v1642
    %v1644 = vadd.f32 %v1643, -0.16666654
    %v1645 = vmul.f32 %v1640, %v1644
    %v1646 = vadd.f32 %v1645, 1.0
    %v1647 = vmul.f32 %v1646, %v1631
    %vm1648 = vweird.f32 %v1336
    %v1649 = vand.u32 %v1632, 3
    %vm1650 = vcmp.lt.s32.totalorder %v1649, 2
    %vm1651 = vcmp.eq.s32.totalorder %v1649, 0
    %v1652 = vxor.u32 %v1647, 2147483648
    %v1653 = vsel %vm1651, %v1639, %v1652
    %vm1654 = vcmp.eq.s32.totalorder %v1649, 2
    %v1655 = vxor.u32 %v1639, 2147483648
    %v1656 = vsel %vm1654, %v1655, %v1647
    %v1657 = vsel %vm1650, %v1653, %v1656
    %v1658 = vsel %vm1648, nan, %v1657
    %v1659 = vand.u32 2147483647, %v1337
    %vm1660 = vcmp.le.f32.partialorder %v1659, 0.7853982
    %vm1661 = vcmp.lt.s32.totalorder %v1337, 0
    %v1662 = vand.u32 %v1337, 2139095040
    %v1663 = vshrl.u32 %v1662, 23
    %v1664 = vsub.s32 %v1663, 127
    %v1665 = vand.u32 2147483647, %v1337
    %v1666 = vand.u32 %v1665, 8388607
    %v1667 = vor.u32 %v1666, 8388608
    %v1668 = vsub.s32 0, %v1667
    %v1669 = vadd.s32 %v1664, 1
    %vm1670 = vcmp.gt.s32.totalorder %v1669, 0
    %v1671 = vsel %vm1670, %v1669, 0
    %v1672 = vshrl.u32 %v1671, 5
    %v1673 = vand.u32 %v1671, 31
    %v1674 = vsub.s32 32, %v1673
    %v1675 = vshrl.u32 683565275, %v1674
    %v1676 = vshll.u32 683565275, %v1673
    %v1677 = vshrl.u32 2475754826, %v1674
    %v1678 = vor.u32 %v1676, %v1677
    %v1679 = vshll.u32 2475754826, %v1673
    %v1680 = vshrl.u32 2131351028, %v1674
    %v1681 = vor.u32 %v1679, %v1680
    %v1682 = vshll.u32 2131351028, %v1673
    %v1683 = vshrl.u32 2102212464, %v1674
    %v1684 = vor.u32 %v1682, %v1683
    %v1685 = vshll.u32 2102212464, %v1673
    %v1686 = vshrl.u32 920167782, %v1674
    %v1687 = vor.u32 %v1685, %v1686
    %v1688 = vshll.u32 920167782, %v1673
    %v1689 = vshrl.u32 1326507024, %v1674
    %v1690 = vor.u32 %v1688, %v1689
    %vm1691 = vcmp.lt.s32.totalorder %v1672, 1
    %vm1692 = vcmp.lt.s32.totalorder %v1672, 2
    %vm1693 = vcmp.lt.s32.totalorder %v1672, 3
    %vm1694 = vcmp.lt.s32.totalorder %v1672, 4
    %v1695 = vsel %vm1691, %v1675, %v1678
    %v1696 = vsel %vm1694, %v1684, 2102212464
    %v1697 = vsel %vm1693, %v1681, %v1696
    %v1698 = vsel %vm1692, %v1695, %v1697
    %v1699 = vsel %vm1691, %v1678, %v1681
    %v1700 = vsel %vm1694, %v1687, 920167782
    %v1701 = vsel %vm1693, %v1684, %v1700
    %v1702 = vsel %vm1692, %v1699, %v1701
    %v1703 = vsel %vm1691, %v1681, %v1684
    %v1704 = vsel %vm1694, %v1690, 1326507024
    %v1705 = vsel %vm1693, %v1687, %v1704
    %v1706 = vsel %vm1692, %v1703, %v1705
    %v1707 = vshll.u32 %v1667, 8
    %v1708 = vand.u32 %v1707, 65535
    %v1709 = vshrl.u32 %v1707, 16
    %v1710 = vand.u32 %v1706, 65535
    %v1711 = vshrl.u32 %v1706, 16
    %v1712 = vmul.u32 %v1708, %v1710
    %v1713 = vmul.u32 %v1708, %v1711
    %v1714 = vmul.u32 %v1709, %v1710
    %v1715 = vmul.u32 %v1709, %v1711
    %v1716 = vshll.u32 %v1713, 16
    %v1717 = vshrl.u32 %v1713, 16
    %v1718 = vshll.u32 %v1714, 16
    %v1719 = vshrl.u32 %v1714, 16
    %vm1720 = vc.u32 %v1712, %v1716
    %v1721 = vsel %vm1720, 1, 0
    %v1722 = vadd.s32 %v1712, %v1716
    %v1723 = vadd.s32 %v1715, %v1721
    %vm1724 = vc.u32 %v1722, %v1718
    %v1725 = vsel %vm1724, 1, 0
    %v1726 = vadd.s32 %v1722, %v1718
    %v1727 = vadd.s32 %v1723, %v1725
    %v1728 = vadd.s32 %v1727, %v1717
    %v1729 = vadd.s32 %v1728, %v1719
    %v1730 = vand.u32 %v1707, 65535
    %v1731 = vshrl.u32 %v1707, 16
    %v1732 = vand.u32 %v1702, 65535
    %v1733 = vshrl.u32 %v1702, 16
    %v1734 = vmul.u32 %v1730, %v1732
    %v1735 = vmul.u32 %v1730, %v1733
    %v1736 = vmul.u32 %v1731, %v1732
    %v1737 = vmul.u32 %v1731, %v1733
    %v1738 = vshll.u32 %v1735, 16
    %v1739 = vshrl.u32 %v1735, 16
    %v1740 = vshll.u32 %v1736, 16
    %v1741 = vshrl.u32 %v1736, 16
    %vm1742 = vc.u32 %v1734, %v1738
    %v1743 = vsel %vm1742, 1, 0
    %v1744 = vadd.s32 %v1734, %v1738
    %v1745 = vadd.s32 %v1737, %v1743
    %vm1746 = vc.u32 %v1744, %v1740
    %v1747 = vsel %vm1746, 1, 0
    %v1748 = vadd.s32 %v1744, %v1740
    %v1749 = vadd.s32 %v1745, %v1747
    %v1750 = vadd.s32 %v1749, %v1739
    %v1751 = vadd.s32 %v1750, %v1741
    %v1752 = vmul.u32 %v1707, %v1698
    %v1753 = vadd.s32 %v1729, %v1748
    %vm1754 = vc.u32 %v1729, %v1748
    %v1755 = vadd.s32 %v1751, 1
    %v1756 = vsel %vm1754, %v1755, %v1751
    %v1757 = vadd.s32 %v1752, %v1756
    %v1758 = vadd.s32 %v1757, 536870912
    %v1759 = vshrl.u32 %v1758, 30
    %v1760 = vshll.u32 %v1759, 30
    %v1761 = vsub.s32 %v1757, %v1760
    %vm1762 = vcmp.lt.s32.totalorder %v1761, 0
    %v1763 = vsub.s32 0, %v1761
    %v1764 = vsel %vm1762, %v1763, %v1761
    %v1765 = vclz %v1764
    %v1766 = vsub.s32 %v1765, 2
    %vm1767 = vcmp.gt.s32.totalorder 0, %v1766
    %v1768 = vsel %vm1767, 0, %v1766
    %v1769 = vsub.s32 32, %v1768
    %v1770 = vshll.u32 %v1761, %v1768
    %v1771 = vshrl.u32 %v1753, %v1769
    %v1772 = vor.u32 %v1770, %v1771
    %v1773 = vsub.s32 4294967266, %v1768
    %v1774 = vadd.s32 %v1773, 127
    %v1775 = vshll.u32 %v1774, 23
    %v1776 = vor.u32 4788187, %v1775
    %v1777 = vand.u32 2147483647, %v1776
    %v1779 = vcvt.s32.f32 %v1772
    %v1780 = vmul.f32 %v1779, %v1777
    %v1781 = vxor.u32 %v1780, 2147483648
    %v1782 = vsel %vm1661, %v1781, %v1780
    %v1783 = vsub.s32 4, %v1759
    %v1784 = vsel %vm1661, %v1783, %v1759
    %v1785 = vsel %vm1660, %v1337, %v1782
    %v1786 = vsel %vm1660, 0, %v1784
    %v1787 = vmul.f32 %v1785, %v1785
    %v1788 = vmul.f32 %v1787, -0.001358992
    %v1789 = vadd.f32 %v1788, 0.041655596
    %v1790 = vmul.f32 %v1787, %v1789
    %v1791 = vadd.f32 %v1790, -0.4999988
    %v1792 = vmul.f32 %v1787, %v1791
    %v1793 = vadd.f32 1.0, %v1792
    %v1794 = vmul.f32 %v1785, %v1785
    %v1795 = vmul.f32 %v1794, -0.00019511016
    %v1796 = vadd.f32 %v1795, 0.008332121
    %v1797 = vmul.f32 %v1794, %v1796
    %v1798 = vadd.f32 %v1797, -0.16666654
    %v1799 = vmul.f32 %v1794, %v1798
    %v1800 = vadd.f32 %v1799, 1.0
    %v1801 = vmul.f32 %v1800, %v1785
    %vm1802 = vweird.f32 %v1337
    %v1803 = vand.u32 %v1786, 3
    %vm1804 = vcmp.lt.s32.totalorder %v1803, 2
    %vm1805 = vcmp.eq.s32.totalorder %v1803, 0
    %v1806 = vxor.u32 %v1801, 2147483648
    %v1807 = vsel %vm1805, %v1793, %v1806
    %vm1808 = vcmp.eq.s32.totalorder %v1803, 2
    %v1809 = vxor.u32 %v1793, 2147483648
    %v1810 = vsel %vm1808, %v1809, %v1801
    %v1811 = vsel %vm1804, %v1807, %v1810
    %v1812 = vsel %vm1802, nan, %v1811
    %v1813 = vand.u32 2147483647, %v1338
    %vm1814 = vcmp.le.f32.partialorder %v1813, 0.7853982
    %vm1815 = vcmp.lt.s32.totalorder %v1338, 0
    %v1816 = vand.u32 %v1338, 2139095040
    %v1817 = vshrl.u32 %v1816, 23
    %v1818 = vsub.s32 %v1817, 127
    %v1819 = vand.u32 2147483647, %v1338
    %v1820 = vand.u32 %v1819, 8388607
    %v1821 = vor.u32 %v1820, 8388608
    %v1822 = vsub.s32 0, %v1821
    %v1823 = vadd.s32 %v1818, 1
    %vm1824 = vcmp.gt.s32.totalorder %v1823, 0
    %v1825 = vsel %vm1824, %v1823, 0
    %v1826 = vshrl.u32 %v1825, 5
    %v1827 = vand.u32 %v1825, 31
    %v1828 = vsub.s32 32, %v1827
    %v1829 = vshrl.u32 683565275, %v1828
    %v1830 = vshll.u32 683565275, %v1827
    %v1831 = vshrl.u32 2475754826, %v1828
    %v1832 = vor.u32 %v1830, %v1831
    %v1833 = vshll.u32 2475754826, %v1827
    %v1834 = vshrl.u32 2131351028, %v1828
    %v1835 = vor.u32 %v1833, %v1834
    %v1836 = vshll.u32 2131351028, %v1827
    %v1837 = vshrl.u32 2102212464, %v1828
    %v1838 = vor.u32 %v1836, %v1837
    %v1839 = vshll.u32 2102212464, %v1827
    %v1840 = vshrl.u32 920167782, %v1828
    %v1841 = vor.u32 %v1839, %v1840
    %v1842 = vshll.u32 920167782, %v1827
    %v1843 = vshrl.u32 1326507024, %v1828
    %v1844 = vor.u32 %v1842, %v1843
    %vm1845 = vcmp.lt.s32.totalorder %v1826, 1
    %vm1846 = vcmp.lt.s32.totalorder %v1826, 2
    %vm1847 = vcmp.lt.s32.totalorder %v1826, 3
    %vm1848 = vcmp.lt.s32.totalorder %v1826, 4
    %v1849 = vsel %vm1845, %v1829, %v1832
    %v1850 = vsel %vm1848, %v1838, 2102212464
    %v1851 = vsel %vm1847, %v1835, %v1850
    %v1852 = vsel %vm1846, %v1849, %v1851
    %v1853 = vsel %vm1845, %v1832, %v1835
    %v1854 = vsel %vm1848, %v1841, 920167782
    %v1855 = vsel %vm1847, %v1838, %v1854
    %v1856 = vsel %vm1846, %v1853, %v1855
    %v1857 = vsel %vm1845, %v1835, %v1838
    %v1858 = vsel %vm1848, %v1844, 1326507024
    %v1859 = vsel %vm1847, %v1841, %v1858
    %v1860 = vsel %vm1846, %v1857, %v1859
    %v1861 = vshll.u32 %v1821, 8
    %v1862 = vand.u32 %v1861, 65535
    %v1863 = vshrl.u32 %v1861, 16
    %v1864 = vand.u32 %v1860, 65535
    %v1865 = vshrl.u32 %v1860, 16
    %v1866 = vmul.u32 %v1862, %v1864
    %v1867 = vmul.u32 %v1862, %v1865
    %v1868 = vmul.u32 %v1863, %v1864
    %v1869 = vmul.u32 %v1863, %v1865
    %v1870 = vshll.u32 %v1867, 16
    %v1871 = vshrl.u32 %v1867, 16
    %v1872 = vshll.u32 %v1868, 16
    %v1873 = vshrl.u32 %v1868, 16
    %vm1874 = vc.u32 %v1866, %v1870
    %v1875 = vsel %vm1874, 1, 0
    %v1876 = vadd.s32 %v1866, %v1870
    %v1877 = vadd.s32 %v1869, %v1875
    %vm1878 = vc.u32 %v1876, %v1872
    %v1879 = vsel %vm1878, 1, 0
    %v1880 = vadd.s32 %v1876, %v1872
    %v1881 = vadd.s32 %v1877, %v1879
    %v1882 = vadd.s32 %v1881, %v1871
    %v1883 = vadd.s32 %v1882, %v1873
    %v1884 = vand.u32 %v1861, 65535
    %v1885 = vshrl.u32 %v1861, 16
    %v1886 = vand.u32 %v1856, 65535
    %v1887 = vshrl.u32 %v1856, 16
    %v1888 = vmul.u32 %v1884, %v1886
    %v1889 = vmul.u32 %v1884, %v1887
    %v1890 = vmul.u32 %v1885, %v1886
    %v1891 = vmul.u32 %v1885, %v1887
    %v1892 = vshll.u32 %v1889, 16
    %v1893 = vshrl.u32 %v1889, 16
    %v1894 = vshll.u32 %v1890, 16
    %v1895 = vshrl.u32 %v1890, 16
    %vm1896 = vc.u32 %v1888, %v1892
    %v1897 = vsel %vm1896, 1, 0
    %v1898 = vadd.s32 %v1888, %v1892
    %v1899 = vadd.s32 %v1891, %v1897
    %vm1900 = vc.u32 %v1898, %v1894
    %v1901 = vsel %vm1900, 1, 0
    %v1902 = vadd.s32 %v1898, %v1894
    %v1903 = vadd.s32 %v1899, %v1901
    %v1904 = vadd.s32 %v1903, %v1893
    %v1905 = vadd.s32 %v1904, %v1895
    %v1906 = vmul.u32 %v1861, %v1852
    %v1907 = vadd.s32 %v1883, %v1902
    %vm1908 = vc.u32 %v1883, %v1902
    %v1909 = vadd.s32 %v1905, 1
    %v1910 = vsel %vm1908, %v1909, %v1905
    %v1911 = vadd.s32 %v1906, %v1910
    %v1912 = vadd.s32 %v1911, 536870912
    %v1913 = vshrl.u32 %v1912, 30
    %v1914 = vshll.u32 %v1913, 30
    %v1915 = vsub.s32 %v1911, %v1914
    %vm1916 = vcmp.lt.s32.totalorder %v1915, 0
    %v1917 = vsub.s32 0, %v1915
    %v1918 = vsel %vm1916, %v1917, %v1915
    %v1919 = vclz %v1918
    %v1920 = vsub.s32 %v1919, 2
    %vm1921 = vcmp.gt.s32.totalorder 0, %v1920
    %v1922 = vsel %vm1921, 0, %v1920
    %v1923 = vsub.s32 32, %v1922
    %v1924 = vshll.u32 %v1915, %v1922
    %v1925 = vshrl.u32 %v1907, %v1923
    %v1926 = vor.u32 %v1924, %v1925
    %v1927 = vsub.s32 4294967266, %v1922
    %v1928 = vadd.s32 %v1927, 127
    %v1929 = vshll.u32 %v1928, 23
    %v1930 = vor.u32 4788187, %v1929
    %v1931 = vand.u32 2147483647, %v1930
    %v1933 = vcvt.s32.f32 %v1926
    %v1934 = vmul.f32 %v1933, %v1931
    %v1935 = vxor.u32 %v1934, 2147483648
    %v1936 = vsel %vm1815, %v1935, %v1934
    %v1937 = vsub.s32 4, %v1913
    %v1938 = vsel %vm1815, %v1937, %v1913
    %v1939 = vsel %vm1814, %v1338, %v1936
    %v1940 = vsel %vm1814, 0, %v1938
    %v1941 = vmul.f32 %v1939, %v1939
    %v1942 = vmul.f32 %v1941, -0.001358992
    %v1943 = vadd.f32 %v1942, 0.041655596
    %v1944 = vmul.f32 %v1941, %v1943
    %v1945 = vadd.f32 %v1944, -0.4999988
    %v1946 = vmul.f32 %v1941, %v1945
    %v1947 = vadd.f32 1.0, %v1946
    %v1948 = vmul.f32 %v1939, %v1939
    %v1949 = vmul.f32 %v1948, -0.00019511016
    %v1950 = vadd.f32 %v1949, 0.008332121
    %v1951 = vmul.f32 %v1948, %v1950
    %v1952 = vadd.f32 %v1951, -0.16666654
    %v1953 = vmul.f32 %v1948, %v1952
    %v1954 = vadd.f32 %v1953, 1.0
    %v1955 = vmul.f32 %v1954, %v1939
    %vm1956 = vweird.f32 %v1338
    %v1957 = vand.u32 %v1940, 3
    %vm1958 = vcmp.lt.s32.totalorder %v1957, 2
    %vm1959 = vcmp.eq.s32.totalorder %v1957, 0
    %v1960 = vxor.u32 %v1955, 2147483648
    %v1961 = vsel %vm1959, %v1947, %v1960
    %vm1962 = vcmp.eq.s32.totalorder %v1957, 2
    %v1963 = vxor.u32 %v1947, 2147483648
    %v1964 = vsel %vm1962, %v1963, %v1955
    %v1965 = vsel %vm1958, %v1961, %v1964
    %v1966 = vsel %vm1956, nan, %v1965
    %v1967 = vand.u32 2147483647, %v1339
    %vm1968 = vcmp.le.f32.partialorder %v1967, 0.7853982
    %vm1969 = vcmp.lt.s32.totalorder %v1339, 0
    %v1970 = vand.u32 %v1339, 2139095040
    %v1971 = vshrl.u32 %v1970, 23
    %v1972 = vsub.s32 %v1971, 127
    %v1973 = vand.u32 2147483647, %v1339
    %v1974 = vand.u32 %v1973, 8388607
    %v1975 = vor.u32 %v1974, 8388608
    %v1976 = vsub.s32 0, %v1975
    %v1977 = vadd.s32 %v1972, 1
    %vm1978 = vcmp.gt.s32.totalorder %v1977, 0
    %v1979 = vsel %vm1978, %v1977, 0
    %v1980 = vshrl.u32 %v1979, 5
    %v1981 = vand.u32 %v1979, 31
    %v1982 = vsub.s32 32, %v1981
    %v1983 = vshrl.u32 683565275, %v1982
    %v1984 = vshll.u32 683565275, %v1981
    %v1985 = vshrl.u32 2475754826, %v1982
    %v1986 = vor.u32 %v1984, %v1985
    %v1987 = vshll.u32 2475754826, %v1981
    %v1988 = vshrl.u32 2131351028, %v1982
    %v1989 = vor.u32 %v1987, %v1988
    %v1990 = vshll.u32 2131351028, %v1981
    %v1991 = vshrl.u32 2102212464, %v1982
    %v1992 = vor.u32 %v1990, %v1991
    %v1993 = vshll.u32 2102212464, %v1981
    %v1994 = vshrl.u32 920167782, %v1982
    %v1995 = vor.u32 %v1993, %v1994
    %v1996 = vshll.u32 920167782, %v1981
    %v1997 = vshrl.u32 1326507024, %v1982
    %v1998 = vor.u32 %v1996, %v1997
    %vm1999 = vcmp.lt.s32.totalorder %v1980, 1
    %vm2000 = vcmp.lt.s32.totalorder %v1980, 2
    %vm2001 = vcmp.lt.s32.totalorder %v1980, 3
    %vm2002 = vcmp.lt.s32.totalorder %v1980, 4
    %v2003 = vsel %vm1999, %v1983, %v1986
    %v2004 = vsel %vm2002, %v1992, 2102212464
    %v2005 = vsel %vm2001, %v1989, %v2004
    %v2006 = vsel %vm2000, %v2003, %v2005
    %v2007 = vsel %vm1999, %v1986, %v1989
    %v2008 = vsel %vm2002, %v1995, 920167782
    %v2009 = vsel %vm2001, %v1992, %v2008
    %v2010 = vsel %vm2000, %v2007, %v2009
    %v2011 = vsel %vm1999, %v1989, %v1992
    %v2012 = vsel %vm2002, %v1998, 1326507024
    %v2013 = vsel %vm2001, %v1995, %v2012
    %v2014 = vsel %vm2000, %v2011, %v2013
    %v2015 = vshll.u32 %v1975, 8
    %v2016 = vand.u32 %v2015, 65535
    %v2017 = vshrl.u32 %v2015, 16
    %v2018 = vand.u32 %v2014, 65535
    %v2019 = vshrl.u32 %v2014, 16
    %v2020 = vmul.u32 %v2016, %v2018
    %v2021 = vmul.u32 %v2016, %v2019
    %v2022 = vmul.u32 %v2017, %v2018
    %v2023 = vmul.u32 %v2017, %v2019
    %v2024 = vshll.u32 %v2021, 16
    %v2025 = vshrl.u32 %v2021, 16
    %v2026 = vshll.u32 %v2022, 16
    %v2027 = vshrl.u32 %v2022, 16
    %vm2028 = vc.u32 %v2020, %v2024
    %v2029 = vsel %vm2028, 1, 0
    %v2030 = vadd.s32 %v2020, %v2024
    %v2031 = vadd.s32 %v2023, %v2029
    %vm2032 = vc.u32 %v2030, %v2026
    %v2033 = vsel %vm2032, 1, 0
    %v2034 = vadd.s32 %v2030, %v2026
    %v2035 = vadd.s32 %v2031, %v2033
    %v2036 = vadd.s32 %v2035, %v2025
    %v2037 = vadd.s32 %v2036, %v2027
    %v2038 = vand.u32 %v2015, 65535
    %v2039 = vshrl.u32 %v2015, 16
    %v2040 = vand.u32 %v2010, 65535
    %v2041 = vshrl.u32 %v2010, 16
    %v2042 = vmul.u32 %v2038, %v2040
    %v2043 = vmul.u32 %v2038, %v2041
    %v2044 = vmul.u32 %v2039, %v2040
    %v2045 = vmul.u32 %v2039, %v2041
    %v2046 = vshll.u32 %v2043, 16
    %v2047 = vshrl.u32 %v2043, 16
    %v2048 = vshll.u32 %v2044, 16
    %v2049 = vshrl.u32 %v2044, 16
    %vm2050 = vc.u32 %v2042, %v2046
    %v2051 = vsel %vm2050, 1, 0
    %v2052 = vadd.s32 %v2042, %v2046
    %v2053 = vadd.s32 %v2045, %v2051
    %vm2054 = vc.u32 %v2052, %v2048
    %v2055 = vsel %vm2054, 1, 0
    %v2056 = vadd.s32 %v2052, %v2048
    %v2057 = vadd.s32 %v2053, %v2055
    %v2058 = vadd.s32 %v2057, %v2047
    %v2059 = vadd.s32 %v2058, %v2049
    %v2060 = vmul.u32 %v2015, %v2006
    %v2061 = vadd.s32 %v2037, %v2056
    %vm2062 = vc.u32 %v2037, %v2056
    %v2063 = vadd.s32 %v2059, 1
    %v2064 = vsel %vm2062, %v2063, %v2059
    %v2065 = vadd.s32 %v2060, %v2064
    %v2066 = vadd.s32 %v2065, 536870912
    %v2067 = vshrl.u32 %v2066, 30
    %v2068 = vshll.u32 %v2067, 30
    %v2069 = vsub.s32 %v2065, %v2068
    %vm2070 = vcmp.lt.s32.totalorder %v2069, 0
    %v2071 = vsub.s32 0, %v2069
    %v2072 = vsel %vm2070, %v2071, %v2069
    %v2073 = vclz %v2072
    %v2074 = vsub.s32 %v2073, 2
    %vm2075 = vcmp.gt.s32.totalorder 0, %v2074
    %v2076 = vsel %vm2075, 0, %v2074
    %v2077 = vsub.s32 32, %v2076
    %v2078 = vshll.u32 %v2069, %v2076
    %v2079 = vshrl.u32 %v2061, %v2077
    %v2080 = vor.u32 %v2078, %v2079
    %v2081 = vsub.s32 4294967266, %v2076
    %v2082 = vadd.s32 %v2081, 127
    %v2083 = vshll.u32 %v2082, 23
    %v2084 = vor.u32 4788187, %v2083
    %v2085 = vand.u32 2147483647, %v2084
    %v2087 = vcvt.s32.f32 %v2080
    %v2088 = vmul.f32 %v2087, %v2085
    %v2089 = vxor.u32 %v2088, 2147483648
    %v2090 = vsel %vm1969, %v2089, %v2088
    %v2091 = vsub.s32 4, %v2067
    %v2092 = vsel %vm1969, %v2091, %v2067
    %v2093 = vsel %vm1968, %v1339, %v2090
    %v2094 = vsel %vm1968, 0, %v2092
    %v2095 = vmul.f32 %v2093, %v2093
    %v2096 = vmul.f32 %v2095, -0.001358992
    %v2097 = vadd.f32 %v2096, 0.041655596
    %v2098 = vmul.f32 %v2095, %v2097
    %v2099 = vadd.f32 %v2098, -0.4999988
    %v2100 = vmul.f32 %v2095, %v2099
    %v2101 = vadd.f32 1.0, %v2100
    %v2102 = vmul.f32 %v2093, %v2093
    %v2103 = vmul.f32 %v2102, -0.00019511016
    %v2104 = vadd.f32 %v2103, 0.008332121
    %v2105 = vmul.f32 %v2102, %v2104
    %v2106 = vadd.f32 %v2105, -0.16666654
    %v2107 = vmul.f32 %v2102, %v2106
    %v2108 = vadd.f32 %v2107, 1.0
    %v2109 = vmul.f32 %v2108, %v2093
    %vm2110 = vweird.f32 %v1339
    %v2111 = vand.u32 %v2094, 3
    %vm2112 = vcmp.lt.s32.totalorder %v2111, 2
    %vm2113 = vcmp.eq.s32.totalorder %v2111, 0
    %v2114 = vxor.u32 %v2109, 2147483648
    %v2115 = vsel %vm2113, %v2101, %v2114
    %vm2116 = vcmp.eq.s32.totalorder %v2111, 2
    %v2117 = vxor.u32 %v2101, 2147483648
    %v2118 = vsel %vm2116, %v2117, %v2109
    %v2119 = vsel %vm2112, %v2115, %v2118
    %v2120 = vsel %vm2110, nan, %v2119
    %v2121 = vand.u32 2147483647, %v1340
    %vm2122 = vcmp.le.f32.partialorder %v2121, 0.7853982
    %vm2123 = vcmp.lt.s32.totalorder %v1340, 0
    %v2124 = vand.u32 %v1340, 2139095040
    %v2125 = vshrl.u32 %v2124, 23
    %v2126 = vsub.s32 %v2125, 127
    %v2127 = vand.u32 2147483647, %v1340
    %v2128 = vand.u32 %v2127, 8388607
    %v2129 = vor.u32 %v2128, 8388608
    %v2130 = vsub.s32 0, %v2129
    %v2131 = vadd.s32 %v2126, 1
    %vm2132 = vcmp.gt.s32.totalorder %v2131, 0
    %v2133 = vsel %vm2132, %v2131, 0
    %v2134 = vshrl.u32 %v2133, 5
    %v2135 = vand.u32 %v2133, 31
    %v2136 = vsub.s32 32, %v2135
    %v2137 = vshrl.u32 683565275, %v2136
    %v2138 = vshll.u32 683565275, %v2135
    %v2139 = vshrl.u32 2475754826, %v2136
    %v2140 = vor.u32 %v2138, %v2139
    %v2141 = vshll.u32 2475754826, %v2135
    %v2142 = vshrl.u32 2131351028, %v2136
    %v2143 = vor.u32 %v2141, %v2142
    %v2144 = vshll.u32 2131351028, %v2135
    %v2145 = vshrl.u32 2102212464, %v2136
    %v2146 = vor.u32 %v2144, %v2145
    %v2147 = vshll.u32 2102212464, %v2135
    %v2148 = vshrl.u32 920167782, %v2136
    %v2149 = vor.u32 %v2147, %v2148
    %v2150 = vshll.u32 920167782, %v2135
    %v2151 = vshrl.u32 1326507024, %v2136
    %v2152 = vor.u32 %v2150, %v2151
    %vm2153 = vcmp.lt.s32.totalorder %v2134, 1
    %vm2154 = vcmp.lt.s32.totalorder %v2134, 2
    %vm2155 = vcmp.lt.s32.totalorder %v2134, 3
    %vm2156 = vcmp.lt.s32.totalorder %v2134, 4
    %v2157 = vsel %vm2153, %v2137, %v2140
    %v2158 = vsel %vm2156, %v2146, 2102212464
    %v2159 = vsel %vm2155, %v2143, %v2158
    %v2160 = vsel %vm2154, %v2157, %v2159
    %v2161 = vsel %vm2153, %v2140, %v2143
    %v2162 = vsel %vm2156, %v2149, 920167782
    %v2163 = vsel %vm2155, %v2146, %v2162
    %v2164 = vsel %vm2154, %v2161, %v2163
    %v2165 = vsel %vm2153, %v2143, %v2146
    %v2166 = vsel %vm2156, %v2152, 1326507024
    %v2167 = vsel %vm2155, %v2149, %v2166
    %v2168 = vsel %vm2154, %v2165, %v2167
    %v2169 = vshll.u32 %v2129, 8
    %v2170 = vand.u32 %v2169, 65535
    %v2171 = vshrl.u32 %v2169, 16
    %v2172 = vand.u32 %v2168, 65535
    %v2173 = vshrl.u32 %v2168, 16
    %v2174 = vmul.u32 %v2170, %v2172
    %v2175 = vmul.u32 %v2170, %v2173
    %v2176 = vmul.u32 %v2171, %v2172
    %v2177 = vmul.u32 %v2171, %v2173
    %v2178 = vshll.u32 %v2175, 16
    %v2179 = vshrl.u32 %v2175, 16
    %v2180 = vshll.u32 %v2176, 16
    %v2181 = vshrl.u32 %v2176, 16
    %vm2182 = vc.u32 %v2174, %v2178
    %v2183 = vsel %vm2182, 1, 0
    %v2184 = vadd.s32 %v2174, %v2178
    %v2185 = vadd.s32 %v2177, %v2183
    %vm2186 = vc.u32 %v2184, %v2180
    %v2187 = vsel %vm2186, 1, 0
    %v2188 = vadd.s32 %v2184, %v2180
    %v2189 = vadd.s32 %v2185, %v2187
    %v2190 = vadd.s32 %v2189, %v2179
    %v2191 = vadd.s32 %v2190, %v2181
    %v2192 = vand.u32 %v2169, 65535
    %v2193 = vshrl.u32 %v2169, 16
    %v2194 = vand.u32 %v2164, 65535
    %v2195 = vshrl.u32 %v2164, 16
    %v2196 = vmul.u32 %v2192, %v2194
    %v2197 = vmul.u32 %v2192, %v2195
    %v2198 = vmul.u32 %v2193, %v2194
    %v2199 = vmul.u32 %v2193, %v2195
    %v2200 = vshll.u32 %v2197, 16
    %v2201 = vshrl.u32 %v2197, 16
    %v2202 = vshll.u32 %v2198, 16
    %v2203 = vshrl.u32 %v2198, 16
    %vm2204 = vc.u32 %v2196, %v2200
    %v2205 = vsel %vm2204, 1, 0
    %v2206 = vadd.s32 %v2196, %v2200
    %v2207 = vadd.s32 %v2199, %v2205
    %vm2208 = vc.u32 %v2206, %v2202
    %v2209 = vsel %vm2208, 1, 0
    %v2210 = vadd.s32 %v2206, %v2202
    %v2211 = vadd.s32 %v2207, %v2209
    %v2212 = vadd.s32 %v2211, %v2201
    %v2213 = vadd.s32 %v2212, %v2203
    %v2214 = vmul.u32 %v2169, %v2160
    %v2215 = vadd.s32 %v2191, %v2210
    %vm2216 = vc.u32 %v2191, %v2210
    %v2217 = vadd.s32 %v2213, 1
    %v2218 = vsel %vm2216, %v2217, %v2213
    %v2219 = vadd.s32 %v2214, %v2218
    %v2220 = vadd.s32 %v2219, 536870912
    %v2221 = vshrl.u32 %v2220, 30
    %v2222 = vshll.u32 %v2221, 30
    %v2223 = vsub.s32 %v2219, %v2222
    %vm2224 = vcmp.lt.s32.totalorder %v2223, 0
    %v2225 = vsub.s32 0, %v2223
    %v2226 = vsel %vm2224, %v2225, %v2223
    %v2227 = vclz %v2226
    %v2228 = vsub.s32 %v2227, 2
    %vm2229 = vcmp.gt.s32.totalorder 0, %v2228
    %v2230 = vsel %vm2229, 0, %v2228
    %v2231 = vsub.s32 32, %v2230
    %v2232 = vshll.u32 %v2223, %v2230
    %v2233 = vshrl.u32 %v2215, %v2231
    %v2234 = vor.u32 %v2232, %v2233
    %v2235 = vsub.s32 4294967266, %v2230
    %v2236 = vadd.s32 %v2235, 127
    %v2237 = vshll.u32 %v2236, 23
    %v2238 = vor.u32 4788187, %v2237
    %v2239 = vand.u32 2147483647, %v2238
    %v2241 = vcvt.s32.f32 %v2234
    %v2242 = vmul.f32 %v2241, %v2239
    %v2243 = vxor.u32 %v2242, 2147483648
    %v2244 = vsel %vm2123, %v2243, %v2242
    %v2245 = vsub.s32 4, %v2221
    %v2246 = vsel %vm2123, %v2245, %v2221
    %v2247 = vsel %vm2122, %v1340, %v2244
    %v2248 = vsel %vm2122, 0, %v2246
    %v2249 = vmul.f32 %v2247, %v2247
    %v2250 = vmul.f32 %v2249, -0.001358992
    %v2251 = vadd.f32 %v2250, 0.041655596
    %v2252 = vmul.f32 %v2249, %v2251
    %v2253 = vadd.f32 %v2252, -0.4999988
    %v2254 = vmul.f32 %v2249, %v2253
    %v2255 = vadd.f32 1.0, %v2254
    %v2256 = vmul.f32 %v2247, %v2247
    %v2257 = vmul.f32 %v2256, -0.00019511016
    %v2258 = vadd.f32 %v2257, 0.008332121
    %v2259 = vmul.f32 %v2256, %v2258
    %v2260 = vadd.f32 %v2259, -0.16666654
    %v2261 = vmul.f32 %v2256, %v2260
    %v2262 = vadd.f32 %v2261, 1.0
    %v2263 = vmul.f32 %v2262, %v2247
    %vm2264 = vweird.f32 %v1340
    %v2265 = vand.u32 %v2248, 3
    %vm2266 = vcmp.lt.s32.totalorder %v2265, 2
    %vm2267 = vcmp.eq.s32.totalorder %v2265, 0
    %v2268 = vxor.u32 %v2263, 2147483648
    %v2269 = vsel %vm2267, %v2255, %v2268
    %vm2270 = vcmp.eq.s32.totalorder %v2265, 2
    %v2271 = vxor.u32 %v2255, 2147483648
    %v2272 = vsel %vm2270, %v2271, %v2263
    %v2273 = vsel %vm2266, %v2269, %v2272
    %v2274 = vsel %vm2264, nan, %v2273
    %v2275 = vand.u32 2147483647, %v1341
    %vm2276 = vcmp.le.f32.partialorder %v2275, 0.7853982
    %vm2277 = vcmp.lt.s32.totalorder %v1341, 0
    %v2278 = vand.u32 %v1341, 2139095040
    %v2279 = vshrl.u32 %v2278, 23
    %v2280 = vsub.s32 %v2279, 127
    %v2281 = vand.u32 2147483647, %v1341
    %v2282 = vand.u32 %v2281, 8388607
    %v2283 = vor.u32 %v2282, 8388608
    %v2284 = vsub.s32 0, %v2283
    %v2285 = vadd.s32 %v2280, 1
    %vm2286 = vcmp.gt.s32.totalorder %v2285, 0
    %v2287 = vsel %vm2286, %v2285, 0
    %v2288 = vshrl.u32 %v2287, 5
    %v2289 = vand.u32 %v2287, 31
    %v2290 = vsub.s32 32, %v2289
    %v2291 = vshrl.u32 683565275, %v2290
    %v2292 = vshll.u32 683565275, %v2289
    %v2293 = vshrl.u32 2475754826, %v2290
    %v2294 = vor.u32 %v2292, %v2293
    %v2295 = vshll.u32 2475754826, %v2289
    %v2296 = vshrl.u32 2131351028, %v2290
    %v2297 = vor.u32 %v2295, %v2296
    %v2298 = vshll.u32 2131351028, %v2289
    %v2299 = vshrl.u32 2102212464, %v2290
    %v2300 = vor.u32 %v2298, %v2299
    %v2301 = vshll.u32 2102212464, %v2289
    %v2302 = vshrl.u32 920167782, %v2290
    %v2303 = vor.u32 %v2301, %v2302
    %v2304 = vshll.u32 920167782, %v2289
    %v2305 = vshrl.u32 1326507024, %v2290
    %v2306 = vor.u32 %v2304, %v2305
    %vm2307 = vcmp.lt.s32.totalorder %v2288, 1
    %vm2308 = vcmp.lt.s32.totalorder %v2288, 2
    %vm2309 = vcmp.lt.s32.totalorder %v2288, 3
    %vm2310 = vcmp.lt.s32.totalorder %v2288, 4
    %v2311 = vsel %vm2307, %v2291, %v2294
    %v2312 = vsel %vm2310, %v2300, 2102212464
    %v2313 = vsel %vm2309, %v2297, %v2312
    %v2314 = vsel %vm2308, %v2311, %v2313
    %v2315 = vsel %vm2307, %v2294, %v2297
    %v2316 = vsel %vm2310, %v2303, 920167782
    %v2317 = vsel %vm2309, %v2300, %v2316
    %v2318 = vsel %vm2308, %v2315, %v2317
    %v2319 = vsel %vm2307, %v2297, %v2300
    %v2320 = vsel %vm2310, %v2306, 1326507024
    %v2321 = vsel %vm2309, %v2303, %v2320
    %v2322 = vsel %vm2308, %v2319, %v2321
    %v2323 = vshll.u32 %v2283, 8
    %v2324 = vand.u32 %v2323, 65535
    %v2325 = vshrl.u32 %v2323, 16
    %v2326 = vand.u32 %v2322, 65535
    %v2327 = vshrl.u32 %v2322, 16
    %v2328 = vmul.u32 %v2324, %v2326
    %v2329 = vmul.u32 %v2324, %v2327
    %v2330 = vmul.u32 %v2325, %v2326
    %v2331 = vmul.u32 %v2325, %v2327
    %v2332 = vshll.u32 %v2329, 16
    %v2333 = vshrl.u32 %v2329, 16
    %v2334 = vshll.u32 %v2330, 16
    %v2335 = vshrl.u32 %v2330, 16
    %vm2336 = vc.u32 %v2328, %v2332
    %v2337 = vsel %vm2336, 1, 0
    %v2338 = vadd.s32 %v2328, %v2332
    %v2339 = vadd.s32 %v2331, %v2337
    %vm2340 = vc.u32 %v2338, %v2334
    %v2341 = vsel %vm2340, 1, 0
    %v2342 = vadd.s32 %v2338, %v2334
    %v2343 = vadd.s32 %v2339, %v2341
    %v2344 = vadd.s32 %v2343, %v2333
    %v2345 = vadd.s32 %v2344, %v2335
    %v2346 = vand.u32 %v2323, 65535
    %v2347 = vshrl.u32 %v2323, 16
    %v2348 = vand.u32 %v2318, 65535
    %v2349 = vshrl.u32 %v2318, 16
    %v2350 = vmul.u32 %v2346, %v2348
    %v2351 = vmul.u32 %v2346, %v2349
    %v2352 = vmul.u32 %v2347, %v2348
    %v2353 = vmul.u32 %v2347, %v2349
    %v2354 = vshll.u32 %v2351, 16
    %v2355 = vshrl.u32 %v2351, 16
    %v2356 = vshll.u32 %v2352, 16
    %v2357 = vshrl.u32 %v2352, 16
    %vm2358 = vc.u32 %v2350, %v2354
    %v2359 = vsel %vm2358, 1, 0
    %v2360 = vadd.s32 %v2350, %v2354
    %v2361 = vadd.s32 %v2353, %v2359
    %vm2362 = vc.u32 %v2360, %v2356
    %v2363 = vsel %vm2362, 1, 0
    %v2364 = vadd.s32 %v2360, %v2356
    %v2365 = vadd.s32 %v2361, %v2363
    %v2366 = vadd.s32 %v2365, %v2355
    %v2367 = vadd.s32 %v2366, %v2357
    %v2368 = vmul.u32 %v2323, %v2314
    %v2369 = vadd.s32 %v2345, %v2364
    %vm2370 = vc.u32 %v2345, %v2364
    %v2371 = vadd.s32 %v2367, 1
    %v2372 = vsel %vm2370, %v2371, %v2367
    %v2373 = vadd.s32 %v2368, %v2372
    %v2374 = vadd.s32 %v2373, 536870912
    %v2375 = vshrl.u32 %v2374, 30
    %v2376 = vshll.u32 %v2375, 30
    %v2377 = vsub.s32 %v2373, %v2376
    %vm2378 = vcmp.lt.s32.totalorder %v2377, 0
    %v2379 = vsub.s32 0, %v2377
    %v2380 = vsel %vm2378, %v2379, %v2377
    %v2381 = vclz %v2380
    %v2382 = vsub.s32 %v2381, 2
    %vm2383 = vcmp.gt.s32.totalorder 0, %v2382
    %v2384 = vsel %vm2383, 0, %v2382
    %v2385 = vsub.s32 32, %v2384
    %v2386 = vshll.u32 %v2377, %v2384
    %v2387 = vshrl.u32 %v2369, %v2385
    %v2388 = vor.u32 %v2386, %v2387
    %v2389 = vsub.s32 4294967266, %v2384
    %v2390 = vadd.s32 %v2389, 127
    %v2391 = vshll.u32 %v2390, 23
    %v2392 = vor.u32 4788187, %v2391
    %v2393 = vand.u32 2147483647, %v2392
    %v2395 = vcvt.s32.f32 %v2388
    %v2396 = vmul.f32 %v2395, %v2393
    %v2397 = vxor.u32 %v2396, 2147483648
    %v2398 = vsel %vm2277, %v2397, %v2396
    %v2399 = vsub.s32 4, %v2375
    %v2400 = vsel %vm2277, %v2399, %v2375
    %v2401 = vsel %vm2276, %v1341, %v2398
    %v2402 = vsel %vm2276, 0, %v2400
    %v2403 = vmul.f32 %v2401, %v2401
    %v2404 = vmul.f32 %v2403, -0.001358992
    %v2405 = vadd.f32 %v2404, 0.041655596
    %v2406 = vmul.f32 %v2403, %v2405
    %v2407 = vadd.f32 %v2406, -0.4999988
    %v2408 = vmul.f32 %v2403, %v2407
    %v2409 = vadd.f32 1.0, %v2408
    %v2410 = vmul.f32 %v2401, %v2401
    %v2411 = vmul.f32 %v2410, -0.00019511016
    %v2412 = vadd.f32 %v2411, 0.008332121
    %v2413 = vmul.f32 %v2410, %v2412
    %v2414 = vadd.f32 %v2413, -0.16666654
    %v2415 = vmul.f32 %v2410, %v2414
    %v2416 = vadd.f32 %v2415, 1.0
    %v2417 = vmul.f32 %v2416, %v2401
    %vm2418 = vweird.f32 %v1341
    %v2419 = vand.u32 %v2402, 3
    %vm2420 = vcmp.lt.s32.totalorder %v2419, 2
    %vm2421 = vcmp.eq.s32.totalorder %v2419, 0
    %v2422 = vxor.u32 %v2417, 2147483648
    %v2423 = vsel %vm2421, %v2409, %v2422
    %vm2424 = vcmp.eq.s32.totalorder %v2419, 2
    %v2425 = vxor.u32 %v2409, 2147483648
    %v2426 = vsel %vm2424, %v2425, %v2417
    %v2427 = vsel %vm2420, %v2423, %v2426
    %v2428 = vsel %vm2418, nan, %v2427
    %v2429 = vand.u32 2147483647, %v1342
    %vm2430 = vcmp.le.f32.partialorder %v2429, 0.7853982
    %vm2431 = vcmp.lt.s32.totalorder %v1342, 0
    %v2432 = vand.u32 %v1342, 2139095040
    %v2433 = vshrl.u32 %v2432, 23
    %v2434 = vsub.s32 %v2433, 127
    %v2435 = vand.u32 2147483647, %v1342
    %v2436 = vand.u32 %v2435, 8388607
    %v2437 = vor.u32 %v2436, 8388608
    %v2438 = vsub.s32 0, %v2437
    %v2439 = vadd.s32 %v2434, 1
    %vm2440 = vcmp.gt.s32.totalorder %v2439, 0
    %v2441 = vsel %vm2440, %v2439, 0
    %v2442 = vshrl.u32 %v2441, 5
    %v2443 = vand.u32 %v2441, 31
    %v2444 = vsub.s32 32, %v2443
    %v2445 = vshrl.u32 683565275, %v2444
    %v2446 = vshll.u32 683565275, %v2443
    %v2447 = vshrl.u32 2475754826, %v2444
    %v2448 = vor.u32 %v2446, %v2447
    %v2449 = vshll.u32 2475754826, %v2443
    %v2450 = vshrl.u32 2131351028, %v2444
    %v2451 = vor.u32 %v2449, %v2450
    %v2452 = vshll.u32 2131351028, %v2443
    %v2453 = vshrl.u32 2102212464, %v2444
    %v2454 = vor.u32 %v2452, %v2453
    %v2455 = vshll.u32 2102212464, %v2443
    %v2456 = vshrl.u32 920167782, %v2444
    %v2457 = vor.u32 %v2455, %v2456
    %v2458 = vshll.u32 920167782, %v2443
    %v2459 = vshrl.u32 1326507024, %v2444
    %v2460 = vor.u32 %v2458, %v2459
    %vm2461 = vcmp.lt.s32.totalorder %v2442, 1
    %vm2462 = vcmp.lt.s32.totalorder %v2442, 2
    %vm2463 = vcmp.lt.s32.totalorder %v2442, 3
    %vm2464 = vcmp.lt.s32.totalorder %v2442, 4
    %v2465 = vsel %vm2461, %v2445, %v2448
    %v2466 = vsel %vm2464, %v2454, 2102212464
    %v2467 = vsel %vm2463, %v2451, %v2466
    %v2468 = vsel %vm2462, %v2465, %v2467
    %v2469 = vsel %vm2461, %v2448, %v2451
    %v2470 = vsel %vm2464, %v2457, 920167782
    %v2471 = vsel %vm2463, %v2454, %v2470
    %v2472 = vsel %vm2462, %v2469, %v2471
    %v2473 = vsel %vm2461, %v2451, %v2454
    %v2474 = vsel %vm2464, %v2460, 1326507024
    %v2475 = vsel %vm2463, %v2457, %v2474
    %v2476 = vsel %vm2462, %v2473, %v2475
    %v2477 = vshll.u32 %v2437, 8
    %v2478 = vand.u32 %v2477, 65535
    %v2479 = vshrl.u32 %v2477, 16
    %v2480 = vand.u32 %v2476, 65535
    %v2481 = vshrl.u32 %v2476, 16
    %v2482 = vmul.u32 %v2478, %v2480
    %v2483 = vmul.u32 %v2478, %v2481
    %v2484 = vmul.u32 %v2479, %v2480
    %v2485 = vmul.u32 %v2479, %v2481
    %v2486 = vshll.u32 %v2483, 16
    %v2487 = vshrl.u32 %v2483, 16
    %v2488 = vshll.u32 %v2484, 16
    %v2489 = vshrl.u32 %v2484, 16
    %vm2490 = vc.u32 %v2482, %v2486
    %v2491 = vsel %vm2490, 1, 0
    %v2492 = vadd.s32 %v2482, %v2486
    %v2493 = vadd.s32 %v2485, %v2491
    %vm2494 = vc.u32 %v2492, %v2488
    %v2495 = vsel %vm2494, 1, 0
    %v2496 = vadd.s32 %v2492, %v2488
    %v2497 = vadd.s32 %v2493, %v2495
    %v2498 = vadd.s32 %v2497, %v2487
    %v2499 = vadd.s32 %v2498, %v2489
    %v2500 = vand.u32 %v2477, 65535
    %v2501 = vshrl.u32 %v2477, 16
    %v2502 = vand.u32 %v2472, 65535
    %v2503 = vshrl.u32 %v2472, 16
    %v2504 = vmul.u32 %v2500, %v2502
    %v2505 = vmul.u32 %v2500, %v2503
    %v2506 = vmul.u32 %v2501, %v2502
    %v2507 = vmul.u32 %v2501, %v2503
    %v2508 = vshll.u32 %v2505, 16
    %v2509 = vshrl.u32 %v2505, 16
    %v2510 = vshll.u32 %v2506, 16
    %v2511 = vshrl.u32 %v2506, 16
    %vm2512 = vc.u32 %v2504, %v2508
    %v2513 = vsel %vm2512, 1, 0
    %v2514 = vadd.s32 %v2504, %v2508
    %v2515 = vadd.s32 %v2507, %v2513
    %vm2516 = vc.u32 %v2514, %v2510
    %v2517 = vsel %vm2516, 1, 0
    %v2518 = vadd.s32 %v2514, %v2510
    %v2519 = vadd.s32 %v2515, %v2517
    %v2520 = vadd.s32 %v2519, %v2509
    %v2521 = vadd.s32 %v2520, %v2511
    %v2522 = vmul.u32 %v2477, %v2468
    %v2523 = vadd.s32 %v2499, %v2518
    %vm2524 = vc.u32 %v2499, %v2518
    %v2525 = vadd.s32 %v2521, 1
    %v2526 = vsel %vm2524, %v2525, %v2521
    %v2527 = vadd.s32 %v2522, %v2526
    %v2528 = vadd.s32 %v2527, 536870912
    %v2529 = vshrl.u32 %v2528, 30
    %v2530 = vshll.u32 %v2529, 30
    %v2531 = vsub.s32 %v2527, %v2530
    %vm2532 = vcmp.lt.s32.totalorder %v2531, 0
    %v2533 = vsub.s32 0, %v2531
    %v2534 = vsel %vm2532, %v2533, %v2531
    %v2535 = vclz %v2534
    %v2536 = vsub.s32 %v2535, 2
    %vm2537 = vcmp.gt.s32.totalorder 0, %v2536
    %v2538 = vsel %vm2537, 0, %v2536
    %v2539 = vsub.s32 32, %v2538
    %v2540 = vshll.u32 %v2531, %v2538
    %v2541 = vshrl.u32 %v2523, %v2539
    %v2542 = vor.u32 %v2540, %v2541
    %v2543 = vsub.s32 4294967266, %v2538
    %v2544 = vadd.s32 %v2543, 127
    %v2545 = vshll.u32 %v2544, 23
    %v2546 = vor.u32 4788187, %v2545
    %v2547 = vand.u32 2147483647, %v2546
    %v2549 = vcvt.s32.f32 %v2542
    %v2550 = vmul.f32 %v2549, %v2547
    %v2551 = vxor.u32 %v2550, 2147483648
    %v2552 = vsel %vm2431, %v2551, %v2550
    %v2553 = vsub.s32 4, %v2529
    %v2554 = vsel %vm2431, %v2553, %v2529
    %v2555 = vsel %vm2430, %v1342, %v2552
    %v2556 = vsel %vm2430, 0, %v2554
    %v2557 = vmul.f32 %v2555, %v2555
    %v2558 = vmul.f32 %v2557, -0.001358992
    %v2559 = vadd.f32 %v2558, 0.041655596
    %v2560 = vmul.f32 %v2557, %v2559
    %v2561 = vadd.f32 %v2560, -0.4999988
    %v2562 = vmul.f32 %v2557, %v2561
    %v2563 = vadd.f32 1.0, %v2562
    %v2564 = vmul.f32 %v2555, %v2555
    %v2565 = vmul.f32 %v2564, -0.00019511016
    %v2566 = vadd.f32 %v2565, 0.008332121
    %v2567 = vmul.f32 %v2564, %v2566
    %v2568 = vadd.f32 %v2567, -0.16666654
    %v2569 = vmul.f32 %v2564, %v2568
    %v2570 = vadd.f32 %v2569, 1.0
    %v2571 = vmul.f32 %v2570, %v2555
    %vm2572 = vweird.f32 %v1342
    %v2573 = vand.u32 %v2556, 3
    %vm2574 = vcmp.lt.s32.totalorder %v2573, 2
    %vm2575 = vcmp.eq.s32.totalorder %v2573, 0
    %v2576 = vxor.u32 %v2571, 2147483648
    %v2577 = vsel %vm2575, %v2563, %v2576
    %vm2578 = vcmp.eq.s32.totalorder %v2573, 2
    %v2579 = vxor.u32 %v2563, 2147483648
    %v2580 = vsel %vm2578, %v2579, %v2571
    %v2581 = vsel %vm2574, %v2577, %v2580
    %v2582 = vsel %vm2572, nan, %v2581
    %v2583 = vand.u32 2147483647, %v1343
    %vm2584 = vcmp.le.f32.partialorder %v2583, 0.7853982
    %vm2585 = vcmp.lt.s32.totalorder %v1343, 0
    %v2586 = vand.u32 %v1343, 2139095040
    %v2587 = vshrl.u32 %v2586, 23
    %v2588 = vsub.s32 %v2587, 127
    %v2589 = vand.u32 2147483647, %v1343
    %v2590 = vand.u32 %v2589, 8388607
    %v2591 = vor.u32 %v2590, 8388608
    %v2592 = vsub.s32 0, %v2591
    %v2593 = vadd.s32 %v2588, 1
    %vm2594 = vcmp.gt.s32.totalorder %v2593, 0
    %v2595 = vsel %vm2594, %v2593, 0
    %v2596 = vshrl.u32 %v2595, 5
    %v2597 = vand.u32 %v2595, 31
    %v2598 = vsub.s32 32, %v2597
    %v2599 = vshrl.u32 683565275, %v2598
    %v2600 = vshll.u32 683565275, %v2597
    %v2601 = vshrl.u32 2475754826, %v2598
    %v2602 = vor.u32 %v2600, %v2601
    %v2603 = vshll.u32 2475754826, %v2597
    %v2604 = vshrl.u32 2131351028, %v2598
    %v2605 = vor.u32 %v2603, %v2604
    %v2606 = vshll.u32 2131351028, %v2597
    %v2607 = vshrl.u32 2102212464, %v2598
    %v2608 = vor.u32 %v2606, %v2607
    %v2609 = vshll.u32 2102212464, %v2597
    %v2610 = vshrl.u32 920167782, %v2598
    %v2611 = vor.u32 %v2609, %v2610
    %v2612 = vshll.u32 920167782, %v2597
    %v2613 = vshrl.u32 1326507024, %v2598
    %v2614 = vor.u32 %v2612, %v2613
    %vm2615 = vcmp.lt.s32.totalorder %v2596, 1
    %vm2616 = vcmp.lt.s32.totalorder %v2596, 2
    %vm2617 = vcmp.lt.s32.totalorder %v2596, 3
    %vm2618 = vcmp.lt.s32.totalorder %v2596, 4
    %v2619 = vsel %vm2615, %v2599, %v2602
    %v2620 = vsel %vm2618, %v2608, 2102212464
    %v2621 = vsel %vm2617, %v2605, %v2620
    %v2622 = vsel %vm2616, %v2619, %v2621
    %v2623 = vsel %vm2615, %v2602, %v2605
    %v2624 = vsel %vm2618, %v2611, 920167782
    %v2625 = vsel %vm2617, %v2608, %v2624
    %v2626 = vsel %vm2616, %v2623, %v2625
    %v2627 = vsel %vm2615, %v2605, %v2608
    %v2628 = vsel %vm2618, %v2614, 1326507024
    %v2629 = vsel %vm2617, %v2611, %v2628
    %v2630 = vsel %vm2616, %v2627, %v2629
    %v2631 = vshll.u32 %v2591, 8
    %v2632 = vand.u32 %v2631, 65535
    %v2633 = vshrl.u32 %v2631, 16
    %v2634 = vand.u32 %v2630, 65535
    %v2635 = vshrl.u32 %v2630, 16
    %v2636 = vmul.u32 %v2632, %v2634
    %v2637 = vmul.u32 %v2632, %v2635
    %v2638 = vmul.u32 %v2633, %v2634
    %v2639 = vmul.u32 %v2633, %v2635
    %v2640 = vshll.u32 %v2637, 16
    %v2641 = vshrl.u32 %v2637, 16
    %v2642 = vshll.u32 %v2638, 16
    %v2643 = vshrl.u32 %v2638, 16
    %vm2644 = vc.u32 %v2636, %v2640
    %v2645 = vsel %vm2644, 1, 0
    %v2646 = vadd.s32 %v2636, %v2640
    %v2647 = vadd.s32 %v2639, %v2645
    %vm2648 = vc.u32 %v2646, %v2642
    %v2649 = vsel %vm2648, 1, 0
    %v2650 = vadd.s32 %v2646, %v2642
    %v2651 = vadd.s32 %v2647, %v2649
    %v2652 = vadd.s32 %v2651, %v2641
    %v2653 = vadd.s32 %v2652, %v2643
    %v2654 = vand.u32 %v2631, 65535
    %v2655 = vshrl.u32 %v2631, 16
    %v2656 = vand.u32 %v2626, 65535
    %v2657 = vshrl.u32 %v2626, 16
    %v2658 = vmul.u32 %v2654, %v2656
    %v2659 = vmul.u32 %v2654, %v2657
    %v2660 = vmul.u32 %v2655, %v2656
    %v2661 = vmul.u32 %v2655, %v2657
    %v2662 = vshll.u32 %v2659, 16
    %v2663 = vshrl.u32 %v2659, 16
    %v2664 = vshll.u32 %v2660, 16
    %v2665 = vshrl.u32 %v2660, 16
    %vm2666 = vc.u32 %v2658, %v2662
    %v2667 = vsel %vm2666, 1, 0
    %v2668 = vadd.s32 %v2658, %v2662
    %v2669 = vadd.s32 %v2661, %v2667
    %vm2670 = vc.u32 %v2668, %v2664
    %v2671 = vsel %vm2670, 1, 0
    %v2672 = vadd.s32 %v2668, %v2664
    %v2673 = vadd.s32 %v2669, %v2671
    %v2674 = vadd.s32 %v2673, %v2663
    %v2675 = vadd.s32 %v2674, %v2665
    %v2676 = vmul.u32 %v2631, %v2622
    %v2677 = vadd.s32 %v2653, %v2672
    %vm2678 = vc.u32 %v2653, %v2672
    %v2679 = vadd.s32 %v2675, 1
    %v2680 = vsel %vm2678, %v2679, %v2675
    %v2681 = vadd.s32 %v2676, %v2680
    %v2682 = vadd.s32 %v2681, 536870912
    %v2683 = vshrl.u32 %v2682, 30
    %v2684 = vshll.u32 %v2683, 30
    %v2685 = vsub.s32 %v2681, %v2684
    %vm2686 = vcmp.lt.s32.totalorder %v2685, 0
    %v2687 = vsub.s32 0, %v2685
    %v2688 = vsel %vm2686, %v2687, %v2685
    %v2689 = vclz %v2688
    %v2690 = vsub.s32 %v2689, 2
    %vm2691 = vcmp.gt.s32.totalorder 0, %v2690
    %v2692 = vsel %vm2691, 0, %v2690
    %v2693 = vsub.s32 32, %v2692
    %v2694 = vshll.u32 %v2685, %v2692
    %v2695 = vshrl.u32 %v2677, %v2693
    %v2696 = vor.u32 %v2694, %v2695
    %v2697 = vsub.s32 4294967266, %v2692
    %v2698 = vadd.s32 %v2697, 127
    %v2699 = vshll.u32 %v2698, 23
    %v2700 = vor.u32 4788187, %v2699
    %v2701 = vand.u32 2147483647, %v2700
    %v2703 = vcvt.s32.f32 %v2696
    %v2704 = vmul.f32 %v2703, %v2701
    %v2705 = vxor.u32 %v2704, 2147483648
    %v2706 = vsel %vm2585, %v2705, %v2704
    %v2707 = vsub.s32 4, %v2683
    %v2708 = vsel %vm2585, %v2707, %v2683
    %v2709 = vsel %vm2584, %v1343, %v2706
    %v2710 = vsel %vm2584, 0, %v2708
    %v2711 = vmul.f32 %v2709, %v2709
    %v2712 = vmul.f32 %v2711, -0.001358992
    %v2713 = vadd.f32 %v2712, 0.041655596
    %v2714 = vmul.f32 %v2711, %v2713
    %v2715 = vadd.f32 %v2714, -0.4999988
    %v2716 = vmul.f32 %v2711, %v2715
    %v2717 = vadd.f32 1.0, %v2716
    %v2718 = vmul.f32 %v2709, %v2709
    %v2719 = vmul.f32 %v2718, -0.00019511016
    %v2720 = vadd.f32 %v2719, 0.008332121
    %v2721 = vmul.f32 %v2718, %v2720
    %v2722 = vadd.f32 %v2721, -0.16666654
    %v2723 = vmul.f32 %v2718, %v2722
    %v2724 = vadd.f32 %v2723, 1.0
    %v2725 = vmul.f32 %v2724, %v2709
    %vm2726 = vweird.f32 %v1343
    %v2727 = vand.u32 %v2710, 3
    %vm2728 = vcmp.lt.s32.totalorder %v2727, 2
    %vm2729 = vcmp.eq.s32.totalorder %v2727, 0
    %v2730 = vxor.u32 %v2725, 2147483648
    %v2731 = vsel %vm2729, %v2717, %v2730
    %vm2732 = vcmp.eq.s32.totalorder %v2727, 2
    %v2733 = vxor.u32 %v2717, 2147483648
    %v2734 = vsel %vm2732, %v2733, %v2725
    %v2735 = vsel %vm2728, %v2731, %v2734
    %v2736 = vsel %vm2726, nan, %v2735
    %v2737 = vand.u32 2147483647, %v1344
    %vm2738 = vcmp.le.f32.partialorder %v2737, 0.7853982
    %vm2739 = vcmp.lt.s32.totalorder %v1344, 0
    %v2740 = vand.u32 %v1344, 2139095040
    %v2741 = vshrl.u32 %v2740, 23
    %v2742 = vsub.s32 %v2741, 127
    %v2743 = vand.u32 2147483647, %v1344
    %v2744 = vand.u32 %v2743, 8388607
    %v2745 = vor.u32 %v2744, 8388608
    %v2746 = vsub.s32 0, %v2745
    %v2747 = vadd.s32 %v2742, 1
    %vm2748 = vcmp.gt.s32.totalorder %v2747, 0
    %v2749 = vsel %vm2748, %v2747, 0
    %v2750 = vshrl.u32 %v2749, 5
    %v2751 = vand.u32 %v2749, 31
    %v2752 = vsub.s32 32, %v2751
    %v2753 = vshrl.u32 683565275, %v2752
    %v2754 = vshll.u32 683565275, %v2751
    %v2755 = vshrl.u32 2475754826, %v2752
    %v2756 = vor.u32 %v2754, %v2755
    %v2757 = vshll.u32 2475754826, %v2751
    %v2758 = vshrl.u32 2131351028, %v2752
    %v2759 = vor.u32 %v2757, %v2758
    %v2760 = vshll.u32 2131351028, %v2751
    %v2761 = vshrl.u32 2102212464, %v2752
    %v2762 = vor.u32 %v2760, %v2761
    %v2763 = vshll.u32 2102212464, %v2751
    %v2764 = vshrl.u32 920167782, %v2752
    %v2765 = vor.u32 %v2763, %v2764
    %v2766 = vshll.u32 920167782, %v2751
    %v2767 = vshrl.u32 1326507024, %v2752
    %v2768 = vor.u32 %v2766, %v2767
    %vm2769 = vcmp.lt.s32.totalorder %v2750, 1
    %vm2770 = vcmp.lt.s32.totalorder %v2750, 2
    %vm2771 = vcmp.lt.s32.totalorder %v2750, 3
    %vm2772 = vcmp.lt.s32.totalorder %v2750, 4
    %v2773 = vsel %vm2769, %v2753, %v2756
    %v2774 = vsel %vm2772, %v2762, 2102212464
    %v2775 = vsel %vm2771, %v2759, %v2774
    %v2776 = vsel %vm2770, %v2773, %v2775
    %v2777 = vsel %vm2769, %v2756, %v2759
    %v2778 = vsel %vm2772, %v2765, 920167782
    %v2779 = vsel %vm2771, %v2762, %v2778
    %v2780 = vsel %vm2770, %v2777, %v2779
    %v2781 = vsel %vm2769, %v2759, %v2762
    %v2782 = vsel %vm2772, %v2768, 1326507024
    %v2783 = vsel %vm2771, %v2765, %v2782
    %v2784 = vsel %vm2770, %v2781, %v2783
    %v2785 = vshll.u32 %v2745, 8
    %v2786 = vand.u32 %v2785, 65535
    %v2787 = vshrl.u32 %v2785, 16
    %v2788 = vand.u32 %v2784, 65535
    %v2789 = vshrl.u32 %v2784, 16
    %v2790 = vmul.u32 %v2786, %v2788
    %v2791 = vmul.u32 %v2786, %v2789
    %v2792 = vmul.u32 %v2787, %v2788
    %v2793 = vmul.u32 %v2787, %v2789
    %v2794 = vshll.u32 %v2791, 16
    %v2795 = vshrl.u32 %v2791, 16
    %v2796 = vshll.u32 %v2792, 16
    %v2797 = vshrl.u32 %v2792, 16
    %vm2798 = vc.u32 %v2790, %v2794
    %v2799 = vsel %vm2798, 1, 0
    %v2800 = vadd.s32 %v2790, %v2794
    %v2801 = vadd.s32 %v2793, %v2799
    %vm2802 = vc.u32 %v2800, %v2796
    %v2803 = vsel %vm2802, 1, 0
    %v2804 = vadd.s32 %v2800, %v2796
    %v2805 = vadd.s32 %v2801, %v2803
    %v2806 = vadd.s32 %v2805, %v2795
    %v2807 = vadd.s32 %v2806, %v2797
    %v2808 = vand.u32 %v2785, 65535
    %v2809 = vshrl.u32 %v2785, 16
    %v2810 = vand.u32 %v2780, 65535
    %v2811 = vshrl.u32 %v2780, 16
    %v2812 = vmul.u32 %v2808, %v2810
    %v2813 = vmul.u32 %v2808, %v2811
    %v2814 = vmul.u32 %v2809, %v2810
    %v2815 = vmul.u32 %v2809, %v2811
    %v2816 = vshll.u32 %v2813, 16
    %v2817 = vshrl.u32 %v2813, 16
    %v2818 = vshll.u32 %v2814, 16
    %v2819 = vshrl.u32 %v2814, 16
    %vm2820 = vc.u32 %v2812, %v2816
    %v2821 = vsel %vm2820, 1, 0
    %v2822 = vadd.s32 %v2812, %v2816
    %v2823 = vadd.s32 %v2815, %v2821
    %vm2824 = vc.u32 %v2822, %v2818
    %v2825 = vsel %vm2824, 1, 0
    %v2826 = vadd.s32 %v2822, %v2818
    %v2827 = vadd.s32 %v2823, %v2825
    %v2828 = vadd.s32 %v2827, %v2817
    %v2829 = vadd.s32 %v2828, %v2819
    %v2830 = vmul.u32 %v2785, %v2776
    %v2831 = vadd.s32 %v2807, %v2826
    %vm2832 = vc.u32 %v2807, %v2826
    %v2833 = vadd.s32 %v2829, 1
    %v2834 = vsel %vm2832, %v2833, %v2829
    %v2835 = vadd.s32 %v2830, %v2834
    %v2836 = vadd.s32 %v2835, 536870912
    %v2837 = vshrl.u32 %v2836, 30
    %v2838 = vshll.u32 %v2837, 30
    %v2839 = vsub.s32 %v2835, %v2838
    %vm2840 = vcmp.lt.s32.totalorder %v2839, 0
    %v2841 = vsub.s32 0, %v2839
    %v2842 = vsel %vm2840, %v2841, %v2839
    %v2843 = vclz %v2842
    %v2844 = vsub.s32 %v2843, 2
    %vm2845 = vcmp.gt.s32.totalorder 0, %v2844
    %v2846 = vsel %vm2845, 0, %v2844
    %v2847 = vsub.s32 32, %v2846
    %v2848 = vshll.u32 %v2839, %v2846
    %v2849 = vshrl.u32 %v2831, %v2847
    %v2850 = vor.u32 %v2848, %v2849
    %v2851 = vsub.s32 4294967266, %v2846
    %v2852 = vadd.s32 %v2851, 127
    %v2853 = vshll.u32 %v2852, 23
    %v2854 = vor.u32 4788187, %v2853
    %v2855 = vand.u32 2147483647, %v2854
    %v2857 = vcvt.s32.f32 %v2850
    %v2858 = vmul.f32 %v2857, %v2855
    %v2859 = vxor.u32 %v2858, 2147483648
    %v2860 = vsel %vm2739, %v2859, %v2858
    %v2861 = vsub.s32 4, %v2837
    %v2862 = vsel %vm2739, %v2861, %v2837
    %v2863 = vsel %vm2738, %v1344, %v2860
    %v2864 = vsel %vm2738, 0, %v2862
    %v2865 = vmul.f32 %v2863, %v2863
    %v2866 = vmul.f32 %v2865, -0.001358992
    %v2867 = vadd.f32 %v2866, 0.041655596
    %v2868 = vmul.f32 %v2865, %v2867
    %v2869 = vadd.f32 %v2868, -0.4999988
    %v2870 = vmul.f32 %v2865, %v2869
    %v2871 = vadd.f32 1.0, %v2870
    %v2872 = vmul.f32 %v2863, %v2863
    %v2873 = vmul.f32 %v2872, -0.00019511016
    %v2874 = vadd.f32 %v2873, 0.008332121
    %v2875 = vmul.f32 %v2872, %v2874
    %v2876 = vadd.f32 %v2875, -0.16666654
    %v2877 = vmul.f32 %v2872, %v2876
    %v2878 = vadd.f32 %v2877, 1.0
    %v2879 = vmul.f32 %v2878, %v2863
    %vm2880 = vweird.f32 %v1344
    %v2881 = vand.u32 %v2864, 3
    %vm2882 = vcmp.lt.s32.totalorder %v2881, 2
    %vm2883 = vcmp.eq.s32.totalorder %v2881, 0
    %v2884 = vxor.u32 %v2879, 2147483648
    %v2885 = vsel %vm2883, %v2871, %v2884
    %vm2886 = vcmp.eq.s32.totalorder %v2881, 2
    %v2887 = vxor.u32 %v2871, 2147483648
    %v2888 = vsel %vm2886, %v2887, %v2879
    %v2889 = vsel %vm2882, %v2885, %v2888
    %v2890 = vsel %vm2880, nan, %v2889
    %v2891 = vand.u32 2147483647, %v1345
    %vm2892 = vcmp.le.f32.partialorder %v2891, 0.7853982
    %vm2893 = vcmp.lt.s32.totalorder %v1345, 0
    %v2894 = vand.u32 %v1345, 2139095040
    %v2895 = vshrl.u32 %v2894, 23
    %v2896 = vsub.s32 %v2895, 127
    %v2897 = vand.u32 2147483647, %v1345
    %v2898 = vand.u32 %v2897, 8388607
    %v2899 = vor.u32 %v2898, 8388608
    %v2900 = vsub.s32 0, %v2899
    %v2901 = vadd.s32 %v2896, 1
    %vm2902 = vcmp.gt.s32.totalorder %v2901, 0
    %v2903 = vsel %vm2902, %v2901, 0
    %v2904 = vshrl.u32 %v2903, 5
    %v2905 = vand.u32 %v2903, 31
    %v2906 = vsub.s32 32, %v2905
    %v2907 = vshrl.u32 683565275, %v2906
    %v2908 = vshll.u32 683565275, %v2905
    %v2909 = vshrl.u32 2475754826, %v2906
    %v2910 = vor.u32 %v2908, %v2909
    %v2911 = vshll.u32 2475754826, %v2905
    %v2912 = vshrl.u32 2131351028, %v2906
    %v2913 = vor.u32 %v2911, %v2912
    %v2914 = vshll.u32 2131351028, %v2905
    %v2915 = vshrl.u32 2102212464, %v2906
    %v2916 = vor.u32 %v2914, %v2915
    %v2917 = vshll.u32 2102212464, %v2905
    %v2918 = vshrl.u32 920167782, %v2906
    %v2919 = vor.u32 %v2917, %v2918
    %v2920 = vshll.u32 920167782, %v2905
    %v2921 = vshrl.u32 1326507024, %v2906
    %v2922 = vor.u32 %v2920, %v2921
    %vm2923 = vcmp.lt.s32.totalorder %v2904, 1
    %vm2924 = vcmp.lt.s32.totalorder %v2904, 2
    %vm2925 = vcmp.lt.s32.totalorder %v2904, 3
    %vm2926 = vcmp.lt.s32.totalorder %v2904, 4
    %v2927 = vsel %vm2923, %v2907, %v2910
    %v2928 = vsel %vm2926, %v2916, 2102212464
    %v2929 = vsel %vm2925, %v2913, %v2928
    %v2930 = vsel %vm2924, %v2927, %v2929
    %v2931 = vsel %vm2923, %v2910, %v2913
    %v2932 = vsel %vm2926, %v2919, 920167782
    %v2933 = vsel %vm2925, %v2916, %v2932
    %v2934 = vsel %vm2924, %v2931, %v2933
    %v2935 = vsel %vm2923, %v2913, %v2916
    %v2936 = vsel %vm2926, %v2922, 1326507024
    %v2937 = vsel %vm2925, %v2919, %v2936
    %v2938 = vsel %vm2924, %v2935, %v2937
    %v2939 = vshll.u32 %v2899, 8
    %v2940 = vand.u32 %v2939, 65535
    %v2941 = vshrl.u32 %v2939, 16
    %v2942 = vand.u32 %v2938, 65535
    %v2943 = vshrl.u32 %v2938, 16
    %v2944 = vmul.u32 %v2940, %v2942
    %v2945 = vmul.u32 %v2940, %v2943
    %v2946 = vmul.u32 %v2941, %v2942
    %v2947 = vmul.u32 %v2941, %v2943
    %v2948 = vshll.u32 %v2945, 16
    %v2949 = vshrl.u32 %v2945, 16
    %v2950 = vshll.u32 %v2946, 16
    %v2951 = vshrl.u32 %v2946, 16
    %vm2952 = vc.u32 %v2944, %v2948
    %v2953 = vsel %vm2952, 1, 0
    %v2954 = vadd.s32 %v2944, %v2948
    %v2955 = vadd.s32 %v2947, %v2953
    %vm2956 = vc.u32 %v2954, %v2950
    %v2957 = vsel %vm2956, 1, 0
    %v2958 = vadd.s32 %v2954, %v2950
    %v2959 = vadd.s32 %v2955, %v2957
    %v2960 = vadd.s32 %v2959, %v2949
    %v2961 = vadd.s32 %v2960, %v2951
    %v2962 = vand.u32 %v2939, 65535
    %v2963 = vshrl.u32 %v2939, 16
    %v2964 = vand.u32 %v2934, 65535
    %v2965 = vshrl.u32 %v2934, 16
    %v2966 = vmul.u32 %v2962, %v2964
    %v2967 = vmul.u32 %v2962, %v2965
    %v2968 = vmul.u32 %v2963, %v2964
    %v2969 = vmul.u32 %v2963, %v2965
    %v2970 = vshll.u32 %v2967, 16
    %v2971 = vshrl.u32 %v2967, 16
    %v2972 = vshll.u32 %v2968, 16
    %v2973 = vshrl.u32 %v2968, 16
    %vm2974 = vc.u32 %v2966, %v2970
    %v2975 = vsel %vm2974, 1, 0
    %v2976 = vadd.s32 %v2966, %v2970
    %v2977 = vadd.s32 %v2969, %v2975
    %vm2978 = vc.u32 %v2976, %v2972
    %v2979 = vsel %vm2978, 1, 0
    %v2980 = vadd.s32 %v2976, %v2972
    %v2981 = vadd.s32 %v2977, %v2979
    %v2982 = vadd.s32 %v2981, %v2971
    %v2983 = vadd.s32 %v2982, %v2973
    %v2984 = vmul.u32 %v2939, %v2930
    %v2985 = vadd.s32 %v2961, %v2980
    %vm2986 = vc.u32 %v2961, %v2980
    %v2987 = vadd.s32 %v2983, 1
    %v2988 = vsel %vm2986, %v2987, %v2983
    %v2989 = vadd.s32 %v2984, %v2988
    %v2990 = vadd.s32 %v2989, 536870912
    %v2991 = vshrl.u32 %v2990, 30
    %v2992 = vshll.u32 %v2991, 30
    %v2993 = vsub.s32 %v2989, %v2992
    %vm2994 = vcmp.lt.s32.totalorder %v2993, 0
    %v2995 = vsub.s32 0, %v2993
    %v2996 = vsel %vm2994, %v2995, %v2993
    %v2997 = vclz %v2996
    %v2998 = vsub.s32 %v2997, 2
    %vm2999 = vcmp.gt.s32.totalorder 0, %v2998
    %v3000 = vsel %vm2999, 0, %v2998
    %v3001 = vsub.s32 32, %v3000
    %v3002 = vshll.u32 %v2993, %v3000
    %v3003 = vshrl.u32 %v2985, %v3001
    %v3004 = vor.u32 %v3002, %v3003
    %v3005 = vsub.s32 4294967266, %v3000
    %v3006 = vadd.s32 %v3005, 127
    %v3007 = vshll.u32 %v3006, 23
    %v3008 = vor.u32 4788187, %v3007
    %v3009 = vand.u32 2147483647, %v3008
    %v3011 = vcvt.s32.f32 %v3004
    %v3012 = vmul.f32 %v3011, %v3009
    %v3013 = vxor.u32 %v3012, 2147483648
    %v3014 = vsel %vm2893, %v3013, %v3012
    %v3015 = vsub.s32 4, %v2991
    %v3016 = vsel %vm2893, %v3015, %v2991
    %v3017 = vsel %vm2892, %v1345, %v3014
    %v3018 = vsel %vm2892, 0, %v3016
    %v3019 = vmul.f32 %v3017, %v3017
    %v3020 = vmul.f32 %v3019, -0.001358992
    %v3021 = vadd.f32 %v3020, 0.041655596
    %v3022 = vmul.f32 %v3019, %v3021
    %v3023 = vadd.f32 %v3022, -0.4999988
    %v3024 = vmul.f32 %v3019, %v3023
    %v3025 = vadd.f32 1.0, %v3024
    %v3026 = vmul.f32 %v3017, %v3017
    %v3027 = vmul.f32 %v3026, -0.00019511016
    %v3028 = vadd.f32 %v3027, 0.008332121
    %v3029 = vmul.f32 %v3026, %v3028
    %v3030 = vadd.f32 %v3029, -0.16666654
    %v3031 = vmul.f32 %v3026, %v3030
    %v3032 = vadd.f32 %v3031, 1.0
    %v3033 = vmul.f32 %v3032, %v3017
    %vm3034 = vweird.f32 %v1345
    %v3035 = vand.u32 %v3018, 3
    %vm3036 = vcmp.lt.s32.totalorder %v3035, 2
    %vm3037 = vcmp.eq.s32.totalorder %v3035, 0
    %v3038 = vxor.u32 %v3033, 2147483648
    %v3039 = vsel %vm3037, %v3025, %v3038
    %vm3040 = vcmp.eq.s32.totalorder %v3035, 2
    %v3041 = vxor.u32 %v3025, 2147483648
    %v3042 = vsel %vm3040, %v3041, %v3033
    %v3043 = vsel %vm3036, %v3039, %v3042
    %v3044 = vsel %vm3034, nan, %v3043
    %v3045 = vand.u32 2147483647, %v1346
    %vm3046 = vcmp.le.f32.partialorder %v3045, 0.7853982
    %vm3047 = vcmp.lt.s32.totalorder %v1346, 0
    %v3048 = vand.u32 %v1346, 2139095040
    %v3049 = vshrl.u32 %v3048, 23
    %v3050 = vsub.s32 %v3049, 127
    %v3051 = vand.u32 2147483647, %v1346
    %v3052 = vand.u32 %v3051, 8388607
    %v3053 = vor.u32 %v3052, 8388608
    %v3054 = vsub.s32 0, %v3053
    %v3055 = vadd.s32 %v3050, 1
    %vm3056 = vcmp.gt.s32.totalorder %v3055, 0
    %v3057 = vsel %vm3056, %v3055, 0
    %v3058 = vshrl.u32 %v3057, 5
    %v3059 = vand.u32 %v3057, 31
    %v3060 = vsub.s32 32, %v3059
    %v3061 = vshrl.u32 683565275, %v3060
    %v3062 = vshll.u32 683565275, %v3059
    %v3063 = vshrl.u32 2475754826, %v3060
    %v3064 = vor.u32 %v3062, %v3063
    %v3065 = vshll.u32 2475754826, %v3059
    %v3066 = vshrl.u32 2131351028, %v3060
    %v3067 = vor.u32 %v3065, %v3066
    %v3068 = vshll.u32 2131351028, %v3059
    %v3069 = vshrl.u32 2102212464, %v3060
    %v3070 = vor.u32 %v3068, %v3069
    %v3071 = vshll.u32 2102212464, %v3059
    %v3072 = vshrl.u32 920167782, %v3060
    %v3073 = vor.u32 %v3071, %v3072
    %v3074 = vshll.u32 920167782, %v3059
    %v3075 = vshrl.u32 1326507024, %v3060
    %v3076 = vor.u32 %v3074, %v3075
    %vm3077 = vcmp.lt.s32.totalorder %v3058, 1
    %vm3078 = vcmp.lt.s32.totalorder %v3058, 2
    %vm3079 = vcmp.lt.s32.totalorder %v3058, 3
    %vm3080 = vcmp.lt.s32.totalorder %v3058, 4
    %v3081 = vsel %vm3077, %v3061, %v3064
    %v3082 = vsel %vm3080, %v3070, 2102212464
    %v3083 = vsel %vm3079, %v3067, %v3082
    %v3084 = vsel %vm3078, %v3081, %v3083
    %v3085 = vsel %vm3077, %v3064, %v3067
    %v3086 = vsel %vm3080, %v3073, 920167782
    %v3087 = vsel %vm3079, %v3070, %v3086
    %v3088 = vsel %vm3078, %v3085, %v3087
    %v3089 = vsel %vm3077, %v3067, %v3070
    %v3090 = vsel %vm3080, %v3076, 1326507024
    %v3091 = vsel %vm3079, %v3073, %v3090
    %v3092 = vsel %vm3078, %v3089, %v3091
    %v3093 = vshll.u32 %v3053, 8
    %v3094 = vand.u32 %v3093, 65535
    %v3095 = vshrl.u32 %v3093, 16
    %v3096 = vand.u32 %v3092, 65535
    %v3097 = vshrl.u32 %v3092, 16
    %v3098 = vmul.u32 %v3094, %v3096
    %v3099 = vmul.u32 %v3094, %v3097
    %v3100 = vmul.u32 %v3095, %v3096
    %v3101 = vmul.u32 %v3095, %v3097
    %v3102 = vshll.u32 %v3099, 16
    %v3103 = vshrl.u32 %v3099, 16
    %v3104 = vshll.u32 %v3100, 16
    %v3105 = vshrl.u32 %v3100, 16
    %vm3106 = vc.u32 %v3098, %v3102
    %v3107 = vsel %vm3106, 1, 0
    %v3108 = vadd.s32 %v3098, %v3102
    %v3109 = vadd.s32 %v3101, %v3107
    %vm3110 = vc.u32 %v3108, %v3104
    %v3111 = vsel %vm3110, 1, 0
    %v3112 = vadd.s32 %v3108, %v3104
    %v3113 = vadd.s32 %v3109, %v3111
    %v3114 = vadd.s32 %v3113, %v3103
    %v3115 = vadd.s32 %v3114, %v3105
    %v3116 = vand.u32 %v3093, 65535
    %v3117 = vshrl.u32 %v3093, 16
    %v3118 = vand.u32 %v3088, 65535
    %v3119 = vshrl.u32 %v3088, 16
    %v3120 = vmul.u32 %v3116, %v3118
    %v3121 = vmul.u32 %v3116, %v3119
    %v3122 = vmul.u32 %v3117, %v3118
    %v3123 = vmul.u32 %v3117, %v3119
    %v3124 = vshll.u32 %v3121, 16
    %v3125 = vshrl.u32 %v3121, 16
    %v3126 = vshll.u32 %v3122, 16
    %v3127 = vshrl.u32 %v3122, 16
    %vm3128 = vc.u32 %v3120, %v3124
    %v3129 = vsel %vm3128, 1, 0
    %v3130 = vadd.s32 %v3120, %v3124
    %v3131 = vadd.s32 %v3123, %v3129
    %vm3132 = vc.u32 %v3130, %v3126
    %v3133 = vsel %vm3132, 1, 0
    %v3134 = vadd.s32 %v3130, %v3126
    %v3135 = vadd.s32 %v3131, %v3133
    %v3136 = vadd.s32 %v3135, %v3125
    %v3137 = vadd.s32 %v3136, %v3127
    %v3138 = vmul.u32 %v3093, %v3084
    %v3139 = vadd.s32 %v3115, %v3134
    %vm3140 = vc.u32 %v3115, %v3134
    %v3141 = vadd.s32 %v3137, 1
    %v3142 = vsel %vm3140, %v3141, %v3137
    %v3143 = vadd.s32 %v3138, %v3142
    %v3144 = vadd.s32 %v3143, 536870912
    %v3145 = vshrl.u32 %v3144, 30
    %v3146 = vshll.u32 %v3145, 30
    %v3147 = vsub.s32 %v3143, %v3146
    %vm3148 = vcmp.lt.s32.totalorder %v3147, 0
    %v3149 = vsub.s32 0, %v3147
    %v3150 = vsel %vm3148, %v3149, %v3147
    %v3151 = vclz %v3150
    %v3152 = vsub.s32 %v3151, 2
    %vm3153 = vcmp.gt.s32.totalorder 0, %v3152
    %v3154 = vsel %vm3153, 0, %v3152
    %v3155 = vsub.s32 32, %v3154
    %v3156 = vshll.u32 %v3147, %v3154
    %v3157 = vshrl.u32 %v3139, %v3155
    %v3158 = vor.u32 %v3156, %v3157
    %v3159 = vsub.s32 4294967266, %v3154
    %v3160 = vadd.s32 %v3159, 127
    %v3161 = vshll.u32 %v3160, 23
    %v3162 = vor.u32 4788187, %v3161
    %v3163 = vand.u32 2147483647, %v3162
    %v3165 = vcvt.s32.f32 %v3158
    %v3166 = vmul.f32 %v3165, %v3163
    %v3167 = vxor.u32 %v3166, 2147483648
    %v3168 = vsel %vm3047, %v3167, %v3166
    %v3169 = vsub.s32 4, %v3145
    %v3170 = vsel %vm3047, %v3169, %v3145
    %v3171 = vsel %vm3046, %v1346, %v3168
    %v3172 = vsel %vm3046, 0, %v3170
    %v3173 = vmul.f32 %v3171, %v3171
    %v3174 = vmul.f32 %v3173, -0.001358992
    %v3175 = vadd.f32 %v3174, 0.041655596
    %v3176 = vmul.f32 %v3173, %v3175
    %v3177 = vadd.f32 %v3176, -0.4999988
    %v3178 = vmul.f32 %v3173, %v3177
    %v3179 = vadd.f32 1.0, %v3178
    %v3180 = vmul.f32 %v3171, %v3171
    %v3181 = vmul.f32 %v3180, -0.00019511016
    %v3182 = vadd.f32 %v3181, 0.008332121
    %v3183 = vmul.f32 %v3180, %v3182
    %v3184 = vadd.f32 %v3183, -0.16666654
    %v3185 = vmul.f32 %v3180, %v3184
    %v3186 = vadd.f32 %v3185, 1.0
    %v3187 = vmul.f32 %v3186, %v3171
    %vm3188 = vweird.f32 %v1346
    %v3189 = vand.u32 %v3172, 3
    %vm3190 = vcmp.lt.s32.totalorder %v3189, 2
    %vm3191 = vcmp.eq.s32.totalorder %v3189, 0
    %v3192 = vxor.u32 %v3187, 2147483648
    %v3193 = vsel %vm3191, %v3179, %v3192
    %vm3194 = vcmp.eq.s32.totalorder %v3189, 2
    %v3195 = vxor.u32 %v3179, 2147483648
    %v3196 = vsel %vm3194, %v3195, %v3187
    %v3197 = vsel %vm3190, %v3193, %v3196
    %v3198 = vsel %vm3188, nan, %v3197
    %v3199 = vand.u32 2147483647, %v1347
    %vm3200 = vcmp.le.f32.partialorder %v3199, 0.7853982
    %vm3201 = vcmp.lt.s32.totalorder %v1347, 0
    %v3202 = vand.u32 %v1347, 2139095040
    %v3203 = vshrl.u32 %v3202, 23
    %v3204 = vsub.s32 %v3203, 127
    %v3205 = vand.u32 2147483647, %v1347
    %v3206 = vand.u32 %v3205, 8388607
    %v3207 = vor.u32 %v3206, 8388608
    %v3208 = vsub.s32 0, %v3207
    %v3209 = vadd.s32 %v3204, 1
    %vm3210 = vcmp.gt.s32.totalorder %v3209, 0
    %v3211 = vsel %vm3210, %v3209, 0
    %v3212 = vshrl.u32 %v3211, 5
    %v3213 = vand.u32 %v3211, 31
    %v3214 = vsub.s32 32, %v3213
    %v3215 = vshrl.u32 683565275, %v3214
    %v3216 = vshll.u32 683565275, %v3213
    %v3217 = vshrl.u32 2475754826, %v3214
    %v3218 = vor.u32 %v3216, %v3217
    %v3219 = vshll.u32 2475754826, %v3213
    %v3220 = vshrl.u32 2131351028, %v3214
    %v3221 = vor.u32 %v3219, %v3220
    %v3222 = vshll.u32 2131351028, %v3213
    %v3223 = vshrl.u32 2102212464, %v3214
    %v3224 = vor.u32 %v3222, %v3223
    %v3225 = vshll.u32 2102212464, %v3213
    %v3226 = vshrl.u32 920167782, %v3214
    %v3227 = vor.u32 %v3225, %v3226
    %v3228 = vshll.u32 920167782, %v3213
    %v3229 = vshrl.u32 1326507024, %v3214
    %v3230 = vor.u32 %v3228, %v3229
    %vm3231 = vcmp.lt.s32.totalorder %v3212, 1
    %vm3232 = vcmp.lt.s32.totalorder %v3212, 2
    %vm3233 = vcmp.lt.s32.totalorder %v3212, 3
    %vm3234 = vcmp.lt.s32.totalorder %v3212, 4
    %v3235 = vsel %vm3231, %v3215, %v3218
    %v3236 = vsel %vm3234, %v3224, 2102212464
    %v3237 = vsel %vm3233, %v3221, %v3236
    %v3238 = vsel %vm3232, %v3235, %v3237
    %v3239 = vsel %vm3231, %v3218, %v3221
    %v3240 = vsel %vm3234, %v3227, 920167782
    %v3241 = vsel %vm3233, %v3224, %v3240
    %v3242 = vsel %vm3232, %v3239, %v3241
    %v3243 = vsel %vm3231, %v3221, %v3224
    %v3244 = vsel %vm3234, %v3230, 1326507024
    %v3245 = vsel %vm3233, %v3227, %v3244
    %v3246 = vsel %vm3232, %v3243, %v3245
    %v3247 = vshll.u32 %v3207, 8
    %v3248 = vand.u32 %v3247, 65535
    %v3249 = vshrl.u32 %v3247, 16
    %v3250 = vand.u32 %v3246, 65535
    %v3251 = vshrl.u32 %v3246, 16
    %v3252 = vmul.u32 %v3248, %v3250
    %v3253 = vmul.u32 %v3248, %v3251
    %v3254 = vmul.u32 %v3249, %v3250
    %v3255 = vmul.u32 %v3249, %v3251
    %v3256 = vshll.u32 %v3253, 16
    %v3257 = vshrl.u32 %v3253, 16
    %v3258 = vshll.u32 %v3254, 16
    %v3259 = vshrl.u32 %v3254, 16
    %vm3260 = vc.u32 %v3252, %v3256
    %v3261 = vsel %vm3260, 1, 0
    %v3262 = vadd.s32 %v3252, %v3256
    %v3263 = vadd.s32 %v3255, %v3261
    %vm3264 = vc.u32 %v3262, %v3258
    %v3265 = vsel %vm3264, 1, 0
    %v3266 = vadd.s32 %v3262, %v3258
    %v3267 = vadd.s32 %v3263, %v3265
    %v3268 = vadd.s32 %v3267, %v3257
    %v3269 = vadd.s32 %v3268, %v3259
    %v3270 = vand.u32 %v3247, 65535
    %v3271 = vshrl.u32 %v3247, 16
    %v3272 = vand.u32 %v3242, 65535
    %v3273 = vshrl.u32 %v3242, 16
    %v3274 = vmul.u32 %v3270, %v3272
    %v3275 = vmul.u32 %v3270, %v3273
    %v3276 = vmul.u32 %v3271, %v3272
    %v3277 = vmul.u32 %v3271, %v3273
    %v3278 = vshll.u32 %v3275, 16
    %v3279 = vshrl.u32 %v3275, 16
    %v3280 = vshll.u32 %v3276, 16
    %v3281 = vshrl.u32 %v3276, 16
    %vm3282 = vc.u32 %v3274, %v3278
    %v3283 = vsel %vm3282, 1, 0
    %v3284 = vadd.s32 %v3274, %v3278
    %v3285 = vadd.s32 %v3277, %v3283
    %vm3286 = vc.u32 %v3284, %v3280
    %v3287 = vsel %vm3286, 1, 0
    %v3288 = vadd.s32 %v3284, %v3280
    %v3289 = vadd.s32 %v3285, %v3287
    %v3290 = vadd.s32 %v3289, %v3279
    %v3291 = vadd.s32 %v3290, %v3281
    %v3292 = vmul.u32 %v3247, %v3238
    %v3293 = vadd.s32 %v3269, %v3288
    %vm3294 = vc.u32 %v3269, %v3288
    %v3295 = vadd.s32 %v3291, 1
    %v3296 = vsel %vm3294, %v3295, %v3291
    %v3297 = vadd.s32 %v3292, %v3296
    %v3298 = vadd.s32 %v3297, 536870912
    %v3299 = vshrl.u32 %v3298, 30
    %v3300 = vshll.u32 %v3299, 30
    %v3301 = vsub.s32 %v3297, %v3300
    %vm3302 = vcmp.lt.s32.totalorder %v3301, 0
    %v3303 = vsub.s32 0, %v3301
    %v3304 = vsel %vm3302, %v3303, %v3301
    %v3305 = vclz %v3304
    %v3306 = vsub.s32 %v3305, 2
    %vm3307 = vcmp.gt.s32.totalorder 0, %v3306
    %v3308 = vsel %vm3307, 0, %v3306
    %v3309 = vsub.s32 32, %v3308
    %v3310 = vshll.u32 %v3301, %v3308
    %v3311 = vshrl.u32 %v3293, %v3309
    %v3312 = vor.u32 %v3310, %v3311
    %v3313 = vsub.s32 4294967266, %v3308
    %v3314 = vadd.s32 %v3313, 127
    %v3315 = vshll.u32 %v3314, 23
    %v3316 = vor.u32 4788187, %v3315
    %v3317 = vand.u32 2147483647, %v3316
    %v3319 = vcvt.s32.f32 %v3312
    %v3320 = vmul.f32 %v3319, %v3317
    %v3321 = vxor.u32 %v3320, 2147483648
    %v3322 = vsel %vm3201, %v3321, %v3320
    %v3323 = vsub.s32 4, %v3299
    %v3324 = vsel %vm3201, %v3323, %v3299
    %v3325 = vsel %vm3200, %v1347, %v3322
    %v3326 = vsel %vm3200, 0, %v3324
    %v3327 = vmul.f32 %v3325, %v3325
    %v3328 = vmul.f32 %v3327, -0.001358992
    %v3329 = vadd.f32 %v3328, 0.041655596
    %v3330 = vmul.f32 %v3327, %v3329
    %v3331 = vadd.f32 %v3330, -0.4999988
    %v3332 = vmul.f32 %v3327, %v3331
    %v3333 = vadd.f32 1.0, %v3332
    %v3334 = vmul.f32 %v3325, %v3325
    %v3335 = vmul.f32 %v3334, -0.00019511016
    %v3336 = vadd.f32 %v3335, 0.008332121
    %v3337 = vmul.f32 %v3334, %v3336
    %v3338 = vadd.f32 %v3337, -0.16666654
    %v3339 = vmul.f32 %v3334, %v3338
    %v3340 = vadd.f32 %v3339, 1.0
    %v3341 = vmul.f32 %v3340, %v3325
    %vm3342 = vweird.f32 %v1347
    %v3343 = vand.u32 %v3326, 3
    %vm3344 = vcmp.lt.s32.totalorder %v3343, 2
    %vm3345 = vcmp.eq.s32.totalorder %v3343, 0
    %v3346 = vxor.u32 %v3341, 2147483648
    %v3347 = vsel %vm3345, %v3333, %v3346
    %vm3348 = vcmp.eq.s32.totalorder %v3343, 2
    %v3349 = vxor.u32 %v3333, 2147483648
    %v3350 = vsel %vm3348, %v3349, %v3341
    %v3351 = vsel %vm3344, %v3347, %v3350
    %v3352 = vsel %vm3342, nan, %v3351
    %v3353 = vand.u32 2147483647, %v1348
    %vm3354 = vcmp.le.f32.partialorder %v3353, 0.7853982
    %vm3355 = vcmp.lt.s32.totalorder %v1348, 0
    %v3356 = vand.u32 %v1348, 2139095040
    %v3357 = vshrl.u32 %v3356, 23
    %v3358 = vsub.s32 %v3357, 127
    %v3359 = vand.u32 2147483647, %v1348
    %v3360 = vand.u32 %v3359, 8388607
    %v3361 = vor.u32 %v3360, 8388608
    %v3362 = vsub.s32 0, %v3361
    %v3363 = vadd.s32 %v3358, 1
    %vm3364 = vcmp.gt.s32.totalorder %v3363, 0
    %v3365 = vsel %vm3364, %v3363, 0
    %v3366 = vshrl.u32 %v3365, 5
    %v3367 = vand.u32 %v3365, 31
    %v3368 = vsub.s32 32, %v3367
    %v3369 = vshrl.u32 683565275, %v3368
    %v3370 = vshll.u32 683565275, %v3367
    %v3371 = vshrl.u32 2475754826, %v3368
    %v3372 = vor.u32 %v3370, %v3371
    %v3373 = vshll.u32 2475754826, %v3367
    %v3374 = vshrl.u32 2131351028, %v3368
    %v3375 = vor.u32 %v3373, %v3374
    %v3376 = vshll.u32 2131351028, %v3367
    %v3377 = vshrl.u32 2102212464, %v3368
    %v3378 = vor.u32 %v3376, %v3377
    %v3379 = vshll.u32 2102212464, %v3367
    %v3380 = vshrl.u32 920167782, %v3368
    %v3381 = vor.u32 %v3379, %v3380
    %v3382 = vshll.u32 920167782, %v3367
    %v3383 = vshrl.u32 1326507024, %v3368
    %v3384 = vor.u32 %v3382, %v3383
    %vm3385 = vcmp.lt.s32.totalorder %v3366, 1
    %vm3386 = vcmp.lt.s32.totalorder %v3366, 2
    %vm3387 = vcmp.lt.s32.totalorder %v3366, 3
    %vm3388 = vcmp.lt.s32.totalorder %v3366, 4
    %v3389 = vsel %vm3385, %v3369, %v3372
    %v3390 = vsel %vm3388, %v3378, 2102212464
    %v3391 = vsel %vm3387, %v3375, %v3390
    %v3392 = vsel %vm3386, %v3389, %v3391
    %v3393 = vsel %vm3385, %v3372, %v3375
    %v3394 = vsel %vm3388, %v3381, 920167782
    %v3395 = vsel %vm3387, %v3378, %v3394
    %v3396 = vsel %vm3386, %v3393, %v3395
    %v3397 = vsel %vm3385, %v3375, %v3378
    %v3398 = vsel %vm3388, %v3384, 1326507024
    %v3399 = vsel %vm3387, %v3381, %v3398
    %v3400 = vsel %vm3386, %v3397, %v3399
    %v3401 = vshll.u32 %v3361, 8
    %v3402 = vand.u32 %v3401, 65535
    %v3403 = vshrl.u32 %v3401, 16
    %v3404 = vand.u32 %v3400, 65535
    %v3405 = vshrl.u32 %v3400, 16
    %v3406 = vmul.u32 %v3402, %v3404
    %v3407 = vmul.u32 %v3402, %v3405
    %v3408 = vmul.u32 %v3403, %v3404
    %v3409 = vmul.u32 %v3403, %v3405
    %v3410 = vshll.u32 %v3407, 16
    %v3411 = vshrl.u32 %v3407, 16
    %v3412 = vshll.u32 %v3408, 16
    %v3413 = vshrl.u32 %v3408, 16
    %vm3414 = vc.u32 %v3406, %v3410
    %v3415 = vsel %vm3414, 1, 0
    %v3416 = vadd.s32 %v3406, %v3410
    %v3417 = vadd.s32 %v3409, %v3415
    %vm3418 = vc.u32 %v3416, %v3412
    %v3419 = vsel %vm3418, 1, 0
    %v3420 = vadd.s32 %v3416, %v3412
    %v3421 = vadd.s32 %v3417, %v3419
    %v3422 = vadd.s32 %v3421, %v3411
    %v3423 = vadd.s32 %v3422, %v3413
    %v3424 = vand.u32 %v3401, 65535
    %v3425 = vshrl.u32 %v3401, 16
    %v3426 = vand.u32 %v3396, 65535
    %v3427 = vshrl.u32 %v3396, 16
    %v3428 = vmul.u32 %v3424, %v3426
    %v3429 = vmul.u32 %v3424, %v3427
    %v3430 = vmul.u32 %v3425, %v3426
    %v3431 = vmul.u32 %v3425, %v3427
    %v3432 = vshll.u32 %v3429, 16
    %v3433 = vshrl.u32 %v3429, 16
    %v3434 = vshll.u32 %v3430, 16
    %v3435 = vshrl.u32 %v3430, 16
    %vm3436 = vc.u32 %v3428, %v3432
    %v3437 = vsel %vm3436, 1, 0
    %v3438 = vadd.s32 %v3428, %v3432
    %v3439 = vadd.s32 %v3431, %v3437
    %vm3440 = vc.u32 %v3438, %v3434
    %v3441 = vsel %vm3440, 1, 0
    %v3442 = vadd.s32 %v3438, %v3434
    %v3443 = vadd.s32 %v3439, %v3441
    %v3444 = vadd.s32 %v3443, %v3433
    %v3445 = vadd.s32 %v3444, %v3435
    %v3446 = vmul.u32 %v3401, %v3392
    %v3447 = vadd.s32 %v3423, %v3442
    %vm3448 = vc.u32 %v3423, %v3442
    %v3449 = vadd.s32 %v3445, 1
    %v3450 = vsel %vm3448, %v3449, %v3445
    %v3451 = vadd.s32 %v3446, %v3450
    %v3452 = vadd.s32 %v3451, 536870912
    %v3453 = vshrl.u32 %v3452, 30
    %v3454 = vshll.u32 %v3453, 30
    %v3455 = vsub.s32 %v3451, %v3454
    %vm3456 = vcmp.lt.s32.totalorder %v3455, 0
    %v3457 = vsub.s32 0, %v3455
    %v3458 = vsel %vm3456, %v3457, %v3455
    %v3459 = vclz %v3458
    %v3460 = vsub.s32 %v3459, 2
    %vm3461 = vcmp.gt.s32.totalorder 0, %v3460
    %v3462 = vsel %vm3461, 0, %v3460
    %v3463 = vsub.s32 32, %v3462
    %v3464 = vshll.u32 %v3455, %v3462
    %v3465 = vshrl.u32 %v3447, %v3463
    %v3466 = vor.u32 %v3464, %v3465
    %v3467 = vsub.s32 4294967266, %v3462
    %v3468 = vadd.s32 %v3467, 127
    %v3469 = vshll.u32 %v3468, 23
    %v3470 = vor.u32 4788187, %v3469
    %v3471 = vand.u32 2147483647, %v3470
    %v3473 = vcvt.s32.f32 %v3466
    %v3474 = vmul.f32 %v3473, %v3471
    %v3475 = vxor.u32 %v3474, 2147483648
    %v3476 = vsel %vm3355, %v3475, %v3474
    %v3477 = vsub.s32 4, %v3453
    %v3478 = vsel %vm3355, %v3477, %v3453
    %v3479 = vsel %vm3354, %v1348, %v3476
    %v3480 = vsel %vm3354, 0, %v3478
    %v3481 = vmul.f32 %v3479, %v3479
    %v3482 = vmul.f32 %v3481, -0.001358992
    %v3483 = vadd.f32 %v3482, 0.041655596
    %v3484 = vmul.f32 %v3481, %v3483
    %v3485 = vadd.f32 %v3484, -0.4999988
    %v3486 = vmul.f32 %v3481, %v3485
    %v3487 = vadd.f32 1.0, %v3486
    %v3488 = vmul.f32 %v3479, %v3479
    %v3489 = vmul.f32 %v3488, -0.00019511016
    %v3490 = vadd.f32 %v3489, 0.008332121
    %v3491 = vmul.f32 %v3488, %v3490
    %v3492 = vadd.f32 %v3491, -0.16666654
    %v3493 = vmul.f32 %v3488, %v3492
    %v3494 = vadd.f32 %v3493, 1.0
    %v3495 = vmul.f32 %v3494, %v3479
    %vm3496 = vweird.f32 %v1348
    %v3497 = vand.u32 %v3480, 3
    %vm3498 = vcmp.lt.s32.totalorder %v3497, 2
    %vm3499 = vcmp.eq.s32.totalorder %v3497, 0
    %v3500 = vxor.u32 %v3495, 2147483648
    %v3501 = vsel %vm3499, %v3487, %v3500
    %vm3502 = vcmp.eq.s32.totalorder %v3497, 2
    %v3503 = vxor.u32 %v3487, 2147483648
    %v3504 = vsel %vm3502, %v3503, %v3495
    %v3505 = vsel %vm3498, %v3501, %v3504
    %v3506 = vsel %vm3496, nan, %v3505
    %v3507 = vand.u32 2147483647, %v1349
    %vm3508 = vcmp.le.f32.partialorder %v3507, 0.7853982
    %vm3509 = vcmp.lt.s32.totalorder %v1349, 0
    %v3510 = vand.u32 %v1349, 2139095040
    %v3511 = vshrl.u32 %v3510, 23
    %v3512 = vsub.s32 %v3511, 127
    %v3513 = vand.u32 2147483647, %v1349
    %v3514 = vand.u32 %v3513, 8388607
    %v3515 = vor.u32 %v3514, 8388608
    %v3516 = vsub.s32 0, %v3515
    %v3517 = vadd.s32 %v3512, 1
    %vm3518 = vcmp.gt.s32.totalorder %v3517, 0
    %v3519 = vsel %vm3518, %v3517, 0
    %v3520 = vshrl.u32 %v3519, 5
    %v3521 = vand.u32 %v3519, 31
    %v3522 = vsub.s32 32, %v3521
    %v3523 = vshrl.u32 683565275, %v3522
    %v3524 = vshll.u32 683565275, %v3521
    %v3525 = vshrl.u32 2475754826, %v3522
    %v3526 = vor.u32 %v3524, %v3525
    %v3527 = vshll.u32 2475754826, %v3521
    %v3528 = vshrl.u32 2131351028, %v3522
    %v3529 = vor.u32 %v3527, %v3528
    %v3530 = vshll.u32 2131351028, %v3521
    %v3531 = vshrl.u32 2102212464, %v3522
    %v3532 = vor.u32 %v3530, %v3531
    %v3533 = vshll.u32 2102212464, %v3521
    %v3534 = vshrl.u32 920167782, %v3522
    %v3535 = vor.u32 %v3533, %v3534
    %v3536 = vshll.u32 920167782, %v3521
    %v3537 = vshrl.u32 1326507024, %v3522
    %v3538 = vor.u32 %v3536, %v3537
    %vm3539 = vcmp.lt.s32.totalorder %v3520, 1
    %vm3540 = vcmp.lt.s32.totalorder %v3520, 2
    %vm3541 = vcmp.lt.s32.totalorder %v3520, 3
    %vm3542 = vcmp.lt.s32.totalorder %v3520, 4
    %v3543 = vsel %vm3539, %v3523, %v3526
    %v3544 = vsel %vm3542, %v3532, 2102212464
    %v3545 = vsel %vm3541, %v3529, %v3544
    %v3546 = vsel %vm3540, %v3543, %v3545
    %v3547 = vsel %vm3539, %v3526, %v3529
    %v3548 = vsel %vm3542, %v3535, 920167782
    %v3549 = vsel %vm3541, %v3532, %v3548
    %v3550 = vsel %vm3540, %v3547, %v3549
    %v3551 = vsel %vm3539, %v3529, %v3532
    %v3552 = vsel %vm3542, %v3538, 1326507024
    %v3553 = vsel %vm3541, %v3535, %v3552
    %v3554 = vsel %vm3540, %v3551, %v3553
    %v3555 = vshll.u32 %v3515, 8
    %v3556 = vand.u32 %v3555, 65535
    %v3557 = vshrl.u32 %v3555, 16
    %v3558 = vand.u32 %v3554, 65535
    %v3559 = vshrl.u32 %v3554, 16
    %v3560 = vmul.u32 %v3556, %v3558
    %v3561 = vmul.u32 %v3556, %v3559
    %v3562 = vmul.u32 %v3557, %v3558
    %v3563 = vmul.u32 %v3557, %v3559
    %v3564 = vshll.u32 %v3561, 16
    %v3565 = vshrl.u32 %v3561, 16
    %v3566 = vshll.u32 %v3562, 16
    %v3567 = vshrl.u32 %v3562, 16
    %vm3568 = vc.u32 %v3560, %v3564
    %v3569 = vsel %vm3568, 1, 0
    %v3570 = vadd.s32 %v3560, %v3564
    %v3571 = vadd.s32 %v3563, %v3569
    %vm3572 = vc.u32 %v3570, %v3566
    %v3573 = vsel %vm3572, 1, 0
    %v3574 = vadd.s32 %v3570, %v3566
    %v3575 = vadd.s32 %v3571, %v3573
    %v3576 = vadd.s32 %v3575, %v3565
    %v3577 = vadd.s32 %v3576, %v3567
    %v3578 = vand.u32 %v3555, 65535
    %v3579 = vshrl.u32 %v3555, 16
    %v3580 = vand.u32 %v3550, 65535
    %v3581 = vshrl.u32 %v3550, 16
    %v3582 = vmul.u32 %v3578, %v3580
    %v3583 = vmul.u32 %v3578, %v3581
    %v3584 = vmul.u32 %v3579, %v3580
    %v3585 = vmul.u32 %v3579, %v3581
    %v3586 = vshll.u32 %v3583, 16
    %v3587 = vshrl.u32 %v3583, 16
    %v3588 = vshll.u32 %v3584, 16
    %v3589 = vshrl.u32 %v3584, 16
    %vm3590 = vc.u32 %v3582, %v3586
    %v3591 = vsel %vm3590, 1, 0
    %v3592 = vadd.s32 %v3582, %v3586
    %v3593 = vadd.s32 %v3585, %v3591
    %vm3594 = vc.u32 %v3592, %v3588
    %v3595 = vsel %vm3594, 1, 0
    %v3596 = vadd.s32 %v3592, %v3588
    %v3597 = vadd.s32 %v3593, %v3595
    %v3598 = vadd.s32 %v3597, %v3587
    %v3599 = vadd.s32 %v3598, %v3589
    %v3600 = vmul.u32 %v3555, %v3546
    %v3601 = vadd.s32 %v3577, %v3596
    %vm3602 = vc.u32 %v3577, %v3596
    %v3603 = vadd.s32 %v3599, 1
    %v3604 = vsel %vm3602, %v3603, %v3599
    %v3605 = vadd.s32 %v3600, %v3604
    %v3606 = vadd.s32 %v3605, 536870912
    %v3607 = vshrl.u32 %v3606, 30
    %v3608 = vshll.u32 %v3607, 30
    %v3609 = vsub.s32 %v3605, %v3608
    %vm3610 = vcmp.lt.s32.totalorder %v3609, 0
    %v3611 = vsub.s32 0, %v3609
    %v3612 = vsel %vm3610, %v3611, %v3609
    %v3613 = vclz %v3612
    %v3614 = vsub.s32 %v3613, 2
    %vm3615 = vcmp.gt.s32.totalorder 0, %v3614
    %v3616 = vsel %vm3615, 0, %v3614
    %v3617 = vsub.s32 32, %v3616
    %v3618 = vshll.u32 %v3609, %v3616
    %v3619 = vshrl.u32 %v3601, %v3617
    %v3620 = vor.u32 %v3618, %v3619
    %v3621 = vsub.s32 4294967266, %v3616
    %v3622 = vadd.s32 %v3621, 127
    %v3623 = vshll.u32 %v3622, 23
    %v3624 = vor.u32 4788187, %v3623
    %v3625 = vand.u32 2147483647, %v3624
    %v3627 = vcvt.s32.f32 %v3620
    %v3628 = vmul.f32 %v3627, %v3625
    %v3629 = vxor.u32 %v3628, 2147483648
    %v3630 = vsel %vm3509, %v3629, %v3628
    %v3631 = vsub.s32 4, %v3607
    %v3632 = vsel %vm3509, %v3631, %v3607
    %v3633 = vsel %vm3508, %v1349, %v3630
    %v3634 = vsel %vm3508, 0, %v3632
    %v3635 = vmul.f32 %v3633, %v3633
    %v3636 = vmul.f32 %v3635, -0.001358992
    %v3637 = vadd.f32 %v3636, 0.041655596
    %v3638 = vmul.f32 %v3635, %v3637
    %v3639 = vadd.f32 %v3638, -0.4999988
    %v3640 = vmul.f32 %v3635, %v3639
    %v3641 = vadd.f32 1.0, %v3640
    %v3642 = vmul.f32 %v3633, %v3633
    %v3643 = vmul.f32 %v3642, -0.00019511016
    %v3644 = vadd.f32 %v3643, 0.008332121
    %v3645 = vmul.f32 %v3642, %v3644
    %v3646 = vadd.f32 %v3645, -0.16666654
    %v3647 = vmul.f32 %v3642, %v3646
    %v3648 = vadd.f32 %v3647, 1.0
    %v3649 = vmul.f32 %v3648, %v3633
    %vm3650 = vweird.f32 %v1349
    %v3651 = vand.u32 %v3634, 3
    %vm3652 = vcmp.lt.s32.totalorder %v3651, 2
    %vm3653 = vcmp.eq.s32.totalorder %v3651, 0
    %v3654 = vxor.u32 %v3649, 2147483648
    %v3655 = vsel %vm3653, %v3641, %v3654
    %vm3656 = vcmp.eq.s32.totalorder %v3651, 2
    %v3657 = vxor.u32 %v3641, 2147483648
    %v3658 = vsel %vm3656, %v3657, %v3649
    %v3659 = vsel %vm3652, %v3655, %v3658
    %v3660 = vsel %vm3650, nan, %v3659
    %v3661 = vand.u32 2147483647, %v1350
    %vm3662 = vcmp.le.f32.partialorder %v3661, 0.7853982
    %vm3663 = vcmp.lt.s32.totalorder %v1350, 0
    %v3664 = vand.u32 %v1350, 2139095040
    %v3665 = vshrl.u32 %v3664, 23
    %v3666 = vsub.s32 %v3665, 127
    %v3667 = vand.u32 2147483647, %v1350
    %v3668 = vand.u32 %v3667, 8388607
    %v3669 = vor.u32 %v3668, 8388608
    %v3670 = vsub.s32 0, %v3669
    %v3671 = vadd.s32 %v3666, 1
    %vm3672 = vcmp.gt.s32.totalorder %v3671, 0
    %v3673 = vsel %vm3672, %v3671, 0
    %v3674 = vshrl.u32 %v3673, 5
    %v3675 = vand.u32 %v3673, 31
    %v3676 = vsub.s32 32, %v3675
    %v3677 = vshrl.u32 683565275, %v3676
    %v3678 = vshll.u32 683565275, %v3675
    %v3679 = vshrl.u32 2475754826, %v3676
    %v3680 = vor.u32 %v3678, %v3679
    %v3681 = vshll.u32 2475754826, %v3675
    %v3682 = vshrl.u32 2131351028, %v3676
    %v3683 = vor.u32 %v3681, %v3682
    %v3684 = vshll.u32 2131351028, %v3675
    %v3685 = vshrl.u32 2102212464, %v3676
    %v3686 = vor.u32 %v3684, %v3685
    %v3687 = vshll.u32 2102212464, %v3675
    %v3688 = vshrl.u32 920167782, %v3676
    %v3689 = vor.u32 %v3687, %v3688
    %v3690 = vshll.u32 920167782, %v3675
    %v3691 = vshrl.u32 1326507024, %v3676
    %v3692 = vor.u32 %v3690, %v3691
    %vm3693 = vcmp.lt.s32.totalorder %v3674, 1
    %vm3694 = vcmp.lt.s32.totalorder %v3674, 2
    %vm3695 = vcmp.lt.s32.totalorder %v3674, 3
    %vm3696 = vcmp.lt.s32.totalorder %v3674, 4
    %v3697 = vsel %vm3693, %v3677, %v3680
    %v3698 = vsel %vm3696, %v3686, 2102212464
    %v3699 = vsel %vm3695, %v3683, %v3698
    %v3700 = vsel %vm3694, %v3697, %v3699
    %v3701 = vsel %vm3693, %v3680, %v3683
    %v3702 = vsel %vm3696, %v3689, 920167782
    %v3703 = vsel %vm3695, %v3686, %v3702
    %v3704 = vsel %vm3694, %v3701, %v3703
    %v3705 = vsel %vm3693, %v3683, %v3686
    %v3706 = vsel %vm3696, %v3692, 1326507024
    %v3707 = vsel %vm3695, %v3689, %v3706
    %v3708 = vsel %vm3694, %v3705, %v3707
    %v3709 = vshll.u32 %v3669, 8
    %v3710 = vand.u32 %v3709, 65535
    %v3711 = vshrl.u32 %v3709, 16
    %v3712 = vand.u32 %v3708, 65535
    %v3713 = vshrl.u32 %v3708, 16
    %v3714 = vmul.u32 %v3710, %v3712
    %v3715 = vmul.u32 %v3710, %v3713
    %v3716 = vmul.u32 %v3711, %v3712
    %v3717 = vmul.u32 %v3711, %v3713
    %v3718 = vshll.u32 %v3715, 16
    %v3719 = vshrl.u32 %v3715, 16
    %v3720 = vshll.u32 %v3716, 16
    %v3721 = vshrl.u32 %v3716, 16
    %vm3722 = vc.u32 %v3714, %v3718
    %v3723 = vsel %vm3722, 1, 0
    %v3724 = vadd.s32 %v3714, %v3718
    %v3725 = vadd.s32 %v3717, %v3723
    %vm3726 = vc.u32 %v3724, %v3720
    %v3727 = vsel %vm3726, 1, 0
    %v3728 = vadd.s32 %v3724, %v3720
    %v3729 = vadd.s32 %v3725, %v3727
    %v3730 = vadd.s32 %v3729, %v3719
    %v3731 = vadd.s32 %v3730, %v3721
    %v3732 = vand.u32 %v3709, 65535
    %v3733 = vshrl.u32 %v3709, 16
    %v3734 = vand.u32 %v3704, 65535
    %v3735 = vshrl.u32 %v3704, 16
    %v3736 = vmul.u32 %v3732, %v3734
    %v3737 = vmul.u32 %v3732, %v3735
    %v3738 = vmul.u32 %v3733, %v3734
    %v3739 = vmul.u32 %v3733, %v3735
    %v3740 = vshll.u32 %v3737, 16
    %v3741 = vshrl.u32 %v3737, 16
    %v3742 = vshll.u32 %v3738, 16
    %v3743 = vshrl.u32 %v3738, 16
    %vm3744 = vc.u32 %v3736, %v3740
    %v3745 = vsel %vm3744, 1, 0
    %v3746 = vadd.s32 %v3736, %v3740
    %v3747 = vadd.s32 %v3739, %v3745
    %vm3748 = vc.u32 %v3746, %v3742
    %v3749 = vsel %vm3748, 1, 0
    %v3750 = vadd.s32 %v3746, %v3742
    %v3751 = vadd.s32 %v3747, %v3749
    %v3752 = vadd.s32 %v3751, %v3741
    %v3753 = vadd.s32 %v3752, %v3743
    %v3754 = vmul.u32 %v3709, %v3700
    %v3755 = vadd.s32 %v3731, %v3750
    %vm3756 = vc.u32 %v3731, %v3750
    %v3757 = vadd.s32 %v3753, 1
    %v3758 = vsel %vm3756, %v3757, %v3753
    %v3759 = vadd.s32 %v3754, %v3758
    %v3760 = vadd.s32 %v3759, 536870912
    %v3761 = vshrl.u32 %v3760, 30
    %v3762 = vshll.u32 %v3761, 30
    %v3763 = vsub.s32 %v3759, %v3762
    %vm3764 = vcmp.lt.s32.totalorder %v3763, 0
    %v3765 = vsub.s32 0, %v3763
    %v3766 = vsel %vm3764, %v3765, %v3763
    %v3767 = vclz %v3766
    %v3768 = vsub.s32 %v3767, 2
    %vm3769 = vcmp.gt.s32.totalorder 0, %v3768
    %v3770 = vsel %vm3769, 0, %v3768
    %v3771 = vsub.s32 32, %v3770
    %v3772 = vshll.u32 %v3763, %v3770
    %v3773 = vshrl.u32 %v3755, %v3771
    %v3774 = vor.u32 %v3772, %v3773
    %v3775 = vsub.s32 4294967266, %v3770
    %v3776 = vadd.s32 %v3775, 127
    %v3777 = vshll.u32 %v3776, 23
    %v3778 = vor.u32 4788187, %v3777
    %v3779 = vand.u32 2147483647, %v3778
    %v3781 = vcvt.s32.f32 %v3774
    %v3782 = vmul.f32 %v3781, %v3779
    %v3783 = vxor.u32 %v3782, 2147483648
    %v3784 = vsel %vm3663, %v3783, %v3782
    %v3785 = vsub.s32 4, %v3761
    %v3786 = vsel %vm3663, %v3785, %v3761
    %v3787 = vsel %vm3662, %v1350, %v3784
    %v3788 = vsel %vm3662, 0, %v3786
    %v3789 = vmul.f32 %v3787, %v3787
    %v3790 = vmul.f32 %v3789, -0.001358992
    %v3791 = vadd.f32 %v3790, 0.041655596
    %v3792 = vmul.f32 %v3789, %v3791
    %v3793 = vadd.f32 %v3792, -0.4999988
    %v3794 = vmul.f32 %v3789, %v3793
    %v3795 = vadd.f32 1.0, %v3794
    %v3796 = vmul.f32 %v3787, %v3787
    %v3797 = vmul.f32 %v3796, -0.00019511016
    %v3798 = vadd.f32 %v3797, 0.008332121
    %v3799 = vmul.f32 %v3796, %v3798
    %v3800 = vadd.f32 %v3799, -0.16666654
    %v3801 = vmul.f32 %v3796, %v3800
    %v3802 = vadd.f32 %v3801, 1.0
    %v3803 = vmul.f32 %v3802, %v3787
    %vm3804 = vweird.f32 %v1350
    %v3805 = vand.u32 %v3788, 3
    %vm3806 = vcmp.lt.s32.totalorder %v3805, 2
    %vm3807 = vcmp.eq.s32.totalorder %v3805, 0
    %v3808 = vxor.u32 %v3803, 2147483648
    %v3809 = vsel %vm3807, %v3795, %v3808
    %vm3810 = vcmp.eq.s32.totalorder %v3805, 2
    %v3811 = vxor.u32 %v3795, 2147483648
    %v3812 = vsel %vm3810, %v3811, %v3803
    %v3813 = vsel %vm3806, %v3809, %v3812
    %v3814 = vsel %vm3804, nan, %v3813
    %v3815 = vmul.f32 %v1154, %v1504
    %v3816 = vmul.f32 %v1166, %v1658
    %v3817 = vmul.f32 %v1178, %v1812
    %v3818 = vmul.f32 %v1190, %v1966
    %v3819 = vmul.f32 %v1202, %v2120
    %v3820 = vmul.f32 %v1214, %v2274
    %v3821 = vmul.f32 %v1226, %v2428
    %v3822 = vmul.f32 %v1238, %v2582
    %v3823 = vmul.f32 %v1250, %v2736
    %v3824 = vmul.f32 %v1262, %v2890
    %v3825 = vmul.f32 %v1274, %v3044
    %v3826 = vmul.f32 %v1286, %v3198
    %v3827 = vmul.f32 %v1298, %v3352
    %v3828 = vmul.f32 %v1310, %v3506
    %v3829 = vmul.f32 %v1322, %v3660
    %v3830 = vmul.f32 %v1334, %v3814
    %v3831 = vmul.f32 %v3815, 20.0
    %v3832 = vmul.f32 %v3816, 20.0
    %v3833 = vmul.f32 %v3817, 20.0
    %v3834 = vmul.f32 %v3818, 20.0
    %v3835 = vmul.f32 %v3819, 20.0
    %v3836 = vmul.f32 %v3820, 20.0
    %v3837 = vmul.f32 %v3821, 20.0
    %v3838 = vmul.f32 %v3822, 20.0
    %v3839 = vmul.f32 %v3823, 20.0
    %v3840 = vmul.f32 %v3824, 20.0
    %v3841 = vmul.f32 %v3825, 20.0
    %v3842 = vmul.f32 %v3826, 20.0
    %v3843 = vmul.f32 %v3827, 20.0
    %v3844 = vmul.f32 %v3828, 20.0
    %v3845 = vmul.f32 %v3829, 20.0
    %v3846 = vmul.f32 %v3830, 20.0
    %v3847 = vadd.f32 %v663, %v3831
    %v3848 = vadd.f32 %v664, %v3832
    %v3849 = vadd.f32 %v665, %v3833
    %v3850 = vadd.f32 %v666, %v3834
    %v3851 = vadd.f32 %v667, %v3835
    %v3852 = vadd.f32 %v668, %v3836
    %v3853 = vadd.f32 %v669, %v3837
    %v3854 = vadd.f32 %v670, %v3838
    %v3855 = vadd.f32 %v671, %v3839
    %v3856 = vadd.f32 %v672, %v3840
    %v3857 = vadd.f32 %v673, %v3841
    %v3858 = vadd.f32 %v674, %v3842
    %v3859 = vadd.f32 %v675, %v3843
    %v3860 = vadd.f32 %v676, %v3844
    %v3861 = vadd.f32 %v677, %v3845
    %v3862 = vadd.f32 %v678, %v3846
    %s3863 = sld [smem:[#allocation3]]
    %s3864 = sld [smem:[#allocation3 + $0x1]]
    %s3865 = sld [smem:[#allocation3 + $0x2]]
    %v3866 = vstv %s3863
    %vm3867 = vcmp.lt.f32.partialorder %v48, %v3866
    %vm3868 = vcmp.lt.f32.partialorder %v49, %v3866
    %vm3869 = vcmp.lt.f32.partialorder %v50, %v3866
    %vm3870 = vcmp.lt.f32.partialorder %v51, %v3866
    %vm3871 = vcmp.lt.f32.partialorder %v52, %v3866
    %vm3872 = vcmp.lt.f32.partialorder %v53, %v3866
    %vm3873 = vcmp.lt.f32.partialorder %v54, %v3866
    %vm3874 = vcmp.lt.f32.partialorder %v55, %v3866
    %vm3875 = vcmp.lt.f32.partialorder %v56, %v3866
    %vm3876 = vcmp.lt.f32.partialorder %v57, %v3866
    %vm3877 = vcmp.lt.f32.partialorder %v58, %v3866
    %vm3878 = vcmp.lt.f32.partialorder %v59, %v3866
    %vm3879 = vcmp.lt.f32.partialorder %v60, %v3866
    %vm3880 = vcmp.lt.f32.partialorder %v61, %v3866
    %vm3881 = vcmp.lt.f32.partialorder %v62, %v3866
    %vm3882 = vcmp.lt.f32.partialorder %v63, %v3866
    %v3883 = vstv %s3864
    %v3884 = vsub.f32 %v48, %v3883
    %v3885 = vsub.f32 %v49, %v3883
    %v3886 = vsub.f32 %v50, %v3883
    %v3887 = vsub.f32 %v51, %v3883
    %v3888 = vsub.f32 %v52, %v3883
    %v3889 = vsub.f32 %v53, %v3883
    %v3890 = vsub.f32 %v54, %v3883
    %v3891 = vsub.f32 %v55, %v3883
    %v3892 = vsub.f32 %v56, %v3883
    %v3893 = vsub.f32 %v57, %v3883
    %v3894 = vsub.f32 %v58, %v3883
    %v3895 = vsub.f32 %v59, %v3883
    %v3896 = vsub.f32 %v60, %v3883
    %v3897 = vsub.f32 %v61, %v3883
    %v3898 = vsub.f32 %v62, %v3883
    %v3899 = vsub.f32 %v63, %v3883
    %s3900 = ssub.f32 %s3863, %s3864
    %v3901 = vstv %s3900
    %v3902 = vrcp.pop %v3901
    %v3903 = vmul.f32 %v3901, %v3902
    %v3904 = vsub.f32 1.0, %v3903
    %v3905 = vmul.f32 %v3902, %v3904
    %v3906 = vadd.f32 %v3902, %v3905
    %vm3907 = vweird.f32 %v3901
    %vm3908 = vweird.f32 %v3902
    %vm3909 = vmor %vm3907, %vm3908
    %v3910 = vsel %vm3909, %v3902, %v3906
    %v3911 = vand.u32 2147483647, %v3901
    %vm3912 = vcmp.eq.f32.partialorder %v3911, 8.507059e+37
    %v3913 = vand.u32 %v3901, 2147483648
    %v3914 = vor.u32 1.1754944e-38, %v3913
    %v3915 = vsel %vm3912, %v3914, %v3910
    %v3916 = vmul.f32 %v3884, %v3915
    %v3917 = vmul.f32 %v3885, %v3915
    %v3918 = vmul.f32 %v3886, %v3915
    %v3919 = vmul.f32 %v3887, %v3915
    %v3920 = vmul.f32 %v3888, %v3915
    %v3921 = vmul.f32 %v3889, %v3915
    %v3922 = vmul.f32 %v3890, %v3915
    %v3923 = vmul.f32 %v3891, %v3915
    %v3924 = vmul.f32 %v3892, %v3915
    %v3925 = vmul.f32 %v3893, %v3915
    %v3926 = vmul.f32 %v3894, %v3915
    %v3927 = vmul.f32 %v3895, %v3915
    %v3928 = vmul.f32 %v3896, %v3915
    %v3929 = vmul.f32 %v3897, %v3915
    %v3930 = vmul.f32 %v3898, %v3915
    %v3931 = vmul.f32 %v3899, %v3915
    %v3932 = vstv %s3865
    %v3933 = vsub.f32 %v3932, %v48
    %v3934 = vsub.f32 %v3932, %v49
    %v3935 = vsub.f32 %v3932, %v50
    %v3936 = vsub.f32 %v3932, %v51
    %v3937 = vsub.f32 %v3932, %v52
    %v3938 = vsub.f32 %v3932, %v53
    %v3939 = vsub.f32 %v3932, %v54
    %v3940 = vsub.f32 %v3932, %v55
    %v3941 = vsub.f32 %v3932, %v56
    %v3942 = vsub.f32 %v3932, %v57
    %v3943 = vsub.f32 %v3932, %v58
    %v3944 = vsub.f32 %v3932, %v59
    %v3945 = vsub.f32 %v3932, %v60
    %v3946 = vsub.f32 %v3932, %v61
    %v3947 = vsub.f32 %v3932, %v62
    %v3948 = vsub.f32 %v3932, %v63
    %s3949 = ssub.f32 %s3865, %s3863
    %v3950 = vstv %s3949
    %v3951 = vrcp.pop %v3950
    %v3952 = vmul.f32 %v3950, %v3951
    %v3953 = vsub.f32 1.0, %v3952
    %v3954 = vmul.f32 %v3951, %v3953
    %v3955 = vadd.f32 %v3951, %v3954
    %vm3956 = vweird.f32 %v3950
    %vm3957 = vweird.f32 %v3951
    %vm3958 = vmor %vm3956, %vm3957
    %v3959 = vsel %vm3958, %v3951, %v3955
    %v3960 = vand.u32 2147483647, %v3950
    %vm3961 = vcmp.eq.f32.partialorder %v3960, 8.507059e+37
    %v3962 = vand.u32 %v3950, 2147483648
    %v3963 = vor.u32 1.1754944e-38, %v3962
    %v3964 = vsel %vm3961, %v3963, %v3959
    %v3965 = vmul.f32 %v3933, %v3964
    %v3966 = vmul.f32 %v3934, %v3964
    %v3967 = vmul.f32 %v3935, %v3964
    %v3968 = vmul.f32 %v3936, %v3964
    %v3969 = vmul.f32 %v3937, %v3964
    %v3970 = vmul.f32 %v3938, %v3964
    %v3971 = vmul.f32 %v3939, %v3964
    %v3972 = vmul.f32 %v3940, %v3964
    %v3973 = vmul.f32 %v3941, %v3964
    %v3974 = vmul.f32 %v3942, %v3964
    %v3975 = vmul.f32 %v3943, %v3964
    %v3976 = vmul.f32 %v3944, %v3964
    %v3977 = vmul.f32 %v3945, %v3964
    %v3978 = vmul.f32 %v3946, %v3964
    %v3979 = vmul.f32 %v3947, %v3964
    %v3980 = vmul.f32 %v3948, %v3964
    %v3981 = vsel %vm3867, %v3916, %v3965
    %v3982 = vsel %vm3868, %v3917, %v3966
    %v3983 = vsel %vm3869, %v3918, %v3967
    %v3984 = vsel %vm3870, %v3919, %v3968
    %v3985 = vsel %vm3871, %v3920, %v3969
    %v3986 = vsel %vm3872, %v3921, %v3970
    %v3987 = vsel %vm3873, %v3922, %v3971
    %v3988 = vsel %vm3874, %v3923, %v3972
    %v3989 = vsel %vm3875, %v3924, %v3973
    %v3990 = vsel %vm3876, %v3925, %v3974
    %v3991 = vsel %vm3877, %v3926, %v3975
    %v3992 = vsel %vm3878, %v3927, %v3976
    %v3993 = vsel %vm3879, %v3928, %v3977
    %v3994 = vsel %vm3880, %v3929, %v3978
    %v3995 = vsel %vm3881, %v3930, %v3979
    %v3996 = vsel %vm3882, %v3931, %v3980
    %v3997 = vld [vmem:[%s6] sm:$0xff]
    %v3998 = vld [vmem:[%s6 + $0x8] sm:$0xff]
    %v3999 = vld [vmem:[%s6 + $0x10] sm:$0xff]
    %v4000 = vld [vmem:[%s6 + $0x18] sm:$0xff]
    %v4001 = vld [vmem:[%s6 + $0x20] sm:$0xff]
    %v4002 = vld [vmem:[%s6 + $0x28] sm:$0xff]
    %v4003 = vld [vmem:[%s6 + $0x30] sm:$0xff]
    %v4004 = vld [vmem:[%s6 + $0x38] sm:$0xff]
    %v4005 = vld [vmem:[%s6 + $0x40] sm:$0xff]
    %v4006 = vld [vmem:[%s6 + $0x48] sm:$0xff]
    %v4007 = vld [vmem:[%s6 + $0x50] sm:$0xff]
    %v4008 = vld [vmem:[%s6 + $0x58] sm:$0xff]
    %v4009 = vld [vmem:[%s6 + $0x60] sm:$0xff]
    %v4010 = vld [vmem:[%s6 + $0x68] sm:$0xff]
    %v4011 = vld [vmem:[%s6 + $0x70] sm:$0xff]
    %v4012 = vld [vmem:[%s6 + $0x78] sm:$0xff]
    %v4013 = vld [vmem:[%s5] sm:$0xff]
    %vm4014 = vcmask 64512
    %v4016 = vsel %vm4014, %v3997, 0
    %v4019 = vsel %vm4014, %v3998, 0
    %v4022 = vsel %vm4014, %v3999, 0
    %v4025 = vsel %vm4014, %v4000, 0
    %v4028 = vsel %vm4014, %v4001, 0
    %v4031 = vsel %vm4014, %v4002, 0
    %v4034 = vsel %vm4014, %v4003, 0
    %v4037 = vsel %vm4014, %v4004, 0
    %v4040 = vsel %vm4014, %v4005, 0
    %v4043 = vsel %vm4014, %v4006, 0
    %v4046 = vsel %vm4014, %v4007, 0
    %v4049 = vsel %vm4014, %v4008, 0
    %v4052 = vsel %vm4014, %v4009, 0
    %v4055 = vsel %vm4014, %v4010, 0
    %v4058 = vsel %vm4014, %v4011, 0
    %v4061 = vsel %vm4014, %v4012, 0
    %4063 = vmatpush.msra.mxu0 0.0
    %4064 = vmatpush.msra.mxu0 0.0
    %4065 = vmatpush.msra.mxu0 0.0
    %4066 = vmatpush.msra.mxu0 0.0
    %4067 = vmatpush.msra.mxu0 0.0
    %4068 = vmatpush.msra.mxu0 0.0
    %4069 = vmatpush.msra.mxu0 0.0
    %4070 = vmatpush.msra.mxu0 0.0
    %4071 = vmatpush.msra.mxu0 0.0
    %4072 = vmatpush.msra.mxu0 0.0
    %4073 = vmatpush.msra.mxu0 0.0
    %4074 = vmatpush.msra.mxu0 0.0
    %4075 = vmatpush.msra.mxu0 0.0
    %4076 = vmatpush.msra.mxu0 0.0
    %4077 = vmatpush.msra.mxu0 0.0
    %4078 = vmatpush.msra.mxu0 %v4013
    %4079 = vmatmul.f32.gmra.mxu0 %v4016
    %v4080 = vpop.f32.mrf.mxu0
    %v4081 = vadd.f32 0.0, %v4080
    %4082 = vmatmul.f32.gmra.mxu0 %v4019
    %v4083 = vpop.f32.mrf.mxu0
    %v4084 = vadd.f32 0.0, %v4083
    %4085 = vmatmul.f32.gmra.mxu0 %v4022
    %v4086 = vpop.f32.mrf.mxu0
    %v4087 = vadd.f32 0.0, %v4086
    %4088 = vmatmul.f32.gmra.mxu0 %v4025
    %v4089 = vpop.f32.mrf.mxu0
    %v4090 = vadd.f32 0.0, %v4089
    %4091 = vmatmul.f32.gmra.mxu0 %v4028
    %v4092 = vpop.f32.mrf.mxu0
    %v4093 = vadd.f32 0.0, %v4092
    %4094 = vmatmul.f32.gmra.mxu0 %v4031
    %v4095 = vpop.f32.mrf.mxu0
    %v4096 = vadd.f32 0.0, %v4095
    %4097 = vmatmul.f32.gmra.mxu0 %v4034
    %v4098 = vpop.f32.mrf.mxu0
    %v4099 = vadd.f32 0.0, %v4098
    %4100 = vmatmul.f32.gmra.mxu0 %v4037
    %v4101 = vpop.f32.mrf.mxu0
    %v4102 = vadd.f32 0.0, %v4101
    %4103 = vmatmul.f32.gmra.mxu0 %v4040
    %v4104 = vpop.f32.mrf.mxu0
    %v4105 = vadd.f32 0.0, %v4104
    %4106 = vmatmul.f32.gmra.mxu0 %v4043
    %v4107 = vpop.f32.mrf.mxu0
    %v4108 = vadd.f32 0.0, %v4107
    %4109 = vmatmul.f32.gmra.mxu0 %v4046
    %v4110 = vpop.f32.mrf.mxu0
    %v4111 = vadd.f32 0.0, %v4110
    %4112 = vmatmul.f32.gmra.mxu0 %v4049
    %v4113 = vpop.f32.mrf.mxu0
    %v4114 = vadd.f32 0.0, %v4113
    %4115 = vmatmul.f32.gmra.mxu0 %v4052
    %v4116 = vpop.f32.mrf.mxu0
    %v4117 = vadd.f32 0.0, %v4116
    %4118 = vmatmul.f32.gmra.mxu0 %v4055
    %v4119 = vpop.f32.mrf.mxu0
    %v4120 = vadd.f32 0.0, %v4119
    %4121 = vmatmul.f32.gmra.mxu0 %v4058
    %v4122 = vpop.f32.mrf.mxu0
    %v4123 = vadd.f32 0.0, %v4122
    %4124 = vmatmul.f32.gmra.mxu0 %v4061
    %v4125 = vpop.f32.mrf.mxu0
    %v4126 = vadd.f32 0.0, %v4125
    %4127 = vdwg.mxu0
    %v4128 = vld [vmem:[%s7] sm:$0xff]
    %v4130 = vsel %vm4014, %v4081, 0
    %v4133 = vsel %vm4014, %v4084, 0
    %v4136 = vsel %vm4014, %v4087, 0
    %v4139 = vsel %vm4014, %v4090, 0
    %v4142 = vsel %vm4014, %v4093, 0
    %v4145 = vsel %vm4014, %v4096, 0
    %v4148 = vsel %vm4014, %v4099, 0
    %v4151 = vsel %vm4014, %v4102, 0
    %v4154 = vsel %vm4014, %v4105, 0
    %v4157 = vsel %vm4014, %v4108, 0
    %v4160 = vsel %vm4014, %v4111, 0
    %v4163 = vsel %vm4014, %v4114, 0
    %v4166 = vsel %vm4014, %v4117, 0
    %v4169 = vsel %vm4014, %v4120, 0
    %v4172 = vsel %vm4014, %v4123, 0
    %v4175 = vsel %vm4014, %v4126, 0
    %4177 = vmatpush.msra.mxu0 0.0
    %4178 = vmatpush.msra.mxu0 0.0
    %4179 = vmatpush.msra.mxu0 0.0
    %4180 = vmatpush.msra.mxu0 0.0
    %4181 = vmatpush.msra.mxu0 0.0
    %4182 = vmatpush.msra.mxu0 0.0
    %4183 = vmatpush.msra.mxu0 0.0
    %4184 = vmatpush.msra.mxu0 0.0
    %4185 = vmatpush.msra.mxu0 0.0
    %4186 = vmatpush.msra.mxu0 0.0
    %4187 = vmatpush.msra.mxu0 0.0
    %4188 = vmatpush.msra.mxu0 0.0
    %4189 = vmatpush.msra.mxu0 0.0
    %4190 = vmatpush.msra.mxu0 0.0
    %4191 = vmatpush.msra.mxu0 0.0
    %4192 = vmatpush.msra.mxu0 %v4128
    %4193 = vmatmul.f32.gmra.mxu0 %v4130
    %v4194 = vpop.f32.mrf.mxu0
    %v4195 = vadd.f32 0.0, %v4194
    %4196 = vmatmul.f32.gmra.mxu0 %v4133
    %v4197 = vpop.f32.mrf.mxu0
    %v4198 = vadd.f32 0.0, %v4197
    %4199 = vmatmul.f32.gmra.mxu0 %v4136
    %v4200 = vpop.f32.mrf.mxu0
    %v4201 = vadd.f32 0.0, %v4200
    %4202 = vmatmul.f32.gmra.mxu0 %v4139
    %v4203 = vpop.f32.mrf.mxu0
    %v4204 = vadd.f32 0.0, %v4203
    %4205 = vmatmul.f32.gmra.mxu0 %v4142
    %v4206 = vpop.f32.mrf.mxu0
    %v4207 = vadd.f32 0.0, %v4206
    %4208 = vmatmul.f32.gmra.mxu0 %v4145
    %v4209 = vpop.f32.mrf.mxu0
    %v4210 = vadd.f32 0.0, %v4209
    %4211 = vmatmul.f32.gmra.mxu0 %v4148
    %v4212 = vpop.f32.mrf.mxu0
    %v4213 = vadd.f32 0.0, %v4212
    %4214 = vmatmul.f32.gmra.mxu0 %v4151
    %v4215 = vpop.f32.mrf.mxu0
    %v4216 = vadd.f32 0.0, %v4215
    %4217 = vmatmul.f32.gmra.mxu0 %v4154
    %v4218 = vpop.f32.mrf.mxu0
    %v4219 = vadd.f32 0.0, %v4218
    %4220 = vmatmul.f32.gmra.mxu0 %v4157
    %v4221 = vpop.f32.mrf.mxu0
    %v4222 = vadd.f32 0.0, %v4221
    %4223 = vmatmul.f32.gmra.mxu0 %v4160
    %v4224 = vpop.f32.mrf.mxu0
    %v4225 = vadd.f32 0.0, %v4224
    %4226 = vmatmul.f32.gmra.mxu0 %v4163
    %v4227 = vpop.f32.mrf.mxu0
    %v4228 = vadd.f32 0.0, %v4227
    %4229 = vmatmul.f32.gmra.mxu0 %v4166
    %v4230 = vpop.f32.mrf.mxu0
    %v4231 = vadd.f32 0.0, %v4230
    %4232 = vmatmul.f32.gmra.mxu0 %v4169
    %v4233 = vpop.f32.mrf.mxu0
    %v4234 = vadd.f32 0.0, %v4233
    %4235 = vmatmul.f32.gmra.mxu0 %v4172
    %v4236 = vpop.f32.mrf.mxu0
    %v4237 = vadd.f32 0.0, %v4236
    %4238 = vmatmul.f32.gmra.mxu0 %v4175
    %v4239 = vpop.f32.mrf.mxu0
    %v4240 = vadd.f32 0.0, %v4239
    %4241 = vdwg.mxu0
    %v4242 = vld [vmem:[%s4] sm:$0xff]
    %v4243 = vld [vmem:[%s4 + $0x8] sm:$0xff]
    %v4244 = vld [vmem:[%s4 + $0x10] sm:$0xff]
    %v4245 = vld [vmem:[%s4 + $0x18] sm:$0xff]
    %v4246 = vld [vmem:[%s4 + $0x20] sm:$0xff]
    %v4247 = vld [vmem:[%s4 + $0x28] sm:$0xff]
    %v4248 = vld [vmem:[%s4 + $0x30] sm:$0xff]
    %v4249 = vld [vmem:[%s4 + $0x38] sm:$0xff]
    %v4250 = vld [vmem:[%s4 + $0x40] sm:$0xff]
    %v4251 = vld [vmem:[%s4 + $0x48] sm:$0xff]
    %v4252 = vld [vmem:[%s4 + $0x50] sm:$0xff]
    %v4253 = vld [vmem:[%s4 + $0x58] sm:$0xff]
    %v4254 = vld [vmem:[%s4 + $0x60] sm:$0xff]
    %v4255 = vld [vmem:[%s4 + $0x68] sm:$0xff]
    %v4256 = vld [vmem:[%s4 + $0x70] sm:$0xff]
    %v4257 = vld [vmem:[%s4 + $0x78] sm:$0xff]
    %v4258 = vsub.f32 %v4242, %v4195
    %v4259 = vsub.f32 %v4243, %v4198
    %v4260 = vsub.f32 %v4244, %v4201
    %v4261 = vsub.f32 %v4245, %v4204
    %v4262 = vsub.f32 %v4246, %v4207
    %v4263 = vsub.f32 %v4247, %v4210
    %v4264 = vsub.f32 %v4248, %v4213
    %v4265 = vsub.f32 %v4249, %v4216
    %v4266 = vsub.f32 %v4250, %v4219
    %v4267 = vsub.f32 %v4251, %v4222
    %v4268 = vsub.f32 %v4252, %v4225
    %v4269 = vsub.f32 %v4253, %v4228
    %v4270 = vsub.f32 %v4254, %v4231
    %v4271 = vsub.f32 %v4255, %v4234
    %v4272 = vsub.f32 %v4256, %v4237
    %v4273 = vsub.f32 %v4257, %v4240
    %v4274 = vmul.f32 %v4258, %v3981
    %v4275 = vmul.f32 %v4259, %v3982
    %v4276 = vmul.f32 %v4260, %v3983
    %v4277 = vmul.f32 %v4261, %v3984
    %v4278 = vmul.f32 %v4262, %v3985
    %v4279 = vmul.f32 %v4263, %v3986
    %v4280 = vmul.f32 %v4264, %v3987
    %v4281 = vmul.f32 %v4265, %v3988
    %v4282 = vmul.f32 %v4266, %v3989
    %v4283 = vmul.f32 %v4267, %v3990
    %v4284 = vmul.f32 %v4268, %v3991
    %v4285 = vmul.f32 %v4269, %v3992
    %v4286 = vmul.f32 %v4270, %v3993
    %v4287 = vmul.f32 %v4271, %v3994
    %v4288 = vmul.f32 %v4272, %v3995
    %v4289 = vmul.f32 %v4273, %v3996
    %v4290 = vadd.f32 %v3847, %v4274
    %v4291 = vadd.f32 %v3848, %v4275
    %v4292 = vadd.f32 %v3849, %v4276
    %v4293 = vadd.f32 %v3850, %v4277
    %v4294 = vadd.f32 %v3851, %v4278
    %v4295 = vadd.f32 %v3852, %v4279
    %v4296 = vadd.f32 %v3853, %v4280
    %v4297 = vadd.f32 %v3854, %v4281
    %v4298 = vadd.f32 %v3855, %v4282
    %v4299 = vadd.f32 %v3856, %v4283
    %v4300 = vadd.f32 %v3857, %v4284
    %v4301 = vadd.f32 %v3858, %v4285
    %v4302 = vadd.f32 %v3859, %v4286
    %v4303 = vadd.f32 %v3860, %v4287
    %v4304 = vadd.f32 %v3861, %v4288
    %v4305 = vadd.f32 %v3862, %v4289
    %4306 = vst [vmem:[%s8] sm:$0xff] %v4290
    %4307 = vst [vmem:[%s8 + $0x8] sm:$0xff] %v4291
    %4308 = vst [vmem:[%s8 + $0x10] sm:$0xff] %v4292
    %4309 = vst [vmem:[%s8 + $0x18] sm:$0xff] %v4293
    %4310 = vst [vmem:[%s8 + $0x20] sm:$0xff] %v4294
    %4311 = vst [vmem:[%s8 + $0x28] sm:$0xff] %v4295
    %4312 = vst [vmem:[%s8 + $0x30] sm:$0xff] %v4296
    %4313 = vst [vmem:[%s8 + $0x38] sm:$0xff] %v4297
    %4314 = vst [vmem:[%s8 + $0x40] sm:$0xff] %v4298
    %4315 = vst [vmem:[%s8 + $0x48] sm:$0xff] %v4299
    %4316 = vst [vmem:[%s8 + $0x50] sm:$0xff] %v4300
    %4317 = vst [vmem:[%s8 + $0x58] sm:$0xff] %v4301
    %4318 = vst [vmem:[%s8 + $0x60] sm:$0xff] %v4302
    %4319 = vst [vmem:[%s8 + $0x68] sm:$0xff] %v4303
    %4320 = vst [vmem:[%s8 + $0x70] sm:$0xff] %v4304
    %4321 = vst [vmem:[%s8 + $0x78] sm:$0xff] %v4305
    %v4322 = vmax.f32 %v4290, %v4294
    %v4323 = vmax.f32 %v4291, %v4295
    %v4324 = vmax.f32 %v4292, %v4296
    %v4325 = vmax.f32 %v4293, %v4297
    %v4326 = vmax.f32 %v4322, %v4298
    %v4327 = vmax.f32 %v4323, %v4299
    %v4328 = vmax.f32 %v4324, %v4300
    %v4329 = vmax.f32 %v4325, %v4301
    %v4330 = vmax.f32 %v4326, %v4302
    %v4331 = vmax.f32 %v4327, %v4303
    %v4332 = vmax.f32 %v4328, %v4304
    %v4333 = vmax.f32 %v4329, %v4305
    %v4334 = vmax.f32 %v4330, %v4331
    %v4335 = vmax.f32 %v4332, %v4333
    %v4336 = vmax.f32 %v4334, %v4335
    %4337 = vmax.xlane.f32.xlu0 %v4336
    %v4338 = vpop.xlane.xlu0 %4337
    %v4339 = vrot.slane %v4338, 4
    %v4340 = vmax.f32 %v4338, %v4339
    %v4341 = vrot.slane %v4340, 2
    %v4342 = vmax.f32 %v4340, %v4341
    %v4343 = vrot.slane %v4342, 1
    %v4344 = vmax.f32 %v4342, %v4343
    %s4345 = vtos %v4344
    %v4346 = vstv %s4345
    %p4347 = scmp.eq.s32.totalorder 0, 0
    // Predicated region
    $region38: #{_lambda_.36} parent=1 // pred_check
      %p4348 = pneg %p4347
    $region39: #{_lambda_.36} parent=1 // pred_check_branch
      %4350 = sbr.rel (%p4348) target = $region41
    $region40: #{_lambda_.36} parent=1 // pred_region
      %vm4351 = vcmask 0
      %4352 = vst.msk [vmem:[#allocation6] sm:$0x1] %vm4351, %v4346
    $region41: #{_lambda_.36} parent=1 // pred_fallthru
      _
    %p4353 = scmp.gt.s32.totalorder 0, 0
    // Predicated region
    $region42: #{_lambda_.36} parent=1 // pred_check
      %p4354 = pneg %p4353
    $region43: #{_lambda_.36} parent=1 // pred_check_branch
      %4356 = sbr.rel (%p4354) target = $region45
    $region44: #{_lambda_.36} parent=1 // pred_region
      %v4357 = vld [vmem:[#allocation6] sm:$0x1]
      %v4358 = vmax.f32 %v4357, %v4346
      %vm4359 = vcmask 0
      %4360 = vst.msk [vmem:[#allocation6] sm:$0x1] %vm4359, %v4358
    $region45: #{_lambda_.36} parent=1 // pred_fallthru
      _
    // Predicated region
    $region46: #{_lambda_.36} parent=1 // pred_check
      _
    $region47: #{_lambda_.36} parent=1 // pred_check_branch
      %4362 = sbr.rel (0) target = $region49
    $region48: #{_lambda_.36} parent=1 // pred_region
      _
    $region49: #{_lambda_.36} parent=1 // pred_fallthru
      _
    // Predicated region
    $region50: #{_lambda_.36} parent=1 // pred_check
      _
    $region51: #{_lambda_.36} parent=1 // pred_check_branch
      %4364 = sbr.rel (0) target = $region53
    $region52: #{_lambda_.36} parent=1 // pred_region
      %4366 = vsyncadd [#allocation4], 0
      %s4368 = sshll.u32 [#allocation6], 4
      %s4369 = int_to_ptr.vmem [resolvable:$true] %s4368
      %s4370 = sshll.u32 %s9, 4
      %s4371 = int_to_ptr.hbm [resolvable:$true] %s4370
      %4373 = dma.vmem_to_hbm [thread:$0]  %s4369, 16, %s4371, [#allocation4]
    $region53: #{_lambda_.36} parent=1 // pred_fallthru
      _
    // Predicated region
    $region54: #{_lambda_.36} parent=1 // pred_check
      _
    $region55: #{_lambda_.36} parent=1 // pred_check_branch
      %4375 = sbr.rel (0) target = $region57
    $region56: #{_lambda_.36} parent=1 // pred_region
      _
    $region57: #{_lambda_.36} parent=1 // pred_fallthru
      _
    // Predicated region
    $region58: #{_lambda_.36} parent=1 // pred_check
      _
    $region59: #{_lambda_.36} parent=1 // pred_check_branch
      %4377 = sbr.rel (0) target = $region61
    $region60: #{_lambda_.36} parent=1 // pred_region
      %4379 = dma.done [#allocation4], 16
    $region61: #{_lambda_.36} parent=1 // pred_fallthru
      _
    %4380 = vsyncpa [#allocation4], 1
    %4381 = vsyncpa [#allocation5], 1

</llo_original>
